<compile_context>
chip_gen: v7x
topology: tpu7x:2x2x1
jax: 0.10.0
libtpu: 0.0.40
codegen_flags: <defaults>
</compile_context>

<pallas_src>
import functools

import jax
import jax.numpy as jnp
from jax import lax
from jax.experimental import pallas as pl
from jax.experimental.pallas import tpu as pltpu


LANE = 128                       # padded channel width of every node-feature tensor
POSX_LANE, POSY_LANE = 125, 126  # lanes of the packed x tile holding pos_x / pos_y
PALLAS_MIN_N = 64                # below this node count, use plain XLA (launch overhead)
VMEM_LIMIT = 32 * 1024 * 1024    # safe on v5e/v6e (128 MiB) and v7x (64 MiB)


# ---------------------------------------------------------------------------
# small static helpers
# ---------------------------------------------------------------------------
def _ceil_to(x, m):
    return ((x + m - 1) // m) * m


def _tile(n, t_max, *, align=16, min_tiles=1):
    """Pick (tile, padded_total): tile % align == 0, padded_total % tile == 0,
    and (if the problem is big enough) at least `min_tiles` tiles so the
    'parallel' grid axis can be sharded across v7x's two TensorCores."""
    n_a = _ceil_to(max(n, align), align)
    cap = _ceil_to(-(-n_a // min_tiles), align) if min_tiles > 1 else n_a
    t = max(align, min(t_max, cap, n_a))
    return t, _ceil_to(n_a, t)


def _pad_rows(a, n_rows):
    if a.shape[0] == n_rows:
        return a
    return jnp.pad(a, ((0, n_rows - a.shape[0]), (0, 0)))


def _pack_coords(pos, batch, width, height):
    """(N, 8) f32: [pos_x*W, pos_y*H, batch, 0, 0, 0, 0, 0] (used only by the
    trilinear index math; the matmul-visible pos lives inside the packed x)."""
    n = pos.shape[0]
    z = jnp.zeros((n, 5), jnp.float32)
    return jnp.concatenate(
        [(pos[:, 0:1] * width).astype(jnp.float32),
         (pos[:, 1:2] * height).astype(jnp.float32),
         batch.reshape(n, 1).astype(jnp.float32), z], axis=1)


def _pack_x(features, pos):
    """Pack node features + normalized pos into a 128-lane bf16 tile so the
    layer is a single (tn,128)@(128,128) MXU matmul (pos rows folded into W)."""
    n, c = features.shape
    x = features.astype(jnp.float32)
    if c < LANE:
        x = jnp.pad(x, ((0, 0), (0, LANE - c)))
    x = x.at[:, POSX_LANE].set(pos[:, 0]).at[:, POSY_LANE].set(pos[:, 1])
    return x.astype(jnp.bfloat16)


def _trilinear_corners(xs, ys, bb, *, Df, Hf, Wf, width, height, batch_size):
    """Per-node 8 trilinear corners (clipped flat indices + zero-masked weights).
    Matches torch _sample_features + grid_sample(align_corners=True, zeros)."""
    sx = (Wf - 1.0) / max(width - 1.0, 1.0)
    sy = (Hf - 1.0) / max(height - 1.0, 1.0)
    bs = batch_size if batch_size > 1 else 2
    sz = (Df - 1.0) / max(bs - 1.0, 1.0)
    ix = xs * sx
    iy = ys * sy
    iz = bb * sz
    ix0f = jnp.floor(ix); iy0f = jnp.floor(iy); iz0f = jnp.floor(iz)
    wx1 = ix - ix0f; wy1 = iy - iy0f; wz1 = iz - iz0f
    ix0 = ix0f.astype(jnp.int32); iy0 = iy0f.astype(jnp.int32); iz0 = iz0f.astype(jnp.int32)
    idxs, ws = [], []
    for dz in (0, 1):
        for dy in (0, 1):
            for dx in (0, 1):
                zi = iz0 + dz; yi = iy0 + dy; xi = ix0 + dx
                valid = ((zi >= 0) & (zi <= Df - 1) & (yi >= 0) & (yi <= Hf - 1)
                         & (xi >= 0) & (xi <= Wf - 1))
                w = ((wz1 if dz else 1.0 - wz1) * (wy1 if dy else 1.0 - wy1)
                     * (wx1 if dx else 1.0 - wx1))
                w = jnp.where(valid, w, 0.0)
                flat = (jnp.clip(zi, 0, Df - 1) * Hf + jnp.clip(yi, 0, Hf - 1)) * Wf \
                    + jnp.clip(xi, 0, Wf - 1)
                idxs.append(flat)
                ws.append(w)
    return jnp.stack(idxs, axis=1), jnp.stack(ws, axis=1)


def _tile_block_ranges(corner_idx, n, n_pad, tn, tk):
    """Per node-tile [first_block, last_block] of feature rows that can receive
    non-zero trilinear weight; interleaved 1-D int32 for scalar prefetch."""
    lo = corner_idx.min(axis=1)
    hi = corner_idx.max(axis=1)
    pad = n_pad - n
    if pad:
        big = jnp.full((pad,), jnp.int32(2 ** 30))
        lo = jnp.concatenate([lo, big])
        hi = jnp.concatenate([hi, jnp.zeros((pad,), hi.dtype)])
    lo_b = lo.reshape(-1, tn).min(axis=1) // tk
    hi_b = hi.reshape(-1, tn).max(axis=1) // tk
    return jnp.stack([lo_b, hi_b], axis=1).reshape(-1).astype(jnp.int32)


# ---------------------------------------------------------------------------
# Pallas kernel 1: trilinear grid-sample (== `_sample_features` hot path) as a
# sparse-ranged one-hot contraction, optionally fused with the node layer
# (relu(x_packed @ W + sampled @ Ws + b); Ws already folded into feat_proj).
# ---------------------------------------------------------------------------
def _sample_kernel(kinfo_ref, *refs, Df, Hf, Wf, width, height, batch_size, fuse_layer):
    if fuse_layer:
        coords_ref, x_ref, feat_ref, w_ref, b_ref, out_ref, ibase_ref, wcor_ref = refs
    else:
        coords_ref, feat_ref, out_ref, ibase_ref, wcor_ref = refs

    i = pl.program_id(0)
    k = pl.program_id(1)

    @pl.when(k == 0)
    def _init():
        # output init: x@Wx + pos@Wp (folded into packed x / W) + bias, or zeros
        if fuse_layer:
            out_ref[...] = (jnp.dot(x_ref[...], w_ref[...],
                                    preferred_element_type=jnp.float32)
                            + b_ref[...])
        else:
            out_ref[...] = jnp.zeros_like(out_ref)

        # hoisted per-node trilinear corner math, reused across every k step
        c = coords_ref[...]
        xs = c[:, 0:1]; ys = c[:, 1:2]; bb = c[:, 2:3]
        sx = (Wf - 1.0) / max(width - 1.0, 1.0)
        sy = (Hf - 1.0) / max(height - 1.0, 1.0)
        bs = batch_size if batch_size > 1 else 2
        sz = (Df - 1.0) / max(bs - 1.0, 1.0)
        ix = xs * sx; iy = ys * sy; iz = bb * sz
        ix0f = jnp.floor(ix); iy0f = jnp.floor(iy); iz0f = jnp.floor(iz)
        wx1 = ix - ix0f; wx0 = 1.0 - wx1
        wy1 = iy - iy0f; wy0 = 1.0 - wy1
        wz1 = iz - iz0f; wz0 = 1.0 - wz1
        ix0 = ix0f.astype(jnp.int32)
        iy0 = iy0f.astype(jnp.int32)
        iz0 = iz0f.astype(jnp.int32)
        vx0 = (ix0 >= 0) & (ix0 <= Wf - 1)
        vx1 = (ix0 + 1 >= 0) & (ix0 + 1 <= Wf - 1)
        vy0 = (iy0 >= 0) & (iy0 <= Hf - 1)
        vy1 = (iy0 + 1 >= 0) & (iy0 + 1 <= Hf - 1)
        vz0 = (iz0 >= 0) & (iz0 <= Df - 1)
        vz1 = (iz0 + 1 >= 0) & (iz0 + 1 <= Df - 1)
        wx0m = jnp.where(vx0, wx0, 0.0)
        wx1m = jnp.where(vx1, wx1, 0.0)
        w00 = jnp.where(vz0 & vy0, wz0 * wy0, 0.0)
        w01 = jnp.where(vz0 & vy1, wz0 * wy1, 0.0)
        w10 = jnp.where(vz1 & vy0, wz1 * wy0, 0.0)
        w11 = jnp.where(vz1 & vy1, wz1 * wy1, 0.0)
        zb0 = iz0 * (Hf * Wf)
        zb1 = zb0 + Hf * Wf
        yb0 = iy0 * Wf
        yb1 = yb0 + Wf
        b00 = zb0 + yb0 + ix0
        b01 = zb0 + yb1 + ix0
        b10 = zb1 + yb0 + ix0
        b11 = zb1 + yb1 + ix0
        ibase_ref[...] = jnp.concatenate([b00, b01, b10, b11, b00, b01, b10, b11], axis=1)
        wcor_ref[...] = jnp.concatenate(
            [w00 * wx0m, w00 * wx1m, w01 * wx0m, w01 * wx1m,
             w10 * wx0m, w10 * wx1m, w11 * wx0m, w11 * wx1m], axis=1)

    kin = kinfo_ref[2 * i]
    kax = kinfo_ref[2 * i + 1]

    @pl.when((k >= kin) & (k <= kax))
    def _accumulate():
        tn = out_ref.shape[0]
        tkb = feat_ref.shape[0]
        pix = lax.broadcasted_iota(jnp.int32, (tn, tkb), 1) + k * tkb
        wmat = jnp.zeros((tn, tkb), jnp.float32)
        for p in range(4):                      # 4 (z,y) corner rows x 2 x-corners
            bcol = ibase_ref[:, p:p + 1]
            w0 = wcor_ref[:, 2 * p:2 * p + 1]
            w1 = wcor_ref[:, 2 * p + 1:2 * p + 2]
            wmat = wmat + jnp.where(pix == bcol, w0,
                                    jnp.where(pix == bcol + 1, w1, 0.0))
        # bf16 MXU contraction against the pre-projected feature slab, f32 acc.
        out_ref[...] += jnp.dot(wmat.astype(jnp.bfloat16), feat_ref[...],
                                preferred_element_type=jnp.float32)

    if fuse_layer:
        @pl.when(k == pl.num_programs(1) - 1)
        def _finish():
            out_ref[...] = jnp.maximum(out_ref[...], 0.0)


def sample_projected(coords, feat_proj, x_packed=None, w=None, b=None, *,
                     Df, Hf, Wf, width, height, batch_size,
                     tn_max=512, tk_max=512):
    """sampled_features @ Ws, where feat_proj = image_feat @ Ws (bf16, 128-lane).
    If x_packed/w/b are given the whole node layer is fused:
    relu(x_packed @ W + sampled @ Ws + b)."""
    fuse = x_packed is not None
    n = coords.shape[0]
    dhw = feat_proj.shape[0]

    if n < PALLAS_MIN_N:
        # tiny node counts (deep stages): pure-XLA gather, no pallas launch.
        idx, cw = _trilinear_corners(coords[:, 0], coords[:, 1], coords[:, 2],
                                     Df=Df, Hf=Hf, Wf=Wf, width=width,
                                     height=height, batch_size=batch_size)
        g = feat_proj[idx].astype(jnp.float32)                 # (n, 8, LANE)
        sampled = (g * cw[:, :, None]).sum(axis=1)
        if not fuse:
            return sampled
        y = jnp.dot(x_packed, w, preferred_element_type=jnp.float32) + b + sampled
        return jnp.maximum(y, 0.0)

    tn, n_pad = _tile(n, tn_max, min_tiles=2)
    tk, dhw_pad = _tile(dhw, tk_max, min_tiles=1)
    n_tiles = n_pad // tn
    k_tiles = dhw_pad // tk

    coords_p = _pad_rows(coords.astype(jnp.float32), n_pad)
    feat_p = _pad_rows(feat_proj, dhw_pad)

    # scalar-prefetched per-tile [first, last] active feature-row block
    idx, _ = _trilinear_corners(coords[:, 0], coords[:, 1], coords[:, 2],
                                Df=Df, Hf=Hf, Wf=Wf, width=width,
                                height=height, batch_size=batch_size)
    kinfo = _tile_block_ranges(idx, n, n_pad, tn, tk)

    args = [kinfo, coords_p]
    in_specs = [pl.BlockSpec((tn, 8), lambda i, k, info: (i, 0))]
    if fuse:
        args.append(_pad_rows(x_packed, n_pad))
        in_specs.append(pl.BlockSpec((tn, LANE), lambda i, k, info: (i, 0)))
    args.append(feat_p)
    in_specs.append(pl.BlockSpec(
        (tk, LANE),
        lambda i, k, info: (jnp.minimum(jnp.maximum(k, info[2 * i]), info[2 * i + 1]), 0)))
    if fuse:
        args += [w, b.reshape(1, LANE)]
        in_specs += [pl.BlockSpec((LANE, LANE), lambda i, k, info: (0, 0)),
                     pl.BlockSpec((1, LANE), lambda i, k, info: (0, 0))]

    kernel = functools.partial(
        _sample_kernel, Df=int(Df), Hf=int(Hf), Wf=int(Wf),
        width=float(width), height=float(height), batch_size=int(batch_size),
        fuse_layer=fuse)

    out = pl.pallas_call(
        kernel,
        out_shape=jax.ShapeDtypeStruct((n_pad, LANE), jnp.float32),
        grid_spec=pltpu.PrefetchScalarGridSpec(
            num_scalar_prefetch=1,
            grid=(n_tiles, k_tiles),
            in_specs=in_specs,
            out_specs=pl.BlockSpec((tn, LANE), lambda i, k, info: (i, 0)),
            scratch_shapes=[pltpu.VMEM((tn, 8), jnp.int32),
                            pltpu.VMEM((tn, 8), jnp.float32)]),
        compiler_params=pltpu.CompilerParams(
            dimension_semantics=("parallel", "arbitrary"),
            vmem_limit_bytes=VMEM_LIMIT),
    )(*args)
    return out[:n]


# ---------------------------------------------------------------------------
# Pallas kernel 2: node-wise layer  y = relu(x_packed @ W [+ skip] + b),
# single bf16 MXU matmul per node tile (pos rows folded into W).
# ---------------------------------------------------------------------------
def _layer_kernel(*refs, has_skip):
    if has_skip:
        x_ref, skip_ref, w_ref, b_ref, out_ref = refs
    else:
        x_ref, w_ref, b_ref, out_ref = refs
    y = jnp.dot(x_ref[...], w_ref[...], preferred_element_type=jnp.float32) + b_ref[...]
    if has_skip:
        y = y + skip_ref[...].astype(jnp.float32)
    out_ref[...] = jnp.maximum(y, 0.0)


def node_layer(x_packed, w, b, skip=None, *, tn_max=1024):
    n = x_packed.shape[0]
    if n < PALLAS_MIN_N:
        # deep stages with a handful of nodes: leave to XLA (launch overhead).
        y = jnp.dot(x_packed, w, preferred_element_type=jnp.float32) + b
        if skip is not None:
            y = y + skip.astype(jnp.float32)
        return jnp.maximum(y, 0.0)

    tn, n_pad = _tile(n, tn_max, min_tiles=2)
    args = [_pad_rows(x_packed, n_pad)]
    in_specs = [pl.BlockSpec((tn, LANE), lambda i: (i, 0))]
    if skip is not None:
        args.append(_pad_rows(skip.astype(jnp.bfloat16), n_pad))
        in_specs.append(pl.BlockSpec((tn, LANE), lambda i: (i, 0)))
    args += [w, b.reshape(1, LANE)]
    in_specs += [pl.BlockSpec((LANE, LANE), lambda i: (0, 0)),
                 pl.BlockSpec((1, LANE), lambda i: (0, 0))]

    out = pl.pallas_call(
        functools.partial(_layer_kernel, has_skip=skip is not None),
        out_shape=jax.ShapeDtypeStruct((n_pad, LANE), jnp.float32),
        grid=(n_pad // tn,),
        in_specs=in_specs,
        out_specs=pl.BlockSpec((tn, LANE), lambda i: (i, 0)),
        compiler_params=pltpu.CompilerParams(
            dimension_semantics=("parallel",),
            vmem_limit_bytes=VMEM_LIMIT),
    )(*args)
    return out[:n]


# ---------------------------------------------------------------------------
# Glue (plain JAX): pooling stand-in, image pyramid stand-in.
# ---------------------------------------------------------------------------
def voxel_mean_pool(feats, pos, batch, num_batches, grid_size):
    # TODO(synk): real `Pooling` keeps only non-empty voxels (dynamic shapes) and
    #             applies a per-pool Cartesian transform; static full-grid mean pool here.
    g = int(grid_size)
    vx = jnp.clip(jnp.floor(pos[:, 0] * g).astype(jnp.int32), 0, g - 1)
    vy = jnp.clip(jnp.floor(pos[:, 1] * g).astype(jnp.int32), 0, g - 1)
    vid = batch.astype(jnp.int32) * (g * g) + vy * g + vx
    m = num_batches * g * g
    cnt = jnp.maximum(
        jax.ops.segment_sum(jnp.ones((pos.shape[0],), jnp.float32), vid, num_segments=m),
        1.0)[:, None]
    pooled = [jax.ops.segment_sum(f.astype(jnp.float32), vid, num_segments=m) / cnt
              for f in feats]
    p_mean = jax.ops.segment_sum(pos, vid, num_segments=m) / cnt
    vids = jnp.arange(m)
    b_new = (vids // (g * g)).astype(jnp.float32)
    rem = vids % (g * g)
    cx = (rem % g).astype(jnp.float32)
    cy = (rem // g).astype(jnp.float32)
    pos_new = jnp.stack([(cx + 0.5) / g, (cy + 0.5) / g, p_mean[:, 2]], axis=1)
    return pooled, pos_new, b_new


def avg_pool_nchw(img, f):
    b, c, h, w = img.shape
    return img.reshape(b, c, h // f, f, w // f, f).mean(axis=(3, 5))


class EVRGBGNNBackbonePallas:
    """JAX/Pallas re-implementation of EVRGBGNNBackbone's forward pass."""

    def __init__(self, key, height, width, base_width=0.25, after_pool_width=0.25,
                 net_stem_width=0.25, num_scales=2, use_image=True, radius=0.01,
                 batch_size=2):
        self.height, self.width = height, width
        self.num_scales = num_scales
        self.use_image = use_image
        self.batch_size = batch_size

        channels = [1, int(base_width * 32), int(after_pool_width * 64),
                    int(net_stem_width * 128), int(net_stem_width * 128),
                    int(net_stem_width * 128)]
        self.x_in_channels = channels[:-1]
        self.feature_channels = channels[1:]
        self.out_channels_real = channels[1:]
        self.out_channels = self.out_channels_real[-2:]
        self.effective_radius = 2.0 * float(int(radius * width + 2) / width)

        # TODO(synk): compute_pooling_at_each_layer not provided; fixed voxel grids.
        self.pool_grids = [8, 4, 2, 1]
        self.factors = [2, 4, 8, 16, 32]     # feature-map strides of the image pyramid

        keys = iter(jax.random.split(key, 16))

        def init_w(k, cin, cout):
            return jax.random.normal(k, (cin, cout), jnp.float32) / jnp.sqrt(float(cin))

        # TODO(synk): `Layer` (cfg.conv graph conv) definition not in the provided
        #             source; node-wise linear+ReLU stand-in (weights split into
        #             x / sampled-image / pos parts so sampling+concat+linear fuse,
        #             pos rows folded into the 128x128 main weight).
        # TODO(synk): HookModule(ResNet) not reproducible from the snippet; the image
        #             pyramid is avg-pool per stride + a 1x1-conv head (left to XLA).
        self.w_main, self.b, self.ws = [], [], []
        self.head_w, self.head_b = [], []
        for i in range(5):
            cin_x = self.x_in_channels[i]
            cf = self.feature_channels[i]
            cout = self.out_channels_real[i]
            cin_real = cin_x + (cf if use_image else 0) + 2
            w_full = init_w(next(keys), cin_real, cout)
            w_x = w_full[:cin_x]
            off = cin_x
            if use_image:
                self.ws.append(w_full[off:off + cf])
                off += cf
            w_p = w_full[off:off + 2]
            wm = jnp.zeros((LANE, LANE), jnp.float32)
            wm = wm.at[:cin_x, :cout].set(w_x)
            wm = wm.at[POSX_LANE, :cout].set(w_p[0])
            wm = wm.at[POSY_LANE, :cout].set(w_p[1])
            self.w_main.append(wm.astype(jnp.bfloat16))
            self.b.append(jnp.zeros((LANE,), jnp.float32))
            self.head_w.append(init_w(next(keys), 3, cf))
            self.head_b.append(jnp.zeros((cf,), jnp.float32))

    def _image_feat_projections(self, image):
        """Per scale: flattened image features pre-projected by the layer's
        sampled-feature weight -> (D*Hf*Wf, 128) bf16 plus the (D, Hf, Wf) geometry."""
        projs = []
        for s, f in enumerate(self.factors):
            xi = avg_pool_nchw(image, f)                              # (B, 3, h, w)
            b, ci, hh, ww = xi.shape
            flat = jnp.transpose(xi, (0, 2, 3, 1)).reshape(b * hh * ww, ci)
            feat = jnp.maximum(flat @ self.head_w[s] + self.head_b[s], 0.0)   # 1x1 head (XLA)
            proj = feat @ self.ws[s]                                  # fold layer weight
            proj = jnp.pad(proj, ((0, 0), (0, LANE - proj.shape[1])))
            projs.append((proj.astype(jnp.bfloat16), (b, hh, ww)))
        return projs

    def forward(self, x, pos, batch, image=None):
        h, w = self.height, self.width

        # TODO(synk): EV_TGN radius-graph + Cartesian edge_attr feed the graph conv
        #             in the original; the node-wise stand-in does not use edges.

        use_image = self.use_image and image is not None
        projs = self._image_feat_projections(image) if use_image else None

        pos_cur = pos.astype(jnp.float32)
        batch_cur = batch.astype(jnp.float32)
        coords = _pack_coords(pos_cur, batch_cur, w, h)
        x_packed = _pack_x(x.astype(jnp.float32), pos_cur)

        # conv_block1: sampling_skip(feat[0]) + cat(pos2) + layer, fully fused.
        if use_image:
            proj0, (d0, h0, w0) = projs[0]
            x_cur = sample_projected(coords, proj0, x_packed=x_packed,
                                     w=self.w_main[0], b=self.b[0],
                                     Df=d0, Hf=h0, Wf=w0, width=w, height=h,
                                     batch_size=d0)
        else:
            x_cur = node_layer(x_packed, self.w_main[0], self.b[0])

        outputs = []
        for s in range(1, 5):                     # pool1..4 / layer2..5
            skip_pre = None
            if use_image:
                # sampling_skip(feat[s]) at PRE-pool positions, already projected by Ws
                proj_s, (ds, hs, ws_) = projs[s]
                skip_pre = sample_projected(coords, proj_s, Df=ds, Hf=hs, Wf=ws_,
                                            width=w, height=h, batch_size=ds)
            feats_to_pool = (x_cur, skip_pre) if use_image else (x_cur,)
            pooled, pos_cur, batch_cur = voxel_mean_pool(
                feats_to_pool, pos_cur, batch_cur, self.batch_size, self.pool_grids[s - 1])
            coords = _pack_coords(pos_cur, batch_cur, w, h)
            x_packed = _pack_x(pooled[0], pos_cur)
            skip_pooled = pooled[1] if use_image else None
            x_cur = node_layer(x_packed, self.w_main[s], self.b[s], skip=skip_pooled)
            if s >= 3:                            # out3 (layer4), out4 (layer5)
                outputs.append({"x": x_cur[:, :self.out_channels_real[s]],
                                "pos": pos_cur, "batch": batch_cur})
        return outputs[-self.num_scales:]


if __name__ == "__main__":
    key = jax.random.PRNGKey(0)
    k_img, k_pos, k_pol, k_params = jax.random.split(key, 4)

    B, H, W = 2, 32, 32
    N = 384                                       # not a tile multiple: exercises padding
    image = jax.random.normal(k_img, (B, 3, H, W), jnp.float32)
    pos_xy = jax.random.uniform(k_pos, (N, 2), jnp.float32)
    t = jnp.linspace(0.0, 1.0, N, dtype=jnp.float32).reshape(N, 1)
    pos = jnp.concatenate([pos_xy, t], axis=1)    # (N, 3) = (x, y, t) in [0, 1]
    batch = jnp.concatenate([jnp.zeros(N // 2, jnp.int32),
                             jnp.ones(N - N // 2, jnp.int32)])
    polarity = jnp.where(jax.random.uniform(k_pol, (N, 1)) > 0.5, 1.0, -1.0
                         ).astype(jnp.float32)    # event features (1 channel)

    model = EVRGBGNNBackbonePallas(k_params, height=H, width=W, batch_size=B)
    outs = model.forward(polarity, pos, batch, image)
    for o in outs:
        jax.block_until_ready(o["x"])
    print("KERNEL_OK")
</pallas_src>

<mosaic_0001>
module attributes {stable_mosaic.version = 11 : i64} {
  func.func @_sample_kernel(%arg0: i32, %arg1: i32, %arg2: memref<4xi32, #tpu.memory_space<smem>>, %arg3: memref<192x8xf32, #tpu.memory_space<vmem>>, %arg4: memref<192x128xbf16, #tpu.memory_space<vmem>>, %arg5: memref<512x128xbf16, #tpu.memory_space<vmem>>, %arg6: memref<128x128xbf16, #tpu.memory_space<vmem>>, %arg7: memref<1x128xf32, #tpu.memory_space<vmem>>, %arg8: memref<192x128xf32, #tpu.memory_space<vmem>>, %arg9: memref<192x8xi32, #tpu.memory_space<vmem>>, %arg10: memref<192x8xf32, #tpu.memory_space<vmem>>) attributes {dimension_semantics = [#tpu.dimension_semantics<parallel>, #tpu.dimension_semantics<arbitrary>], iteration_bounds = array<i64: 2, 1>, scalar_prefetch = 1 : i64, scratch_operands = 2 : i64, tpu.core_type = #tpu.core_type<tc>, window_params = [{transform_indices = @transform_0, window_bounds = array<i64: 192, 8>}, {transform_indices = @transform_1, window_bounds = array<i64: 192, 128>}, {transform_indices = @transform_2, window_bounds = array<i64: 512, 128>}, {pipeline_mode = #tpu.pipeline_mode<synchronous>, transform_indices = @transform_3, window_bounds = array<i64: 128, 128>}, {pipeline_mode = #tpu.pipeline_mode<synchronous>, transform_indices = @transform_4, window_bounds = array<i64: 1, 128>}, {transform_indices = @transform_5, window_bounds = array<i64: 192, 128>}]} {
    %c0_i32 = arith.constant 0 : i32
    %0 = arith.cmpi eq, %arg1, %c0_i32 : i32
    %1 = arith.extui %0 : i1 to i32
    %c0_i32_0 = arith.constant 0 : i32
    %2 = arith.cmpi ne, %1, %c0_i32_0 : i32
    scf.if %2 {
      %c0 = arith.constant 0 : index
      %c0_5 = arith.constant 0 : index
      %18 = vector.load %arg4[%c0, %c0_5] : memref<192x128xbf16, #tpu.memory_space<vmem>>, vector<192x128xbf16>
      %c0_6 = arith.constant 0 : index
      %c0_7 = arith.constant 0 : index
      %19 = vector.load %arg6[%c0_6, %c0_7] : memref<128x128xbf16, #tpu.memory_space<vmem>>, vector<128x128xbf16>
      %cst = arith.constant dense<0.000000e+00> : vector<192x128xf32>
      %20 = tpu.matmul %18, %19, %cst {dimension_numbers = #tpu.dot_dimension_numbers<[1], [0], [0], [1], [0, 0, 1, 1], [], []>} : vector<192x128xbf16>, vector<128x128xbf16>, vector<192x128xf32> -> vector<192x128xf32>
      %c0_8 = arith.constant 0 : index
      %c0_9 = arith.constant 0 : index
      %21 = vector.load %arg7[%c0_8, %c0_9] : memref<1x128xf32, #tpu.memory_space<vmem>>, vector<1x128xf32>
      %22 = vector.broadcast %21 : vector<1x128xf32> to vector<192x128xf32>
      %23 = arith.addf %20, %22 : vector<192x128xf32>
      %c0_10 = arith.constant 0 : index
      %c0_11 = arith.constant 0 : index
      %24 = vector.load %arg8[%c0_10, %c0_11] : memref<192x128xf32, #tpu.memory_space<vmem>>, vector<192x128xf32>
      tpu.vector_store %arg8[%c0_10, %c0_11], %23 {strides = array<i32>} : memref<192x128xf32, #tpu.memory_space<vmem>>, vector<192x128xf32>,
      %c0_12 = arith.constant 0 : index
      %c0_13 = arith.constant 0 : index
      %25 = vector.load %arg3[%c0_12, %c0_13] : memref<192x8xf32, #tpu.memory_space<vmem>>, vector<192x8xf32>
      %26 = vector.extract_strided_slice %25 {offsets = [0, 0], sizes = [192, 1], strides = [1, 1]} : vector<192x8xf32> to vector<192x1xf32>
      %27 = vector.extract_strided_slice %25 {offsets = [0, 1], sizes = [192, 1], strides = [1, 1]} : vector<192x8xf32> to vector<192x1xf32>
      %28 = vector.extract_strided_slice %25 {offsets = [0, 2], sizes = [192, 1], strides = [1, 1]} : vector<192x8xf32> to vector<192x1xf32>
      %cst_14 = arith.constant 0.483870953 : f32
      %29 = vector.broadcast %cst_14 : f32 to vector<192x1xf32>
      %30 = arith.mulf %26, %29 : vector<192x1xf32>
      %cst_15 = arith.constant 0.483870953 : f32
      %31 = vector.broadcast %cst_15 : f32 to vector<192x1xf32>
      %32 = arith.mulf %27, %31 : vector<192x1xf32>
      %cst_16 = arith.constant 1.000000e+00 : f32
      %33 = vector.broadcast %cst_16 : f32 to vector<192x1xf32>
      %34 = arith.mulf %28, %33 : vector<192x1xf32>
      %35 = math.floor %30 : vector<192x1xf32>
      %36 = math.floor %32 : vector<192x1xf32>
      %37 = math.floor %34 : vector<192x1xf32>
      %38 = arith.subf %30, %35 : vector<192x1xf32>
      %cst_17 = arith.constant 1.000000e+00 : f32
      %39 = vector.broadcast %cst_17 : f32 to vector<192x1xf32>
      %40 = arith.subf %39, %38 : vector<192x1xf32>
      %41 = arith.subf %32, %36 : vector<192x1xf32>
      %cst_18 = arith.constant 1.000000e+00 : f32
      %42 = vector.broadcast %cst_18 : f32 to vector<192x1xf32>
      %43 = arith.subf %42, %41 : vector<192x1xf32>
      %44 = arith.subf %34, %37 : vector<192x1xf32>
      %cst_19 = arith.constant 1.000000e+00 : f32
      %45 = vector.broadcast %cst_19 : f32 to vector<192x1xf32>
      %46 = arith.subf %45, %44 : vector<192x1xf32>
      %47 = arith.fptosi %35 : vector<192x1xf32> to vector<192x1xi32>
      %48 = arith.fptosi %36 : vector<192x1xf32> to vector<192x1xi32>
      %49 = arith.fptosi %37 : vector<192x1xf32> to vector<192x1xi32>
      %c0_i32_20 = arith.constant 0 : i32
      %50 = vector.broadcast %c0_i32_20 : i32 to vector<192x1xi32>
      %51 = arith.cmpi sge, %47, %50 : vector<192x1xi32>
      %c15_i32 = arith.constant 15 : i32
      %52 = vector.broadcast %c15_i32 : i32 to vector<192x1xi32>
      %53 = arith.cmpi sle, %47, %52 : vector<192x1xi32>
      %54 = arith.andi %51, %53 : vector<192x1xi1>
      %c1_i32_21 = arith.constant 1 : i32
      %55 = vector.broadcast %c1_i32_21 : i32 to vector<192x1xi32>
      %56 = arith.addi %47, %55 : vector<192x1xi32>
      %c0_i32_22 = arith.constant 0 : i32
      %57 = vector.broadcast %c0_i32_22 : i32 to vector<192x1xi32>
      %58 = arith.cmpi sge, %56, %57 : vector<192x1xi32>
      %c1_i32_23 = arith.constant 1 : i32
      %59 = vector.broadcast %c1_i32_23 : i32 to vector<192x1xi32>
      %60 = arith.addi %47, %59 : vector<192x1xi32>
      %c15_i32_24 = arith.constant 15 : i32
      %61 = vector.broadcast %c15_i32_24 : i32 to vector<192x1xi32>
      %62 = arith.cmpi sle, %60, %61 : vector<192x1xi32>
      %63 = arith.andi %58, %62 : vector<192x1xi1>
      %c0_i32_25 = arith.constant 0 : i32
      %64 = vector.broadcast %c0_i32_25 : i32 to vector<192x1xi32>
      %65 = arith.cmpi sge, %48, %64 : vector<192x1xi32>
      %c15_i32_26 = arith.constant 15 : i32
      %66 = vector.broadcast %c15_i32_26 : i32 to vector<192x1xi32>
      %67 = arith.cmpi sle, %48, %66 : vector<192x1xi32>
      %68 = arith.andi %65, %67 : vector<192x1xi1>
      %c1_i32_27 = arith.constant 1 : i32
      %69 = vector.broadcast %c1_i32_27 : i32 to vector<192x1xi32>
      %70 = arith.addi %48, %69 : vector<192x1xi32>
      %c0_i32_28 = arith.constant 0 : i32
      %71 = vector.broadcast %c0_i32_28 : i32 to vector<192x1xi32>
      %72 = arith.cmpi sge, %70, %71 : vector<192x1xi32>
      %c1_i32_29 = arith.constant 1 : i32
      %73 = vector.broadcast %c1_i32_29 : i32 to vector<192x1xi32>
      %74 = arith.addi %48, %73 : vector<192x1xi32>
      %c15_i32_30 = arith.constant 15 : i32
      %75 = vector.broadcast %c15_i32_30 : i32 to vector<192x1xi32>
      %76 = arith.cmpi sle, %74, %75 : vector<192x1xi32>
      %77 = arith.andi %72, %76 : vector<192x1xi1>
      %c0_i32_31 = arith.constant 0 : i32
      %78 = vector.broadcast %c0_i32_31 : i32 to vector<192x1xi32>
      %79 = arith.cmpi sge, %49, %78 : vector<192x1xi32>
      %c1_i32_32 = arith.constant 1 : i32
      %80 = vector.broadcast %c1_i32_32 : i32 to vector<192x1xi32>
      %81 = arith.cmpi sle, %49, %80 : vector<192x1xi32>
      %82 = arith.andi %79, %81 : vector<192x1xi1>
      %c1_i32_33 = arith.constant 1 : i32
      %83 = vector.broadcast %c1_i32_33 : i32 to vector<192x1xi32>
      %84 = arith.addi %49, %83 : vector<192x1xi32>
      %c0_i32_34 = arith.constant 0 : i32
      %85 = vector.broadcast %c0_i32_34 : i32 to vector<192x1xi32>
      %86 = arith.cmpi sge, %84, %85 : vector<192x1xi32>
      %c1_i32_35 = arith.constant 1 : i32
      %87 = vector.broadcast %c1_i32_35 : i32 to vector<192x1xi32>
      %88 = arith.addi %49, %87 : vector<192x1xi32>
      %c1_i32_36 = arith.constant 1 : i32
      %89 = vector.broadcast %c1_i32_36 : i32 to vector<192x1xi32>
      %90 = arith.cmpi sle, %88, %89 : vector<192x1xi32>
      %91 = arith.andi %86, %90 : vector<192x1xi1>
      %cst_37 = arith.constant 0.000000e+00 : f32
      %92 = vector.broadcast %cst_37 : f32 to vector<192x1xf32>
      %93 = arith.select %54, %40, %92 : vector<192x1xi1>, vector<192x1xf32>
      %cst_38 = arith.constant 0.000000e+00 : f32
      %94 = vector.broadcast %cst_38 : f32 to vector<192x1xf32>
      %95 = arith.select %63, %38, %94 : vector<192x1xi1>, vector<192x1xf32>
      %96 = arith.andi %82, %68 : vector<192x1xi1>
      %97 = arith.mulf %46, %43 : vector<192x1xf32>
      %cst_39 = arith.constant 0.000000e+00 : f32
      %98 = vector.broadcast %cst_39 : f32 to vector<192x1xf32>
      %99 = arith.select %96, %97, %98 : vector<192x1xi1>, vector<192x1xf32>
      %100 = arith.andi %82, %77 : vector<192x1xi1>
      %101 = arith.mulf %46, %41 : vector<192x1xf32>
      %cst_40 = arith.constant 0.000000e+00 : f32
      %102 = vector.broadcast %cst_40 : f32 to vector<192x1xf32>
      %103 = arith.select %100, %101, %102 : vector<192x1xi1>, vector<192x1xf32>
      %104 = arith.andi %91, %68 : vector<192x1xi1>
      %105 = arith.mulf %44, %43 : vector<192x1xf32>
      %cst_41 = arith.constant 0.000000e+00 : f32
      %106 = vector.broadcast %cst_41 : f32 to vector<192x1xf32>
      %107 = arith.select %104, %105, %106 : vector<192x1xi1>, vector<192x1xf32>
      %108 = arith.andi %91, %77 : vector<192x1xi1>
      %109 = arith.mulf %44, %41 : vector<192x1xf32>
      %cst_42 = arith.constant 0.000000e+00 : f32
      %110 = vector.broadcast %cst_42 : f32 to vector<192x1xf32>
      %111 = arith.select %108, %109, %110 : vector<192x1xi1>, vector<192x1xf32>
      %c256_i32 = arith.constant 256 : i32
      %112 = vector.broadcast %c256_i32 : i32 to vector<192x1xi32>
      %113 = arith.muli %49, %112 : vector<192x1xi32>
      %c256_i32_43 = arith.constant 256 : i32
      %114 = vector.broadcast %c256_i32_43 : i32 to vector<192x1xi32>
      %115 = arith.addi %113, %114 : vector<192x1xi32>
      %c16_i32 = arith.constant 16 : i32
      %116 = vector.broadcast %c16_i32 : i32 to vector<192x1xi32>
      %117 = arith.muli %48, %116 : vector<192x1xi32>
      %c16_i32_44 = arith.constant 16 : i32
      %118 = vector.broadcast %c16_i32_44 : i32 to vector<192x1xi32>
      %119 = arith.addi %117, %118 : vector<192x1xi32>
      %120 = arith.addi %113, %117 : vector<192x1xi32>
      %121 = arith.addi %120, %47 : vector<192x1xi32>
      %122 = arith.addi %113, %119 : vector<192x1xi32>
      %123 = arith.addi %122, %47 : vector<192x1xi32>
      %124 = arith.addi %115, %117 : vector<192x1xi32>
      %125 = arith.addi %124, %47 : vector<192x1xi32>
      %126 = arith.addi %115, %119 : vector<192x1xi32>
      %127 = arith.addi %126, %47 : vector<192x1xi32>
      %128 = tpu.concatenate %121, %123, %125, %127, %121, %123, %125, %127 in 1 : vector<192x1xi32>, vector<192x1xi32>, vector<192x1xi32>, vector<192x1xi32>, vector<192x1xi32>, vector<192x1xi32>, vector<192x1xi32>, vector<192x1xi32> -> vector<192x8xi32>
      %c0_45 = arith.constant 0 : index
      %c0_46 = arith.constant 0 : index
      %129 = vector.load %arg9[%c0_45, %c0_46] : memref<192x8xi32, #tpu.memory_space<vmem>>, vector<192x8xi32>
      tpu.vector_store %arg9[%c0_45, %c0_46], %128 {strides = array<i32>} : memref<192x8xi32, #tpu.memory_space<vmem>>, vector<192x8xi32>,
      %130 = arith.mulf %99, %93 : vector<192x1xf32>
      %131 = arith.mulf %99, %95 : vector<192x1xf32>
      %132 = arith.mulf %103, %93 : vector<192x1xf32>
      %133 = arith.mulf %103, %95 : vector<192x1xf32>
      %134 = arith.mulf %107, %93 : vector<192x1xf32>
      %135 = arith.mulf %107, %95 : vector<192x1xf32>
      %136 = arith.mulf %111, %93 : vector<192x1xf32>
      %137 = arith.mulf %111, %95 : vector<192x1xf32>
      %138 = tpu.concatenate %130, %131, %132, %133, %134, %135, %136, %137 in 1 : vector<192x1xf32>, vector<192x1xf32>, vector<192x1xf32>, vector<192x1xf32>, vector<192x1xf32>, vector<192x1xf32>, vector<192x1xf32>, vector<192x1xf32> -> vector<192x8xf32>
      %c0_47 = arith.constant 0 : index
      %c0_48 = arith.constant 0 : index
      %139 = vector.load %arg10[%c0_47, %c0_48] : memref<192x8xf32, #tpu.memory_space<vmem>>, vector<192x8xf32>
      tpu.vector_store %arg10[%c0_47, %c0_48], %138 {strides = array<i32>} : memref<192x8xf32, #tpu.memory_space<vmem>>, vector<192x8xf32>,
    } else {
    }
    %c2_i32 = arith.constant 2 : i32
    %3 = arith.muli %c2_i32, %arg0 : i32
    %4 = arith.index_cast %3 : i32 to index
    %5 = memref.load %arg2[%4] : memref<4xi32, #tpu.memory_space<smem>>
    %c2_i32_1 = arith.constant 2 : i32
    %6 = arith.muli %c2_i32_1, %arg0 : i32
    %c1_i32 = arith.constant 1 : i32
    %7 = arith.addi %6, %c1_i32 : i32
    %8 = arith.index_cast %7 : i32 to index
    %9 = memref.load %arg2[%8] : memref<4xi32, #tpu.memory_space<smem>>
    %10 = arith.cmpi sge, %arg1, %5 : i32
    %11 = arith.cmpi sle, %arg1, %9 : i32
    %12 = arith.andi %10, %11 : i1
    %13 = arith.extui %12 : i1 to i32
    %c0_i32_2 = arith.constant 0 : i32
    %14 = arith.cmpi ne, %13, %c0_i32_2 : i32
    scf.if %14 {
      %18 = tpu.iota {dimensions = array<i32: 1>} : vector<192x512xi32>
      %c512_i32 = arith.constant 512 : i32
      %19 = arith.muli %arg1, %c512_i32 : i32
      %20 = vector.broadcast %19 : i32 to vector<192x512xi32>
      %21 = arith.addi %18, %20 : vector<192x512xi32>
      %cst = arith.constant 0.000000e+00 : f32
      %22 = vector.broadcast %cst : f32 to vector<192x512xf32>
      %c0 = arith.constant 0 : index
      %c0_5 = arith.constant 0 : index
      %23 = vector.load %arg9[%c0, %c0_5] : memref<192x8xi32, #tpu.memory_space<vmem>>, vector<192x1xi32>
      %c0_6 = arith.constant 0 : index
      %c0_7 = arith.constant 0 : index
      %24 = vector.load %arg10[%c0_6, %c0_7] : memref<192x8xf32, #tpu.memory_space<vmem>>, vector<192x1xf32>
      %c0_8 = arith.constant 0 : index
      %c1 = arith.constant 1 : index
      %25 = vector.load %arg10[%c0_8, %c1] : memref<192x8xf32, #tpu.memory_space<vmem>>, vector<192x1xf32>
      %26 = vector.broadcast %23 : vector<192x1xi32> to vector<192x512xi32>
      %27 = arith.cmpi eq, %21, %26 : vector<192x512xi32>
      %c1_i32_9 = arith.constant 1 : i32
      %28 = vector.broadcast %c1_i32_9 : i32 to vector<192x1xi32>
      %29 = arith.addi %23, %28 : vector<192x1xi32>
      %30 = vector.broadcast %29 : vector<192x1xi32> to vector<192x512xi32>
      %31 = arith.cmpi eq, %21, %30 : vector<192x512xi32>
      %cst_10 = arith.constant 0.000000e+00 : f32
      %32 = vector.shape_cast %25 : vector<192x1xf32> to vector<192x1xf32>
      %33 = vector.broadcast %32 : vector<192x1xf32> to vector<192x512xf32>
      %34 = vector.broadcast %cst_10 : f32 to vector<192x512xf32>
      %35 = arith.select %31, %33, %34 : vector<192x512xi1>, vector<192x512xf32>
      %36 = vector.shape_cast %24 : vector<192x1xf32> to vector<192x1xf32>
      %37 = vector.broadcast %36 : vector<192x1xf32> to vector<192x512xf32>
      %38 = arith.select %27, %37, %35 : vector<192x512xi1>, vector<192x512xf32>
      %39 = arith.addf %22, %38 : vector<192x512xf32>
      %c0_11 = arith.constant 0 : index
      %c1_12 = arith.constant 1 : index
      %40 = vector.load %arg9[%c0_11, %c1_12] : memref<192x8xi32, #tpu.memory_space<vmem>>, vector<192x1xi32>
      %c0_13 = arith.constant 0 : index
      %c2 = arith.constant 2 : index
      %41 = vector.load %arg10[%c0_13, %c2] : memref<192x8xf32, #tpu.memory_space<vmem>>, vector<192x1xf32>
      %c0_14 = arith.constant 0 : index
      %c3 = arith.constant 3 : index
      %42 = vector.load %arg10[%c0_14, %c3] : memref<192x8xf32, #tpu.memory_space<vmem>>, vector<192x1xf32>
      %43 = vector.broadcast %40 : vector<192x1xi32> to vector<192x512xi32>
      %44 = arith.cmpi eq, %21, %43 : vector<192x512xi32>
      %c1_i32_15 = arith.constant 1 : i32
      %45 = vector.broadcast %c1_i32_15 : i32 to vector<192x1xi32>
      %46 = arith.addi %40, %45 : vector<192x1xi32>
      %47 = vector.broadcast %46 : vector<192x1xi32> to vector<192x512xi32>
      %48 = arith.cmpi eq, %21, %47 : vector<192x512xi32>
      %cst_16 = arith.constant 0.000000e+00 : f32
      %49 = vector.shape_cast %42 : vector<192x1xf32> to vector<192x1xf32>
      %50 = vector.broadcast %49 : vector<192x1xf32> to vector<192x512xf32>
      %51 = vector.broadcast %cst_16 : f32 to vector<192x512xf32>
      %52 = arith.select %48, %50, %51 : vector<192x512xi1>, vector<192x512xf32>
      %53 = vector.shape_cast %41 : vector<192x1xf32> to vector<192x1xf32>
      %54 = vector.broadcast %53 : vector<192x1xf32> to vector<192x512xf32>
      %55 = arith.select %44, %54, %52 : vector<192x512xi1>, vector<192x512xf32>
      %56 = arith.addf %39, %55 : vector<192x512xf32>
      %c0_17 = arith.constant 0 : index
      %c2_18 = arith.constant 2 : index
      %57 = vector.load %arg9[%c0_17, %c2_18] : memref<192x8xi32, #tpu.memory_space<vmem>>, vector<192x1xi32>
      %c0_19 = arith.constant 0 : index
      %c4 = arith.constant 4 : index
      %58 = vector.load %arg10[%c0_19, %c4] : memref<192x8xf32, #tpu.memory_space<vmem>>, vector<192x1xf32>
      %c0_20 = arith.constant 0 : index
      %c5 = arith.constant 5 : index
      %59 = vector.load %arg10[%c0_20, %c5] : memref<192x8xf32, #tpu.memory_space<vmem>>, vector<192x1xf32>
      %60 = vector.broadcast %57 : vector<192x1xi32> to vector<192x512xi32>
      %61 = arith.cmpi eq, %21, %60 : vector<192x512xi32>
      %c1_i32_21 = arith.constant 1 : i32
      %62 = vector.broadcast %c1_i32_21 : i32 to vector<192x1xi32>
      %63 = arith.addi %57, %62 : vector<192x1xi32>
      %64 = vector.broadcast %63 : vector<192x1xi32> to vector<192x512xi32>
      %65 = arith.cmpi eq, %21, %64 : vector<192x512xi32>
      %cst_22 = arith.constant 0.000000e+00 : f32
      %66 = vector.shape_cast %59 : vector<192x1xf32> to vector<192x1xf32>
      %67 = vector.broadcast %66 : vector<192x1xf32> to vector<192x512xf32>
      %68 = vector.broadcast %cst_22 : f32 to vector<192x512xf32>
      %69 = arith.select %65, %67, %68 : vector<192x512xi1>, vector<192x512xf32>
      %70 = vector.shape_cast %58 : vector<192x1xf32> to vector<192x1xf32>
      %71 = vector.broadcast %70 : vector<192x1xf32> to vector<192x512xf32>
      %72 = arith.select %61, %71, %69 : vector<192x512xi1>, vector<192x512xf32>
      %73 = arith.addf %56, %72 : vector<192x512xf32>
      %c0_23 = arith.constant 0 : index
      %c3_24 = arith.constant 3 : index
      %74 = vector.load %arg9[%c0_23, %c3_24] : memref<192x8xi32, #tpu.memory_space<vmem>>, vector<192x1xi32>
      %c0_25 = arith.constant 0 : index
      %c6 = arith.constant 6 : index
      %75 = vector.load %arg10[%c0_25, %c6] : memref<192x8xf32, #tpu.memory_space<vmem>>, vector<192x1xf32>
      %c0_26 = arith.constant 0 : index
      %c7 = arith.constant 7 : index
      %76 = vector.load %arg10[%c0_26, %c7] : memref<192x8xf32, #tpu.memory_space<vmem>>, vector<192x1xf32>
      %77 = vector.broadcast %74 : vector<192x1xi32> to vector<192x512xi32>
      %78 = arith.cmpi eq, %21, %77 : vector<192x512xi32>
      %c1_i32_27 = arith.constant 1 : i32
      %79 = vector.broadcast %c1_i32_27 : i32 to vector<192x1xi32>
      %80 = arith.addi %74, %79 : vector<192x1xi32>
      %81 = vector.broadcast %80 : vector<192x1xi32> to vector<192x512xi32>
      %82 = arith.cmpi eq, %21, %81 : vector<192x512xi32>
      %cst_28 = arith.constant 0.000000e+00 : f32
      %83 = vector.shape_cast %76 : vector<192x1xf32> to vector<192x1xf32>
      %84 = vector.broadcast %83 : vector<192x1xf32> to vector<192x512xf32>
      %85 = vector.broadcast %cst_28 : f32 to vector<192x512xf32>
      %86 = arith.select %82, %84, %85 : vector<192x512xi1>, vector<192x512xf32>
      %87 = vector.shape_cast %75 : vector<192x1xf32> to vector<192x1xf32>
      %88 = vector.broadcast %87 : vector<192x1xf32> to vector<192x512xf32>
      %89 = arith.select %78, %88, %86 : vector<192x512xi1>, vector<192x512xf32>
      %90 = arith.addf %73, %89 : vector<192x512xf32>
      %c0_29 = arith.constant 0 : index
      %c0_30 = arith.constant 0 : index
      %91 = vector.load %arg8[%c0_29, %c0_30] : memref<192x128xf32, #tpu.memory_space<vmem>>, vector<192x128xf32>
      %92 = arith.truncf %90 : vector<192x512xf32> to vector<192x512xbf16>
      %c0_31 = arith.constant 0 : index
      %c0_32 = arith.constant 0 : index
      %93 = vector.load %arg5[%c0_31, %c0_32] : memref<512x128xbf16, #tpu.memory_space<vmem>>, vector<512x128xbf16>
      %cst_33 = arith.constant dense<0.000000e+00> : vector<192x128xf32>
      %94 = tpu.matmul %92, %93, %cst_33 {dimension_numbers = #tpu.dot_dimension_numbers<[1], [0], [0], [1], [0, 0, 1, 1], [], []>} : vector<192x512xbf16>, vector<512x128xbf16>, vector<192x128xf32> -> vector<192x128xf32>
      %95 = arith.addf %91, %94 : vector<192x128xf32>
      %c0_34 = arith.constant 0 : index
      %c0_35 = arith.constant 0 : index
      %96 = vector.load %arg8[%c0_34, %c0_35] : memref<192x128xf32, #tpu.memory_space<vmem>>, vector<192x128xf32>
      tpu.vector_store %arg8[%c0_34, %c0_35], %95 {strides = array<i32>} : memref<192x128xf32, #tpu.memory_space<vmem>>, vector<192x128xf32>,
    } else {
    }
    %c0_i32_3 = arith.constant 0 : i32
    %15 = arith.cmpi eq, %arg1, %c0_i32_3 : i32
    %16 = arith.extui %15 : i1 to i32
    %c0_i32_4 = arith.constant 0 : i32
    %17 = arith.cmpi ne, %16, %c0_i32_4 : i32
    scf.if %17 {
      %c0 = arith.constant 0 : index
      %c0_5 = arith.constant 0 : index
      %18 = vector.load %arg8[%c0, %c0_5] : memref<192x128xf32, #tpu.memory_space<vmem>>, vector<192x128xf32>
      %cst = arith.constant 0.000000e+00 : f32
      %19 = vector.broadcast %cst : f32 to vector<192x128xf32>
      %20 = arith.maximumf %18, %19 : vector<192x128xf32>
      %c0_6 = arith.constant 0 : index
      %c0_7 = arith.constant 0 : index
      %21 = vector.load %arg8[%c0_6, %c0_7] : memref<192x128xf32, #tpu.memory_space<vmem>>, vector<192x128xf32>
      tpu.vector_store %arg8[%c0_6, %c0_7], %20 {strides = array<i32>} : memref<192x128xf32, #tpu.memory_space<vmem>>, vector<192x128xf32>,
    } else {
    }
    return
  }
  func.func @transform_0(%arg0: i32, %arg1: i32, %arg2: memref<4xi32, #tpu.memory_space<smem>>) -> (i32, i32) {
    %c0_i32 = arith.constant 0 : i32
    %c0_i32_0 = arith.constant 0 : i32
    return %arg0, %c0_i32 : i32, i32
  }
  func.func @transform_1(%arg0: i32, %arg1: i32, %arg2: memref<4xi32, #tpu.memory_space<smem>>) -> (i32, i32) {
    %c0_i32 = arith.constant 0 : i32
    %c0_i32_0 = arith.constant 0 : i32
    return %arg0, %c0_i32 : i32, i32
  }
  func.func @transform_2(%arg0: i32, %arg1: i32, %arg2: memref<4xi32, #tpu.memory_space<smem>>) -> (i32, i32) {
    %c2_i32 = arith.constant 2 : i32
    %0 = arith.muli %c2_i32, %arg0 : i32
    %1 = arith.index_cast %0 : i32 to index
    %2 = memref.load %arg2[%1] : memref<4xi32, #tpu.memory_space<smem>>
    %3 = arith.maxsi %arg1, %2 : i32
    %c2_i32_0 = arith.constant 2 : i32
    %4 = arith.muli %c2_i32_0, %arg0 : i32
    %c1_i32 = arith.constant 1 : i32
    %5 = arith.addi %4, %c1_i32 : i32
    %6 = arith.index_cast %5 : i32 to index
    %7 = memref.load %arg2[%6] : memref<4xi32, #tpu.memory_space<smem>>
    %8 = arith.minsi %3, %7 : i32
    %c0_i32 = arith.constant 0 : i32
    %c0_i32_1 = arith.constant 0 : i32
    return %8, %c0_i32 : i32, i32
  }
  func.func @transform_3(%arg0: i32, %arg1: i32, %arg2: memref<4xi32, #tpu.memory_space<smem>>) -> (i32, i32) {
    %c0_i32 = arith.constant 0 : i32
    %c0_i32_0 = arith.constant 0 : i32
    %c0_i32_1 = arith.constant 0 : i32
    return %c0_i32, %c0_i32_0 : i32, i32
  }
  func.func @transform_4(%arg0: i32, %arg1: i32, %arg2: memref<4xi32, #tpu.memory_space<smem>>) -> (i32, i32) {
    %c0_i32 = arith.constant 0 : i32
    %c0_i32_0 = arith.constant 0 : i32
    %c0_i32_1 = arith.constant 0 : i32
    return %c0_i32, %c0_i32_0 : i32, i32
  }
  func.func @transform_5(%arg0: i32, %arg1: i32, %arg2: memref<4xi32, #tpu.memory_space<smem>>) -> (i32, i32) {
    %c0_i32 = arith.constant 0 : i32
    %c0_i32_0 = arith.constant 0 : i32
    return %arg0, %c0_i32 : i32, i32
  }
}

</mosaic_0001>

<llo_original>
// kernel: tpu_custom_call.1
$region0: #{tpu_custom_call.1}
  #allocation0 [shape = 'u32[]', space=smem, size = 0x4, offset = 0x4, fixed_abs, tag = 'smem constant byte address 0x4 - core index']
  #allocation1 [shape = 'u32[144,128]{1,0:T(1,128)}', space=vmem, size = 0x12000, scoped, tag = 'internal scratch']
  #allocation2 [shape = 's32[192,8]{1,0:T(8,128)}', space=vmem, size = 0x18000, scoped, tag = 'scratch operand']
  #allocation3 [shape = 'f32[192,8]{1,0:T(8,128)}', space=vmem, size = 0x18000, scoped, tag = 'scratch operand']
  #allocation4 [shape = 's32[1]{0}', space=sflag, size = 0x4, scoped, tag = 'scoped memory for tpu_custom_call.1']
  #allocation5 [shape = 'u8[512]{0}', space=smem, size = 0x200, scoped, tag = 'prefetched SMEM operand 0']
  %s0 = inlined_call_operand.vmem [shape: s32[4], index: 0, kind: input, shape index: {}]
  %s1 = inlined_call_operand.vmem [shape: f32[384,8], index: 1, kind: input, shape index: {}]
  %s2 = inlined_call_operand.hbm [shape: bf16[384,128], index: 2, kind: input, shape index: {}]
  %s3 = inlined_call_operand.vmem [shape: bf16[512,128], index: 3, kind: input, shape index: {}]
  %s4 = inlined_call_operand.vmem [shape: bf16[128,128], index: 4, kind: input, shape index: {}]
  %s5 = inlined_call_operand.vmem [shape: f32[1,128], index: 5, kind: input, shape index: {}]
  %s6 = inlined_call_operand.hbm [shape: f32[384,128], index: 6, kind: output, shape index: {}]
  %s7 = sld [smem:[#allocation0]]
  $region69: #{tpu_custom_call.1} parent=0
    _
  %s9 = ssub.s32 1, %s7
  %s10 = scalar_select 0, %s9, %s7
  %s11 = sshll.u32 %s0, 4
  %s12 = int_to_ptr.vmem [resolvable:$true] %s11
  %14 = dma.vmem_to_smem %s12, 16, [#allocation5], [#allocation4]
  %15 = dma.done [#allocation4], 16
  %16 = sfence
  $region1: #{tpu_custom_call.1} parent=0
    #allocation6 [shape = 'u8[98304]{0}', space=vmem, size = 0x18000, scoped, tag = 'input window, operand 2']
    #allocation7 [shape = 's32[2]{0}', space=sflag, size = 0x8, scoped, tag = 'scoped memory for tpu_custom_call.1']
    #allocation8 [shape = 's32[2]{0}', space=sflag, size = 0x8, scoped, tag = 'scoped memory for tpu_custom_call.1']
    #allocation9 [shape = 'u8[196608]{0}', space=vmem, size = 0x30000, scoped, tag = 'output window, operand 0']
    %17 = vsyncpa [#allocation7], 0
    %s18 = scalar_lea.sflag [#allocation7], 1
    %19 = vsyncpa %s18, 0
    %20 = vsyncpa [#allocation8], 0
    %s21 = scalar_lea.sflag [#allocation8], 1
    %22 = vsyncpa %s21, 0
    loop: start=0, step=1, limit=4
    $region2: #{tpu_custom_call.1} parent=1 // loop_pre_header
      _
    $region3: #{tpu_custom_call.1} parent=1 // loop_header
      %s24 = sphi 0, %s28
      %p25 = scmp.ge.s32.totalorder %s24, 4
      %s31 = sphi 0, %s43
      %s32 = sphi 0, %s39
      %s33 = sphi 0, %s31
      %s34 = sphi 0, %s32
      %s35 = sphi 0, %s33
      %s36 = sphi 0, %s34
      %s46 = sphi 0, %s48
      %s49 = sphi 0, %s46
      %s50 = sphi 0, %s49
      %s66 = sphi 0, %s50
      %s72 = sphi 0, %s74
      %s75 = sphi 0, %s72
      %s76 = sphi 0, %s75
      %s92 = sphi 0, %s76
      %s114 = sphi 0, %s116
      %s117 = sphi 0, %s114
      %s118 = sphi 0, %s117
      %s134 = sphi 0, %s118
      %s138 = sphi 0, %s138
      %s140 = sphi 0, %s138
      %s141 = sphi 0, %s140
      %s155 = sphi 0, %s141
      %s159 = sphi 0, %s159
      %s161 = sphi 0, %s159
      %s162 = sphi 0, %s161
      %s176 = sphi 0, %s162
      %s182 = sphi 0, %s184
      %s185 = sphi 0, %s182
      %s186 = sphi 0, %s185
      %s202 = sphi 0, %s186
    $region4: #{tpu_custom_call.1} parent=1 // loop_header_branch
      %27 = sbr.rel (%p25) target = $region8
    $region5: #{tpu_custom_call.1} parent=1 // loop_body
      %s29 = ssub.s32 %s24, 1
      %s30 = ssub.s32 %s24, 2
      %s37 = sadd.s32 1, %s32
      %p38 = scmp.ge.s32.totalorder %s37, 1
      %s39 = scalar_select %p38, 0, %s37
      %s40 = sadd.s32 1, %s31
      %s41 = scalar_select %p38, %s40, %s31
      %p42 = scmp.ge.s32.totalorder %s41, 2
      %s43 = scalar_select %p42, 0, %s41
      %s44 = ssub.s32 %s31, %s43
      %p45 = scmp.eq.s32.totalorder %s44, 0
      %s47 = sadd.s32 %s46, 1
      %s48 = scalar_select %p45, %s46, %s47
      %p51 = pneg %p45
      %p52 = scmp.eq.s32.totalorder %s24, 1
      %p53 = por %p51, %p52
      %p54 = scmp.ne.s32.totalorder %s46, %s49
      %p55 = scmp.eq.s32.totalorder %s24, 0
      %p56 = por %p54, %p55
      %p57 = scmp.ne.s32.totalorder %s46, %s49
      %p58 = scmp.eq.s32.totalorder %s29, 1
      %p59 = por %p57, %p58
      %p60 = scmp.ne.s32.totalorder %s49, %s50
      %p61 = scmp.eq.s32.totalorder %s29, 0
      %p62 = por %p60, %p61
      %p63 = scmp.ne.s32.totalorder %s49, %s50
      %p64 = scmp.eq.s32.totalorder %s30, 1
      %p65 = por %p63, %p64
      %p67 = scmp.ne.s32.totalorder %s50, %s66
      %p68 = scmp.eq.s32.totalorder %s30, 0
      %p69 = por %p67, %p68
      %s70 = ssub.s32 %s31, %s43
      %p71 = scmp.eq.s32.totalorder %s70, 0
      %s73 = sadd.s32 %s72, 1
      %s74 = scalar_select %p71, %s72, %s73
      %p77 = pneg %p71
      %p78 = scmp.eq.s32.totalorder %s24, 1
      %p79 = por %p77, %p78
      %p80 = scmp.ne.s32.totalorder %s72, %s75
      %p81 = scmp.eq.s32.totalorder %s24, 0
      %p82 = por %p80, %p81
      %p83 = scmp.ne.s32.totalorder %s72, %s75
      %p84 = scmp.eq.s32.totalorder %s29, 1
      %p85 = por %p83, %p84
      %p86 = scmp.ne.s32.totalorder %s75, %s76
      %p87 = scmp.eq.s32.totalorder %s29, 0
      %p88 = por %p86, %p87
      %p89 = scmp.ne.s32.totalorder %s75, %s76
      %p90 = scmp.eq.s32.totalorder %s30, 1
      %p91 = por %p89, %p90
      %p93 = scmp.ne.s32.totalorder %s76, %s92
      %p94 = scmp.eq.s32.totalorder %s30, 0
      %p95 = por %p93, %p94
      %s96 = smul.u32 %s31, 2
      %s97 = sld [smem:[#allocation5 + %s96]]
      %p98 = scmp.gt.s32.totalorder %s32, %s97
      %s99 = scalar_select %p98, %s32, %s97
      %s100 = sadd.s32 %s96, 1
      %s101 = sld [smem:[#allocation5 + %s100]]
      %p102 = scmp.lt.s32.totalorder %s99, %s101
      %s103 = scalar_select %p102, %s99, %s101
      %s104 = smul.u32 %s43, 2
      %s105 = sld [smem:[#allocation5 + %s104]]
      %p106 = scmp.gt.s32.totalorder %s39, %s105
      %s107 = scalar_select %p106, %s39, %s105
      %s108 = sadd.s32 %s104, 1
      %s109 = sld [smem:[#allocation5 + %s108]]
      %p110 = scmp.lt.s32.totalorder %s107, %s109
      %s111 = scalar_select %p110, %s107, %s109
      %s112 = ssub.s32 %s103, %s111
      %p113 = scmp.eq.s32.totalorder %s112, 0
      %s115 = sadd.s32 %s114, 1
      %s116 = scalar_select %p113, %s114, %s115
      %p119 = pneg %p113
      %p120 = scmp.eq.s32.totalorder %s24, 1
      %p121 = por %p119, %p120
      %p122 = scmp.ne.s32.totalorder %s114, %s117
      %p123 = scmp.eq.s32.totalorder %s24, 0
      %p124 = por %p122, %p123
      %p125 = scmp.ne.s32.totalorder %s114, %s117
      %p126 = scmp.eq.s32.totalorder %s29, 1
      %p127 = por %p125, %p126
      %p128 = scmp.ne.s32.totalorder %s117, %s118
      %p129 = scmp.eq.s32.totalorder %s29, 0
      %p130 = por %p128, %p129
      %p131 = scmp.ne.s32.totalorder %s117, %s118
      %p132 = scmp.eq.s32.totalorder %s30, 1
      %p133 = por %p131, %p132
      %p135 = scmp.ne.s32.totalorder %s118, %s134
      %p136 = scmp.eq.s32.totalorder %s30, 0
      %p137 = por %p135, %p136
      %s139 = sadd.s32 %s138, 1
      %p142 = scmp.eq.s32.totalorder %s24, 1
      %p143 = scmp.ne.s32.totalorder %s138, %s140
      %p144 = scmp.eq.s32.totalorder %s24, 0
      %p145 = por %p143, %p144
      %p146 = scmp.ne.s32.totalorder %s138, %s140
      %p147 = scmp.eq.s32.totalorder %s29, 1
      %p148 = por %p146, %p147
      %p149 = scmp.ne.s32.totalorder %s140, %s141
      %p150 = scmp.eq.s32.totalorder %s29, 0
      %p151 = por %p149, %p150
      %p152 = scmp.ne.s32.totalorder %s140, %s141
      %p153 = scmp.eq.s32.totalorder %s30, 1
      %p154 = por %p152, %p153
      %p156 = scmp.ne.s32.totalorder %s141, %s155
      %p157 = scmp.eq.s32.totalorder %s30, 0
      %p158 = por %p156, %p157
      %s160 = sadd.s32 %s159, 1
      %p163 = scmp.eq.s32.totalorder %s24, 1
      %p164 = scmp.ne.s32.totalorder %s159, %s161
      %p165 = scmp.eq.s32.totalorder %s24, 0
      %p166 = por %p164, %p165
      %p167 = scmp.ne.s32.totalorder %s159, %s161
      %p168 = scmp.eq.s32.totalorder %s29, 1
      %p169 = por %p167, %p168
      %p170 = scmp.ne.s32.totalorder %s161, %s162
      %p171 = scmp.eq.s32.totalorder %s29, 0
      %p172 = por %p170, %p171
      %p173 = scmp.ne.s32.totalorder %s161, %s162
      %p174 = scmp.eq.s32.totalorder %s30, 1
      %p175 = por %p173, %p174
      %p177 = scmp.ne.s32.totalorder %s162, %s176
      %p178 = scmp.eq.s32.totalorder %s30, 0
      %p179 = por %p177, %p178
      %s180 = ssub.s32 %s31, %s43
      %p181 = scmp.eq.s32.totalorder %s180, 0
      %s183 = sadd.s32 %s182, 1
      %s184 = scalar_select %p181, %s182, %s183
      %p187 = pneg %p181
      %p188 = scmp.eq.s32.totalorder %s24, 1
      %p189 = por %p187, %p188
      %p190 = scmp.ne.s32.totalorder %s182, %s185
      %p191 = scmp.eq.s32.totalorder %s24, 0
      %p192 = por %p190, %p191
      %p193 = scmp.ne.s32.totalorder %s182, %s185
      %p194 = scmp.eq.s32.totalorder %s29, 1
      %p195 = por %p193, %p194
      %p196 = scmp.ne.s32.totalorder %s185, %s186
      %p197 = scmp.eq.s32.totalorder %s29, 0
      %p198 = por %p196, %p197
      %p199 = scmp.ne.s32.totalorder %s185, %s186
      %p200 = scmp.eq.s32.totalorder %s30, 1
      %p201 = por %p199, %p200
      %p203 = scmp.ne.s32.totalorder %s186, %s202
      %p204 = scmp.eq.s32.totalorder %s30, 0
      %p205 = por %p203, %p204
      %p206 = scmp.le.s32.totalorder 1, %s24
      %p207 = scmp.lt.s32.totalorder %s24, 3
      %p208 = pnand %p206, %p207
      %p209 = pneg %p208
      // Predicated region
      $region9: #{tpu_custom_call.1} parent=5 // pred_check
        _
      $region10: #{tpu_custom_call.1} parent=5 // pred_check_branch
        %211 = sbr.rel (%p208) target = $region12
      $region11: #{tpu_custom_call.1} parent=5 // pred_region
        %s212 = ssub.s32 %s24, 1
        // Predicated region
        $region13: #{tpu_custom_call.1} parent=11 // pred_check
          %p213 = pneg %p151
        $region14: #{tpu_custom_call.1} parent=11 // pred_check_branch
          %215 = sbr.rel (%p213) target = $region16
        $region15: #{tpu_custom_call.1} parent=11 // pred_region
          _
        $region16: #{tpu_custom_call.1} parent=11 // pred_fallthru
          _
        // Predicated region
        $region17: #{tpu_custom_call.1} parent=11 // pred_check
          %p216 = pneg %p172
        $region18: #{tpu_custom_call.1} parent=11 // pred_check_branch
          %218 = sbr.rel (%p216) target = $region20
        $region19: #{tpu_custom_call.1} parent=11 // pred_region
          _
        $region20: #{tpu_custom_call.1} parent=11 // pred_fallthru
          _
      $region12: #{tpu_custom_call.1} parent=5 // pred_fallthru
        _
      %p219 = scmp.lt.s32.totalorder %s24, 2
      // Predicated region
      $region21: #{tpu_custom_call.1} parent=5 // pred_check
        %p220 = pneg %p219
      $region22: #{tpu_custom_call.1} parent=5 // pred_check_branch
        %222 = sbr.rel (%p220) target = $region24
      $region23: #{tpu_custom_call.1} parent=5 // pred_region
        // Predicated region
        $region25: #{tpu_custom_call.1} parent=23 // pred_check
          %p223 = pneg %p56
        $region26: #{tpu_custom_call.1} parent=23 // pred_check_branch
          %225 = sbr.rel (%p223) target = $region28
        $region27: #{tpu_custom_call.1} parent=23 // pred_region
          %s226 = smul.u32 24, %s31
          %p227 = scmp.lt.s32.totalorder %s226, 47
          %s228 = scalar_select %p227, %s226, 47
          %s229 = smul.addr %s228, 8
          %s230 = scalar_lea.vmem %s1, %s229
          %s231 = smul.u32 24, %s31
        $region28: #{tpu_custom_call.1} parent=23 // pred_fallthru
          _
        // Predicated region
        $region29: #{tpu_custom_call.1} parent=23 // pred_check
          %p232 = pneg %p82
        $region30: #{tpu_custom_call.1} parent=23 // pred_check_branch
          %234 = sbr.rel (%p232) target = $region32
        $region31: #{tpu_custom_call.1} parent=23 // pred_region
          %s235 = sand.u32 %s72, 1
          %s236 = scalar_lea.sflag [#allocation7], %s235
          %s237 = sand.u32 %s72, 1
          %s238 = smul.addr %s237, 96
          %s239 = scalar_lea.vmem [#allocation6], %s238
          %s240 = smul.u32 24, %s31
          %s242 = ssub.s32 1536, 1536
          %243 = vsyncadd %s236, %s242
          %s244 = smul.addr %s240, 64
          %s245 = scalar_lea.hbm %s2, %s244
          %s246 = sshll.u32 %s239, 4
          %s247 = int_to_ptr.vmem [resolvable:$true] %s246
          %252 = dma.hbm_to_vmem [thread:$0]  %s245, 1536, %s247, %s236, 64, 64, 4
        $region32: #{tpu_custom_call.1} parent=23 // pred_fallthru
          _
        // Predicated region
        $region33: #{tpu_custom_call.1} parent=23 // pred_check
          %p253 = pneg %p124
        $region34: #{tpu_custom_call.1} parent=23 // pred_check_branch
          %255 = sbr.rel (%p253) target = $region36
        $region35: #{tpu_custom_call.1} parent=23 // pred_region
          %s256 = smul.u32 %s31, 2
          %s257 = sld [smem:[#allocation5 + %s256]]
          %p258 = scmp.gt.s32.totalorder %s32, %s257
          %s259 = scalar_select %p258, %s32, %s257
          %s260 = sadd.s32 %s256, 1
          %s261 = sld [smem:[#allocation5 + %s260]]
          %p262 = scmp.lt.s32.totalorder %s259, %s261
          %s263 = scalar_select %p262, %s259, %s261
          %s264 = smul.u32 64, %s263
          %p265 = scmp.lt.s32.totalorder %s264, 63
          %s266 = scalar_select %p265, %s264, 63
          %s267 = smul.addr %s266, 4
          %s268 = scalar_lea.vmem %s3, %s267
          %s269 = smul.u32 %s31, 2
          %s270 = sld [smem:[#allocation5 + %s269]]
          %p271 = scmp.gt.s32.totalorder %s32, %s270
          %s272 = scalar_select %p271, %s32, %s270
          %s273 = sadd.s32 %s269, 1
          %s274 = sld [smem:[#allocation5 + %s273]]
          %p275 = scmp.lt.s32.totalorder %s272, %s274
          %s276 = scalar_select %p275, %s272, %s274
          %s277 = smul.u32 64, %s276
        $region36: #{tpu_custom_call.1} parent=23 // pred_fallthru
          _
      $region24: #{tpu_custom_call.1} parent=5 // pred_fallthru
        _
      %p278 = scmp.le.s32.totalorder 1, %s24
      %p279 = scmp.lt.s32.totalorder %s24, 3
      %p280 = pnand %p278, %p279
      %p281 = pneg %p280
      // Predicated region
      $region37: #{tpu_custom_call.1} parent=5 // pred_check
        _
      $region38: #{tpu_custom_call.1} parent=5 // pred_check_branch
        %283 = sbr.rel (%p280) target = $region40
      $region39: #{tpu_custom_call.1} parent=5 // pred_region
        %s284 = ssub.s32 %s24, 1
        %s285 = sand.u32 %s75, 1
        %s286 = scalar_lea.sflag [#allocation7], %s285
        %s287 = sand.u32 %s75, 1
        %s288 = smul.addr %s287, 96
        %s289 = scalar_lea.vmem [#allocation6], %s288
        // Predicated region
        $region41: #{tpu_custom_call.1} parent=39 // pred_check
          %p290 = pneg %p88
        $region42: #{tpu_custom_call.1} parent=39 // pred_check_branch
          %292 = sbr.rel (%p290) target = $region44
        $region43: #{tpu_custom_call.1} parent=39 // pred_region
          %293 = dma.done %s286, 1536
        $region44: #{tpu_custom_call.1} parent=39 // pred_fallthru
          _
        %s294 = smul.u32 24, %s33
        %p295 = scmp.lt.s32.totalorder %s294, 47
        %s296 = scalar_select %p295, %s294, 47
        %s297 = smul.addr %s296, 8
        %s298 = scalar_lea.vmem %s1, %s297
        %p299 = pneg %p62
        %p300 = pneg %p59
        %s301 = sand.u32 %s75, 1
        %s302 = scalar_lea.sflag [#allocation7], %s301
        %s303 = sand.u32 %s75, 1
        %s304 = smul.addr %s303, 96
        %s305 = scalar_lea.vmem [#allocation6], %s304
        %p306 = pneg %p88
        %p307 = pneg %p85
        %s308 = smul.u32 %s33, 2
        %s309 = sld [smem:[#allocation5 + %s308]]
        %p310 = scmp.gt.s32.totalorder %s34, %s309
        %s311 = scalar_select %p310, %s34, %s309
        %s312 = sadd.s32 %s308, 1
        %s313 = sld [smem:[#allocation5 + %s312]]
        %p314 = scmp.lt.s32.totalorder %s311, %s313
        %s315 = scalar_select %p314, %s311, %s313
        %s316 = smul.u32 64, %s315
        %p317 = scmp.lt.s32.totalorder %s316, 63
        %s318 = scalar_select %p317, %s316, 63
        %s319 = smul.addr %s318, 4
        %s320 = scalar_lea.vmem %s3, %s319
        %p321 = pneg %p130
        %p322 = pneg %p127
        %p323 = pneg %p151
        %p324 = pneg %p148
        %p325 = pneg %p172
        %p326 = pneg %p169
        %p327 = pneg %p198
        %p328 = pneg %p195
        %s329 = sand.u32 %s185, 1
        %s330 = scalar_lea.sflag [#allocation8], %s329
        %s331 = sand.u32 %s185, 1
        %s332 = smul.addr %s331, 192
        %s333 = scalar_lea.vmem [#allocation9], %s332
        %s334 = smul.u32 24, %s33
        %p335 = scmp.lt.s32.totalorder %s334, 47
        %s336 = scalar_select %p335, %s334, 47
        %s337 = smul.addr %s336, 8
        %s338 = scalar_lea.vmem %s1, %s337
        %s339 = smul.u32 24, %s33
        %s340 = smul.u32 24, %s33
        %s341 = smul.u32 %s33, 2
        %s342 = sld [smem:[#allocation5 + %s341]]
        %p343 = scmp.gt.s32.totalorder %s34, %s342
        %s344 = scalar_select %p343, %s34, %s342
        %s345 = sadd.s32 %s341, 1
        %s346 = sld [smem:[#allocation5 + %s345]]
        %p347 = scmp.lt.s32.totalorder %s344, %s346
        %s348 = scalar_select %p347, %s344, %s346
        %s349 = smul.u32 64, %s348
        %p350 = scmp.lt.s32.totalorder %s349, 63
        %s351 = scalar_select %p350, %s349, 63
        %s352 = smul.addr %s351, 4
        %s353 = scalar_lea.vmem %s3, %s352
        %s354 = smul.u32 %s33, 2
        %s355 = sld [smem:[#allocation5 + %s354]]
        %p356 = scmp.gt.s32.totalorder %s34, %s355
        %s357 = scalar_select %p356, %s34, %s355
        %s358 = sadd.s32 %s354, 1
        %s359 = sld [smem:[#allocation5 + %s358]]
        %p360 = scmp.lt.s32.totalorder %s357, %s359
        %s361 = scalar_select %p360, %s357, %s359
        %s362 = smul.u32 64, %s361
        %s363 = smul.u32 24, %s33
        %p365 = scmp.eq.s32.totalorder %s34, 0
        // Predicated region
        $region45: #{tpu_custom_call.1} parent=39 // pred_check
          %p366 = pneg %p365
        $region46: #{tpu_custom_call.1} parent=39 // pred_check_branch
          %368 = sbr.rel (%p366) target = $region48
        $region47: #{tpu_custom_call.1} parent=39 // pred_region
          %v369 = vld [vmem:[%s289] sm:$0xf]
          %v370 = vld [vmem:[%s289 + $0x4] sm:$0xf]
          %v371 = vld [vmem:[%s289 + $0x8] sm:$0xf]
          %v372 = vld [vmem:[%s289 + $0xc] sm:$0xf]
          %v373 = vld [vmem:[%s289 + $0x10] sm:$0xf]
          %v374 = vld [vmem:[%s289 + $0x14] sm:$0xf]
          %v375 = vld [vmem:[%s289 + $0x18] sm:$0xf]
          %v376 = vld [vmem:[%s289 + $0x1c] sm:$0xf]
          %v377 = vld [vmem:[%s289 + $0x20] sm:$0xf]
          %v378 = vld [vmem:[%s289 + $0x24] sm:$0xf]
          %v379 = vld [vmem:[%s289 + $0x28] sm:$0xf]
          %v380 = vld [vmem:[%s289 + $0x2c] sm:$0xf]
          %v381 = vld [vmem:[%s289 + $0x30] sm:$0xf]
          %v382 = vld [vmem:[%s289 + $0x34] sm:$0xf]
          %v383 = vld [vmem:[%s289 + $0x38] sm:$0xf]
          %v384 = vld [vmem:[%s289 + $0x3c] sm:$0xf]
          %v385 = vld [vmem:[%s289 + $0x40] sm:$0xf]
          %v386 = vld [vmem:[%s289 + $0x44] sm:$0xf]
          %v387 = vld [vmem:[%s289 + $0x48] sm:$0xf]
          %v388 = vld [vmem:[%s289 + $0x4c] sm:$0xf]
          %v389 = vld [vmem:[%s289 + $0x50] sm:$0xf]
          %v390 = vld [vmem:[%s289 + $0x54] sm:$0xf]
          %v391 = vld [vmem:[%s289 + $0x58] sm:$0xf]
          %v392 = vld [vmem:[%s289 + $0x5c] sm:$0xf]
          %v393 = vld [vmem:[%s4] sm:$0xf]
          %v394 = vld [vmem:[%s4 + $0x4] sm:$0xf]
          %v395 = vld [vmem:[%s4 + $0x8] sm:$0xf]
          %v396 = vld [vmem:[%s4 + $0xc] sm:$0xf]
          %v397 = vld [vmem:[%s4 + $0x10] sm:$0xf]
          %v398 = vld [vmem:[%s4 + $0x14] sm:$0xf]
          %v399 = vld [vmem:[%s4 + $0x18] sm:$0xf]
          %v400 = vld [vmem:[%s4 + $0x1c] sm:$0xf]
          %v401 = vld [vmem:[%s4 + $0x20] sm:$0xf]
          %v402 = vld [vmem:[%s4 + $0x24] sm:$0xf]
          %v403 = vld [vmem:[%s4 + $0x28] sm:$0xf]
          %v404 = vld [vmem:[%s4 + $0x2c] sm:$0xf]
          %v405 = vld [vmem:[%s4 + $0x30] sm:$0xf]
          %v406 = vld [vmem:[%s4 + $0x34] sm:$0xf]
          %v407 = vld [vmem:[%s4 + $0x38] sm:$0xf]
          %v408 = vld [vmem:[%s4 + $0x3c] sm:$0xf]
          %v409 = vld [vmem:[%s5] sm:$0x1]
          %v411 = vlaneseq
          %v412 = vshrl.u32 %v411, 7
          %v413 = vsub.s32 0, %v412
          %v414 = vrot.slane %v409, %v413
          %v440 = vunpack.c.l.b16 %v369
          %v441 = vunpack.c.l.b16 %v370
          %v442 = vunpack.c.l.b16 %v371
          %v443 = vunpack.c.l.b16 %v372
          %v444 = vunpack.c.l.b16 %v373
          %v445 = vunpack.c.l.b16 %v374
          %v446 = vunpack.c.l.b16 %v375
          %v447 = vunpack.c.l.b16 %v376
          %v448 = vunpack.c.l.b16 %v377
          %v449 = vunpack.c.l.b16 %v378
          %v450 = vunpack.c.l.b16 %v379
          %v451 = vunpack.c.l.b16 %v380
          %v452 = vunpack.c.l.b16 %v381
          %v453 = vunpack.c.l.b16 %v382
          %v454 = vunpack.c.l.b16 %v383
          %v455 = vunpack.c.l.b16 %v384
          %v456 = vunpack.c.l.b16 %v385
          %v457 = vunpack.c.l.b16 %v386
          %v458 = vunpack.c.l.b16 %v387
          %v459 = vunpack.c.l.b16 %v388
          %v460 = vunpack.c.l.b16 %v389
          %v461 = vunpack.c.l.b16 %v390
          %v462 = vunpack.c.l.b16 %v391
          %v463 = vunpack.c.l.b16 %v392
          %v464 = vpack.c.b16 %v441, %v440
          %v465 = vpack.c.b16 %v443, %v442
          %v466 = vpack.c.b16 %v445, %v444
          %v467 = vpack.c.b16 %v447, %v446
          %v468 = vpack.c.b16 %v449, %v448
          %v469 = vpack.c.b16 %v451, %v450
          %v470 = vpack.c.b16 %v453, %v452
          %v471 = vpack.c.b16 %v455, %v454
          %v472 = vpack.c.b16 %v457, %v456
          %v473 = vpack.c.b16 %v459, %v458
          %v474 = vpack.c.b16 %v461, %v460
          %v475 = vpack.c.b16 %v463, %v462
          %v504 = vunpack.c.l.b16 %v393
          %v505 = vunpack.c.l.b16 %v394
          %v506 = vunpack.c.l.b16 %v395
          %v507 = vunpack.c.l.b16 %v396
          %v508 = vunpack.c.l.b16 %v397
          %v509 = vunpack.c.l.b16 %v398
          %v510 = vunpack.c.l.b16 %v399
          %v511 = vunpack.c.l.b16 %v400
          %v512 = vunpack.c.l.b16 %v401
          %v513 = vunpack.c.l.b16 %v402
          %v514 = vunpack.c.l.b16 %v403
          %v515 = vunpack.c.l.b16 %v404
          %v516 = vunpack.c.l.b16 %v405
          %v517 = vunpack.c.l.b16 %v406
          %v518 = vunpack.c.l.b16 %v407
          %v519 = vunpack.c.l.b16 %v408
          %v520 = vpack.c.b16 %v505, %v504
          %v521 = vpack.c.b16 %v507, %v506
          %v522 = vpack.c.b16 %v509, %v508
          %v523 = vpack.c.b16 %v511, %v510
          %v524 = vpack.c.b16 %v513, %v512
          %v525 = vpack.c.b16 %v515, %v514
          %v526 = vpack.c.b16 %v517, %v516
          %v527 = vpack.c.b16 %v519, %v518
          %536 = vmatprep.subr.bf16.mxu0 0
          %537 = vmatpush1.bf16.msra.mxu0 %v520
          %538 = vmatprep.subr.bf16.mxu0 0
          %539 = vmatpush1.bf16.msra.mxu0 %v521
          %540 = vmatprep.subr.bf16.mxu0 0
          %541 = vmatpush1.bf16.msra.mxu0 %v522
          %542 = vmatprep.subr.bf16.mxu0 0
          %543 = vmatpush1.bf16.msra.mxu0 %v523
          %544 = vmatprep.subr.bf16.mxu0 0
          %545 = vmatpush1.bf16.msra.mxu0 %v524
          %546 = vmatprep.subr.bf16.mxu0 0
          %547 = vmatpush1.bf16.msra.mxu0 %v525
          %548 = vmatprep.subr.bf16.mxu0 0
          %549 = vmatpush1.bf16.msra.mxu0 %v526
          %550 = vmatprep.subr.bf16.mxu0 0
          %551 = vmatpush1.bf16.msra.mxu0 %v527
          %552 = vmatprep.subr.bf16.mxu0 0
          %553 = vmatpush1.bf16.msra.mxu0 0
          %554 = vmatprep.subr.bf16.mxu0 0
          %555 = vmatpush1.bf16.msra.mxu0 0
          %556 = vmatprep.subr.bf16.mxu0 0
          %557 = vmatpush1.bf16.msra.mxu0 0
          %558 = vmatprep.subr.bf16.mxu0 0
          %559 = vmatpush1.bf16.msra.mxu0 0
          %560 = vmatprep.subr.bf16.mxu0 0
          %561 = vmatpush1.bf16.msra.mxu0 0
          %562 = vmatprep.subr.bf16.mxu0 0
          %563 = vmatpush1.bf16.msra.mxu0 0
          %564 = vmatprep.subr.bf16.mxu0 0
          %565 = vmatpush1.bf16.msra.mxu0 0
          %566 = vmatprep.subr.bf16.mxu0 0
          %567 = vmatpush1.bf16.msra.mxu0 0
          %568 = vmatprep.mubr.bf16.mxu0 0
          %569 = vmatmul.mubr.bf16.gmra.mrb[0].mxu0 %v464
          %v570 = vpop.f32.mrb[0].mxu0
          %v571 = vadd.f32 %v414, %v570
          %v572 = vpop.f32.mrb[0].mxu0
          %v573 = vpop.f32.mrb[0].mxu0
          %v574 = vadd.f32 %v414, %v573
          %v575 = vpop.f32.mrb[0].mxu0
          %576 = vmatprep.mubr.bf16.mxu0 0
          %577 = vmatmul.mubr.bf16.gmra.mrb[0].mxu0 %v465
          %v578 = vpop.f32.mrb[0].mxu0
          %v579 = vadd.f32 %v414, %v578
          %v580 = vpop.f32.mrb[0].mxu0
          %v581 = vpop.f32.mrb[0].mxu0
          %v582 = vadd.f32 %v414, %v581
          %v583 = vpop.f32.mrb[0].mxu0
          %584 = vmatprep.mubr.bf16.mxu0 0
          %585 = vmatmul.mubr.bf16.gmra.mrb[0].mxu0 %v466
          %v586 = vpop.f32.mrb[0].mxu0
          %v587 = vadd.f32 %v414, %v586
          %v588 = vpop.f32.mrb[0].mxu0
          %v589 = vpop.f32.mrb[0].mxu0
          %v590 = vadd.f32 %v414, %v589
          %v591 = vpop.f32.mrb[0].mxu0
          %592 = vmatprep.mubr.bf16.mxu0 0
          %593 = vmatmul.mubr.bf16.gmra.mrb[0].mxu0 %v467
          %v594 = vpop.f32.mrb[0].mxu0
          %v595 = vadd.f32 %v414, %v594
          %v596 = vpop.f32.mrb[0].mxu0
          %v597 = vpop.f32.mrb[0].mxu0
          %v598 = vadd.f32 %v414, %v597
          %v599 = vpop.f32.mrb[0].mxu0
          %600 = vmatprep.mubr.bf16.mxu0 0
          %601 = vmatmul.mubr.bf16.gmra.mrb[0].mxu0 %v468
          %v602 = vpop.f32.mrb[0].mxu0
          %v603 = vadd.f32 %v414, %v602
          %v604 = vpop.f32.mrb[0].mxu0
          %v605 = vpop.f32.mrb[0].mxu0
          %v606 = vadd.f32 %v414, %v605
          %v607 = vpop.f32.mrb[0].mxu0
          %608 = vmatprep.mubr.bf16.mxu0 0
          %609 = vmatmul.mubr.bf16.gmra.mrb[0].mxu0 %v469
          %v610 = vpop.f32.mrb[0].mxu0
          %v611 = vadd.f32 %v414, %v610
          %v612 = vpop.f32.mrb[0].mxu0
          %v613 = vpop.f32.mrb[0].mxu0
          %v614 = vadd.f32 %v414, %v613
          %v615 = vpop.f32.mrb[0].mxu0
          %616 = vmatprep.mubr.bf16.mxu0 0
          %617 = vmatmul.mubr.bf16.gmra.mrb[0].mxu0 %v470
          %v618 = vpop.f32.mrb[0].mxu0
          %v619 = vadd.f32 %v414, %v618
          %v620 = vpop.f32.mrb[0].mxu0
          %v621 = vpop.f32.mrb[0].mxu0
          %v622 = vadd.f32 %v414, %v621
          %v623 = vpop.f32.mrb[0].mxu0
          %624 = vmatprep.mubr.bf16.mxu0 0
          %625 = vmatmul.mubr.bf16.gmra.mrb[0].mxu0 %v471
          %v626 = vpop.f32.mrb[0].mxu0
          %v627 = vadd.f32 %v414, %v626
          %v628 = vpop.f32.mrb[0].mxu0
          %v629 = vpop.f32.mrb[0].mxu0
          %v630 = vadd.f32 %v414, %v629
          %v631 = vpop.f32.mrb[0].mxu0
          %632 = vmatprep.mubr.bf16.mxu0 0
          %633 = vmatmul.mubr.bf16.gmra.mrb[0].mxu0 %v472
          %v634 = vpop.f32.mrb[0].mxu0
          %v635 = vadd.f32 %v414, %v634
          %v636 = vpop.f32.mrb[0].mxu0
          %v637 = vpop.f32.mrb[0].mxu0
          %v638 = vadd.f32 %v414, %v637
          %v639 = vpop.f32.mrb[0].mxu0
          %640 = vmatprep.mubr.bf16.mxu0 0
          %641 = vmatmul.mubr.bf16.gmra.mrb[0].mxu0 %v473
          %v642 = vpop.f32.mrb[0].mxu0
          %v643 = vadd.f32 %v414, %v642
          %v644 = vpop.f32.mrb[0].mxu0
          %v645 = vpop.f32.mrb[0].mxu0
          %v646 = vadd.f32 %v414, %v645
          %v647 = vpop.f32.mrb[0].mxu0
          %648 = vmatprep.mubr.bf16.mxu0 0
          %649 = vmatmul.mubr.bf16.gmra.mrb[0].mxu0 %v474
          %v650 = vpop.f32.mrb[0].mxu0
          %v651 = vadd.f32 %v414, %v650
          %v652 = vpop.f32.mrb[0].mxu0
          %v653 = vpop.f32.mrb[0].mxu0
          %v654 = vadd.f32 %v414, %v653
          %v655 = vpop.f32.mrb[0].mxu0
          %656 = vmatprep.mubr.bf16.mxu0 0
          %657 = vmatmul.mubr.bf16.gmra.mrb[0].mxu0 %v475
          %v658 = vpop.f32.mrb[0].mxu0
          %v659 = vadd.f32 %v414, %v658
          %v660 = vpop.f32.mrb[0].mxu0
          %v661 = vpop.f32.mrb[0].mxu0
          %v662 = vadd.f32 %v414, %v661
          %v663 = vpop.f32.mrb[0].mxu0
          %664 = vdwg.mxu0
          %665 = vst [vmem:[%s333] sm:$0xff] %v571
          %666 = vst [vmem:[%s333 + $0x8] sm:$0xff] %v574
          %667 = vst [vmem:[%s333 + $0x10] sm:$0xff] %v579
          %668 = vst [vmem:[%s333 + $0x18] sm:$0xff] %v582
          %669 = vst [vmem:[%s333 + $0x20] sm:$0xff] %v587
          %670 = vst [vmem:[%s333 + $0x28] sm:$0xff] %v590
          %671 = vst [vmem:[%s333 + $0x30] sm:$0xff] %v595
          %672 = vst [vmem:[%s333 + $0x38] sm:$0xff] %v598
          %673 = vst [vmem:[%s333 + $0x40] sm:$0xff] %v603
          %674 = vst [vmem:[%s333 + $0x48] sm:$0xff] %v606
          %675 = vst [vmem:[%s333 + $0x50] sm:$0xff] %v611
          %676 = vst [vmem:[%s333 + $0x58] sm:$0xff] %v614
          %677 = vst [vmem:[%s333 + $0x60] sm:$0xff] %v619
          %678 = vst [vmem:[%s333 + $0x68] sm:$0xff] %v622
          %679 = vst [vmem:[%s333 + $0x70] sm:$0xff] %v627
          %680 = vst [vmem:[%s333 + $0x78] sm:$0xff] %v630
          %681 = vst [vmem:[%s333 + $0x80] sm:$0xff] %v635
          %682 = vst [vmem:[%s333 + $0x88] sm:$0xff] %v638
          %683 = vst [vmem:[%s333 + $0x90] sm:$0xff] %v643
          %684 = vst [vmem:[%s333 + $0x98] sm:$0xff] %v646
          %685 = vst [vmem:[%s333 + $0xa0] sm:$0xff] %v651
          %686 = vst [vmem:[%s333 + $0xa8] sm:$0xff] %v654
          %687 = vst [vmem:[%s333 + $0xb0] sm:$0xff] %v659
          %688 = vst [vmem:[%s333 + $0xb8] sm:$0xff] %v662
          %v689 = vld [vmem:[%s338] sm:$0xff]
          %v690 = vld [vmem:[%s338 + $0x8] sm:$0xff]
          %v691 = vld [vmem:[%s338 + $0x10] sm:$0xff]
          %v692 = vld [vmem:[%s338 + $0x18] sm:$0xff]
          %v693 = vld [vmem:[%s338 + $0x20] sm:$0xff]
          %v694 = vld [vmem:[%s338 + $0x28] sm:$0xff]
          %v695 = vld [vmem:[%s338 + $0x30] sm:$0xff]
          %v696 = vld [vmem:[%s338 + $0x38] sm:$0xff]
          %v697 = vld [vmem:[%s338 + $0x40] sm:$0xff]
          %v698 = vld [vmem:[%s338 + $0x48] sm:$0xff]
          %v699 = vld [vmem:[%s338 + $0x50] sm:$0xff]
          %v700 = vld [vmem:[%s338 + $0x58] sm:$0xff]
          %v701 = vld [vmem:[%s338 + $0x60] sm:$0xff]
          %v702 = vld [vmem:[%s338 + $0x68] sm:$0xff]
          %v703 = vld [vmem:[%s338 + $0x70] sm:$0xff]
          %v704 = vld [vmem:[%s338 + $0x78] sm:$0xff]
          %v705 = vld [vmem:[%s338 + $0x80] sm:$0xff]
          %v706 = vld [vmem:[%s338 + $0x88] sm:$0xff]
          %v707 = vld [vmem:[%s338 + $0x90] sm:$0xff]
          %v708 = vld [vmem:[%s338 + $0x98] sm:$0xff]
          %v709 = vld [vmem:[%s338 + $0xa0] sm:$0xff]
          %v710 = vld [vmem:[%s338 + $0xa8] sm:$0xff]
          %v711 = vld [vmem:[%s338 + $0xb0] sm:$0xff]
          %v712 = vld [vmem:[%s338 + $0xb8] sm:$0xff]
          %v713 = vmul.f32 %v689, 0.48387095
          %v714 = vmul.f32 %v690, 0.48387095
          %v715 = vmul.f32 %v691, 0.48387095
          %v716 = vmul.f32 %v692, 0.48387095
          %v717 = vmul.f32 %v693, 0.48387095
          %v718 = vmul.f32 %v694, 0.48387095
          %v719 = vmul.f32 %v695, 0.48387095
          %v720 = vmul.f32 %v696, 0.48387095
          %v721 = vmul.f32 %v697, 0.48387095
          %v722 = vmul.f32 %v698, 0.48387095
          %v723 = vmul.f32 %v699, 0.48387095
          %v724 = vmul.f32 %v700, 0.48387095
          %v725 = vmul.f32 %v701, 0.48387095
          %v726 = vmul.f32 %v702, 0.48387095
          %v727 = vmul.f32 %v703, 0.48387095
          %v728 = vmul.f32 %v704, 0.48387095
          %v729 = vmul.f32 %v705, 0.48387095
          %v730 = vmul.f32 %v706, 0.48387095
          %v731 = vmul.f32 %v707, 0.48387095
          %v732 = vmul.f32 %v708, 0.48387095
          %v733 = vmul.f32 %v709, 0.48387095
          %v734 = vmul.f32 %v710, 0.48387095
          %v735 = vmul.f32 %v711, 0.48387095
          %v736 = vmul.f32 %v712, 0.48387095
          %v737 = vfloor.f32 %v713
          %v738 = vfloor.f32 %v714
          %v739 = vfloor.f32 %v715
          %v740 = vfloor.f32 %v716
          %v741 = vfloor.f32 %v717
          %v742 = vfloor.f32 %v718
          %v743 = vfloor.f32 %v719
          %v744 = vfloor.f32 %v720
          %v745 = vfloor.f32 %v721
          %v746 = vfloor.f32 %v722
          %v747 = vfloor.f32 %v723
          %v748 = vfloor.f32 %v724
          %v749 = vfloor.f32 %v725
          %v750 = vfloor.f32 %v726
          %v751 = vfloor.f32 %v727
          %v752 = vfloor.f32 %v728
          %v753 = vfloor.f32 %v729
          %v754 = vfloor.f32 %v730
          %v755 = vfloor.f32 %v731
          %v756 = vfloor.f32 %v732
          %v757 = vfloor.f32 %v733
          %v758 = vfloor.f32 %v734
          %v759 = vfloor.f32 %v735
          %v760 = vfloor.f32 %v736
          %v761 = vfloor.f32 %v689
          %v762 = vfloor.f32 %v690
          %v763 = vfloor.f32 %v691
          %v764 = vfloor.f32 %v692
          %v765 = vfloor.f32 %v693
          %v766 = vfloor.f32 %v694
          %v767 = vfloor.f32 %v695
          %v768 = vfloor.f32 %v696
          %v769 = vfloor.f32 %v697
          %v770 = vfloor.f32 %v698
          %v771 = vfloor.f32 %v699
          %v772 = vfloor.f32 %v700
          %v773 = vfloor.f32 %v701
          %v774 = vfloor.f32 %v702
          %v775 = vfloor.f32 %v703
          %v776 = vfloor.f32 %v704
          %v777 = vfloor.f32 %v705
          %v778 = vfloor.f32 %v706
          %v779 = vfloor.f32 %v707
          %v780 = vfloor.f32 %v708
          %v781 = vfloor.f32 %v709
          %v782 = vfloor.f32 %v710
          %v783 = vfloor.f32 %v711
          %v784 = vfloor.f32 %v712
          %v785 = vsub.f32 %v713, %v737
          %v786 = vsub.f32 %v714, %v738
          %v787 = vsub.f32 %v715, %v739
          %v788 = vsub.f32 %v716, %v740
          %v789 = vsub.f32 %v717, %v741
          %v790 = vsub.f32 %v718, %v742
          %v791 = vsub.f32 %v719, %v743
          %v792 = vsub.f32 %v720, %v744
          %v793 = vsub.f32 %v721, %v745
          %v794 = vsub.f32 %v722, %v746
          %v795 = vsub.f32 %v723, %v747
          %v796 = vsub.f32 %v724, %v748
          %v797 = vsub.f32 %v725, %v749
          %v798 = vsub.f32 %v726, %v750
          %v799 = vsub.f32 %v727, %v751
          %v800 = vsub.f32 %v728, %v752
          %v801 = vsub.f32 %v729, %v753
          %v802 = vsub.f32 %v730, %v754
          %v803 = vsub.f32 %v731, %v755
          %v804 = vsub.f32 %v732, %v756
          %v805 = vsub.f32 %v733, %v757
          %v806 = vsub.f32 %v734, %v758
          %v807 = vsub.f32 %v735, %v759
          %v808 = vsub.f32 %v736, %v760
          %v809 = vsub.f32 1.0, %v785
          %v810 = vsub.f32 1.0, %v786
          %v811 = vsub.f32 1.0, %v787
          %v812 = vsub.f32 1.0, %v788
          %v813 = vsub.f32 1.0, %v789
          %v814 = vsub.f32 1.0, %v790
          %v815 = vsub.f32 1.0, %v791
          %v816 = vsub.f32 1.0, %v792
          %v817 = vsub.f32 1.0, %v793
          %v818 = vsub.f32 1.0, %v794
          %v819 = vsub.f32 1.0, %v795
          %v820 = vsub.f32 1.0, %v796
          %v821 = vsub.f32 1.0, %v797
          %v822 = vsub.f32 1.0, %v798
          %v823 = vsub.f32 1.0, %v799
          %v824 = vsub.f32 1.0, %v800
          %v825 = vsub.f32 1.0, %v801
          %v826 = vsub.f32 1.0, %v802
          %v827 = vsub.f32 1.0, %v803
          %v828 = vsub.f32 1.0, %v804
          %v829 = vsub.f32 1.0, %v805
          %v830 = vsub.f32 1.0, %v806
          %v831 = vsub.f32 1.0, %v807
          %v832 = vsub.f32 1.0, %v808
          %v833 = vsub.f32 %v689, %v761
          %v834 = vsub.f32 %v690, %v762
          %v835 = vsub.f32 %v691, %v763
          %v836 = vsub.f32 %v692, %v764
          %v837 = vsub.f32 %v693, %v765
          %v838 = vsub.f32 %v694, %v766
          %v839 = vsub.f32 %v695, %v767
          %v840 = vsub.f32 %v696, %v768
          %v841 = vsub.f32 %v697, %v769
          %v842 = vsub.f32 %v698, %v770
          %v843 = vsub.f32 %v699, %v771
          %v844 = vsub.f32 %v700, %v772
          %v845 = vsub.f32 %v701, %v773
          %v846 = vsub.f32 %v702, %v774
          %v847 = vsub.f32 %v703, %v775
          %v848 = vsub.f32 %v704, %v776
          %v849 = vsub.f32 %v705, %v777
          %v850 = vsub.f32 %v706, %v778
          %v851 = vsub.f32 %v707, %v779
          %v852 = vsub.f32 %v708, %v780
          %v853 = vsub.f32 %v709, %v781
          %v854 = vsub.f32 %v710, %v782
          %v855 = vsub.f32 %v711, %v783
          %v856 = vsub.f32 %v712, %v784
          %v857 = vsub.f32 1.0, %v833
          %v858 = vsub.f32 1.0, %v834
          %v859 = vsub.f32 1.0, %v835
          %v860 = vsub.f32 1.0, %v836
          %v861 = vsub.f32 1.0, %v837
          %v862 = vsub.f32 1.0, %v838
          %v863 = vsub.f32 1.0, %v839
          %v864 = vsub.f32 1.0, %v840
          %v865 = vsub.f32 1.0, %v841
          %v866 = vsub.f32 1.0, %v842
          %v867 = vsub.f32 1.0, %v843
          %v868 = vsub.f32 1.0, %v844
          %v869 = vsub.f32 1.0, %v845
          %v870 = vsub.f32 1.0, %v846
          %v871 = vsub.f32 1.0, %v847
          %v872 = vsub.f32 1.0, %v848
          %v873 = vsub.f32 1.0, %v849
          %v874 = vsub.f32 1.0, %v850
          %v875 = vsub.f32 1.0, %v851
          %v876 = vsub.f32 1.0, %v852
          %v877 = vsub.f32 1.0, %v853
          %v878 = vsub.f32 1.0, %v854
          %v879 = vsub.f32 1.0, %v855
          %v880 = vsub.f32 1.0, %v856
          %v881 = vcvt.f32.s32.to.zero.pseudo %v737
          %v882 = vcvt.f32.s32.to.zero.pseudo %v738
          %v883 = vcvt.f32.s32.to.zero.pseudo %v739
          %v884 = vcvt.f32.s32.to.zero.pseudo %v740
          %v885 = vcvt.f32.s32.to.zero.pseudo %v741
          %v886 = vcvt.f32.s32.to.zero.pseudo %v742
          %v887 = vcvt.f32.s32.to.zero.pseudo %v743
          %v888 = vcvt.f32.s32.to.zero.pseudo %v744
          %v889 = vcvt.f32.s32.to.zero.pseudo %v745
          %v890 = vcvt.f32.s32.to.zero.pseudo %v746
          %v891 = vcvt.f32.s32.to.zero.pseudo %v747
          %v892 = vcvt.f32.s32.to.zero.pseudo %v748
          %v893 = vcvt.f32.s32.to.zero.pseudo %v749
          %v894 = vcvt.f32.s32.to.zero.pseudo %v750
          %v895 = vcvt.f32.s32.to.zero.pseudo %v751
          %v896 = vcvt.f32.s32.to.zero.pseudo %v752
          %v897 = vcvt.f32.s32.to.zero.pseudo %v753
          %v898 = vcvt.f32.s32.to.zero.pseudo %v754
          %v899 = vcvt.f32.s32.to.zero.pseudo %v755
          %v900 = vcvt.f32.s32.to.zero.pseudo %v756
          %v901 = vcvt.f32.s32.to.zero.pseudo %v757
          %v902 = vcvt.f32.s32.to.zero.pseudo %v758
          %v903 = vcvt.f32.s32.to.zero.pseudo %v759
          %v904 = vcvt.f32.s32.to.zero.pseudo %v760
          %v905 = vcvt.f32.s32.to.zero.pseudo %v761
          %v906 = vcvt.f32.s32.to.zero.pseudo %v762
          %v907 = vcvt.f32.s32.to.zero.pseudo %v763
          %v908 = vcvt.f32.s32.to.zero.pseudo %v764
          %v909 = vcvt.f32.s32.to.zero.pseudo %v765
          %v910 = vcvt.f32.s32.to.zero.pseudo %v766
          %v911 = vcvt.f32.s32.to.zero.pseudo %v767
          %v912 = vcvt.f32.s32.to.zero.pseudo %v768
          %v913 = vcvt.f32.s32.to.zero.pseudo %v769
          %v914 = vcvt.f32.s32.to.zero.pseudo %v770
          %v915 = vcvt.f32.s32.to.zero.pseudo %v771
          %v916 = vcvt.f32.s32.to.zero.pseudo %v772
          %v917 = vcvt.f32.s32.to.zero.pseudo %v773
          %v918 = vcvt.f32.s32.to.zero.pseudo %v774
          %v919 = vcvt.f32.s32.to.zero.pseudo %v775
          %v920 = vcvt.f32.s32.to.zero.pseudo %v776
          %v921 = vcvt.f32.s32.to.zero.pseudo %v777
          %v922 = vcvt.f32.s32.to.zero.pseudo %v778
          %v923 = vcvt.f32.s32.to.zero.pseudo %v779
          %v924 = vcvt.f32.s32.to.zero.pseudo %v780
          %v925 = vcvt.f32.s32.to.zero.pseudo %v781
          %v926 = vcvt.f32.s32.to.zero.pseudo %v782
          %v927 = vcvt.f32.s32.to.zero.pseudo %v783
          %v928 = vcvt.f32.s32.to.zero.pseudo %v784
          %vm929 = vcmp.ge.s32.totalorder %v881, 0
          %vm930 = vcmp.ge.s32.totalorder %v882, 0
          %vm931 = vcmp.ge.s32.totalorder %v883, 0
          %vm932 = vcmp.ge.s32.totalorder %v884, 0
          %vm933 = vcmp.ge.s32.totalorder %v885, 0
          %vm934 = vcmp.ge.s32.totalorder %v886, 0
          %vm935 = vcmp.ge.s32.totalorder %v887, 0
          %vm936 = vcmp.ge.s32.totalorder %v888, 0
          %vm937 = vcmp.ge.s32.totalorder %v889, 0
          %vm938 = vcmp.ge.s32.totalorder %v890, 0
          %vm939 = vcmp.ge.s32.totalorder %v891, 0
          %vm940 = vcmp.ge.s32.totalorder %v892, 0
          %vm941 = vcmp.ge.s32.totalorder %v893, 0
          %vm942 = vcmp.ge.s32.totalorder %v894, 0
          %vm943 = vcmp.ge.s32.totalorder %v895, 0
          %vm944 = vcmp.ge.s32.totalorder %v896, 0
          %vm945 = vcmp.ge.s32.totalorder %v897, 0
          %vm946 = vcmp.ge.s32.totalorder %v898, 0
          %vm947 = vcmp.ge.s32.totalorder %v899, 0
          %vm948 = vcmp.ge.s32.totalorder %v900, 0
          %vm949 = vcmp.ge.s32.totalorder %v901, 0
          %vm950 = vcmp.ge.s32.totalorder %v902, 0
          %vm951 = vcmp.ge.s32.totalorder %v903, 0
          %vm952 = vcmp.ge.s32.totalorder %v904, 0
          %vm953 = vcmp.le.s32.totalorder %v881, 15
          %vm954 = vcmp.le.s32.totalorder %v882, 15
          %vm955 = vcmp.le.s32.totalorder %v883, 15
          %vm956 = vcmp.le.s32.totalorder %v884, 15
          %vm957 = vcmp.le.s32.totalorder %v885, 15
          %vm958 = vcmp.le.s32.totalorder %v886, 15
          %vm959 = vcmp.le.s32.totalorder %v887, 15
          %vm960 = vcmp.le.s32.totalorder %v888, 15
          %vm961 = vcmp.le.s32.totalorder %v889, 15
          %vm962 = vcmp.le.s32.totalorder %v890, 15
          %vm963 = vcmp.le.s32.totalorder %v891, 15
          %vm964 = vcmp.le.s32.totalorder %v892, 15
          %vm965 = vcmp.le.s32.totalorder %v893, 15
          %vm966 = vcmp.le.s32.totalorder %v894, 15
          %vm967 = vcmp.le.s32.totalorder %v895, 15
          %vm968 = vcmp.le.s32.totalorder %v896, 15
          %vm969 = vcmp.le.s32.totalorder %v897, 15
          %vm970 = vcmp.le.s32.totalorder %v898, 15
          %vm971 = vcmp.le.s32.totalorder %v899, 15
          %vm972 = vcmp.le.s32.totalorder %v900, 15
          %vm973 = vcmp.le.s32.totalorder %v901, 15
          %vm974 = vcmp.le.s32.totalorder %v902, 15
          %vm975 = vcmp.le.s32.totalorder %v903, 15
          %vm976 = vcmp.le.s32.totalorder %v904, 15
          %vm977 = vmand %vm929, %vm953
          %vm978 = vmand %vm930, %vm954
          %vm979 = vmand %vm931, %vm955
          %vm980 = vmand %vm932, %vm956
          %vm981 = vmand %vm933, %vm957
          %vm982 = vmand %vm934, %vm958
          %vm983 = vmand %vm935, %vm959
          %vm984 = vmand %vm936, %vm960
          %vm985 = vmand %vm937, %vm961
          %vm986 = vmand %vm938, %vm962
          %vm987 = vmand %vm939, %vm963
          %vm988 = vmand %vm940, %vm964
          %vm989 = vmand %vm941, %vm965
          %vm990 = vmand %vm942, %vm966
          %vm991 = vmand %vm943, %vm967
          %vm992 = vmand %vm944, %vm968
          %vm993 = vmand %vm945, %vm969
          %vm994 = vmand %vm946, %vm970
          %vm995 = vmand %vm947, %vm971
          %vm996 = vmand %vm948, %vm972
          %vm997 = vmand %vm949, %vm973
          %vm998 = vmand %vm950, %vm974
          %vm999 = vmand %vm951, %vm975
          %vm1000 = vmand %vm952, %vm976
          %v1001 = vadd.s32 %v881, 1
          %v1002 = vadd.s32 %v882, 1
          %v1003 = vadd.s32 %v883, 1
          %v1004 = vadd.s32 %v884, 1
          %v1005 = vadd.s32 %v885, 1
          %v1006 = vadd.s32 %v886, 1
          %v1007 = vadd.s32 %v887, 1
          %v1008 = vadd.s32 %v888, 1
          %v1009 = vadd.s32 %v889, 1
          %v1010 = vadd.s32 %v890, 1
          %v1011 = vadd.s32 %v891, 1
          %v1012 = vadd.s32 %v892, 1
          %v1013 = vadd.s32 %v893, 1
          %v1014 = vadd.s32 %v894, 1
          %v1015 = vadd.s32 %v895, 1
          %v1016 = vadd.s32 %v896, 1
          %v1017 = vadd.s32 %v897, 1
          %v1018 = vadd.s32 %v898, 1
          %v1019 = vadd.s32 %v899, 1
          %v1020 = vadd.s32 %v900, 1
          %v1021 = vadd.s32 %v901, 1
          %v1022 = vadd.s32 %v902, 1
          %v1023 = vadd.s32 %v903, 1
          %v1024 = vadd.s32 %v904, 1
          %vm1025 = vcmp.ge.s32.totalorder %v1001, 0
          %vm1026 = vcmp.ge.s32.totalorder %v1002, 0
          %vm1027 = vcmp.ge.s32.totalorder %v1003, 0
          %vm1028 = vcmp.ge.s32.totalorder %v1004, 0
          %vm1029 = vcmp.ge.s32.totalorder %v1005, 0
          %vm1030 = vcmp.ge.s32.totalorder %v1006, 0
          %vm1031 = vcmp.ge.s32.totalorder %v1007, 0
          %vm1032 = vcmp.ge.s32.totalorder %v1008, 0
          %vm1033 = vcmp.ge.s32.totalorder %v1009, 0
          %vm1034 = vcmp.ge.s32.totalorder %v1010, 0
          %vm1035 = vcmp.ge.s32.totalorder %v1011, 0
          %vm1036 = vcmp.ge.s32.totalorder %v1012, 0
          %vm1037 = vcmp.ge.s32.totalorder %v1013, 0
          %vm1038 = vcmp.ge.s32.totalorder %v1014, 0
          %vm1039 = vcmp.ge.s32.totalorder %v1015, 0
          %vm1040 = vcmp.ge.s32.totalorder %v1016, 0
          %vm1041 = vcmp.ge.s32.totalorder %v1017, 0
          %vm1042 = vcmp.ge.s32.totalorder %v1018, 0
          %vm1043 = vcmp.ge.s32.totalorder %v1019, 0
          %vm1044 = vcmp.ge.s32.totalorder %v1020, 0
          %vm1045 = vcmp.ge.s32.totalorder %v1021, 0
          %vm1046 = vcmp.ge.s32.totalorder %v1022, 0
          %vm1047 = vcmp.ge.s32.totalorder %v1023, 0
          %vm1048 = vcmp.ge.s32.totalorder %v1024, 0
          %vm1049 = vcmp.le.s32.totalorder %v1001, 15
          %vm1050 = vcmp.le.s32.totalorder %v1002, 15
          %vm1051 = vcmp.le.s32.totalorder %v1003, 15
          %vm1052 = vcmp.le.s32.totalorder %v1004, 15
          %vm1053 = vcmp.le.s32.totalorder %v1005, 15
          %vm1054 = vcmp.le.s32.totalorder %v1006, 15
          %vm1055 = vcmp.le.s32.totalorder %v1007, 15
          %vm1056 = vcmp.le.s32.totalorder %v1008, 15
          %vm1057 = vcmp.le.s32.totalorder %v1009, 15
          %vm1058 = vcmp.le.s32.totalorder %v1010, 15
          %vm1059 = vcmp.le.s32.totalorder %v1011, 15
          %vm1060 = vcmp.le.s32.totalorder %v1012, 15
          %vm1061 = vcmp.le.s32.totalorder %v1013, 15
          %vm1062 = vcmp.le.s32.totalorder %v1014, 15
          %vm1063 = vcmp.le.s32.totalorder %v1015, 15
          %vm1064 = vcmp.le.s32.totalorder %v1016, 15
          %vm1065 = vcmp.le.s32.totalorder %v1017, 15
          %vm1066 = vcmp.le.s32.totalorder %v1018, 15
          %vm1067 = vcmp.le.s32.totalorder %v1019, 15
          %vm1068 = vcmp.le.s32.totalorder %v1020, 15
          %vm1069 = vcmp.le.s32.totalorder %v1021, 15
          %vm1070 = vcmp.le.s32.totalorder %v1022, 15
          %vm1071 = vcmp.le.s32.totalorder %v1023, 15
          %vm1072 = vcmp.le.s32.totalorder %v1024, 15
          %vm1073 = vmand %vm1025, %vm1049
          %vm1074 = vmand %vm1026, %vm1050
          %vm1075 = vmand %vm1027, %vm1051
          %vm1076 = vmand %vm1028, %vm1052
          %vm1077 = vmand %vm1029, %vm1053
          %vm1078 = vmand %vm1030, %vm1054
          %vm1079 = vmand %vm1031, %vm1055
          %vm1080 = vmand %vm1032, %vm1056
          %vm1081 = vmand %vm1033, %vm1057
          %vm1082 = vmand %vm1034, %vm1058
          %vm1083 = vmand %vm1035, %vm1059
          %vm1084 = vmand %vm1036, %vm1060
          %vm1085 = vmand %vm1037, %vm1061
          %vm1086 = vmand %vm1038, %vm1062
          %vm1087 = vmand %vm1039, %vm1063
          %vm1088 = vmand %vm1040, %vm1064
          %vm1089 = vmand %vm1041, %vm1065
          %vm1090 = vmand %vm1042, %vm1066
          %vm1091 = vmand %vm1043, %vm1067
          %vm1092 = vmand %vm1044, %vm1068
          %vm1093 = vmand %vm1045, %vm1069
          %vm1094 = vmand %vm1046, %vm1070
          %vm1095 = vmand %vm1047, %vm1071
          %vm1096 = vmand %vm1048, %vm1072
          %vm1097 = vcmp.ge.s32.totalorder %v905, 0
          %vm1098 = vcmp.ge.s32.totalorder %v906, 0
          %vm1099 = vcmp.ge.s32.totalorder %v907, 0
          %vm1100 = vcmp.ge.s32.totalorder %v908, 0
          %vm1101 = vcmp.ge.s32.totalorder %v909, 0
          %vm1102 = vcmp.ge.s32.totalorder %v910, 0
          %vm1103 = vcmp.ge.s32.totalorder %v911, 0
          %vm1104 = vcmp.ge.s32.totalorder %v912, 0
          %vm1105 = vcmp.ge.s32.totalorder %v913, 0
          %vm1106 = vcmp.ge.s32.totalorder %v914, 0
          %vm1107 = vcmp.ge.s32.totalorder %v915, 0
          %vm1108 = vcmp.ge.s32.totalorder %v916, 0
          %vm1109 = vcmp.ge.s32.totalorder %v917, 0
          %vm1110 = vcmp.ge.s32.totalorder %v918, 0
          %vm1111 = vcmp.ge.s32.totalorder %v919, 0
          %vm1112 = vcmp.ge.s32.totalorder %v920, 0
          %vm1113 = vcmp.ge.s32.totalorder %v921, 0
          %vm1114 = vcmp.ge.s32.totalorder %v922, 0
          %vm1115 = vcmp.ge.s32.totalorder %v923, 0
          %vm1116 = vcmp.ge.s32.totalorder %v924, 0
          %vm1117 = vcmp.ge.s32.totalorder %v925, 0
          %vm1118 = vcmp.ge.s32.totalorder %v926, 0
          %vm1119 = vcmp.ge.s32.totalorder %v927, 0
          %vm1120 = vcmp.ge.s32.totalorder %v928, 0
          %vm1121 = vcmp.le.s32.totalorder %v905, 1
          %vm1122 = vcmp.le.s32.totalorder %v906, 1
          %vm1123 = vcmp.le.s32.totalorder %v907, 1
          %vm1124 = vcmp.le.s32.totalorder %v908, 1
          %vm1125 = vcmp.le.s32.totalorder %v909, 1
          %vm1126 = vcmp.le.s32.totalorder %v910, 1
          %vm1127 = vcmp.le.s32.totalorder %v911, 1
          %vm1128 = vcmp.le.s32.totalorder %v912, 1
          %vm1129 = vcmp.le.s32.totalorder %v913, 1
          %vm1130 = vcmp.le.s32.totalorder %v914, 1
          %vm1131 = vcmp.le.s32.totalorder %v915, 1
          %vm1132 = vcmp.le.s32.totalorder %v916, 1
          %vm1133 = vcmp.le.s32.totalorder %v917, 1
          %vm1134 = vcmp.le.s32.totalorder %v918, 1
          %vm1135 = vcmp.le.s32.totalorder %v919, 1
          %vm1136 = vcmp.le.s32.totalorder %v920, 1
          %vm1137 = vcmp.le.s32.totalorder %v921, 1
          %vm1138 = vcmp.le.s32.totalorder %v922, 1
          %vm1139 = vcmp.le.s32.totalorder %v923, 1
          %vm1140 = vcmp.le.s32.totalorder %v924, 1
          %vm1141 = vcmp.le.s32.totalorder %v925, 1
          %vm1142 = vcmp.le.s32.totalorder %v926, 1
          %vm1143 = vcmp.le.s32.totalorder %v927, 1
          %vm1144 = vcmp.le.s32.totalorder %v928, 1
          %vm1145 = vmand %vm1097, %vm1121
          %vm1146 = vmand %vm1098, %vm1122
          %vm1147 = vmand %vm1099, %vm1123
          %vm1148 = vmand %vm1100, %vm1124
          %vm1149 = vmand %vm1101, %vm1125
          %vm1150 = vmand %vm1102, %vm1126
          %vm1151 = vmand %vm1103, %vm1127
          %vm1152 = vmand %vm1104, %vm1128
          %vm1153 = vmand %vm1105, %vm1129
          %vm1154 = vmand %vm1106, %vm1130
          %vm1155 = vmand %vm1107, %vm1131
          %vm1156 = vmand %vm1108, %vm1132
          %vm1157 = vmand %vm1109, %vm1133
          %vm1158 = vmand %vm1110, %vm1134
          %vm1159 = vmand %vm1111, %vm1135
          %vm1160 = vmand %vm1112, %vm1136
          %vm1161 = vmand %vm1113, %vm1137
          %vm1162 = vmand %vm1114, %vm1138
          %vm1163 = vmand %vm1115, %vm1139
          %vm1164 = vmand %vm1116, %vm1140
          %vm1165 = vmand %vm1117, %vm1141
          %vm1166 = vmand %vm1118, %vm1142
          %vm1167 = vmand %vm1119, %vm1143
          %vm1168 = vmand %vm1120, %vm1144
          %v1169 = vadd.s32 %v905, 1
          %v1170 = vadd.s32 %v906, 1
          %v1171 = vadd.s32 %v907, 1
          %v1172 = vadd.s32 %v908, 1
          %v1173 = vadd.s32 %v909, 1
          %v1174 = vadd.s32 %v910, 1
          %v1175 = vadd.s32 %v911, 1
          %v1176 = vadd.s32 %v912, 1
          %v1177 = vadd.s32 %v913, 1
          %v1178 = vadd.s32 %v914, 1
          %v1179 = vadd.s32 %v915, 1
          %v1180 = vadd.s32 %v916, 1
          %v1181 = vadd.s32 %v917, 1
          %v1182 = vadd.s32 %v918, 1
          %v1183 = vadd.s32 %v919, 1
          %v1184 = vadd.s32 %v920, 1
          %v1185 = vadd.s32 %v921, 1
          %v1186 = vadd.s32 %v922, 1
          %v1187 = vadd.s32 %v923, 1
          %v1188 = vadd.s32 %v924, 1
          %v1189 = vadd.s32 %v925, 1
          %v1190 = vadd.s32 %v926, 1
          %v1191 = vadd.s32 %v927, 1
          %v1192 = vadd.s32 %v928, 1
          %vm1193 = vcmp.ge.s32.totalorder %v1169, 0
          %vm1194 = vcmp.ge.s32.totalorder %v1170, 0
          %vm1195 = vcmp.ge.s32.totalorder %v1171, 0
          %vm1196 = vcmp.ge.s32.totalorder %v1172, 0
          %vm1197 = vcmp.ge.s32.totalorder %v1173, 0
          %vm1198 = vcmp.ge.s32.totalorder %v1174, 0
          %vm1199 = vcmp.ge.s32.totalorder %v1175, 0
          %vm1200 = vcmp.ge.s32.totalorder %v1176, 0
          %vm1201 = vcmp.ge.s32.totalorder %v1177, 0
          %vm1202 = vcmp.ge.s32.totalorder %v1178, 0
          %vm1203 = vcmp.ge.s32.totalorder %v1179, 0
          %vm1204 = vcmp.ge.s32.totalorder %v1180, 0
          %vm1205 = vcmp.ge.s32.totalorder %v1181, 0
          %vm1206 = vcmp.ge.s32.totalorder %v1182, 0
          %vm1207 = vcmp.ge.s32.totalorder %v1183, 0
          %vm1208 = vcmp.ge.s32.totalorder %v1184, 0
          %vm1209 = vcmp.ge.s32.totalorder %v1185, 0
          %vm1210 = vcmp.ge.s32.totalorder %v1186, 0
          %vm1211 = vcmp.ge.s32.totalorder %v1187, 0
          %vm1212 = vcmp.ge.s32.totalorder %v1188, 0
          %vm1213 = vcmp.ge.s32.totalorder %v1189, 0
          %vm1214 = vcmp.ge.s32.totalorder %v1190, 0
          %vm1215 = vcmp.ge.s32.totalorder %v1191, 0
          %vm1216 = vcmp.ge.s32.totalorder %v1192, 0
          %vm1217 = vcmp.le.s32.totalorder %v1169, 1
          %vm1218 = vcmp.le.s32.totalorder %v1170, 1
          %vm1219 = vcmp.le.s32.totalorder %v1171, 1
          %vm1220 = vcmp.le.s32.totalorder %v1172, 1
          %vm1221 = vcmp.le.s32.totalorder %v1173, 1
          %vm1222 = vcmp.le.s32.totalorder %v1174, 1
          %vm1223 = vcmp.le.s32.totalorder %v1175, 1
          %vm1224 = vcmp.le.s32.totalorder %v1176, 1
          %vm1225 = vcmp.le.s32.totalorder %v1177, 1
          %vm1226 = vcmp.le.s32.totalorder %v1178, 1
          %vm1227 = vcmp.le.s32.totalorder %v1179, 1
          %vm1228 = vcmp.le.s32.totalorder %v1180, 1
          %vm1229 = vcmp.le.s32.totalorder %v1181, 1
          %vm1230 = vcmp.le.s32.totalorder %v1182, 1
          %vm1231 = vcmp.le.s32.totalorder %v1183, 1
          %vm1232 = vcmp.le.s32.totalorder %v1184, 1
          %vm1233 = vcmp.le.s32.totalorder %v1185, 1
          %vm1234 = vcmp.le.s32.totalorder %v1186, 1
          %vm1235 = vcmp.le.s32.totalorder %v1187, 1
          %vm1236 = vcmp.le.s32.totalorder %v1188, 1
          %vm1237 = vcmp.le.s32.totalorder %v1189, 1
          %vm1238 = vcmp.le.s32.totalorder %v1190, 1
          %vm1239 = vcmp.le.s32.totalorder %v1191, 1
          %vm1240 = vcmp.le.s32.totalorder %v1192, 1
          %vm1241 = vmand %vm1193, %vm1217
          %vm1242 = vmand %vm1194, %vm1218
          %vm1243 = vmand %vm1195, %vm1219
          %vm1244 = vmand %vm1196, %vm1220
          %vm1245 = vmand %vm1197, %vm1221
          %vm1246 = vmand %vm1198, %vm1222
          %vm1247 = vmand %vm1199, %vm1223
          %vm1248 = vmand %vm1200, %vm1224
          %vm1249 = vmand %vm1201, %vm1225
          %vm1250 = vmand %vm1202, %vm1226
          %vm1251 = vmand %vm1203, %vm1227
          %vm1252 = vmand %vm1204, %vm1228
          %vm1253 = vmand %vm1205, %vm1229
          %vm1254 = vmand %vm1206, %vm1230
          %vm1255 = vmand %vm1207, %vm1231
          %vm1256 = vmand %vm1208, %vm1232
          %vm1257 = vmand %vm1209, %vm1233
          %vm1258 = vmand %vm1210, %vm1234
          %vm1259 = vmand %vm1211, %vm1235
          %vm1260 = vmand %vm1212, %vm1236
          %vm1261 = vmand %vm1213, %vm1237
          %vm1262 = vmand %vm1214, %vm1238
          %vm1263 = vmand %vm1215, %vm1239
          %vm1264 = vmand %vm1216, %vm1240
          %v1265 = vsel %vm977, %v809, 0.0
          %v1266 = vsel %vm978, %v810, 0.0
          %v1267 = vsel %vm979, %v811, 0.0
          %v1268 = vsel %vm980, %v812, 0.0
          %v1269 = vsel %vm981, %v813, 0.0
          %v1270 = vsel %vm982, %v814, 0.0
          %v1271 = vsel %vm983, %v815, 0.0
          %v1272 = vsel %vm984, %v816, 0.0
          %v1273 = vsel %vm985, %v817, 0.0
          %v1274 = vsel %vm986, %v818, 0.0
          %v1275 = vsel %vm987, %v819, 0.0
          %v1276 = vsel %vm988, %v820, 0.0
          %v1277 = vsel %vm989, %v821, 0.0
          %v1278 = vsel %vm990, %v822, 0.0
          %v1279 = vsel %vm991, %v823, 0.0
          %v1280 = vsel %vm992, %v824, 0.0
          %v1281 = vsel %vm993, %v825, 0.0
          %v1282 = vsel %vm994, %v826, 0.0
          %v1283 = vsel %vm995, %v827, 0.0
          %v1284 = vsel %vm996, %v828, 0.0
          %v1285 = vsel %vm997, %v829, 0.0
          %v1286 = vsel %vm998, %v830, 0.0
          %v1287 = vsel %vm999, %v831, 0.0
          %v1288 = vsel %vm1000, %v832, 0.0
          %v1289 = vsel %vm1073, %v785, 0.0
          %v1290 = vsel %vm1074, %v786, 0.0
          %v1291 = vsel %vm1075, %v787, 0.0
          %v1292 = vsel %vm1076, %v788, 0.0
          %v1293 = vsel %vm1077, %v789, 0.0
          %v1294 = vsel %vm1078, %v790, 0.0
          %v1295 = vsel %vm1079, %v791, 0.0
          %v1296 = vsel %vm1080, %v792, 0.0
          %v1297 = vsel %vm1081, %v793, 0.0
          %v1298 = vsel %vm1082, %v794, 0.0
          %v1299 = vsel %vm1083, %v795, 0.0
          %v1300 = vsel %vm1084, %v796, 0.0
          %v1301 = vsel %vm1085, %v797, 0.0
          %v1302 = vsel %vm1086, %v798, 0.0
          %v1303 = vsel %vm1087, %v799, 0.0
          %v1304 = vsel %vm1088, %v800, 0.0
          %v1305 = vsel %vm1089, %v801, 0.0
          %v1306 = vsel %vm1090, %v802, 0.0
          %v1307 = vsel %vm1091, %v803, 0.0
          %v1308 = vsel %vm1092, %v804, 0.0
          %v1309 = vsel %vm1093, %v805, 0.0
          %v1310 = vsel %vm1094, %v806, 0.0
          %v1311 = vsel %vm1095, %v807, 0.0
          %v1312 = vsel %vm1096, %v808, 0.0
          %v1313 = vsel %vm977, 1, 0
          %v1314 = vsel %vm978, 1, 0
          %v1315 = vsel %vm979, 1, 0
          %v1316 = vsel %vm980, 1, 0
          %v1317 = vsel %vm981, 1, 0
          %v1318 = vsel %vm982, 1, 0
          %v1319 = vsel %vm983, 1, 0
          %v1320 = vsel %vm984, 1, 0
          %v1321 = vsel %vm985, 1, 0
          %v1322 = vsel %vm986, 1, 0
          %v1323 = vsel %vm987, 1, 0
          %v1324 = vsel %vm988, 1, 0
          %v1325 = vsel %vm989, 1, 0
          %v1326 = vsel %vm990, 1, 0
          %v1327 = vsel %vm991, 1, 0
          %v1328 = vsel %vm992, 1, 0
          %v1329 = vsel %vm993, 1, 0
          %v1330 = vsel %vm994, 1, 0
          %v1331 = vsel %vm995, 1, 0
          %v1332 = vsel %vm996, 1, 0
          %v1333 = vsel %vm997, 1, 0
          %v1334 = vsel %vm998, 1, 0
          %v1335 = vsel %vm999, 1, 0
          %v1336 = vsel %vm1000, 1, 0
          %1337 = vrot.lane.b32.xlu0 %v1313, 1
          %v1338 = vpop.permute.xlu0 %1337
          %1339 = vrot.lane.b32.xlu0 %v1314, 1
          %v1340 = vpop.permute.xlu0 %1339
          %1341 = vrot.lane.b32.xlu0 %v1315, 1
          %v1342 = vpop.permute.xlu0 %1341
          %1343 = vrot.lane.b32.xlu0 %v1316, 1
          %v1344 = vpop.permute.xlu0 %1343
          %1345 = vrot.lane.b32.xlu0 %v1317, 1
          %v1346 = vpop.permute.xlu0 %1345
          %1347 = vrot.lane.b32.xlu0 %v1318, 1
          %v1348 = vpop.permute.xlu0 %1347
          %1349 = vrot.lane.b32.xlu0 %v1319, 1
          %v1350 = vpop.permute.xlu0 %1349
          %1351 = vrot.lane.b32.xlu0 %v1320, 1
          %v1352 = vpop.permute.xlu0 %1351
          %1353 = vrot.lane.b32.xlu0 %v1321, 1
          %v1354 = vpop.permute.xlu0 %1353
          %1355 = vrot.lane.b32.xlu0 %v1322, 1
          %v1356 = vpop.permute.xlu0 %1355
          %1357 = vrot.lane.b32.xlu0 %v1323, 1
          %v1358 = vpop.permute.xlu0 %1357
          %1359 = vrot.lane.b32.xlu0 %v1324, 1
          %v1360 = vpop.permute.xlu0 %1359
          %1361 = vrot.lane.b32.xlu0 %v1325, 1
          %v1362 = vpop.permute.xlu0 %1361
          %1363 = vrot.lane.b32.xlu0 %v1326, 1
          %v1364 = vpop.permute.xlu0 %1363
          %1365 = vrot.lane.b32.xlu0 %v1327, 1
          %v1366 = vpop.permute.xlu0 %1365
          %1367 = vrot.lane.b32.xlu0 %v1328, 1
          %v1368 = vpop.permute.xlu0 %1367
          %1369 = vrot.lane.b32.xlu0 %v1329, 1
          %v1370 = vpop.permute.xlu0 %1369
          %1371 = vrot.lane.b32.xlu0 %v1330, 1
          %v1372 = vpop.permute.xlu0 %1371
          %1373 = vrot.lane.b32.xlu0 %v1331, 1
          %v1374 = vpop.permute.xlu0 %1373
          %1375 = vrot.lane.b32.xlu0 %v1332, 1
          %v1376 = vpop.permute.xlu0 %1375
          %1377 = vrot.lane.b32.xlu0 %v1333, 1
          %v1378 = vpop.permute.xlu0 %1377
          %1379 = vrot.lane.b32.xlu0 %v1334, 1
          %v1380 = vpop.permute.xlu0 %1379
          %1381 = vrot.lane.b32.xlu0 %v1335, 1
          %v1382 = vpop.permute.xlu0 %1381
          %1383 = vrot.lane.b32.xlu0 %v1336, 1
          %v1384 = vpop.permute.xlu0 %1383
          %vm1385 = vcmp.ne.s32.totalorder %v1338, 0
          %vm1386 = vcmp.ne.s32.totalorder %v1340, 0
          %vm1387 = vcmp.ne.s32.totalorder %v1342, 0
          %vm1388 = vcmp.ne.s32.totalorder %v1344, 0
          %vm1389 = vcmp.ne.s32.totalorder %v1346, 0
          %vm1390 = vcmp.ne.s32.totalorder %v1348, 0
          %vm1391 = vcmp.ne.s32.totalorder %v1350, 0
          %vm1392 = vcmp.ne.s32.totalorder %v1352, 0
          %vm1393 = vcmp.ne.s32.totalorder %v1354, 0
          %vm1394 = vcmp.ne.s32.totalorder %v1356, 0
          %vm1395 = vcmp.ne.s32.totalorder %v1358, 0
          %vm1396 = vcmp.ne.s32.totalorder %v1360, 0
          %vm1397 = vcmp.ne.s32.totalorder %v1362, 0
          %vm1398 = vcmp.ne.s32.totalorder %v1364, 0
          %vm1399 = vcmp.ne.s32.totalorder %v1366, 0
          %vm1400 = vcmp.ne.s32.totalorder %v1368, 0
          %vm1401 = vcmp.ne.s32.totalorder %v1370, 0
          %vm1402 = vcmp.ne.s32.totalorder %v1372, 0
          %vm1403 = vcmp.ne.s32.totalorder %v1374, 0
          %vm1404 = vcmp.ne.s32.totalorder %v1376, 0
          %vm1405 = vcmp.ne.s32.totalorder %v1378, 0
          %vm1406 = vcmp.ne.s32.totalorder %v1380, 0
          %vm1407 = vcmp.ne.s32.totalorder %v1382, 0
          %vm1408 = vcmp.ne.s32.totalorder %v1384, 0
          %vm1409 = vmand %vm1145, %vm1385
          %vm1410 = vmand %vm1146, %vm1386
          %vm1411 = vmand %vm1147, %vm1387
          %vm1412 = vmand %vm1148, %vm1388
          %vm1413 = vmand %vm1149, %vm1389
          %vm1414 = vmand %vm1150, %vm1390
          %vm1415 = vmand %vm1151, %vm1391
          %vm1416 = vmand %vm1152, %vm1392
          %vm1417 = vmand %vm1153, %vm1393
          %vm1418 = vmand %vm1154, %vm1394
          %vm1419 = vmand %vm1155, %vm1395
          %vm1420 = vmand %vm1156, %vm1396
          %vm1421 = vmand %vm1157, %vm1397
          %vm1422 = vmand %vm1158, %vm1398
          %vm1423 = vmand %vm1159, %vm1399
          %vm1424 = vmand %vm1160, %vm1400
          %vm1425 = vmand %vm1161, %vm1401
          %vm1426 = vmand %vm1162, %vm1402
          %vm1427 = vmand %vm1163, %vm1403
          %vm1428 = vmand %vm1164, %vm1404
          %vm1429 = vmand %vm1165, %vm1405
          %vm1430 = vmand %vm1166, %vm1406
          %vm1431 = vmand %vm1167, %vm1407
          %vm1432 = vmand %vm1168, %vm1408
          %1457 = vrot.lane.b32.xlu0 %v809, 1
          %v1458 = vpop.permute.xlu0 %1457
          %1459 = vrot.lane.b32.xlu0 %v810, 1
          %v1460 = vpop.permute.xlu0 %1459
          %1461 = vrot.lane.b32.xlu0 %v811, 1
          %v1462 = vpop.permute.xlu0 %1461
          %1463 = vrot.lane.b32.xlu0 %v812, 1
          %v1464 = vpop.permute.xlu0 %1463
          %1465 = vrot.lane.b32.xlu0 %v813, 1
          %v1466 = vpop.permute.xlu0 %1465
          %1467 = vrot.lane.b32.xlu0 %v814, 1
          %v1468 = vpop.permute.xlu0 %1467
          %1469 = vrot.lane.b32.xlu0 %v815, 1
          %v1470 = vpop.permute.xlu0 %1469
          %1471 = vrot.lane.b32.xlu0 %v816, 1
          %v1472 = vpop.permute.xlu0 %1471
          %1473 = vrot.lane.b32.xlu0 %v817, 1
          %v1474 = vpop.permute.xlu0 %1473
          %1475 = vrot.lane.b32.xlu0 %v818, 1
          %v1476 = vpop.permute.xlu0 %1475
          %1477 = vrot.lane.b32.xlu0 %v819, 1
          %v1478 = vpop.permute.xlu0 %1477
          %1479 = vrot.lane.b32.xlu0 %v820, 1
          %v1480 = vpop.permute.xlu0 %1479
          %1481 = vrot.lane.b32.xlu0 %v821, 1
          %v1482 = vpop.permute.xlu0 %1481
          %1483 = vrot.lane.b32.xlu0 %v822, 1
          %v1484 = vpop.permute.xlu0 %1483
          %1485 = vrot.lane.b32.xlu0 %v823, 1
          %v1486 = vpop.permute.xlu0 %1485
          %1487 = vrot.lane.b32.xlu0 %v824, 1
          %v1488 = vpop.permute.xlu0 %1487
          %1489 = vrot.lane.b32.xlu0 %v825, 1
          %v1490 = vpop.permute.xlu0 %1489
          %1491 = vrot.lane.b32.xlu0 %v826, 1
          %v1492 = vpop.permute.xlu0 %1491
          %1493 = vrot.lane.b32.xlu0 %v827, 1
          %v1494 = vpop.permute.xlu0 %1493
          %1495 = vrot.lane.b32.xlu0 %v828, 1
          %v1496 = vpop.permute.xlu0 %1495
          %1497 = vrot.lane.b32.xlu0 %v829, 1
          %v1498 = vpop.permute.xlu0 %1497
          %1499 = vrot.lane.b32.xlu0 %v830, 1
          %v1500 = vpop.permute.xlu0 %1499
          %1501 = vrot.lane.b32.xlu0 %v831, 1
          %v1502 = vpop.permute.xlu0 %1501
          %1503 = vrot.lane.b32.xlu0 %v832, 1
          %v1504 = vpop.permute.xlu0 %1503
          %v1529 = vmul.f32 %v857, %v1458
          %v1530 = vmul.f32 %v858, %v1460
          %v1531 = vmul.f32 %v859, %v1462
          %v1532 = vmul.f32 %v860, %v1464
          %v1533 = vmul.f32 %v861, %v1466
          %v1534 = vmul.f32 %v862, %v1468
          %v1535 = vmul.f32 %v863, %v1470
          %v1536 = vmul.f32 %v864, %v1472
          %v1537 = vmul.f32 %v865, %v1474
          %v1538 = vmul.f32 %v866, %v1476
          %v1539 = vmul.f32 %v867, %v1478
          %v1540 = vmul.f32 %v868, %v1480
          %v1541 = vmul.f32 %v869, %v1482
          %v1542 = vmul.f32 %v870, %v1484
          %v1543 = vmul.f32 %v871, %v1486
          %v1544 = vmul.f32 %v872, %v1488
          %v1545 = vmul.f32 %v873, %v1490
          %v1546 = vmul.f32 %v874, %v1492
          %v1547 = vmul.f32 %v875, %v1494
          %v1548 = vmul.f32 %v876, %v1496
          %v1549 = vmul.f32 %v877, %v1498
          %v1550 = vmul.f32 %v878, %v1500
          %v1551 = vmul.f32 %v879, %v1502
          %v1552 = vmul.f32 %v880, %v1504
          %v1553 = vsel %vm1409, %v1529, 0.0
          %v1554 = vsel %vm1410, %v1530, 0.0
          %v1555 = vsel %vm1411, %v1531, 0.0
          %v1556 = vsel %vm1412, %v1532, 0.0
          %v1557 = vsel %vm1413, %v1533, 0.0
          %v1558 = vsel %vm1414, %v1534, 0.0
          %v1559 = vsel %vm1415, %v1535, 0.0
          %v1560 = vsel %vm1416, %v1536, 0.0
          %v1561 = vsel %vm1417, %v1537, 0.0
          %v1562 = vsel %vm1418, %v1538, 0.0
          %v1563 = vsel %vm1419, %v1539, 0.0
          %v1564 = vsel %vm1420, %v1540, 0.0
          %v1565 = vsel %vm1421, %v1541, 0.0
          %v1566 = vsel %vm1422, %v1542, 0.0
          %v1567 = vsel %vm1423, %v1543, 0.0
          %v1568 = vsel %vm1424, %v1544, 0.0
          %v1569 = vsel %vm1425, %v1545, 0.0
          %v1570 = vsel %vm1426, %v1546, 0.0
          %v1571 = vsel %vm1427, %v1547, 0.0
          %v1572 = vsel %vm1428, %v1548, 0.0
          %v1573 = vsel %vm1429, %v1549, 0.0
          %v1574 = vsel %vm1430, %v1550, 0.0
          %v1575 = vsel %vm1431, %v1551, 0.0
          %v1576 = vsel %vm1432, %v1552, 0.0
          %v1577 = vsel %vm1073, 1, 0
          %v1578 = vsel %vm1074, 1, 0
          %v1579 = vsel %vm1075, 1, 0
          %v1580 = vsel %vm1076, 1, 0
          %v1581 = vsel %vm1077, 1, 0
          %v1582 = vsel %vm1078, 1, 0
          %v1583 = vsel %vm1079, 1, 0
          %v1584 = vsel %vm1080, 1, 0
          %v1585 = vsel %vm1081, 1, 0
          %v1586 = vsel %vm1082, 1, 0
          %v1587 = vsel %vm1083, 1, 0
          %v1588 = vsel %vm1084, 1, 0
          %v1589 = vsel %vm1085, 1, 0
          %v1590 = vsel %vm1086, 1, 0
          %v1591 = vsel %vm1087, 1, 0
          %v1592 = vsel %vm1088, 1, 0
          %v1593 = vsel %vm1089, 1, 0
          %v1594 = vsel %vm1090, 1, 0
          %v1595 = vsel %vm1091, 1, 0
          %v1596 = vsel %vm1092, 1, 0
          %v1597 = vsel %vm1093, 1, 0
          %v1598 = vsel %vm1094, 1, 0
          %v1599 = vsel %vm1095, 1, 0
          %v1600 = vsel %vm1096, 1, 0
          %1601 = vrot.lane.b32.xlu0 %v1577, 1
          %v1602 = vpop.permute.xlu0 %1601
          %1603 = vrot.lane.b32.xlu0 %v1578, 1
          %v1604 = vpop.permute.xlu0 %1603
          %1605 = vrot.lane.b32.xlu0 %v1579, 1
          %v1606 = vpop.permute.xlu0 %1605
          %1607 = vrot.lane.b32.xlu0 %v1580, 1
          %v1608 = vpop.permute.xlu0 %1607
          %1609 = vrot.lane.b32.xlu0 %v1581, 1
          %v1610 = vpop.permute.xlu0 %1609
          %1611 = vrot.lane.b32.xlu0 %v1582, 1
          %v1612 = vpop.permute.xlu0 %1611
          %1613 = vrot.lane.b32.xlu0 %v1583, 1
          %v1614 = vpop.permute.xlu0 %1613
          %1615 = vrot.lane.b32.xlu0 %v1584, 1
          %v1616 = vpop.permute.xlu0 %1615
          %1617 = vrot.lane.b32.xlu0 %v1585, 1
          %v1618 = vpop.permute.xlu0 %1617
          %1619 = vrot.lane.b32.xlu0 %v1586, 1
          %v1620 = vpop.permute.xlu0 %1619
          %1621 = vrot.lane.b32.xlu0 %v1587, 1
          %v1622 = vpop.permute.xlu0 %1621
          %1623 = vrot.lane.b32.xlu0 %v1588, 1
          %v1624 = vpop.permute.xlu0 %1623
          %1625 = vrot.lane.b32.xlu0 %v1589, 1
          %v1626 = vpop.permute.xlu0 %1625
          %1627 = vrot.lane.b32.xlu0 %v1590, 1
          %v1628 = vpop.permute.xlu0 %1627
          %1629 = vrot.lane.b32.xlu0 %v1591, 1
          %v1630 = vpop.permute.xlu0 %1629
          %1631 = vrot.lane.b32.xlu0 %v1592, 1
          %v1632 = vpop.permute.xlu0 %1631
          %1633 = vrot.lane.b32.xlu0 %v1593, 1
          %v1634 = vpop.permute.xlu0 %1633
          %1635 = vrot.lane.b32.xlu0 %v1594, 1
          %v1636 = vpop.permute.xlu0 %1635
          %1637 = vrot.lane.b32.xlu0 %v1595, 1
          %v1638 = vpop.permute.xlu0 %1637
          %1639 = vrot.lane.b32.xlu0 %v1596, 1
          %v1640 = vpop.permute.xlu0 %1639
          %1641 = vrot.lane.b32.xlu0 %v1597, 1
          %v1642 = vpop.permute.xlu0 %1641
          %1643 = vrot.lane.b32.xlu0 %v1598, 1
          %v1644 = vpop.permute.xlu0 %1643
          %1645 = vrot.lane.b32.xlu0 %v1599, 1
          %v1646 = vpop.permute.xlu0 %1645
          %1647 = vrot.lane.b32.xlu0 %v1600, 1
          %v1648 = vpop.permute.xlu0 %1647
          %vm1649 = vcmp.ne.s32.totalorder %v1602, 0
          %vm1650 = vcmp.ne.s32.totalorder %v1604, 0
          %vm1651 = vcmp.ne.s32.totalorder %v1606, 0
          %vm1652 = vcmp.ne.s32.totalorder %v1608, 0
          %vm1653 = vcmp.ne.s32.totalorder %v1610, 0
          %vm1654 = vcmp.ne.s32.totalorder %v1612, 0
          %vm1655 = vcmp.ne.s32.totalorder %v1614, 0
          %vm1656 = vcmp.ne.s32.totalorder %v1616, 0
          %vm1657 = vcmp.ne.s32.totalorder %v1618, 0
          %vm1658 = vcmp.ne.s32.totalorder %v1620, 0
          %vm1659 = vcmp.ne.s32.totalorder %v1622, 0
          %vm1660 = vcmp.ne.s32.totalorder %v1624, 0
          %vm1661 = vcmp.ne.s32.totalorder %v1626, 0
          %vm1662 = vcmp.ne.s32.totalorder %v1628, 0
          %vm1663 = vcmp.ne.s32.totalorder %v1630, 0
          %vm1664 = vcmp.ne.s32.totalorder %v1632, 0
          %vm1665 = vcmp.ne.s32.totalorder %v1634, 0
          %vm1666 = vcmp.ne.s32.totalorder %v1636, 0
          %vm1667 = vcmp.ne.s32.totalorder %v1638, 0
          %vm1668 = vcmp.ne.s32.totalorder %v1640, 0
          %vm1669 = vcmp.ne.s32.totalorder %v1642, 0
          %vm1670 = vcmp.ne.s32.totalorder %v1644, 0
          %vm1671 = vcmp.ne.s32.totalorder %v1646, 0
          %vm1672 = vcmp.ne.s32.totalorder %v1648, 0
          %vm1673 = vmand %vm1145, %vm1649
          %vm1674 = vmand %vm1146, %vm1650
          %vm1675 = vmand %vm1147, %vm1651
          %vm1676 = vmand %vm1148, %vm1652
          %vm1677 = vmand %vm1149, %vm1653
          %vm1678 = vmand %vm1150, %vm1654
          %vm1679 = vmand %vm1151, %vm1655
          %vm1680 = vmand %vm1152, %vm1656
          %vm1681 = vmand %vm1153, %vm1657
          %vm1682 = vmand %vm1154, %vm1658
          %vm1683 = vmand %vm1155, %vm1659
          %vm1684 = vmand %vm1156, %vm1660
          %vm1685 = vmand %vm1157, %vm1661
          %vm1686 = vmand %vm1158, %vm1662
          %vm1687 = vmand %vm1159, %vm1663
          %vm1688 = vmand %vm1160, %vm1664
          %vm1689 = vmand %vm1161, %vm1665
          %vm1690 = vmand %vm1162, %vm1666
          %vm1691 = vmand %vm1163, %vm1667
          %vm1692 = vmand %vm1164, %vm1668
          %vm1693 = vmand %vm1165, %vm1669
          %vm1694 = vmand %vm1166, %vm1670
          %vm1695 = vmand %vm1167, %vm1671
          %vm1696 = vmand %vm1168, %vm1672
          %1721 = vrot.lane.b32.xlu0 %v785, 1
          %v1722 = vpop.permute.xlu0 %1721
          %1723 = vrot.lane.b32.xlu0 %v786, 1
          %v1724 = vpop.permute.xlu0 %1723
          %1725 = vrot.lane.b32.xlu0 %v787, 1
          %v1726 = vpop.permute.xlu0 %1725
          %1727 = vrot.lane.b32.xlu0 %v788, 1
          %v1728 = vpop.permute.xlu0 %1727
          %1729 = vrot.lane.b32.xlu0 %v789, 1
          %v1730 = vpop.permute.xlu0 %1729
          %1731 = vrot.lane.b32.xlu0 %v790, 1
          %v1732 = vpop.permute.xlu0 %1731
          %1733 = vrot.lane.b32.xlu0 %v791, 1
          %v1734 = vpop.permute.xlu0 %1733
          %1735 = vrot.lane.b32.xlu0 %v792, 1
          %v1736 = vpop.permute.xlu0 %1735
          %1737 = vrot.lane.b32.xlu0 %v793, 1
          %v1738 = vpop.permute.xlu0 %1737
          %1739 = vrot.lane.b32.xlu0 %v794, 1
          %v1740 = vpop.permute.xlu0 %1739
          %1741 = vrot.lane.b32.xlu0 %v795, 1
          %v1742 = vpop.permute.xlu0 %1741
          %1743 = vrot.lane.b32.xlu0 %v796, 1
          %v1744 = vpop.permute.xlu0 %1743
          %1745 = vrot.lane.b32.xlu0 %v797, 1
          %v1746 = vpop.permute.xlu0 %1745
          %1747 = vrot.lane.b32.xlu0 %v798, 1
          %v1748 = vpop.permute.xlu0 %1747
          %1749 = vrot.lane.b32.xlu0 %v799, 1
          %v1750 = vpop.permute.xlu0 %1749
          %1751 = vrot.lane.b32.xlu0 %v800, 1
          %v1752 = vpop.permute.xlu0 %1751
          %1753 = vrot.lane.b32.xlu0 %v801, 1
          %v1754 = vpop.permute.xlu0 %1753
          %1755 = vrot.lane.b32.xlu0 %v802, 1
          %v1756 = vpop.permute.xlu0 %1755
          %1757 = vrot.lane.b32.xlu0 %v803, 1
          %v1758 = vpop.permute.xlu0 %1757
          %1759 = vrot.lane.b32.xlu0 %v804, 1
          %v1760 = vpop.permute.xlu0 %1759
          %1761 = vrot.lane.b32.xlu0 %v805, 1
          %v1762 = vpop.permute.xlu0 %1761
          %1763 = vrot.lane.b32.xlu0 %v806, 1
          %v1764 = vpop.permute.xlu0 %1763
          %1765 = vrot.lane.b32.xlu0 %v807, 1
          %v1766 = vpop.permute.xlu0 %1765
          %1767 = vrot.lane.b32.xlu0 %v808, 1
          %v1768 = vpop.permute.xlu0 %1767
          %v1793 = vmul.f32 %v857, %v1722
          %v1794 = vmul.f32 %v858, %v1724
          %v1795 = vmul.f32 %v859, %v1726
          %v1796 = vmul.f32 %v860, %v1728
          %v1797 = vmul.f32 %v861, %v1730
          %v1798 = vmul.f32 %v862, %v1732
          %v1799 = vmul.f32 %v863, %v1734
          %v1800 = vmul.f32 %v864, %v1736
          %v1801 = vmul.f32 %v865, %v1738
          %v1802 = vmul.f32 %v866, %v1740
          %v1803 = vmul.f32 %v867, %v1742
          %v1804 = vmul.f32 %v868, %v1744
          %v1805 = vmul.f32 %v869, %v1746
          %v1806 = vmul.f32 %v870, %v1748
          %v1807 = vmul.f32 %v871, %v1750
          %v1808 = vmul.f32 %v872, %v1752
          %v1809 = vmul.f32 %v873, %v1754
          %v1810 = vmul.f32 %v874, %v1756
          %v1811 = vmul.f32 %v875, %v1758
          %v1812 = vmul.f32 %v876, %v1760
          %v1813 = vmul.f32 %v877, %v1762
          %v1814 = vmul.f32 %v878, %v1764
          %v1815 = vmul.f32 %v879, %v1766
          %v1816 = vmul.f32 %v880, %v1768
          %v1817 = vsel %vm1673, %v1793, 0.0
          %v1818 = vsel %vm1674, %v1794, 0.0
          %v1819 = vsel %vm1675, %v1795, 0.0
          %v1820 = vsel %vm1676, %v1796, 0.0
          %v1821 = vsel %vm1677, %v1797, 0.0
          %v1822 = vsel %vm1678, %v1798, 0.0
          %v1823 = vsel %vm1679, %v1799, 0.0
          %v1824 = vsel %vm1680, %v1800, 0.0
          %v1825 = vsel %vm1681, %v1801, 0.0
          %v1826 = vsel %vm1682, %v1802, 0.0
          %v1827 = vsel %vm1683, %v1803, 0.0
          %v1828 = vsel %vm1684, %v1804, 0.0
          %v1829 = vsel %vm1685, %v1805, 0.0
          %v1830 = vsel %vm1686, %v1806, 0.0
          %v1831 = vsel %vm1687, %v1807, 0.0
          %v1832 = vsel %vm1688, %v1808, 0.0
          %v1833 = vsel %vm1689, %v1809, 0.0
          %v1834 = vsel %vm1690, %v1810, 0.0
          %v1835 = vsel %vm1691, %v1811, 0.0
          %v1836 = vsel %vm1692, %v1812, 0.0
          %v1837 = vsel %vm1693, %v1813, 0.0
          %v1838 = vsel %vm1694, %v1814, 0.0
          %v1839 = vsel %vm1695, %v1815, 0.0
          %v1840 = vsel %vm1696, %v1816, 0.0
          %vm1841 = vmand %vm1241, %vm1385
          %vm1842 = vmand %vm1242, %vm1386
          %vm1843 = vmand %vm1243, %vm1387
          %vm1844 = vmand %vm1244, %vm1388
          %vm1845 = vmand %vm1245, %vm1389
          %vm1846 = vmand %vm1246, %vm1390
          %vm1847 = vmand %vm1247, %vm1391
          %vm1848 = vmand %vm1248, %vm1392
          %vm1849 = vmand %vm1249, %vm1393
          %vm1850 = vmand %vm1250, %vm1394
          %vm1851 = vmand %vm1251, %vm1395
          %vm1852 = vmand %vm1252, %vm1396
          %vm1853 = vmand %vm1253, %vm1397
          %vm1854 = vmand %vm1254, %vm1398
          %vm1855 = vmand %vm1255, %vm1399
          %vm1856 = vmand %vm1256, %vm1400
          %vm1857 = vmand %vm1257, %vm1401
          %vm1858 = vmand %vm1258, %vm1402
          %vm1859 = vmand %vm1259, %vm1403
          %vm1860 = vmand %vm1260, %vm1404
          %vm1861 = vmand %vm1261, %vm1405
          %vm1862 = vmand %vm1262, %vm1406
          %vm1863 = vmand %vm1263, %vm1407
          %vm1864 = vmand %vm1264, %vm1408
          %v1865 = vmul.f32 %v833, %v1458
          %v1866 = vmul.f32 %v834, %v1460
          %v1867 = vmul.f32 %v835, %v1462
          %v1868 = vmul.f32 %v836, %v1464
          %v1869 = vmul.f32 %v837, %v1466
          %v1870 = vmul.f32 %v838, %v1468
          %v1871 = vmul.f32 %v839, %v1470
          %v1872 = vmul.f32 %v840, %v1472
          %v1873 = vmul.f32 %v841, %v1474
          %v1874 = vmul.f32 %v842, %v1476
          %v1875 = vmul.f32 %v843, %v1478
          %v1876 = vmul.f32 %v844, %v1480
          %v1877 = vmul.f32 %v845, %v1482
          %v1878 = vmul.f32 %v846, %v1484
          %v1879 = vmul.f32 %v847, %v1486
          %v1880 = vmul.f32 %v848, %v1488
          %v1881 = vmul.f32 %v849, %v1490
          %v1882 = vmul.f32 %v850, %v1492
          %v1883 = vmul.f32 %v851, %v1494
          %v1884 = vmul.f32 %v852, %v1496
          %v1885 = vmul.f32 %v853, %v1498
          %v1886 = vmul.f32 %v854, %v1500
          %v1887 = vmul.f32 %v855, %v1502
          %v1888 = vmul.f32 %v856, %v1504
          %v1889 = vsel %vm1841, %v1865, 0.0
          %v1890 = vsel %vm1842, %v1866, 0.0
          %v1891 = vsel %vm1843, %v1867, 0.0
          %v1892 = vsel %vm1844, %v1868, 0.0
          %v1893 = vsel %vm1845, %v1869, 0.0
          %v1894 = vsel %vm1846, %v1870, 0.0
          %v1895 = vsel %vm1847, %v1871, 0.0
          %v1896 = vsel %vm1848, %v1872, 0.0
          %v1897 = vsel %vm1849, %v1873, 0.0
          %v1898 = vsel %vm1850, %v1874, 0.0
          %v1899 = vsel %vm1851, %v1875, 0.0
          %v1900 = vsel %vm1852, %v1876, 0.0
          %v1901 = vsel %vm1853, %v1877, 0.0
          %v1902 = vsel %vm1854, %v1878, 0.0
          %v1903 = vsel %vm1855, %v1879, 0.0
          %v1904 = vsel %vm1856, %v1880, 0.0
          %v1905 = vsel %vm1857, %v1881, 0.0
          %v1906 = vsel %vm1858, %v1882, 0.0
          %v1907 = vsel %vm1859, %v1883, 0.0
          %v1908 = vsel %vm1860, %v1884, 0.0
          %v1909 = vsel %vm1861, %v1885, 0.0
          %v1910 = vsel %vm1862, %v1886, 0.0
          %v1911 = vsel %vm1863, %v1887, 0.0
          %v1912 = vsel %vm1864, %v1888, 0.0
          %vm1913 = vmand %vm1241, %vm1649
          %vm1914 = vmand %vm1242, %vm1650
          %vm1915 = vmand %vm1243, %vm1651
          %vm1916 = vmand %vm1244, %vm1652
          %vm1917 = vmand %vm1245, %vm1653
          %vm1918 = vmand %vm1246, %vm1654
          %vm1919 = vmand %vm1247, %vm1655
          %vm1920 = vmand %vm1248, %vm1656
          %vm1921 = vmand %vm1249, %vm1657
          %vm1922 = vmand %vm1250, %vm1658
          %vm1923 = vmand %vm1251, %vm1659
          %vm1924 = vmand %vm1252, %vm1660
          %vm1925 = vmand %vm1253, %vm1661
          %vm1926 = vmand %vm1254, %vm1662
          %vm1927 = vmand %vm1255, %vm1663
          %vm1928 = vmand %vm1256, %vm1664
          %vm1929 = vmand %vm1257, %vm1665
          %vm1930 = vmand %vm1258, %vm1666
          %vm1931 = vmand %vm1259, %vm1667
          %vm1932 = vmand %vm1260, %vm1668
          %vm1933 = vmand %vm1261, %vm1669
          %vm1934 = vmand %vm1262, %vm1670
          %vm1935 = vmand %vm1263, %vm1671
          %vm1936 = vmand %vm1264, %vm1672
          %v1937 = vmul.f32 %v833, %v1722
          %v1938 = vmul.f32 %v834, %v1724
          %v1939 = vmul.f32 %v835, %v1726
          %v1940 = vmul.f32 %v836, %v1728
          %v1941 = vmul.f32 %v837, %v1730
          %v1942 = vmul.f32 %v838, %v1732
          %v1943 = vmul.f32 %v839, %v1734
          %v1944 = vmul.f32 %v840, %v1736
          %v1945 = vmul.f32 %v841, %v1738
          %v1946 = vmul.f32 %v842, %v1740
          %v1947 = vmul.f32 %v843, %v1742
          %v1948 = vmul.f32 %v844, %v1744
          %v1949 = vmul.f32 %v845, %v1746
          %v1950 = vmul.f32 %v846, %v1748
          %v1951 = vmul.f32 %v847, %v1750
          %v1952 = vmul.f32 %v848, %v1752
          %v1953 = vmul.f32 %v849, %v1754
          %v1954 = vmul.f32 %v850, %v1756
          %v1955 = vmul.f32 %v851, %v1758
          %v1956 = vmul.f32 %v852, %v1760
          %v1957 = vmul.f32 %v853, %v1762
          %v1958 = vmul.f32 %v854, %v1764
          %v1959 = vmul.f32 %v855, %v1766
          %v1960 = vmul.f32 %v856, %v1768
          %v1961 = vsel %vm1913, %v1937, 0.0
          %v1962 = vsel %vm1914, %v1938, 0.0
          %v1963 = vsel %vm1915, %v1939, 0.0
          %v1964 = vsel %vm1916, %v1940, 0.0
          %v1965 = vsel %vm1917, %v1941, 0.0
          %v1966 = vsel %vm1918, %v1942, 0.0
          %v1967 = vsel %vm1919, %v1943, 0.0
          %v1968 = vsel %vm1920, %v1944, 0.0
          %v1969 = vsel %vm1921, %v1945, 0.0
          %v1970 = vsel %vm1922, %v1946, 0.0
          %v1971 = vsel %vm1923, %v1947, 0.0
          %v1972 = vsel %vm1924, %v1948, 0.0
          %v1973 = vsel %vm1925, %v1949, 0.0
          %v1974 = vsel %vm1926, %v1950, 0.0
          %v1975 = vsel %vm1927, %v1951, 0.0
          %v1976 = vsel %vm1928, %v1952, 0.0
          %v1977 = vsel %vm1929, %v1953, 0.0
          %v1978 = vsel %vm1930, %v1954, 0.0
          %v1979 = vsel %vm1931, %v1955, 0.0
          %v1980 = vsel %vm1932, %v1956, 0.0
          %v1981 = vsel %vm1933, %v1957, 0.0
          %v1982 = vsel %vm1934, %v1958, 0.0
          %v1983 = vsel %vm1935, %v1959, 0.0
          %v1984 = vsel %vm1936, %v1960, 0.0
          %v1985 = vmul.u32 %v905, 256
          %v1986 = vmul.u32 %v906, 256
          %v1987 = vmul.u32 %v907, 256
          %v1988 = vmul.u32 %v908, 256
          %v1989 = vmul.u32 %v909, 256
          %v1990 = vmul.u32 %v910, 256
          %v1991 = vmul.u32 %v911, 256
          %v1992 = vmul.u32 %v912, 256
          %v1993 = vmul.u32 %v913, 256
          %v1994 = vmul.u32 %v914, 256
          %v1995 = vmul.u32 %v915, 256
          %v1996 = vmul.u32 %v916, 256
          %v1997 = vmul.u32 %v917, 256
          %v1998 = vmul.u32 %v918, 256
          %v1999 = vmul.u32 %v919, 256
          %v2000 = vmul.u32 %v920, 256
          %v2001 = vmul.u32 %v921, 256
          %v2002 = vmul.u32 %v922, 256
          %v2003 = vmul.u32 %v923, 256
          %v2004 = vmul.u32 %v924, 256
          %v2005 = vmul.u32 %v925, 256
          %v2006 = vmul.u32 %v926, 256
          %v2007 = vmul.u32 %v927, 256
          %v2008 = vmul.u32 %v928, 256
          %v2009 = vadd.s32 %v1985, 256
          %v2010 = vadd.s32 %v1986, 256
          %v2011 = vadd.s32 %v1987, 256
          %v2012 = vadd.s32 %v1988, 256
          %v2013 = vadd.s32 %v1989, 256
          %v2014 = vadd.s32 %v1990, 256
          %v2015 = vadd.s32 %v1991, 256
          %v2016 = vadd.s32 %v1992, 256
          %v2017 = vadd.s32 %v1993, 256
          %v2018 = vadd.s32 %v1994, 256
          %v2019 = vadd.s32 %v1995, 256
          %v2020 = vadd.s32 %v1996, 256
          %v2021 = vadd.s32 %v1997, 256
          %v2022 = vadd.s32 %v1998, 256
          %v2023 = vadd.s32 %v1999, 256
          %v2024 = vadd.s32 %v2000, 256
          %v2025 = vadd.s32 %v2001, 256
          %v2026 = vadd.s32 %v2002, 256
          %v2027 = vadd.s32 %v2003, 256
          %v2028 = vadd.s32 %v2004, 256
          %v2029 = vadd.s32 %v2005, 256
          %v2030 = vadd.s32 %v2006, 256
          %v2031 = vadd.s32 %v2007, 256
          %v2032 = vadd.s32 %v2008, 256
          %v2033 = vmul.u32 %v881, 16
          %v2034 = vmul.u32 %v882, 16
          %v2035 = vmul.u32 %v883, 16
          %v2036 = vmul.u32 %v884, 16
          %v2037 = vmul.u32 %v885, 16
          %v2038 = vmul.u32 %v886, 16
          %v2039 = vmul.u32 %v887, 16
          %v2040 = vmul.u32 %v888, 16
          %v2041 = vmul.u32 %v889, 16
          %v2042 = vmul.u32 %v890, 16
          %v2043 = vmul.u32 %v891, 16
          %v2044 = vmul.u32 %v892, 16
          %v2045 = vmul.u32 %v893, 16
          %v2046 = vmul.u32 %v894, 16
          %v2047 = vmul.u32 %v895, 16
          %v2048 = vmul.u32 %v896, 16
          %v2049 = vmul.u32 %v897, 16
          %v2050 = vmul.u32 %v898, 16
          %v2051 = vmul.u32 %v899, 16
          %v2052 = vmul.u32 %v900, 16
          %v2053 = vmul.u32 %v901, 16
          %v2054 = vmul.u32 %v902, 16
          %v2055 = vmul.u32 %v903, 16
          %v2056 = vmul.u32 %v904, 16
          %v2057 = vadd.s32 %v2033, 16
          %v2058 = vadd.s32 %v2034, 16
          %v2059 = vadd.s32 %v2035, 16
          %v2060 = vadd.s32 %v2036, 16
          %v2061 = vadd.s32 %v2037, 16
          %v2062 = vadd.s32 %v2038, 16
          %v2063 = vadd.s32 %v2039, 16
          %v2064 = vadd.s32 %v2040, 16
          %v2065 = vadd.s32 %v2041, 16
          %v2066 = vadd.s32 %v2042, 16
          %v2067 = vadd.s32 %v2043, 16
          %v2068 = vadd.s32 %v2044, 16
          %v2069 = vadd.s32 %v2045, 16
          %v2070 = vadd.s32 %v2046, 16
          %v2071 = vadd.s32 %v2047, 16
          %v2072 = vadd.s32 %v2048, 16
          %v2073 = vadd.s32 %v2049, 16
          %v2074 = vadd.s32 %v2050, 16
          %v2075 = vadd.s32 %v2051, 16
          %v2076 = vadd.s32 %v2052, 16
          %v2077 = vadd.s32 %v2053, 16
          %v2078 = vadd.s32 %v2054, 16
          %v2079 = vadd.s32 %v2055, 16
          %v2080 = vadd.s32 %v2056, 16
          %2081 = vrot.lane.b32.xlu0 %v2033, 1
          %v2082 = vpop.permute.xlu0 %2081
          %2083 = vrot.lane.b32.xlu0 %v2034, 1
          %v2084 = vpop.permute.xlu0 %2083
          %2085 = vrot.lane.b32.xlu0 %v2035, 1
          %v2086 = vpop.permute.xlu0 %2085
          %2087 = vrot.lane.b32.xlu0 %v2036, 1
          %v2088 = vpop.permute.xlu0 %2087
          %2089 = vrot.lane.b32.xlu0 %v2037, 1
          %v2090 = vpop.permute.xlu0 %2089
          %2091 = vrot.lane.b32.xlu0 %v2038, 1
          %v2092 = vpop.permute.xlu0 %2091
          %2093 = vrot.lane.b32.xlu0 %v2039, 1
          %v2094 = vpop.permute.xlu0 %2093
          %2095 = vrot.lane.b32.xlu0 %v2040, 1
          %v2096 = vpop.permute.xlu0 %2095
          %2097 = vrot.lane.b32.xlu0 %v2041, 1
          %v2098 = vpop.permute.xlu0 %2097
          %2099 = vrot.lane.b32.xlu0 %v2042, 1
          %v2100 = vpop.permute.xlu0 %2099
          %2101 = vrot.lane.b32.xlu0 %v2043, 1
          %v2102 = vpop.permute.xlu0 %2101
          %2103 = vrot.lane.b32.xlu0 %v2044, 1
          %v2104 = vpop.permute.xlu0 %2103
          %2105 = vrot.lane.b32.xlu0 %v2045, 1
          %v2106 = vpop.permute.xlu0 %2105
          %2107 = vrot.lane.b32.xlu0 %v2046, 1
          %v2108 = vpop.permute.xlu0 %2107
          %2109 = vrot.lane.b32.xlu0 %v2047, 1
          %v2110 = vpop.permute.xlu0 %2109
          %2111 = vrot.lane.b32.xlu0 %v2048, 1
          %v2112 = vpop.permute.xlu0 %2111
          %2113 = vrot.lane.b32.xlu0 %v2049, 1
          %v2114 = vpop.permute.xlu0 %2113
          %2115 = vrot.lane.b32.xlu0 %v2050, 1
          %v2116 = vpop.permute.xlu0 %2115
          %2117 = vrot.lane.b32.xlu0 %v2051, 1
          %v2118 = vpop.permute.xlu0 %2117
          %2119 = vrot.lane.b32.xlu0 %v2052, 1
          %v2120 = vpop.permute.xlu0 %2119
          %2121 = vrot.lane.b32.xlu0 %v2053, 1
          %v2122 = vpop.permute.xlu0 %2121
          %2123 = vrot.lane.b32.xlu0 %v2054, 1
          %v2124 = vpop.permute.xlu0 %2123
          %2125 = vrot.lane.b32.xlu0 %v2055, 1
          %v2126 = vpop.permute.xlu0 %2125
          %2127 = vrot.lane.b32.xlu0 %v2056, 1
          %v2128 = vpop.permute.xlu0 %2127
          %v2129 = vadd.s32 %v1985, %v2082
          %v2130 = vadd.s32 %v1986, %v2084
          %v2131 = vadd.s32 %v1987, %v2086
          %v2132 = vadd.s32 %v1988, %v2088
          %v2133 = vadd.s32 %v1989, %v2090
          %v2134 = vadd.s32 %v1990, %v2092
          %v2135 = vadd.s32 %v1991, %v2094
          %v2136 = vadd.s32 %v1992, %v2096
          %v2137 = vadd.s32 %v1993, %v2098
          %v2138 = vadd.s32 %v1994, %v2100
          %v2139 = vadd.s32 %v1995, %v2102
          %v2140 = vadd.s32 %v1996, %v2104
          %v2141 = vadd.s32 %v1997, %v2106
          %v2142 = vadd.s32 %v1998, %v2108
          %v2143 = vadd.s32 %v1999, %v2110
          %v2144 = vadd.s32 %v2000, %v2112
          %v2145 = vadd.s32 %v2001, %v2114
          %v2146 = vadd.s32 %v2002, %v2116
          %v2147 = vadd.s32 %v2003, %v2118
          %v2148 = vadd.s32 %v2004, %v2120
          %v2149 = vadd.s32 %v2005, %v2122
          %v2150 = vadd.s32 %v2006, %v2124
          %v2151 = vadd.s32 %v2007, %v2126
          %v2152 = vadd.s32 %v2008, %v2128
          %2153 = vrot.lane.b32.xlu0 %v881, 2
          %v2154 = vpop.permute.xlu0 %2153
          %2155 = vrot.lane.b32.xlu0 %v882, 2
          %v2156 = vpop.permute.xlu0 %2155
          %2157 = vrot.lane.b32.xlu0 %v883, 2
          %v2158 = vpop.permute.xlu0 %2157
          %2159 = vrot.lane.b32.xlu0 %v884, 2
          %v2160 = vpop.permute.xlu0 %2159
          %2161 = vrot.lane.b32.xlu0 %v885, 2
          %v2162 = vpop.permute.xlu0 %2161
          %2163 = vrot.lane.b32.xlu0 %v886, 2
          %v2164 = vpop.permute.xlu0 %2163
          %2165 = vrot.lane.b32.xlu0 %v887, 2
          %v2166 = vpop.permute.xlu0 %2165
          %2167 = vrot.lane.b32.xlu0 %v888, 2
          %v2168 = vpop.permute.xlu0 %2167
          %2169 = vrot.lane.b32.xlu0 %v889, 2
          %v2170 = vpop.permute.xlu0 %2169
          %2171 = vrot.lane.b32.xlu0 %v890, 2
          %v2172 = vpop.permute.xlu0 %2171
          %2173 = vrot.lane.b32.xlu0 %v891, 2
          %v2174 = vpop.permute.xlu0 %2173
          %2175 = vrot.lane.b32.xlu0 %v892, 2
          %v2176 = vpop.permute.xlu0 %2175
          %2177 = vrot.lane.b32.xlu0 %v893, 2
          %v2178 = vpop.permute.xlu0 %2177
          %2179 = vrot.lane.b32.xlu0 %v894, 2
          %v2180 = vpop.permute.xlu0 %2179
          %2181 = vrot.lane.b32.xlu0 %v895, 2
          %v2182 = vpop.permute.xlu0 %2181
          %2183 = vrot.lane.b32.xlu0 %v896, 2
          %v2184 = vpop.permute.xlu0 %2183
          %2185 = vrot.lane.b32.xlu0 %v897, 2
          %v2186 = vpop.permute.xlu0 %2185
          %2187 = vrot.lane.b32.xlu0 %v898, 2
          %v2188 = vpop.permute.xlu0 %2187
          %2189 = vrot.lane.b32.xlu0 %v899, 2
          %v2190 = vpop.permute.xlu0 %2189
          %2191 = vrot.lane.b32.xlu0 %v900, 2
          %v2192 = vpop.permute.xlu0 %2191
          %2193 = vrot.lane.b32.xlu0 %v901, 2
          %v2194 = vpop.permute.xlu0 %2193
          %2195 = vrot.lane.b32.xlu0 %v902, 2
          %v2196 = vpop.permute.xlu0 %2195
          %2197 = vrot.lane.b32.xlu0 %v903, 2
          %v2198 = vpop.permute.xlu0 %2197
          %2199 = vrot.lane.b32.xlu0 %v904, 2
          %v2200 = vpop.permute.xlu0 %2199
          %v2201 = vadd.s32 %v2129, %v2154
          %v2202 = vadd.s32 %v2130, %v2156
          %v2203 = vadd.s32 %v2131, %v2158
          %v2204 = vadd.s32 %v2132, %v2160
          %v2205 = vadd.s32 %v2133, %v2162
          %v2206 = vadd.s32 %v2134, %v2164
          %v2207 = vadd.s32 %v2135, %v2166
          %v2208 = vadd.s32 %v2136, %v2168
          %v2209 = vadd.s32 %v2137, %v2170
          %v2210 = vadd.s32 %v2138, %v2172
          %v2211 = vadd.s32 %v2139, %v2174
          %v2212 = vadd.s32 %v2140, %v2176
          %v2213 = vadd.s32 %v2141, %v2178
          %v2214 = vadd.s32 %v2142, %v2180
          %v2215 = vadd.s32 %v2143, %v2182
          %v2216 = vadd.s32 %v2144, %v2184
          %v2217 = vadd.s32 %v2145, %v2186
          %v2218 = vadd.s32 %v2146, %v2188
          %v2219 = vadd.s32 %v2147, %v2190
          %v2220 = vadd.s32 %v2148, %v2192
          %v2221 = vadd.s32 %v2149, %v2194
          %v2222 = vadd.s32 %v2150, %v2196
          %v2223 = vadd.s32 %v2151, %v2198
          %v2224 = vadd.s32 %v2152, %v2200
          %2225 = vrot.lane.b32.xlu0 %v2057, 1
          %v2226 = vpop.permute.xlu0 %2225
          %2227 = vrot.lane.b32.xlu0 %v2058, 1
          %v2228 = vpop.permute.xlu0 %2227
          %2229 = vrot.lane.b32.xlu0 %v2059, 1
          %v2230 = vpop.permute.xlu0 %2229
          %2231 = vrot.lane.b32.xlu0 %v2060, 1
          %v2232 = vpop.permute.xlu0 %2231
          %2233 = vrot.lane.b32.xlu0 %v2061, 1
          %v2234 = vpop.permute.xlu0 %2233
          %2235 = vrot.lane.b32.xlu0 %v2062, 1
          %v2236 = vpop.permute.xlu0 %2235
          %2237 = vrot.lane.b32.xlu0 %v2063, 1
          %v2238 = vpop.permute.xlu0 %2237
          %2239 = vrot.lane.b32.xlu0 %v2064, 1
          %v2240 = vpop.permute.xlu0 %2239
          %2241 = vrot.lane.b32.xlu0 %v2065, 1
          %v2242 = vpop.permute.xlu0 %2241
          %2243 = vrot.lane.b32.xlu0 %v2066, 1
          %v2244 = vpop.permute.xlu0 %2243
          %2245 = vrot.lane.b32.xlu0 %v2067, 1
          %v2246 = vpop.permute.xlu0 %2245
          %2247 = vrot.lane.b32.xlu0 %v2068, 1
          %v2248 = vpop.permute.xlu0 %2247
          %2249 = vrot.lane.b32.xlu0 %v2069, 1
          %v2250 = vpop.permute.xlu0 %2249
          %2251 = vrot.lane.b32.xlu0 %v2070, 1
          %v2252 = vpop.permute.xlu0 %2251
          %2253 = vrot.lane.b32.xlu0 %v2071, 1
          %v2254 = vpop.permute.xlu0 %2253
          %2255 = vrot.lane.b32.xlu0 %v2072, 1
          %v2256 = vpop.permute.xlu0 %2255
          %2257 = vrot.lane.b32.xlu0 %v2073, 1
          %v2258 = vpop.permute.xlu0 %2257
          %2259 = vrot.lane.b32.xlu0 %v2074, 1
          %v2260 = vpop.permute.xlu0 %2259
          %2261 = vrot.lane.b32.xlu0 %v2075, 1
          %v2262 = vpop.permute.xlu0 %2261
          %2263 = vrot.lane.b32.xlu0 %v2076, 1
          %v2264 = vpop.permute.xlu0 %2263
          %2265 = vrot.lane.b32.xlu0 %v2077, 1
          %v2266 = vpop.permute.xlu0 %2265
          %2267 = vrot.lane.b32.xlu0 %v2078, 1
          %v2268 = vpop.permute.xlu0 %2267
          %2269 = vrot.lane.b32.xlu0 %v2079, 1
          %v2270 = vpop.permute.xlu0 %2269
          %2271 = vrot.lane.b32.xlu0 %v2080, 1
          %v2272 = vpop.permute.xlu0 %2271
          %v2273 = vadd.s32 %v1985, %v2226
          %v2274 = vadd.s32 %v1986, %v2228
          %v2275 = vadd.s32 %v1987, %v2230
          %v2276 = vadd.s32 %v1988, %v2232
          %v2277 = vadd.s32 %v1989, %v2234
          %v2278 = vadd.s32 %v1990, %v2236
          %v2279 = vadd.s32 %v1991, %v2238
          %v2280 = vadd.s32 %v1992, %v2240
          %v2281 = vadd.s32 %v1993, %v2242
          %v2282 = vadd.s32 %v1994, %v2244
          %v2283 = vadd.s32 %v1995, %v2246
          %v2284 = vadd.s32 %v1996, %v2248
          %v2285 = vadd.s32 %v1997, %v2250
          %v2286 = vadd.s32 %v1998, %v2252
          %v2287 = vadd.s32 %v1999, %v2254
          %v2288 = vadd.s32 %v2000, %v2256
          %v2289 = vadd.s32 %v2001, %v2258
          %v2290 = vadd.s32 %v2002, %v2260
          %v2291 = vadd.s32 %v2003, %v2262
          %v2292 = vadd.s32 %v2004, %v2264
          %v2293 = vadd.s32 %v2005, %v2266
          %v2294 = vadd.s32 %v2006, %v2268
          %v2295 = vadd.s32 %v2007, %v2270
          %v2296 = vadd.s32 %v2008, %v2272
          %v2297 = vadd.s32 %v2273, %v2154
          %v2298 = vadd.s32 %v2274, %v2156
          %v2299 = vadd.s32 %v2275, %v2158
          %v2300 = vadd.s32 %v2276, %v2160
          %v2301 = vadd.s32 %v2277, %v2162
          %v2302 = vadd.s32 %v2278, %v2164
          %v2303 = vadd.s32 %v2279, %v2166
          %v2304 = vadd.s32 %v2280, %v2168
          %v2305 = vadd.s32 %v2281, %v2170
          %v2306 = vadd.s32 %v2282, %v2172
          %v2307 = vadd.s32 %v2283, %v2174
          %v2308 = vadd.s32 %v2284, %v2176
          %v2309 = vadd.s32 %v2285, %v2178
          %v2310 = vadd.s32 %v2286, %v2180
          %v2311 = vadd.s32 %v2287, %v2182
          %v2312 = vadd.s32 %v2288, %v2184
          %v2313 = vadd.s32 %v2289, %v2186
          %v2314 = vadd.s32 %v2290, %v2188
          %v2315 = vadd.s32 %v2291, %v2190
          %v2316 = vadd.s32 %v2292, %v2192
          %v2317 = vadd.s32 %v2293, %v2194
          %v2318 = vadd.s32 %v2294, %v2196
          %v2319 = vadd.s32 %v2295, %v2198
          %v2320 = vadd.s32 %v2296, %v2200
          %v2321 = vadd.s32 %v2009, %v2082
          %v2322 = vadd.s32 %v2010, %v2084
          %v2323 = vadd.s32 %v2011, %v2086
          %v2324 = vadd.s32 %v2012, %v2088
          %v2325 = vadd.s32 %v2013, %v2090
          %v2326 = vadd.s32 %v2014, %v2092
          %v2327 = vadd.s32 %v2015, %v2094
          %v2328 = vadd.s32 %v2016, %v2096
          %v2329 = vadd.s32 %v2017, %v2098
          %v2330 = vadd.s32 %v2018, %v2100
          %v2331 = vadd.s32 %v2019, %v2102
          %v2332 = vadd.s32 %v2020, %v2104
          %v2333 = vadd.s32 %v2021, %v2106
          %v2334 = vadd.s32 %v2022, %v2108
          %v2335 = vadd.s32 %v2023, %v2110
          %v2336 = vadd.s32 %v2024, %v2112
          %v2337 = vadd.s32 %v2025, %v2114
          %v2338 = vadd.s32 %v2026, %v2116
          %v2339 = vadd.s32 %v2027, %v2118
          %v2340 = vadd.s32 %v2028, %v2120
          %v2341 = vadd.s32 %v2029, %v2122
          %v2342 = vadd.s32 %v2030, %v2124
          %v2343 = vadd.s32 %v2031, %v2126
          %v2344 = vadd.s32 %v2032, %v2128
          %v2345 = vadd.s32 %v2321, %v2154
          %v2346 = vadd.s32 %v2322, %v2156
          %v2347 = vadd.s32 %v2323, %v2158
          %v2348 = vadd.s32 %v2324, %v2160
          %v2349 = vadd.s32 %v2325, %v2162
          %v2350 = vadd.s32 %v2326, %v2164
          %v2351 = vadd.s32 %v2327, %v2166
          %v2352 = vadd.s32 %v2328, %v2168
          %v2353 = vadd.s32 %v2329, %v2170
          %v2354 = vadd.s32 %v2330, %v2172
          %v2355 = vadd.s32 %v2331, %v2174
          %v2356 = vadd.s32 %v2332, %v2176
          %v2357 = vadd.s32 %v2333, %v2178
          %v2358 = vadd.s32 %v2334, %v2180
          %v2359 = vadd.s32 %v2335, %v2182
          %v2360 = vadd.s32 %v2336, %v2184
          %v2361 = vadd.s32 %v2337, %v2186
          %v2362 = vadd.s32 %v2338, %v2188
          %v2363 = vadd.s32 %v2339, %v2190
          %v2364 = vadd.s32 %v2340, %v2192
          %v2365 = vadd.s32 %v2341, %v2194
          %v2366 = vadd.s32 %v2342, %v2196
          %v2367 = vadd.s32 %v2343, %v2198
          %v2368 = vadd.s32 %v2344, %v2200
          %v2369 = vadd.s32 %v2009, %v2226
          %v2370 = vadd.s32 %v2010, %v2228
          %v2371 = vadd.s32 %v2011, %v2230
          %v2372 = vadd.s32 %v2012, %v2232
          %v2373 = vadd.s32 %v2013, %v2234
          %v2374 = vadd.s32 %v2014, %v2236
          %v2375 = vadd.s32 %v2015, %v2238
          %v2376 = vadd.s32 %v2016, %v2240
          %v2377 = vadd.s32 %v2017, %v2242
          %v2378 = vadd.s32 %v2018, %v2244
          %v2379 = vadd.s32 %v2019, %v2246
          %v2380 = vadd.s32 %v2020, %v2248
          %v2381 = vadd.s32 %v2021, %v2250
          %v2382 = vadd.s32 %v2022, %v2252
          %v2383 = vadd.s32 %v2023, %v2254
          %v2384 = vadd.s32 %v2024, %v2256
          %v2385 = vadd.s32 %v2025, %v2258
          %v2386 = vadd.s32 %v2026, %v2260
          %v2387 = vadd.s32 %v2027, %v2262
          %v2388 = vadd.s32 %v2028, %v2264
          %v2389 = vadd.s32 %v2029, %v2266
          %v2390 = vadd.s32 %v2030, %v2268
          %v2391 = vadd.s32 %v2031, %v2270
          %v2392 = vadd.s32 %v2032, %v2272
          %v2393 = vadd.s32 %v2369, %v2154
          %v2394 = vadd.s32 %v2370, %v2156
          %v2395 = vadd.s32 %v2371, %v2158
          %v2396 = vadd.s32 %v2372, %v2160
          %v2397 = vadd.s32 %v2373, %v2162
          %v2398 = vadd.s32 %v2374, %v2164
          %v2399 = vadd.s32 %v2375, %v2166
          %v2400 = vadd.s32 %v2376, %v2168
          %v2401 = vadd.s32 %v2377, %v2170
          %v2402 = vadd.s32 %v2378, %v2172
          %v2403 = vadd.s32 %v2379, %v2174
          %v2404 = vadd.s32 %v2380, %v2176
          %v2405 = vadd.s32 %v2381, %v2178
          %v2406 = vadd.s32 %v2382, %v2180
          %v2407 = vadd.s32 %v2383, %v2182
          %v2408 = vadd.s32 %v2384, %v2184
          %v2409 = vadd.s32 %v2385, %v2186
          %v2410 = vadd.s32 %v2386, %v2188
          %v2411 = vadd.s32 %v2387, %v2190
          %v2412 = vadd.s32 %v2388, %v2192
          %v2413 = vadd.s32 %v2389, %v2194
          %v2414 = vadd.s32 %v2390, %v2196
          %v2415 = vadd.s32 %v2391, %v2198
          %v2416 = vadd.s32 %v2392, %v2200
          %2417 = vrot.lane.b32.xlu0 %v2201, 126
          %v2418 = vpop.permute.xlu0 %2417
          %2419 = vrot.lane.b32.xlu0 %v2202, 126
          %v2420 = vpop.permute.xlu0 %2419
          %2421 = vrot.lane.b32.xlu0 %v2203, 126
          %v2422 = vpop.permute.xlu0 %2421
          %2423 = vrot.lane.b32.xlu0 %v2204, 126
          %v2424 = vpop.permute.xlu0 %2423
          %2425 = vrot.lane.b32.xlu0 %v2205, 126
          %v2426 = vpop.permute.xlu0 %2425
          %2427 = vrot.lane.b32.xlu0 %v2206, 126
          %v2428 = vpop.permute.xlu0 %2427
          %2429 = vrot.lane.b32.xlu0 %v2207, 126
          %v2430 = vpop.permute.xlu0 %2429
          %2431 = vrot.lane.b32.xlu0 %v2208, 126
          %v2432 = vpop.permute.xlu0 %2431
          %2433 = vrot.lane.b32.xlu0 %v2209, 126
          %v2434 = vpop.permute.xlu0 %2433
          %2435 = vrot.lane.b32.xlu0 %v2210, 126
          %v2436 = vpop.permute.xlu0 %2435
          %2437 = vrot.lane.b32.xlu0 %v2211, 126
          %v2438 = vpop.permute.xlu0 %2437
          %2439 = vrot.lane.b32.xlu0 %v2212, 126
          %v2440 = vpop.permute.xlu0 %2439
          %2441 = vrot.lane.b32.xlu0 %v2213, 126
          %v2442 = vpop.permute.xlu0 %2441
          %2443 = vrot.lane.b32.xlu0 %v2214, 126
          %v2444 = vpop.permute.xlu0 %2443
          %2445 = vrot.lane.b32.xlu0 %v2215, 126
          %v2446 = vpop.permute.xlu0 %2445
          %2447 = vrot.lane.b32.xlu0 %v2216, 126
          %v2448 = vpop.permute.xlu0 %2447
          %2449 = vrot.lane.b32.xlu0 %v2217, 126
          %v2450 = vpop.permute.xlu0 %2449
          %2451 = vrot.lane.b32.xlu0 %v2218, 126
          %v2452 = vpop.permute.xlu0 %2451
          %2453 = vrot.lane.b32.xlu0 %v2219, 126
          %v2454 = vpop.permute.xlu0 %2453
          %2455 = vrot.lane.b32.xlu0 %v2220, 126
          %v2456 = vpop.permute.xlu0 %2455
          %2457 = vrot.lane.b32.xlu0 %v2221, 126
          %v2458 = vpop.permute.xlu0 %2457
          %2459 = vrot.lane.b32.xlu0 %v2222, 126
          %v2460 = vpop.permute.xlu0 %2459
          %2461 = vrot.lane.b32.xlu0 %v2223, 126
          %v2462 = vpop.permute.xlu0 %2461
          %2463 = vrot.lane.b32.xlu0 %v2224, 126
          %v2464 = vpop.permute.xlu0 %2463
          %2465 = vrot.lane.b32.xlu0 %v2297, 127
          %v2466 = vpop.permute.xlu0 %2465
          %2467 = vrot.lane.b32.xlu0 %v2298, 127
          %v2468 = vpop.permute.xlu0 %2467
          %2469 = vrot.lane.b32.xlu0 %v2299, 127
          %v2470 = vpop.permute.xlu0 %2469
          %2471 = vrot.lane.b32.xlu0 %v2300, 127
          %v2472 = vpop.permute.xlu0 %2471
          %2473 = vrot.lane.b32.xlu0 %v2301, 127
          %v2474 = vpop.permute.xlu0 %2473
          %2475 = vrot.lane.b32.xlu0 %v2302, 127
          %v2476 = vpop.permute.xlu0 %2475
          %2477 = vrot.lane.b32.xlu0 %v2303, 127
          %v2478 = vpop.permute.xlu0 %2477
          %2479 = vrot.lane.b32.xlu0 %v2304, 127
          %v2480 = vpop.permute.xlu0 %2479
          %2481 = vrot.lane.b32.xlu0 %v2305, 127
          %v2482 = vpop.permute.xlu0 %2481
          %2483 = vrot.lane.b32.xlu0 %v2306, 127
          %v2484 = vpop.permute.xlu0 %2483
          %2485 = vrot.lane.b32.xlu0 %v2307, 127
          %v2486 = vpop.permute.xlu0 %2485
          %2487 = vrot.lane.b32.xlu0 %v2308, 127
          %v2488 = vpop.permute.xlu0 %2487
          %2489 = vrot.lane.b32.xlu0 %v2309, 127
          %v2490 = vpop.permute.xlu0 %2489
          %2491 = vrot.lane.b32.xlu0 %v2310, 127
          %v2492 = vpop.permute.xlu0 %2491
          %2493 = vrot.lane.b32.xlu0 %v2311, 127
          %v2494 = vpop.permute.xlu0 %2493
          %2495 = vrot.lane.b32.xlu0 %v2312, 127
          %v2496 = vpop.permute.xlu0 %2495
          %2497 = vrot.lane.b32.xlu0 %v2313, 127
          %v2498 = vpop.permute.xlu0 %2497
          %2499 = vrot.lane.b32.xlu0 %v2314, 127
          %v2500 = vpop.permute.xlu0 %2499
          %2501 = vrot.lane.b32.xlu0 %v2315, 127
          %v2502 = vpop.permute.xlu0 %2501
          %2503 = vrot.lane.b32.xlu0 %v2316, 127
          %v2504 = vpop.permute.xlu0 %2503
          %2505 = vrot.lane.b32.xlu0 %v2317, 127
          %v2506 = vpop.permute.xlu0 %2505
          %2507 = vrot.lane.b32.xlu0 %v2318, 127
          %v2508 = vpop.permute.xlu0 %2507
          %2509 = vrot.lane.b32.xlu0 %v2319, 127
          %v2510 = vpop.permute.xlu0 %2509
          %2511 = vrot.lane.b32.xlu0 %v2320, 127
          %v2512 = vpop.permute.xlu0 %2511
          %2513 = vrot.lane.b32.xlu0 %v2393, 1
          %v2514 = vpop.permute.xlu0 %2513
          %2515 = vrot.lane.b32.xlu0 %v2394, 1
          %v2516 = vpop.permute.xlu0 %2515
          %2517 = vrot.lane.b32.xlu0 %v2395, 1
          %v2518 = vpop.permute.xlu0 %2517
          %2519 = vrot.lane.b32.xlu0 %v2396, 1
          %v2520 = vpop.permute.xlu0 %2519
          %2521 = vrot.lane.b32.xlu0 %v2397, 1
          %v2522 = vpop.permute.xlu0 %2521
          %2523 = vrot.lane.b32.xlu0 %v2398, 1
          %v2524 = vpop.permute.xlu0 %2523
          %2525 = vrot.lane.b32.xlu0 %v2399, 1
          %v2526 = vpop.permute.xlu0 %2525
          %2527 = vrot.lane.b32.xlu0 %v2400, 1
          %v2528 = vpop.permute.xlu0 %2527
          %2529 = vrot.lane.b32.xlu0 %v2401, 1
          %v2530 = vpop.permute.xlu0 %2529
          %2531 = vrot.lane.b32.xlu0 %v2402, 1
          %v2532 = vpop.permute.xlu0 %2531
          %2533 = vrot.lane.b32.xlu0 %v2403, 1
          %v2534 = vpop.permute.xlu0 %2533
          %2535 = vrot.lane.b32.xlu0 %v2404, 1
          %v2536 = vpop.permute.xlu0 %2535
          %2537 = vrot.lane.b32.xlu0 %v2405, 1
          %v2538 = vpop.permute.xlu0 %2537
          %2539 = vrot.lane.b32.xlu0 %v2406, 1
          %v2540 = vpop.permute.xlu0 %2539
          %2541 = vrot.lane.b32.xlu0 %v2407, 1
          %v2542 = vpop.permute.xlu0 %2541
          %2543 = vrot.lane.b32.xlu0 %v2408, 1
          %v2544 = vpop.permute.xlu0 %2543
          %2545 = vrot.lane.b32.xlu0 %v2409, 1
          %v2546 = vpop.permute.xlu0 %2545
          %2547 = vrot.lane.b32.xlu0 %v2410, 1
          %v2548 = vpop.permute.xlu0 %2547
          %2549 = vrot.lane.b32.xlu0 %v2411, 1
          %v2550 = vpop.permute.xlu0 %2549
          %2551 = vrot.lane.b32.xlu0 %v2412, 1
          %v2552 = vpop.permute.xlu0 %2551
          %2553 = vrot.lane.b32.xlu0 %v2413, 1
          %v2554 = vpop.permute.xlu0 %2553
          %2555 = vrot.lane.b32.xlu0 %v2414, 1
          %v2556 = vpop.permute.xlu0 %2555
          %2557 = vrot.lane.b32.xlu0 %v2415, 1
          %v2558 = vpop.permute.xlu0 %2557
          %2559 = vrot.lane.b32.xlu0 %v2416, 1
          %v2560 = vpop.permute.xlu0 %2559
          %2561 = vrot.lane.b32.xlu0 %v2201, 2
          %v2562 = vpop.permute.xlu0 %2561
          %2563 = vrot.lane.b32.xlu0 %v2202, 2
          %v2564 = vpop.permute.xlu0 %2563
          %2565 = vrot.lane.b32.xlu0 %v2203, 2
          %v2566 = vpop.permute.xlu0 %2565
          %2567 = vrot.lane.b32.xlu0 %v2204, 2
          %v2568 = vpop.permute.xlu0 %2567
          %2569 = vrot.lane.b32.xlu0 %v2205, 2
          %v2570 = vpop.permute.xlu0 %2569
          %2571 = vrot.lane.b32.xlu0 %v2206, 2
          %v2572 = vpop.permute.xlu0 %2571
          %2573 = vrot.lane.b32.xlu0 %v2207, 2
          %v2574 = vpop.permute.xlu0 %2573
          %2575 = vrot.lane.b32.xlu0 %v2208, 2
          %v2576 = vpop.permute.xlu0 %2575
          %2577 = vrot.lane.b32.xlu0 %v2209, 2
          %v2578 = vpop.permute.xlu0 %2577
          %2579 = vrot.lane.b32.xlu0 %v2210, 2
          %v2580 = vpop.permute.xlu0 %2579
          %2581 = vrot.lane.b32.xlu0 %v2211, 2
          %v2582 = vpop.permute.xlu0 %2581
          %2583 = vrot.lane.b32.xlu0 %v2212, 2
          %v2584 = vpop.permute.xlu0 %2583
          %2585 = vrot.lane.b32.xlu0 %v2213, 2
          %v2586 = vpop.permute.xlu0 %2585
          %2587 = vrot.lane.b32.xlu0 %v2214, 2
          %v2588 = vpop.permute.xlu0 %2587
          %2589 = vrot.lane.b32.xlu0 %v2215, 2
          %v2590 = vpop.permute.xlu0 %2589
          %2591 = vrot.lane.b32.xlu0 %v2216, 2
          %v2592 = vpop.permute.xlu0 %2591
          %2593 = vrot.lane.b32.xlu0 %v2217, 2
          %v2594 = vpop.permute.xlu0 %2593
          %2595 = vrot.lane.b32.xlu0 %v2218, 2
          %v2596 = vpop.permute.xlu0 %2595
          %2597 = vrot.lane.b32.xlu0 %v2219, 2
          %v2598 = vpop.permute.xlu0 %2597
          %2599 = vrot.lane.b32.xlu0 %v2220, 2
          %v2600 = vpop.permute.xlu0 %2599
          %2601 = vrot.lane.b32.xlu0 %v2221, 2
          %v2602 = vpop.permute.xlu0 %2601
          %2603 = vrot.lane.b32.xlu0 %v2222, 2
          %v2604 = vpop.permute.xlu0 %2603
          %2605 = vrot.lane.b32.xlu0 %v2223, 2
          %v2606 = vpop.permute.xlu0 %2605
          %2607 = vrot.lane.b32.xlu0 %v2224, 2
          %v2608 = vpop.permute.xlu0 %2607
          %2609 = vrot.lane.b32.xlu0 %v2297, 3
          %v2610 = vpop.permute.xlu0 %2609
          %2611 = vrot.lane.b32.xlu0 %v2298, 3
          %v2612 = vpop.permute.xlu0 %2611
          %2613 = vrot.lane.b32.xlu0 %v2299, 3
          %v2614 = vpop.permute.xlu0 %2613
          %2615 = vrot.lane.b32.xlu0 %v2300, 3
          %v2616 = vpop.permute.xlu0 %2615
          %2617 = vrot.lane.b32.xlu0 %v2301, 3
          %v2618 = vpop.permute.xlu0 %2617
          %2619 = vrot.lane.b32.xlu0 %v2302, 3
          %v2620 = vpop.permute.xlu0 %2619
          %2621 = vrot.lane.b32.xlu0 %v2303, 3
          %v2622 = vpop.permute.xlu0 %2621
          %2623 = vrot.lane.b32.xlu0 %v2304, 3
          %v2624 = vpop.permute.xlu0 %2623
          %2625 = vrot.lane.b32.xlu0 %v2305, 3
          %v2626 = vpop.permute.xlu0 %2625
          %2627 = vrot.lane.b32.xlu0 %v2306, 3
          %v2628 = vpop.permute.xlu0 %2627
          %2629 = vrot.lane.b32.xlu0 %v2307, 3
          %v2630 = vpop.permute.xlu0 %2629
          %2631 = vrot.lane.b32.xlu0 %v2308, 3
          %v2632 = vpop.permute.xlu0 %2631
          %2633 = vrot.lane.b32.xlu0 %v2309, 3
          %v2634 = vpop.permute.xlu0 %2633
          %2635 = vrot.lane.b32.xlu0 %v2310, 3
          %v2636 = vpop.permute.xlu0 %2635
          %2637 = vrot.lane.b32.xlu0 %v2311, 3
          %v2638 = vpop.permute.xlu0 %2637
          %2639 = vrot.lane.b32.xlu0 %v2312, 3
          %v2640 = vpop.permute.xlu0 %2639
          %2641 = vrot.lane.b32.xlu0 %v2313, 3
          %v2642 = vpop.permute.xlu0 %2641
          %2643 = vrot.lane.b32.xlu0 %v2314, 3
          %v2644 = vpop.permute.xlu0 %2643
          %2645 = vrot.lane.b32.xlu0 %v2315, 3
          %v2646 = vpop.permute.xlu0 %2645
          %2647 = vrot.lane.b32.xlu0 %v2316, 3
          %v2648 = vpop.permute.xlu0 %2647
          %2649 = vrot.lane.b32.xlu0 %v2317, 3
          %v2650 = vpop.permute.xlu0 %2649
          %2651 = vrot.lane.b32.xlu0 %v2318, 3
          %v2652 = vpop.permute.xlu0 %2651
          %2653 = vrot.lane.b32.xlu0 %v2319, 3
          %v2654 = vpop.permute.xlu0 %2653
          %2655 = vrot.lane.b32.xlu0 %v2320, 3
          %v2656 = vpop.permute.xlu0 %2655
          %2657 = vrot.lane.b32.xlu0 %v2345, 4
          %v2658 = vpop.permute.xlu0 %2657
          %2659 = vrot.lane.b32.xlu0 %v2346, 4
          %v2660 = vpop.permute.xlu0 %2659
          %2661 = vrot.lane.b32.xlu0 %v2347, 4
          %v2662 = vpop.permute.xlu0 %2661
          %2663 = vrot.lane.b32.xlu0 %v2348, 4
          %v2664 = vpop.permute.xlu0 %2663
          %2665 = vrot.lane.b32.xlu0 %v2349, 4
          %v2666 = vpop.permute.xlu0 %2665
          %2667 = vrot.lane.b32.xlu0 %v2350, 4
          %v2668 = vpop.permute.xlu0 %2667
          %2669 = vrot.lane.b32.xlu0 %v2351, 4
          %v2670 = vpop.permute.xlu0 %2669
          %2671 = vrot.lane.b32.xlu0 %v2352, 4
          %v2672 = vpop.permute.xlu0 %2671
          %2673 = vrot.lane.b32.xlu0 %v2353, 4
          %v2674 = vpop.permute.xlu0 %2673
          %2675 = vrot.lane.b32.xlu0 %v2354, 4
          %v2676 = vpop.permute.xlu0 %2675
          %2677 = vrot.lane.b32.xlu0 %v2355, 4
          %v2678 = vpop.permute.xlu0 %2677
          %2679 = vrot.lane.b32.xlu0 %v2356, 4
          %v2680 = vpop.permute.xlu0 %2679
          %2681 = vrot.lane.b32.xlu0 %v2357, 4
          %v2682 = vpop.permute.xlu0 %2681
          %2683 = vrot.lane.b32.xlu0 %v2358, 4
          %v2684 = vpop.permute.xlu0 %2683
          %2685 = vrot.lane.b32.xlu0 %v2359, 4
          %v2686 = vpop.permute.xlu0 %2685
          %2687 = vrot.lane.b32.xlu0 %v2360, 4
          %v2688 = vpop.permute.xlu0 %2687
          %2689 = vrot.lane.b32.xlu0 %v2361, 4
          %v2690 = vpop.permute.xlu0 %2689
          %2691 = vrot.lane.b32.xlu0 %v2362, 4
          %v2692 = vpop.permute.xlu0 %2691
          %2693 = vrot.lane.b32.xlu0 %v2363, 4
          %v2694 = vpop.permute.xlu0 %2693
          %2695 = vrot.lane.b32.xlu0 %v2364, 4
          %v2696 = vpop.permute.xlu0 %2695
          %2697 = vrot.lane.b32.xlu0 %v2365, 4
          %v2698 = vpop.permute.xlu0 %2697
          %2699 = vrot.lane.b32.xlu0 %v2366, 4
          %v2700 = vpop.permute.xlu0 %2699
          %2701 = vrot.lane.b32.xlu0 %v2367, 4
          %v2702 = vpop.permute.xlu0 %2701
          %2703 = vrot.lane.b32.xlu0 %v2368, 4
          %v2704 = vpop.permute.xlu0 %2703
          %2705 = vrot.lane.b32.xlu0 %v2393, 5
          %v2706 = vpop.permute.xlu0 %2705
          %2707 = vrot.lane.b32.xlu0 %v2394, 5
          %v2708 = vpop.permute.xlu0 %2707
          %2709 = vrot.lane.b32.xlu0 %v2395, 5
          %v2710 = vpop.permute.xlu0 %2709
          %2711 = vrot.lane.b32.xlu0 %v2396, 5
          %v2712 = vpop.permute.xlu0 %2711
          %2713 = vrot.lane.b32.xlu0 %v2397, 5
          %v2714 = vpop.permute.xlu0 %2713
          %2715 = vrot.lane.b32.xlu0 %v2398, 5
          %v2716 = vpop.permute.xlu0 %2715
          %2717 = vrot.lane.b32.xlu0 %v2399, 5
          %v2718 = vpop.permute.xlu0 %2717
          %2719 = vrot.lane.b32.xlu0 %v2400, 5
          %v2720 = vpop.permute.xlu0 %2719
          %2721 = vrot.lane.b32.xlu0 %v2401, 5
          %v2722 = vpop.permute.xlu0 %2721
          %2723 = vrot.lane.b32.xlu0 %v2402, 5
          %v2724 = vpop.permute.xlu0 %2723
          %2725 = vrot.lane.b32.xlu0 %v2403, 5
          %v2726 = vpop.permute.xlu0 %2725
          %2727 = vrot.lane.b32.xlu0 %v2404, 5
          %v2728 = vpop.permute.xlu0 %2727
          %2729 = vrot.lane.b32.xlu0 %v2405, 5
          %v2730 = vpop.permute.xlu0 %2729
          %2731 = vrot.lane.b32.xlu0 %v2406, 5
          %v2732 = vpop.permute.xlu0 %2731
          %2733 = vrot.lane.b32.xlu0 %v2407, 5
          %v2734 = vpop.permute.xlu0 %2733
          %2735 = vrot.lane.b32.xlu0 %v2408, 5
          %v2736 = vpop.permute.xlu0 %2735
          %2737 = vrot.lane.b32.xlu0 %v2409, 5
          %v2738 = vpop.permute.xlu0 %2737
          %2739 = vrot.lane.b32.xlu0 %v2410, 5
          %v2740 = vpop.permute.xlu0 %2739
          %2741 = vrot.lane.b32.xlu0 %v2411, 5
          %v2742 = vpop.permute.xlu0 %2741
          %2743 = vrot.lane.b32.xlu0 %v2412, 5
          %v2744 = vpop.permute.xlu0 %2743
          %2745 = vrot.lane.b32.xlu0 %v2413, 5
          %v2746 = vpop.permute.xlu0 %2745
          %2747 = vrot.lane.b32.xlu0 %v2414, 5
          %v2748 = vpop.permute.xlu0 %2747
          %2749 = vrot.lane.b32.xlu0 %v2415, 5
          %v2750 = vpop.permute.xlu0 %2749
          %2751 = vrot.lane.b32.xlu0 %v2416, 5
          %v2752 = vpop.permute.xlu0 %2751
          %vm2753 = vcmask 7168
          %v2754 = vsel %vm2753, %v2418, %v2466
          %v2755 = vsel %vm2753, %v2420, %v2468
          %v2756 = vsel %vm2753, %v2422, %v2470
          %v2757 = vsel %vm2753, %v2424, %v2472
          %v2758 = vsel %vm2753, %v2426, %v2474
          %v2759 = vsel %vm2753, %v2428, %v2476
          %v2760 = vsel %vm2753, %v2430, %v2478
          %v2761 = vsel %vm2753, %v2432, %v2480
          %v2762 = vsel %vm2753, %v2434, %v2482
          %v2763 = vsel %vm2753, %v2436, %v2484
          %v2764 = vsel %vm2753, %v2438, %v2486
          %v2765 = vsel %vm2753, %v2440, %v2488
          %v2766 = vsel %vm2753, %v2442, %v2490
          %v2767 = vsel %vm2753, %v2444, %v2492
          %v2768 = vsel %vm2753, %v2446, %v2494
          %v2769 = vsel %vm2753, %v2448, %v2496
          %v2770 = vsel %vm2753, %v2450, %v2498
          %v2771 = vsel %vm2753, %v2452, %v2500
          %v2772 = vsel %vm2753, %v2454, %v2502
          %v2773 = vsel %vm2753, %v2456, %v2504
          %v2774 = vsel %vm2753, %v2458, %v2506
          %v2775 = vsel %vm2753, %v2460, %v2508
          %v2776 = vsel %vm2753, %v2462, %v2510
          %v2777 = vsel %vm2753, %v2464, %v2512
          %vm2778 = vcmask 15360
          %v2779 = vsel %vm2778, %v2754, %v2345
          %v2780 = vsel %vm2778, %v2755, %v2346
          %v2781 = vsel %vm2778, %v2756, %v2347
          %v2782 = vsel %vm2778, %v2757, %v2348
          %v2783 = vsel %vm2778, %v2758, %v2349
          %v2784 = vsel %vm2778, %v2759, %v2350
          %v2785 = vsel %vm2778, %v2760, %v2351
          %v2786 = vsel %vm2778, %v2761, %v2352
          %v2787 = vsel %vm2778, %v2762, %v2353
          %v2788 = vsel %vm2778, %v2763, %v2354
          %v2789 = vsel %vm2778, %v2764, %v2355
          %v2790 = vsel %vm2778, %v2765, %v2356
          %v2791 = vsel %vm2778, %v2766, %v2357
          %v2792 = vsel %vm2778, %v2767, %v2358
          %v2793 = vsel %vm2778, %v2768, %v2359
          %v2794 = vsel %vm2778, %v2769, %v2360
          %v2795 = vsel %vm2778, %v2770, %v2361
          %v2796 = vsel %vm2778, %v2771, %v2362
          %v2797 = vsel %vm2778, %v2772, %v2363
          %v2798 = vsel %vm2778, %v2773, %v2364
          %v2799 = vsel %vm2778, %v2774, %v2365
          %v2800 = vsel %vm2778, %v2775, %v2366
          %v2801 = vsel %vm2778, %v2776, %v2367
          %v2802 = vsel %vm2778, %v2777, %v2368
          %vm2803 = vcmask 23552
          %v2804 = vsel %vm2803, %v2779, %v2514
          %v2805 = vsel %vm2803, %v2780, %v2516
          %v2806 = vsel %vm2803, %v2781, %v2518
          %v2807 = vsel %vm2803, %v2782, %v2520
          %v2808 = vsel %vm2803, %v2783, %v2522
          %v2809 = vsel %vm2803, %v2784, %v2524
          %v2810 = vsel %vm2803, %v2785, %v2526
          %v2811 = vsel %vm2803, %v2786, %v2528
          %v2812 = vsel %vm2803, %v2787, %v2530
          %v2813 = vsel %vm2803, %v2788, %v2532
          %v2814 = vsel %vm2803, %v2789, %v2534
          %v2815 = vsel %vm2803, %v2790, %v2536
          %v2816 = vsel %vm2803, %v2791, %v2538
          %v2817 = vsel %vm2803, %v2792, %v2540
          %v2818 = vsel %vm2803, %v2793, %v2542
          %v2819 = vsel %vm2803, %v2794, %v2544
          %v2820 = vsel %vm2803, %v2795, %v2546
          %v2821 = vsel %vm2803, %v2796, %v2548
          %v2822 = vsel %vm2803, %v2797, %v2550
          %v2823 = vsel %vm2803, %v2798, %v2552
          %v2824 = vsel %vm2803, %v2799, %v2554
          %v2825 = vsel %vm2803, %v2800, %v2556
          %v2826 = vsel %vm2803, %v2801, %v2558
          %v2827 = vsel %vm2803, %v2802, %v2560
          %vm2828 = vcmask 31744
          %v2829 = vsel %vm2828, %v2804, %v2562
          %v2830 = vsel %vm2828, %v2805, %v2564
          %v2831 = vsel %vm2828, %v2806, %v2566
          %v2832 = vsel %vm2828, %v2807, %v2568
          %v2833 = vsel %vm2828, %v2808, %v2570
          %v2834 = vsel %vm2828, %v2809, %v2572
          %v2835 = vsel %vm2828, %v2810, %v2574
          %v2836 = vsel %vm2828, %v2811, %v2576
          %v2837 = vsel %vm2828, %v2812, %v2578
          %v2838 = vsel %vm2828, %v2813, %v2580
          %v2839 = vsel %vm2828, %v2814, %v2582
          %v2840 = vsel %vm2828, %v2815, %v2584
          %v2841 = vsel %vm2828, %v2816, %v2586
          %v2842 = vsel %vm2828, %v2817, %v2588
          %v2843 = vsel %vm2828, %v2818, %v2590
          %v2844 = vsel %vm2828, %v2819, %v2592
          %v2845 = vsel %vm2828, %v2820, %v2594
          %v2846 = vsel %vm2828, %v2821, %v2596
          %v2847 = vsel %vm2828, %v2822, %v2598
          %v2848 = vsel %vm2828, %v2823, %v2600
          %v2849 = vsel %vm2828, %v2824, %v2602
          %v2850 = vsel %vm2828, %v2825, %v2604
          %v2851 = vsel %vm2828, %v2826, %v2606
          %v2852 = vsel %vm2828, %v2827, %v2608
          %vm2853 = vcmask 39936
          %v2854 = vsel %vm2853, %v2829, %v2610
          %v2855 = vsel %vm2853, %v2830, %v2612
          %v2856 = vsel %vm2853, %v2831, %v2614
          %v2857 = vsel %vm2853, %v2832, %v2616
          %v2858 = vsel %vm2853, %v2833, %v2618
          %v2859 = vsel %vm2853, %v2834, %v2620
          %v2860 = vsel %vm2853, %v2835, %v2622
          %v2861 = vsel %vm2853, %v2836, %v2624
          %v2862 = vsel %vm2853, %v2837, %v2626
          %v2863 = vsel %vm2853, %v2838, %v2628
          %v2864 = vsel %vm2853, %v2839, %v2630
          %v2865 = vsel %vm2853, %v2840, %v2632
          %v2866 = vsel %vm2853, %v2841, %v2634
          %v2867 = vsel %vm2853, %v2842, %v2636
          %v2868 = vsel %vm2853, %v2843, %v2638
          %v2869 = vsel %vm2853, %v2844, %v2640
          %v2870 = vsel %vm2853, %v2845, %v2642
          %v2871 = vsel %vm2853, %v2846, %v2644
          %v2872 = vsel %vm2853, %v2847, %v2646
          %v2873 = vsel %vm2853, %v2848, %v2648
          %v2874 = vsel %vm2853, %v2849, %v2650
          %v2875 = vsel %vm2853, %v2850, %v2652
          %v2876 = vsel %vm2853, %v2851, %v2654
          %v2877 = vsel %vm2853, %v2852, %v2656
          %vm2878 = vcmask 48128
          %v2879 = vsel %vm2878, %v2854, %v2658
          %v2880 = vsel %vm2878, %v2855, %v2660
          %v2881 = vsel %vm2878, %v2856, %v2662
          %v2882 = vsel %vm2878, %v2857, %v2664
          %v2883 = vsel %vm2878, %v2858, %v2666
          %v2884 = vsel %vm2878, %v2859, %v2668
          %v2885 = vsel %vm2878, %v2860, %v2670
          %v2886 = vsel %vm2878, %v2861, %v2672
          %v2887 = vsel %vm2878, %v2862, %v2674
          %v2888 = vsel %vm2878, %v2863, %v2676
          %v2889 = vsel %vm2878, %v2864, %v2678
          %v2890 = vsel %vm2878, %v2865, %v2680
          %v2891 = vsel %vm2878, %v2866, %v2682
          %v2892 = vsel %vm2878, %v2867, %v2684
          %v2893 = vsel %vm2878, %v2868, %v2686
          %v2894 = vsel %vm2878, %v2869, %v2688
          %v2895 = vsel %vm2878, %v2870, %v2690
          %v2896 = vsel %vm2878, %v2871, %v2692
          %v2897 = vsel %vm2878, %v2872, %v2694
          %v2898 = vsel %vm2878, %v2873, %v2696
          %v2899 = vsel %vm2878, %v2874, %v2698
          %v2900 = vsel %vm2878, %v2875, %v2700
          %v2901 = vsel %vm2878, %v2876, %v2702
          %v2902 = vsel %vm2878, %v2877, %v2704
          %vm2903 = vcmask 56320
          %v2904 = vsel %vm2903, %v2879, %v2706
          %v2905 = vsel %vm2903, %v2880, %v2708
          %v2906 = vsel %vm2903, %v2881, %v2710
          %v2907 = vsel %vm2903, %v2882, %v2712
          %v2908 = vsel %vm2903, %v2883, %v2714
          %v2909 = vsel %vm2903, %v2884, %v2716
          %v2910 = vsel %vm2903, %v2885, %v2718
          %v2911 = vsel %vm2903, %v2886, %v2720
          %v2912 = vsel %vm2903, %v2887, %v2722
          %v2913 = vsel %vm2903, %v2888, %v2724
          %v2914 = vsel %vm2903, %v2889, %v2726
          %v2915 = vsel %vm2903, %v2890, %v2728
          %v2916 = vsel %vm2903, %v2891, %v2730
          %v2917 = vsel %vm2903, %v2892, %v2732
          %v2918 = vsel %vm2903, %v2893, %v2734
          %v2919 = vsel %vm2903, %v2894, %v2736
          %v2920 = vsel %vm2903, %v2895, %v2738
          %v2921 = vsel %vm2903, %v2896, %v2740
          %v2922 = vsel %vm2903, %v2897, %v2742
          %v2923 = vsel %vm2903, %v2898, %v2744
          %v2924 = vsel %vm2903, %v2899, %v2746
          %v2925 = vsel %vm2903, %v2900, %v2748
          %v2926 = vsel %vm2903, %v2901, %v2750
          %v2927 = vsel %vm2903, %v2902, %v2752
          %vm2928 = vcmask 64512
          %2929 = vst.msk [vmem:[#allocation2] sm:$0xff] %vm2928, %v2904
          %2930 = vst.msk [vmem:[#allocation2 + $0x8] sm:$0xff] %vm2928, %v2905
          %2931 = vst.msk [vmem:[#allocation2 + $0x10] sm:$0xff] %vm2928, %v2906
          %2932 = vst.msk [vmem:[#allocation2 + $0x18] sm:$0xff] %vm2928, %v2907
          %2933 = vst.msk [vmem:[#allocation2 + $0x20] sm:$0xff] %vm2928, %v2908
          %2934 = vst.msk [vmem:[#allocation2 + $0x28] sm:$0xff] %vm2928, %v2909
          %2935 = vst.msk [vmem:[#allocation2 + $0x30] sm:$0xff] %vm2928, %v2910
          %2936 = vst.msk [vmem:[#allocation2 + $0x38] sm:$0xff] %vm2928, %v2911
          %2937 = vst.msk [vmem:[#allocation2 + $0x40] sm:$0xff] %vm2928, %v2912
          %2938 = vst.msk [vmem:[#allocation2 + $0x48] sm:$0xff] %vm2928, %v2913
          %2939 = vst.msk [vmem:[#allocation2 + $0x50] sm:$0xff] %vm2928, %v2914
          %2940 = vst.msk [vmem:[#allocation2 + $0x58] sm:$0xff] %vm2928, %v2915
          %2941 = vst.msk [vmem:[#allocation2 + $0x60] sm:$0xff] %vm2928, %v2916
          %2942 = vst.msk [vmem:[#allocation2 + $0x68] sm:$0xff] %vm2928, %v2917
          %2943 = vst.msk [vmem:[#allocation2 + $0x70] sm:$0xff] %vm2928, %v2918
          %2944 = vst.msk [vmem:[#allocation2 + $0x78] sm:$0xff] %vm2928, %v2919
          %2945 = vst.msk [vmem:[#allocation2 + $0x80] sm:$0xff] %vm2928, %v2920
          %2946 = vst.msk [vmem:[#allocation2 + $0x88] sm:$0xff] %vm2928, %v2921
          %2947 = vst.msk [vmem:[#allocation2 + $0x90] sm:$0xff] %vm2928, %v2922
          %2948 = vst.msk [vmem:[#allocation2 + $0x98] sm:$0xff] %vm2928, %v2923
          %2949 = vst.msk [vmem:[#allocation2 + $0xa0] sm:$0xff] %vm2928, %v2924
          %2950 = vst.msk [vmem:[#allocation2 + $0xa8] sm:$0xff] %vm2928, %v2925
          %2951 = vst.msk [vmem:[#allocation2 + $0xb0] sm:$0xff] %vm2928, %v2926
          %2952 = vst.msk [vmem:[#allocation2 + $0xb8] sm:$0xff] %vm2928, %v2927
          %2977 = vrot.lane.b32.xlu0 %v1265, 2
          %v2978 = vpop.permute.xlu0 %2977
          %2979 = vrot.lane.b32.xlu0 %v1266, 2
          %v2980 = vpop.permute.xlu0 %2979
          %2981 = vrot.lane.b32.xlu0 %v1267, 2
          %v2982 = vpop.permute.xlu0 %2981
          %2983 = vrot.lane.b32.xlu0 %v1268, 2
          %v2984 = vpop.permute.xlu0 %2983
          %2985 = vrot.lane.b32.xlu0 %v1269, 2
          %v2986 = vpop.permute.xlu0 %2985
          %2987 = vrot.lane.b32.xlu0 %v1270, 2
          %v2988 = vpop.permute.xlu0 %2987
          %2989 = vrot.lane.b32.xlu0 %v1271, 2
          %v2990 = vpop.permute.xlu0 %2989
          %2991 = vrot.lane.b32.xlu0 %v1272, 2
          %v2992 = vpop.permute.xlu0 %2991
          %2993 = vrot.lane.b32.xlu0 %v1273, 2
          %v2994 = vpop.permute.xlu0 %2993
          %2995 = vrot.lane.b32.xlu0 %v1274, 2
          %v2996 = vpop.permute.xlu0 %2995
          %2997 = vrot.lane.b32.xlu0 %v1275, 2
          %v2998 = vpop.permute.xlu0 %2997
          %2999 = vrot.lane.b32.xlu0 %v1276, 2
          %v3000 = vpop.permute.xlu0 %2999
          %3001 = vrot.lane.b32.xlu0 %v1277, 2
          %v3002 = vpop.permute.xlu0 %3001
          %3003 = vrot.lane.b32.xlu0 %v1278, 2
          %v3004 = vpop.permute.xlu0 %3003
          %3005 = vrot.lane.b32.xlu0 %v1279, 2
          %v3006 = vpop.permute.xlu0 %3005
          %3007 = vrot.lane.b32.xlu0 %v1280, 2
          %v3008 = vpop.permute.xlu0 %3007
          %3009 = vrot.lane.b32.xlu0 %v1281, 2
          %v3010 = vpop.permute.xlu0 %3009
          %3011 = vrot.lane.b32.xlu0 %v1282, 2
          %v3012 = vpop.permute.xlu0 %3011
          %3013 = vrot.lane.b32.xlu0 %v1283, 2
          %v3014 = vpop.permute.xlu0 %3013
          %3015 = vrot.lane.b32.xlu0 %v1284, 2
          %v3016 = vpop.permute.xlu0 %3015
          %3017 = vrot.lane.b32.xlu0 %v1285, 2
          %v3018 = vpop.permute.xlu0 %3017
          %3019 = vrot.lane.b32.xlu0 %v1286, 2
          %v3020 = vpop.permute.xlu0 %3019
          %3021 = vrot.lane.b32.xlu0 %v1287, 2
          %v3022 = vpop.permute.xlu0 %3021
          %3023 = vrot.lane.b32.xlu0 %v1288, 2
          %v3024 = vpop.permute.xlu0 %3023
          %v3049 = vmul.f32 %v1553, %v2978
          %v3050 = vmul.f32 %v1554, %v2980
          %v3051 = vmul.f32 %v1555, %v2982
          %v3052 = vmul.f32 %v1556, %v2984
          %v3053 = vmul.f32 %v1557, %v2986
          %v3054 = vmul.f32 %v1558, %v2988
          %v3055 = vmul.f32 %v1559, %v2990
          %v3056 = vmul.f32 %v1560, %v2992
          %v3057 = vmul.f32 %v1561, %v2994
          %v3058 = vmul.f32 %v1562, %v2996
          %v3059 = vmul.f32 %v1563, %v2998
          %v3060 = vmul.f32 %v1564, %v3000
          %v3061 = vmul.f32 %v1565, %v3002
          %v3062 = vmul.f32 %v1566, %v3004
          %v3063 = vmul.f32 %v1567, %v3006
          %v3064 = vmul.f32 %v1568, %v3008
          %v3065 = vmul.f32 %v1569, %v3010
          %v3066 = vmul.f32 %v1570, %v3012
          %v3067 = vmul.f32 %v1571, %v3014
          %v3068 = vmul.f32 %v1572, %v3016
          %v3069 = vmul.f32 %v1573, %v3018
          %v3070 = vmul.f32 %v1574, %v3020
          %v3071 = vmul.f32 %v1575, %v3022
          %v3072 = vmul.f32 %v1576, %v3024
          %3097 = vrot.lane.b32.xlu0 %v1289, 2
          %v3098 = vpop.permute.xlu0 %3097
          %3099 = vrot.lane.b32.xlu0 %v1290, 2
          %v3100 = vpop.permute.xlu0 %3099
          %3101 = vrot.lane.b32.xlu0 %v1291, 2
          %v3102 = vpop.permute.xlu0 %3101
          %3103 = vrot.lane.b32.xlu0 %v1292, 2
          %v3104 = vpop.permute.xlu0 %3103
          %3105 = vrot.lane.b32.xlu0 %v1293, 2
          %v3106 = vpop.permute.xlu0 %3105
          %3107 = vrot.lane.b32.xlu0 %v1294, 2
          %v3108 = vpop.permute.xlu0 %3107
          %3109 = vrot.lane.b32.xlu0 %v1295, 2
          %v3110 = vpop.permute.xlu0 %3109
          %3111 = vrot.lane.b32.xlu0 %v1296, 2
          %v3112 = vpop.permute.xlu0 %3111
          %3113 = vrot.lane.b32.xlu0 %v1297, 2
          %v3114 = vpop.permute.xlu0 %3113
          %3115 = vrot.lane.b32.xlu0 %v1298, 2
          %v3116 = vpop.permute.xlu0 %3115
          %3117 = vrot.lane.b32.xlu0 %v1299, 2
          %v3118 = vpop.permute.xlu0 %3117
          %3119 = vrot.lane.b32.xlu0 %v1300, 2
          %v3120 = vpop.permute.xlu0 %3119
          %3121 = vrot.lane.b32.xlu0 %v1301, 2
          %v3122 = vpop.permute.xlu0 %3121
          %3123 = vrot.lane.b32.xlu0 %v1302, 2
          %v3124 = vpop.permute.xlu0 %3123
          %3125 = vrot.lane.b32.xlu0 %v1303, 2
          %v3126 = vpop.permute.xlu0 %3125
          %3127 = vrot.lane.b32.xlu0 %v1304, 2
          %v3128 = vpop.permute.xlu0 %3127
          %3129 = vrot.lane.b32.xlu0 %v1305, 2
          %v3130 = vpop.permute.xlu0 %3129
          %3131 = vrot.lane.b32.xlu0 %v1306, 2
          %v3132 = vpop.permute.xlu0 %3131
          %3133 = vrot.lane.b32.xlu0 %v1307, 2
          %v3134 = vpop.permute.xlu0 %3133
          %3135 = vrot.lane.b32.xlu0 %v1308, 2
          %v3136 = vpop.permute.xlu0 %3135
          %3137 = vrot.lane.b32.xlu0 %v1309, 2
          %v3138 = vpop.permute.xlu0 %3137
          %3139 = vrot.lane.b32.xlu0 %v1310, 2
          %v3140 = vpop.permute.xlu0 %3139
          %3141 = vrot.lane.b32.xlu0 %v1311, 2
          %v3142 = vpop.permute.xlu0 %3141
          %3143 = vrot.lane.b32.xlu0 %v1312, 2
          %v3144 = vpop.permute.xlu0 %3143
          %v3169 = vmul.f32 %v1553, %v3098
          %v3170 = vmul.f32 %v1554, %v3100
          %v3171 = vmul.f32 %v1555, %v3102
          %v3172 = vmul.f32 %v1556, %v3104
          %v3173 = vmul.f32 %v1557, %v3106
          %v3174 = vmul.f32 %v1558, %v3108
          %v3175 = vmul.f32 %v1559, %v3110
          %v3176 = vmul.f32 %v1560, %v3112
          %v3177 = vmul.f32 %v1561, %v3114
          %v3178 = vmul.f32 %v1562, %v3116
          %v3179 = vmul.f32 %v1563, %v3118
          %v3180 = vmul.f32 %v1564, %v3120
          %v3181 = vmul.f32 %v1565, %v3122
          %v3182 = vmul.f32 %v1566, %v3124
          %v3183 = vmul.f32 %v1567, %v3126
          %v3184 = vmul.f32 %v1568, %v3128
          %v3185 = vmul.f32 %v1569, %v3130
          %v3186 = vmul.f32 %v1570, %v3132
          %v3187 = vmul.f32 %v1571, %v3134
          %v3188 = vmul.f32 %v1572, %v3136
          %v3189 = vmul.f32 %v1573, %v3138
          %v3190 = vmul.f32 %v1574, %v3140
          %v3191 = vmul.f32 %v1575, %v3142
          %v3192 = vmul.f32 %v1576, %v3144
          %v3193 = vmul.f32 %v1817, %v2978
          %v3194 = vmul.f32 %v1818, %v2980
          %v3195 = vmul.f32 %v1819, %v2982
          %v3196 = vmul.f32 %v1820, %v2984
          %v3197 = vmul.f32 %v1821, %v2986
          %v3198 = vmul.f32 %v1822, %v2988
          %v3199 = vmul.f32 %v1823, %v2990
          %v3200 = vmul.f32 %v1824, %v2992
          %v3201 = vmul.f32 %v1825, %v2994
          %v3202 = vmul.f32 %v1826, %v2996
          %v3203 = vmul.f32 %v1827, %v2998
          %v3204 = vmul.f32 %v1828, %v3000
          %v3205 = vmul.f32 %v1829, %v3002
          %v3206 = vmul.f32 %v1830, %v3004
          %v3207 = vmul.f32 %v1831, %v3006
          %v3208 = vmul.f32 %v1832, %v3008
          %v3209 = vmul.f32 %v1833, %v3010
          %v3210 = vmul.f32 %v1834, %v3012
          %v3211 = vmul.f32 %v1835, %v3014
          %v3212 = vmul.f32 %v1836, %v3016
          %v3213 = vmul.f32 %v1837, %v3018
          %v3214 = vmul.f32 %v1838, %v3020
          %v3215 = vmul.f32 %v1839, %v3022
          %v3216 = vmul.f32 %v1840, %v3024
          %v3217 = vmul.f32 %v1817, %v3098
          %v3218 = vmul.f32 %v1818, %v3100
          %v3219 = vmul.f32 %v1819, %v3102
          %v3220 = vmul.f32 %v1820, %v3104
          %v3221 = vmul.f32 %v1821, %v3106
          %v3222 = vmul.f32 %v1822, %v3108
          %v3223 = vmul.f32 %v1823, %v3110
          %v3224 = vmul.f32 %v1824, %v3112
          %v3225 = vmul.f32 %v1825, %v3114
          %v3226 = vmul.f32 %v1826, %v3116
          %v3227 = vmul.f32 %v1827, %v3118
          %v3228 = vmul.f32 %v1828, %v3120
          %v3229 = vmul.f32 %v1829, %v3122
          %v3230 = vmul.f32 %v1830, %v3124
          %v3231 = vmul.f32 %v1831, %v3126
          %v3232 = vmul.f32 %v1832, %v3128
          %v3233 = vmul.f32 %v1833, %v3130
          %v3234 = vmul.f32 %v1834, %v3132
          %v3235 = vmul.f32 %v1835, %v3134
          %v3236 = vmul.f32 %v1836, %v3136
          %v3237 = vmul.f32 %v1837, %v3138
          %v3238 = vmul.f32 %v1838, %v3140
          %v3239 = vmul.f32 %v1839, %v3142
          %v3240 = vmul.f32 %v1840, %v3144
          %v3241 = vmul.f32 %v1889, %v2978
          %v3242 = vmul.f32 %v1890, %v2980
          %v3243 = vmul.f32 %v1891, %v2982
          %v3244 = vmul.f32 %v1892, %v2984
          %v3245 = vmul.f32 %v1893, %v2986
          %v3246 = vmul.f32 %v1894, %v2988
          %v3247 = vmul.f32 %v1895, %v2990
          %v3248 = vmul.f32 %v1896, %v2992
          %v3249 = vmul.f32 %v1897, %v2994
          %v3250 = vmul.f32 %v1898, %v2996
          %v3251 = vmul.f32 %v1899, %v2998
          %v3252 = vmul.f32 %v1900, %v3000
          %v3253 = vmul.f32 %v1901, %v3002
          %v3254 = vmul.f32 %v1902, %v3004
          %v3255 = vmul.f32 %v1903, %v3006
          %v3256 = vmul.f32 %v1904, %v3008
          %v3257 = vmul.f32 %v1905, %v3010
          %v3258 = vmul.f32 %v1906, %v3012
          %v3259 = vmul.f32 %v1907, %v3014
          %v3260 = vmul.f32 %v1908, %v3016
          %v3261 = vmul.f32 %v1909, %v3018
          %v3262 = vmul.f32 %v1910, %v3020
          %v3263 = vmul.f32 %v1911, %v3022
          %v3264 = vmul.f32 %v1912, %v3024
          %v3265 = vmul.f32 %v1889, %v3098
          %v3266 = vmul.f32 %v1890, %v3100
          %v3267 = vmul.f32 %v1891, %v3102
          %v3268 = vmul.f32 %v1892, %v3104
          %v3269 = vmul.f32 %v1893, %v3106
          %v3270 = vmul.f32 %v1894, %v3108
          %v3271 = vmul.f32 %v1895, %v3110
          %v3272 = vmul.f32 %v1896, %v3112
          %v3273 = vmul.f32 %v1897, %v3114
          %v3274 = vmul.f32 %v1898, %v3116
          %v3275 = vmul.f32 %v1899, %v3118
          %v3276 = vmul.f32 %v1900, %v3120
          %v3277 = vmul.f32 %v1901, %v3122
          %v3278 = vmul.f32 %v1902, %v3124
          %v3279 = vmul.f32 %v1903, %v3126
          %v3280 = vmul.f32 %v1904, %v3128
          %v3281 = vmul.f32 %v1905, %v3130
          %v3282 = vmul.f32 %v1906, %v3132
          %v3283 = vmul.f32 %v1907, %v3134
          %v3284 = vmul.f32 %v1908, %v3136
          %v3285 = vmul.f32 %v1909, %v3138
          %v3286 = vmul.f32 %v1910, %v3140
          %v3287 = vmul.f32 %v1911, %v3142
          %v3288 = vmul.f32 %v1912, %v3144
          %v3289 = vmul.f32 %v1961, %v2978
          %v3290 = vmul.f32 %v1962, %v2980
          %v3291 = vmul.f32 %v1963, %v2982
          %v3292 = vmul.f32 %v1964, %v2984
          %v3293 = vmul.f32 %v1965, %v2986
          %v3294 = vmul.f32 %v1966, %v2988
          %v3295 = vmul.f32 %v1967, %v2990
          %v3296 = vmul.f32 %v1968, %v2992
          %v3297 = vmul.f32 %v1969, %v2994
          %v3298 = vmul.f32 %v1970, %v2996
          %v3299 = vmul.f32 %v1971, %v2998
          %v3300 = vmul.f32 %v1972, %v3000
          %v3301 = vmul.f32 %v1973, %v3002
          %v3302 = vmul.f32 %v1974, %v3004
          %v3303 = vmul.f32 %v1975, %v3006
          %v3304 = vmul.f32 %v1976, %v3008
          %v3305 = vmul.f32 %v1977, %v3010
          %v3306 = vmul.f32 %v1978, %v3012
          %v3307 = vmul.f32 %v1979, %v3014
          %v3308 = vmul.f32 %v1980, %v3016
          %v3309 = vmul.f32 %v1981, %v3018
          %v3310 = vmul.f32 %v1982, %v3020
          %v3311 = vmul.f32 %v1983, %v3022
          %v3312 = vmul.f32 %v1984, %v3024
          %v3313 = vmul.f32 %v1961, %v3098
          %v3314 = vmul.f32 %v1962, %v3100
          %v3315 = vmul.f32 %v1963, %v3102
          %v3316 = vmul.f32 %v1964, %v3104
          %v3317 = vmul.f32 %v1965, %v3106
          %v3318 = vmul.f32 %v1966, %v3108
          %v3319 = vmul.f32 %v1967, %v3110
          %v3320 = vmul.f32 %v1968, %v3112
          %v3321 = vmul.f32 %v1969, %v3114
          %v3322 = vmul.f32 %v1970, %v3116
          %v3323 = vmul.f32 %v1971, %v3118
          %v3324 = vmul.f32 %v1972, %v3120
          %v3325 = vmul.f32 %v1973, %v3122
          %v3326 = vmul.f32 %v1974, %v3124
          %v3327 = vmul.f32 %v1975, %v3126
          %v3328 = vmul.f32 %v1976, %v3128
          %v3329 = vmul.f32 %v1977, %v3130
          %v3330 = vmul.f32 %v1978, %v3132
          %v3331 = vmul.f32 %v1979, %v3134
          %v3332 = vmul.f32 %v1980, %v3136
          %v3333 = vmul.f32 %v1981, %v3138
          %v3334 = vmul.f32 %v1982, %v3140
          %v3335 = vmul.f32 %v1983, %v3142
          %v3336 = vmul.f32 %v1984, %v3144
          %3361 = vrot.lane.b32.xlu0 %v3049, 126
          %v3362 = vpop.permute.xlu0 %3361
          %3363 = vrot.lane.b32.xlu0 %v3050, 126
          %v3364 = vpop.permute.xlu0 %3363
          %3365 = vrot.lane.b32.xlu0 %v3051, 126
          %v3366 = vpop.permute.xlu0 %3365
          %3367 = vrot.lane.b32.xlu0 %v3052, 126
          %v3368 = vpop.permute.xlu0 %3367
          %3369 = vrot.lane.b32.xlu0 %v3053, 126
          %v3370 = vpop.permute.xlu0 %3369
          %3371 = vrot.lane.b32.xlu0 %v3054, 126
          %v3372 = vpop.permute.xlu0 %3371
          %3373 = vrot.lane.b32.xlu0 %v3055, 126
          %v3374 = vpop.permute.xlu0 %3373
          %3375 = vrot.lane.b32.xlu0 %v3056, 126
          %v3376 = vpop.permute.xlu0 %3375
          %3377 = vrot.lane.b32.xlu0 %v3057, 126
          %v3378 = vpop.permute.xlu0 %3377
          %3379 = vrot.lane.b32.xlu0 %v3058, 126
          %v3380 = vpop.permute.xlu0 %3379
          %3381 = vrot.lane.b32.xlu0 %v3059, 126
          %v3382 = vpop.permute.xlu0 %3381
          %3383 = vrot.lane.b32.xlu0 %v3060, 126
          %v3384 = vpop.permute.xlu0 %3383
          %3385 = vrot.lane.b32.xlu0 %v3061, 126
          %v3386 = vpop.permute.xlu0 %3385
          %3387 = vrot.lane.b32.xlu0 %v3062, 126
          %v3388 = vpop.permute.xlu0 %3387
          %3389 = vrot.lane.b32.xlu0 %v3063, 126
          %v3390 = vpop.permute.xlu0 %3389
          %3391 = vrot.lane.b32.xlu0 %v3064, 126
          %v3392 = vpop.permute.xlu0 %3391
          %3393 = vrot.lane.b32.xlu0 %v3065, 126
          %v3394 = vpop.permute.xlu0 %3393
          %3395 = vrot.lane.b32.xlu0 %v3066, 126
          %v3396 = vpop.permute.xlu0 %3395
          %3397 = vrot.lane.b32.xlu0 %v3067, 126
          %v3398 = vpop.permute.xlu0 %3397
          %3399 = vrot.lane.b32.xlu0 %v3068, 126
          %v3400 = vpop.permute.xlu0 %3399
          %3401 = vrot.lane.b32.xlu0 %v3069, 126
          %v3402 = vpop.permute.xlu0 %3401
          %3403 = vrot.lane.b32.xlu0 %v3070, 126
          %v3404 = vpop.permute.xlu0 %3403
          %3405 = vrot.lane.b32.xlu0 %v3071, 126
          %v3406 = vpop.permute.xlu0 %3405
          %3407 = vrot.lane.b32.xlu0 %v3072, 126
          %v3408 = vpop.permute.xlu0 %3407
          %3457 = vrot.lane.b32.xlu0 %v3169, 127
          %v3458 = vpop.permute.xlu0 %3457
          %3459 = vrot.lane.b32.xlu0 %v3170, 127
          %v3460 = vpop.permute.xlu0 %3459
          %3461 = vrot.lane.b32.xlu0 %v3171, 127
          %v3462 = vpop.permute.xlu0 %3461
          %3463 = vrot.lane.b32.xlu0 %v3172, 127
          %v3464 = vpop.permute.xlu0 %3463
          %3465 = vrot.lane.b32.xlu0 %v3173, 127
          %v3466 = vpop.permute.xlu0 %3465
          %3467 = vrot.lane.b32.xlu0 %v3174, 127
          %v3468 = vpop.permute.xlu0 %3467
          %3469 = vrot.lane.b32.xlu0 %v3175, 127
          %v3470 = vpop.permute.xlu0 %3469
          %3471 = vrot.lane.b32.xlu0 %v3176, 127
          %v3472 = vpop.permute.xlu0 %3471
          %3473 = vrot.lane.b32.xlu0 %v3177, 127
          %v3474 = vpop.permute.xlu0 %3473
          %3475 = vrot.lane.b32.xlu0 %v3178, 127
          %v3476 = vpop.permute.xlu0 %3475
          %3477 = vrot.lane.b32.xlu0 %v3179, 127
          %v3478 = vpop.permute.xlu0 %3477
          %3479 = vrot.lane.b32.xlu0 %v3180, 127
          %v3480 = vpop.permute.xlu0 %3479
          %3481 = vrot.lane.b32.xlu0 %v3181, 127
          %v3482 = vpop.permute.xlu0 %3481
          %3483 = vrot.lane.b32.xlu0 %v3182, 127
          %v3484 = vpop.permute.xlu0 %3483
          %3485 = vrot.lane.b32.xlu0 %v3183, 127
          %v3486 = vpop.permute.xlu0 %3485
          %3487 = vrot.lane.b32.xlu0 %v3184, 127
          %v3488 = vpop.permute.xlu0 %3487
          %3489 = vrot.lane.b32.xlu0 %v3185, 127
          %v3490 = vpop.permute.xlu0 %3489
          %3491 = vrot.lane.b32.xlu0 %v3186, 127
          %v3492 = vpop.permute.xlu0 %3491
          %3493 = vrot.lane.b32.xlu0 %v3187, 127
          %v3494 = vpop.permute.xlu0 %3493
          %3495 = vrot.lane.b32.xlu0 %v3188, 127
          %v3496 = vpop.permute.xlu0 %3495
          %3497 = vrot.lane.b32.xlu0 %v3189, 127
          %v3498 = vpop.permute.xlu0 %3497
          %3499 = vrot.lane.b32.xlu0 %v3190, 127
          %v3500 = vpop.permute.xlu0 %3499
          %3501 = vrot.lane.b32.xlu0 %v3191, 127
          %v3502 = vpop.permute.xlu0 %3501
          %3503 = vrot.lane.b32.xlu0 %v3192, 127
          %v3504 = vpop.permute.xlu0 %3503
          %3553 = vrot.lane.b32.xlu0 %v3217, 1
          %v3554 = vpop.permute.xlu0 %3553
          %3555 = vrot.lane.b32.xlu0 %v3218, 1
          %v3556 = vpop.permute.xlu0 %3555
          %3557 = vrot.lane.b32.xlu0 %v3219, 1
          %v3558 = vpop.permute.xlu0 %3557
          %3559 = vrot.lane.b32.xlu0 %v3220, 1
          %v3560 = vpop.permute.xlu0 %3559
          %3561 = vrot.lane.b32.xlu0 %v3221, 1
          %v3562 = vpop.permute.xlu0 %3561
          %3563 = vrot.lane.b32.xlu0 %v3222, 1
          %v3564 = vpop.permute.xlu0 %3563
          %3565 = vrot.lane.b32.xlu0 %v3223, 1
          %v3566 = vpop.permute.xlu0 %3565
          %3567 = vrot.lane.b32.xlu0 %v3224, 1
          %v3568 = vpop.permute.xlu0 %3567
          %3569 = vrot.lane.b32.xlu0 %v3225, 1
          %v3570 = vpop.permute.xlu0 %3569
          %3571 = vrot.lane.b32.xlu0 %v3226, 1
          %v3572 = vpop.permute.xlu0 %3571
          %3573 = vrot.lane.b32.xlu0 %v3227, 1
          %v3574 = vpop.permute.xlu0 %3573
          %3575 = vrot.lane.b32.xlu0 %v3228, 1
          %v3576 = vpop.permute.xlu0 %3575
          %3577 = vrot.lane.b32.xlu0 %v3229, 1
          %v3578 = vpop.permute.xlu0 %3577
          %3579 = vrot.lane.b32.xlu0 %v3230, 1
          %v3580 = vpop.permute.xlu0 %3579
          %3581 = vrot.lane.b32.xlu0 %v3231, 1
          %v3582 = vpop.permute.xlu0 %3581
          %3583 = vrot.lane.b32.xlu0 %v3232, 1
          %v3584 = vpop.permute.xlu0 %3583
          %3585 = vrot.lane.b32.xlu0 %v3233, 1
          %v3586 = vpop.permute.xlu0 %3585
          %3587 = vrot.lane.b32.xlu0 %v3234, 1
          %v3588 = vpop.permute.xlu0 %3587
          %3589 = vrot.lane.b32.xlu0 %v3235, 1
          %v3590 = vpop.permute.xlu0 %3589
          %3591 = vrot.lane.b32.xlu0 %v3236, 1
          %v3592 = vpop.permute.xlu0 %3591
          %3593 = vrot.lane.b32.xlu0 %v3237, 1
          %v3594 = vpop.permute.xlu0 %3593
          %3595 = vrot.lane.b32.xlu0 %v3238, 1
          %v3596 = vpop.permute.xlu0 %3595
          %3597 = vrot.lane.b32.xlu0 %v3239, 1
          %v3598 = vpop.permute.xlu0 %3597
          %3599 = vrot.lane.b32.xlu0 %v3240, 1
          %v3600 = vpop.permute.xlu0 %3599
          %3649 = vrot.lane.b32.xlu0 %v3241, 2
          %v3650 = vpop.permute.xlu0 %3649
          %3651 = vrot.lane.b32.xlu0 %v3242, 2
          %v3652 = vpop.permute.xlu0 %3651
          %3653 = vrot.lane.b32.xlu0 %v3243, 2
          %v3654 = vpop.permute.xlu0 %3653
          %3655 = vrot.lane.b32.xlu0 %v3244, 2
          %v3656 = vpop.permute.xlu0 %3655
          %3657 = vrot.lane.b32.xlu0 %v3245, 2
          %v3658 = vpop.permute.xlu0 %3657
          %3659 = vrot.lane.b32.xlu0 %v3246, 2
          %v3660 = vpop.permute.xlu0 %3659
          %3661 = vrot.lane.b32.xlu0 %v3247, 2
          %v3662 = vpop.permute.xlu0 %3661
          %3663 = vrot.lane.b32.xlu0 %v3248, 2
          %v3664 = vpop.permute.xlu0 %3663
          %3665 = vrot.lane.b32.xlu0 %v3249, 2
          %v3666 = vpop.permute.xlu0 %3665
          %3667 = vrot.lane.b32.xlu0 %v3250, 2
          %v3668 = vpop.permute.xlu0 %3667
          %3669 = vrot.lane.b32.xlu0 %v3251, 2
          %v3670 = vpop.permute.xlu0 %3669
          %3671 = vrot.lane.b32.xlu0 %v3252, 2
          %v3672 = vpop.permute.xlu0 %3671
          %3673 = vrot.lane.b32.xlu0 %v3253, 2
          %v3674 = vpop.permute.xlu0 %3673
          %3675 = vrot.lane.b32.xlu0 %v3254, 2
          %v3676 = vpop.permute.xlu0 %3675
          %3677 = vrot.lane.b32.xlu0 %v3255, 2
          %v3678 = vpop.permute.xlu0 %3677
          %3679 = vrot.lane.b32.xlu0 %v3256, 2
          %v3680 = vpop.permute.xlu0 %3679
          %3681 = vrot.lane.b32.xlu0 %v3257, 2
          %v3682 = vpop.permute.xlu0 %3681
          %3683 = vrot.lane.b32.xlu0 %v3258, 2
          %v3684 = vpop.permute.xlu0 %3683
          %3685 = vrot.lane.b32.xlu0 %v3259, 2
          %v3686 = vpop.permute.xlu0 %3685
          %3687 = vrot.lane.b32.xlu0 %v3260, 2
          %v3688 = vpop.permute.xlu0 %3687
          %3689 = vrot.lane.b32.xlu0 %v3261, 2
          %v3690 = vpop.permute.xlu0 %3689
          %3691 = vrot.lane.b32.xlu0 %v3262, 2
          %v3692 = vpop.permute.xlu0 %3691
          %3693 = vrot.lane.b32.xlu0 %v3263, 2
          %v3694 = vpop.permute.xlu0 %3693
          %3695 = vrot.lane.b32.xlu0 %v3264, 2
          %v3696 = vpop.permute.xlu0 %3695
          %3745 = vrot.lane.b32.xlu0 %v3265, 3
          %v3746 = vpop.permute.xlu0 %3745
          %3747 = vrot.lane.b32.xlu0 %v3266, 3
          %v3748 = vpop.permute.xlu0 %3747
          %3749 = vrot.lane.b32.xlu0 %v3267, 3
          %v3750 = vpop.permute.xlu0 %3749
          %3751 = vrot.lane.b32.xlu0 %v3268, 3
          %v3752 = vpop.permute.xlu0 %3751
          %3753 = vrot.lane.b32.xlu0 %v3269, 3
          %v3754 = vpop.permute.xlu0 %3753
          %3755 = vrot.lane.b32.xlu0 %v3270, 3
          %v3756 = vpop.permute.xlu0 %3755
          %3757 = vrot.lane.b32.xlu0 %v3271, 3
          %v3758 = vpop.permute.xlu0 %3757
          %3759 = vrot.lane.b32.xlu0 %v3272, 3
          %v3760 = vpop.permute.xlu0 %3759
          %3761 = vrot.lane.b32.xlu0 %v3273, 3
          %v3762 = vpop.permute.xlu0 %3761
          %3763 = vrot.lane.b32.xlu0 %v3274, 3
          %v3764 = vpop.permute.xlu0 %3763
          %3765 = vrot.lane.b32.xlu0 %v3275, 3
          %v3766 = vpop.permute.xlu0 %3765
          %3767 = vrot.lane.b32.xlu0 %v3276, 3
          %v3768 = vpop.permute.xlu0 %3767
          %3769 = vrot.lane.b32.xlu0 %v3277, 3
          %v3770 = vpop.permute.xlu0 %3769
          %3771 = vrot.lane.b32.xlu0 %v3278, 3
          %v3772 = vpop.permute.xlu0 %3771
          %3773 = vrot.lane.b32.xlu0 %v3279, 3
          %v3774 = vpop.permute.xlu0 %3773
          %3775 = vrot.lane.b32.xlu0 %v3280, 3
          %v3776 = vpop.permute.xlu0 %3775
          %3777 = vrot.lane.b32.xlu0 %v3281, 3
          %v3778 = vpop.permute.xlu0 %3777
          %3779 = vrot.lane.b32.xlu0 %v3282, 3
          %v3780 = vpop.permute.xlu0 %3779
          %3781 = vrot.lane.b32.xlu0 %v3283, 3
          %v3782 = vpop.permute.xlu0 %3781
          %3783 = vrot.lane.b32.xlu0 %v3284, 3
          %v3784 = vpop.permute.xlu0 %3783
          %3785 = vrot.lane.b32.xlu0 %v3285, 3
          %v3786 = vpop.permute.xlu0 %3785
          %3787 = vrot.lane.b32.xlu0 %v3286, 3
          %v3788 = vpop.permute.xlu0 %3787
          %3789 = vrot.lane.b32.xlu0 %v3287, 3
          %v3790 = vpop.permute.xlu0 %3789
          %3791 = vrot.lane.b32.xlu0 %v3288, 3
          %v3792 = vpop.permute.xlu0 %3791
          %3841 = vrot.lane.b32.xlu0 %v3289, 4
          %v3842 = vpop.permute.xlu0 %3841
          %3843 = vrot.lane.b32.xlu0 %v3290, 4
          %v3844 = vpop.permute.xlu0 %3843
          %3845 = vrot.lane.b32.xlu0 %v3291, 4
          %v3846 = vpop.permute.xlu0 %3845
          %3847 = vrot.lane.b32.xlu0 %v3292, 4
          %v3848 = vpop.permute.xlu0 %3847
          %3849 = vrot.lane.b32.xlu0 %v3293, 4
          %v3850 = vpop.permute.xlu0 %3849
          %3851 = vrot.lane.b32.xlu0 %v3294, 4
          %v3852 = vpop.permute.xlu0 %3851
          %3853 = vrot.lane.b32.xlu0 %v3295, 4
          %v3854 = vpop.permute.xlu0 %3853
          %3855 = vrot.lane.b32.xlu0 %v3296, 4
          %v3856 = vpop.permute.xlu0 %3855
          %3857 = vrot.lane.b32.xlu0 %v3297, 4
          %v3858 = vpop.permute.xlu0 %3857
          %3859 = vrot.lane.b32.xlu0 %v3298, 4
          %v3860 = vpop.permute.xlu0 %3859
          %3861 = vrot.lane.b32.xlu0 %v3299, 4
          %v3862 = vpop.permute.xlu0 %3861
          %3863 = vrot.lane.b32.xlu0 %v3300, 4
          %v3864 = vpop.permute.xlu0 %3863
          %3865 = vrot.lane.b32.xlu0 %v3301, 4
          %v3866 = vpop.permute.xlu0 %3865
          %3867 = vrot.lane.b32.xlu0 %v3302, 4
          %v3868 = vpop.permute.xlu0 %3867
          %3869 = vrot.lane.b32.xlu0 %v3303, 4
          %v3870 = vpop.permute.xlu0 %3869
          %3871 = vrot.lane.b32.xlu0 %v3304, 4
          %v3872 = vpop.permute.xlu0 %3871
          %3873 = vrot.lane.b32.xlu0 %v3305, 4
          %v3874 = vpop.permute.xlu0 %3873
          %3875 = vrot.lane.b32.xlu0 %v3306, 4
          %v3876 = vpop.permute.xlu0 %3875
          %3877 = vrot.lane.b32.xlu0 %v3307, 4
          %v3878 = vpop.permute.xlu0 %3877
          %3879 = vrot.lane.b32.xlu0 %v3308, 4
          %v3880 = vpop.permute.xlu0 %3879
          %3881 = vrot.lane.b32.xlu0 %v3309, 4
          %v3882 = vpop.permute.xlu0 %3881
          %3883 = vrot.lane.b32.xlu0 %v3310, 4
          %v3884 = vpop.permute.xlu0 %3883
          %3885 = vrot.lane.b32.xlu0 %v3311, 4
          %v3886 = vpop.permute.xlu0 %3885
          %3887 = vrot.lane.b32.xlu0 %v3312, 4
          %v3888 = vpop.permute.xlu0 %3887
          %3937 = vrot.lane.b32.xlu0 %v3313, 5
          %v3938 = vpop.permute.xlu0 %3937
          %3939 = vrot.lane.b32.xlu0 %v3314, 5
          %v3940 = vpop.permute.xlu0 %3939
          %3941 = vrot.lane.b32.xlu0 %v3315, 5
          %v3942 = vpop.permute.xlu0 %3941
          %3943 = vrot.lane.b32.xlu0 %v3316, 5
          %v3944 = vpop.permute.xlu0 %3943
          %3945 = vrot.lane.b32.xlu0 %v3317, 5
          %v3946 = vpop.permute.xlu0 %3945
          %3947 = vrot.lane.b32.xlu0 %v3318, 5
          %v3948 = vpop.permute.xlu0 %3947
          %3949 = vrot.lane.b32.xlu0 %v3319, 5
          %v3950 = vpop.permute.xlu0 %3949
          %3951 = vrot.lane.b32.xlu0 %v3320, 5
          %v3952 = vpop.permute.xlu0 %3951
          %3953 = vrot.lane.b32.xlu0 %v3321, 5
          %v3954 = vpop.permute.xlu0 %3953
          %3955 = vrot.lane.b32.xlu0 %v3322, 5
          %v3956 = vpop.permute.xlu0 %3955
          %3957 = vrot.lane.b32.xlu0 %v3323, 5
          %v3958 = vpop.permute.xlu0 %3957
          %3959 = vrot.lane.b32.xlu0 %v3324, 5
          %v3960 = vpop.permute.xlu0 %3959
          %3961 = vrot.lane.b32.xlu0 %v3325, 5
          %v3962 = vpop.permute.xlu0 %3961
          %3963 = vrot.lane.b32.xlu0 %v3326, 5
          %v3964 = vpop.permute.xlu0 %3963
          %3965 = vrot.lane.b32.xlu0 %v3327, 5
          %v3966 = vpop.permute.xlu0 %3965
          %3967 = vrot.lane.b32.xlu0 %v3328, 5
          %v3968 = vpop.permute.xlu0 %3967
          %3969 = vrot.lane.b32.xlu0 %v3329, 5
          %v3970 = vpop.permute.xlu0 %3969
          %3971 = vrot.lane.b32.xlu0 %v3330, 5
          %v3972 = vpop.permute.xlu0 %3971
          %3973 = vrot.lane.b32.xlu0 %v3331, 5
          %v3974 = vpop.permute.xlu0 %3973
          %3975 = vrot.lane.b32.xlu0 %v3332, 5
          %v3976 = vpop.permute.xlu0 %3975
          %3977 = vrot.lane.b32.xlu0 %v3333, 5
          %v3978 = vpop.permute.xlu0 %3977
          %3979 = vrot.lane.b32.xlu0 %v3334, 5
          %v3980 = vpop.permute.xlu0 %3979
          %3981 = vrot.lane.b32.xlu0 %v3335, 5
          %v3982 = vpop.permute.xlu0 %3981
          %3983 = vrot.lane.b32.xlu0 %v3336, 5
          %v3984 = vpop.permute.xlu0 %3983
          %v4009 = vsel %vm2753, %v3362, %v3458
          %v4010 = vsel %vm2753, %v3364, %v3460
          %v4011 = vsel %vm2753, %v3366, %v3462
          %v4012 = vsel %vm2753, %v3368, %v3464
          %v4013 = vsel %vm2753, %v3370, %v3466
          %v4014 = vsel %vm2753, %v3372, %v3468
          %v4015 = vsel %vm2753, %v3374, %v3470
          %v4016 = vsel %vm2753, %v3376, %v3472
          %v4017 = vsel %vm2753, %v3378, %v3474
          %v4018 = vsel %vm2753, %v3380, %v3476
          %v4019 = vsel %vm2753, %v3382, %v3478
          %v4020 = vsel %vm2753, %v3384, %v3480
          %v4021 = vsel %vm2753, %v3386, %v3482
          %v4022 = vsel %vm2753, %v3388, %v3484
          %v4023 = vsel %vm2753, %v3390, %v3486
          %v4024 = vsel %vm2753, %v3392, %v3488
          %v4025 = vsel %vm2753, %v3394, %v3490
          %v4026 = vsel %vm2753, %v3396, %v3492
          %v4027 = vsel %vm2753, %v3398, %v3494
          %v4028 = vsel %vm2753, %v3400, %v3496
          %v4029 = vsel %vm2753, %v3402, %v3498
          %v4030 = vsel %vm2753, %v3404, %v3500
          %v4031 = vsel %vm2753, %v3406, %v3502
          %v4032 = vsel %vm2753, %v3408, %v3504
          %v4033 = vsel %vm2778, %v4009, %v3193
          %v4034 = vsel %vm2778, %v4010, %v3194
          %v4035 = vsel %vm2778, %v4011, %v3195
          %v4036 = vsel %vm2778, %v4012, %v3196
          %v4037 = vsel %vm2778, %v4013, %v3197
          %v4038 = vsel %vm2778, %v4014, %v3198
          %v4039 = vsel %vm2778, %v4015, %v3199
          %v4040 = vsel %vm2778, %v4016, %v3200
          %v4041 = vsel %vm2778, %v4017, %v3201
          %v4042 = vsel %vm2778, %v4018, %v3202
          %v4043 = vsel %vm2778, %v4019, %v3203
          %v4044 = vsel %vm2778, %v4020, %v3204
          %v4045 = vsel %vm2778, %v4021, %v3205
          %v4046 = vsel %vm2778, %v4022, %v3206
          %v4047 = vsel %vm2778, %v4023, %v3207
          %v4048 = vsel %vm2778, %v4024, %v3208
          %v4049 = vsel %vm2778, %v4025, %v3209
          %v4050 = vsel %vm2778, %v4026, %v3210
          %v4051 = vsel %vm2778, %v4027, %v3211
          %v4052 = vsel %vm2778, %v4028, %v3212
          %v4053 = vsel %vm2778, %v4029, %v3213
          %v4054 = vsel %vm2778, %v4030, %v3214
          %v4055 = vsel %vm2778, %v4031, %v3215
          %v4056 = vsel %vm2778, %v4032, %v3216
          %v4057 = vsel %vm2803, %v4033, %v3554
          %v4058 = vsel %vm2803, %v4034, %v3556
          %v4059 = vsel %vm2803, %v4035, %v3558
          %v4060 = vsel %vm2803, %v4036, %v3560
          %v4061 = vsel %vm2803, %v4037, %v3562
          %v4062 = vsel %vm2803, %v4038, %v3564
          %v4063 = vsel %vm2803, %v4039, %v3566
          %v4064 = vsel %vm2803, %v4040, %v3568
          %v4065 = vsel %vm2803, %v4041, %v3570
          %v4066 = vsel %vm2803, %v4042, %v3572
          %v4067 = vsel %vm2803, %v4043, %v3574
          %v4068 = vsel %vm2803, %v4044, %v3576
          %v4069 = vsel %vm2803, %v4045, %v3578
          %v4070 = vsel %vm2803, %v4046, %v3580
          %v4071 = vsel %vm2803, %v4047, %v3582
          %v4072 = vsel %vm2803, %v4048, %v3584
          %v4073 = vsel %vm2803, %v4049, %v3586
          %v4074 = vsel %vm2803, %v4050, %v3588
          %v4075 = vsel %vm2803, %v4051, %v3590
          %v4076 = vsel %vm2803, %v4052, %v3592
          %v4077 = vsel %vm2803, %v4053, %v3594
          %v4078 = vsel %vm2803, %v4054, %v3596
          %v4079 = vsel %vm2803, %v4055, %v3598
          %v4080 = vsel %vm2803, %v4056, %v3600
          %v4081 = vsel %vm2828, %v4057, %v3650
          %v4082 = vsel %vm2828, %v4058, %v3652
          %v4083 = vsel %vm2828, %v4059, %v3654
          %v4084 = vsel %vm2828, %v4060, %v3656
          %v4085 = vsel %vm2828, %v4061, %v3658
          %v4086 = vsel %vm2828, %v4062, %v3660
          %v4087 = vsel %vm2828, %v4063, %v3662
          %v4088 = vsel %vm2828, %v4064, %v3664
          %v4089 = vsel %vm2828, %v4065, %v3666
          %v4090 = vsel %vm2828, %v4066, %v3668
          %v4091 = vsel %vm2828, %v4067, %v3670
          %v4092 = vsel %vm2828, %v4068, %v3672
          %v4093 = vsel %vm2828, %v4069, %v3674
          %v4094 = vsel %vm2828, %v4070, %v3676
          %v4095 = vsel %vm2828, %v4071, %v3678
          %v4096 = vsel %vm2828, %v4072, %v3680
          %v4097 = vsel %vm2828, %v4073, %v3682
          %v4098 = vsel %vm2828, %v4074, %v3684
          %v4099 = vsel %vm2828, %v4075, %v3686
          %v4100 = vsel %vm2828, %v4076, %v3688
          %v4101 = vsel %vm2828, %v4077, %v3690
          %v4102 = vsel %vm2828, %v4078, %v3692
          %v4103 = vsel %vm2828, %v4079, %v3694
          %v4104 = vsel %vm2828, %v4080, %v3696
          %v4105 = vsel %vm2853, %v4081, %v3746
          %v4106 = vsel %vm2853, %v4082, %v3748
          %v4107 = vsel %vm2853, %v4083, %v3750
          %v4108 = vsel %vm2853, %v4084, %v3752
          %v4109 = vsel %vm2853, %v4085, %v3754
          %v4110 = vsel %vm2853, %v4086, %v3756
          %v4111 = vsel %vm2853, %v4087, %v3758
          %v4112 = vsel %vm2853, %v4088, %v3760
          %v4113 = vsel %vm2853, %v4089, %v3762
          %v4114 = vsel %vm2853, %v4090, %v3764
          %v4115 = vsel %vm2853, %v4091, %v3766
          %v4116 = vsel %vm2853, %v4092, %v3768
          %v4117 = vsel %vm2853, %v4093, %v3770
          %v4118 = vsel %vm2853, %v4094, %v3772
          %v4119 = vsel %vm2853, %v4095, %v3774
          %v4120 = vsel %vm2853, %v4096, %v3776
          %v4121 = vsel %vm2853, %v4097, %v3778
          %v4122 = vsel %vm2853, %v4098, %v3780
          %v4123 = vsel %vm2853, %v4099, %v3782
          %v4124 = vsel %vm2853, %v4100, %v3784
          %v4125 = vsel %vm2853, %v4101, %v3786
          %v4126 = vsel %vm2853, %v4102, %v3788
          %v4127 = vsel %vm2853, %v4103, %v3790
          %v4128 = vsel %vm2853, %v4104, %v3792
          %v4129 = vsel %vm2878, %v4105, %v3842
          %v4130 = vsel %vm2878, %v4106, %v3844
          %v4131 = vsel %vm2878, %v4107, %v3846
          %v4132 = vsel %vm2878, %v4108, %v3848
          %v4133 = vsel %vm2878, %v4109, %v3850
          %v4134 = vsel %vm2878, %v4110, %v3852
          %v4135 = vsel %vm2878, %v4111, %v3854
          %v4136 = vsel %vm2878, %v4112, %v3856
          %v4137 = vsel %vm2878, %v4113, %v3858
          %v4138 = vsel %vm2878, %v4114, %v3860
          %v4139 = vsel %vm2878, %v4115, %v3862
          %v4140 = vsel %vm2878, %v4116, %v3864
          %v4141 = vsel %vm2878, %v4117, %v3866
          %v4142 = vsel %vm2878, %v4118, %v3868
          %v4143 = vsel %vm2878, %v4119, %v3870
          %v4144 = vsel %vm2878, %v4120, %v3872
          %v4145 = vsel %vm2878, %v4121, %v3874
          %v4146 = vsel %vm2878, %v4122, %v3876
          %v4147 = vsel %vm2878, %v4123, %v3878
          %v4148 = vsel %vm2878, %v4124, %v3880
          %v4149 = vsel %vm2878, %v4125, %v3882
          %v4150 = vsel %vm2878, %v4126, %v3884
          %v4151 = vsel %vm2878, %v4127, %v3886
          %v4152 = vsel %vm2878, %v4128, %v3888
          %v4153 = vsel %vm2903, %v4129, %v3938
          %v4154 = vsel %vm2903, %v4130, %v3940
          %v4155 = vsel %vm2903, %v4131, %v3942
          %v4156 = vsel %vm2903, %v4132, %v3944
          %v4157 = vsel %vm2903, %v4133, %v3946
          %v4158 = vsel %vm2903, %v4134, %v3948
          %v4159 = vsel %vm2903, %v4135, %v3950
          %v4160 = vsel %vm2903, %v4136, %v3952
          %v4161 = vsel %vm2903, %v4137, %v3954
          %v4162 = vsel %vm2903, %v4138, %v3956
          %v4163 = vsel %vm2903, %v4139, %v3958
          %v4164 = vsel %vm2903, %v4140, %v3960
          %v4165 = vsel %vm2903, %v4141, %v3962
          %v4166 = vsel %vm2903, %v4142, %v3964
          %v4167 = vsel %vm2903, %v4143, %v3966
          %v4168 = vsel %vm2903, %v4144, %v3968
          %v4169 = vsel %vm2903, %v4145, %v3970
          %v4170 = vsel %vm2903, %v4146, %v3972
          %v4171 = vsel %vm2903, %v4147, %v3974
          %v4172 = vsel %vm2903, %v4148, %v3976
          %v4173 = vsel %vm2903, %v4149, %v3978
          %v4174 = vsel %vm2903, %v4150, %v3980
          %v4175 = vsel %vm2903, %v4151, %v3982
          %v4176 = vsel %vm2903, %v4152, %v3984
          %4177 = vst.msk [vmem:[#allocation3] sm:$0xff] %vm2928, %v4153
          %4178 = vst.msk [vmem:[#allocation3 + $0x8] sm:$0xff] %vm2928, %v4154
          %4179 = vst.msk [vmem:[#allocation3 + $0x10] sm:$0xff] %vm2928, %v4155
          %4180 = vst.msk [vmem:[#allocation3 + $0x18] sm:$0xff] %vm2928, %v4156
          %4181 = vst.msk [vmem:[#allocation3 + $0x20] sm:$0xff] %vm2928, %v4157
          %4182 = vst.msk [vmem:[#allocation3 + $0x28] sm:$0xff] %vm2928, %v4158
          %4183 = vst.msk [vmem:[#allocation3 + $0x30] sm:$0xff] %vm2928, %v4159
          %4184 = vst.msk [vmem:[#allocation3 + $0x38] sm:$0xff] %vm2928, %v4160
          %4185 = vst.msk [vmem:[#allocation3 + $0x40] sm:$0xff] %vm2928, %v4161
          %4186 = vst.msk [vmem:[#allocation3 + $0x48] sm:$0xff] %vm2928, %v4162
          %4187 = vst.msk [vmem:[#allocation3 + $0x50] sm:$0xff] %vm2928, %v4163
          %4188 = vst.msk [vmem:[#allocation3 + $0x58] sm:$0xff] %vm2928, %v4164
          %4189 = vst.msk [vmem:[#allocation3 + $0x60] sm:$0xff] %vm2928, %v4165
          %4190 = vst.msk [vmem:[#allocation3 + $0x68] sm:$0xff] %vm2928, %v4166
          %4191 = vst.msk [vmem:[#allocation3 + $0x70] sm:$0xff] %vm2928, %v4167
          %4192 = vst.msk [vmem:[#allocation3 + $0x78] sm:$0xff] %vm2928, %v4168
          %4193 = vst.msk [vmem:[#allocation3 + $0x80] sm:$0xff] %vm2928, %v4169
          %4194 = vst.msk [vmem:[#allocation3 + $0x88] sm:$0xff] %vm2928, %v4170
          %4195 = vst.msk [vmem:[#allocation3 + $0x90] sm:$0xff] %vm2928, %v4171
          %4196 = vst.msk [vmem:[#allocation3 + $0x98] sm:$0xff] %vm2928, %v4172
          %4197 = vst.msk [vmem:[#allocation3 + $0xa0] sm:$0xff] %vm2928, %v4173
          %4198 = vst.msk [vmem:[#allocation3 + $0xa8] sm:$0xff] %vm2928, %v4174
          %4199 = vst.msk [vmem:[#allocation3 + $0xb0] sm:$0xff] %vm2928, %v4175
          %4200 = vst.msk [vmem:[#allocation3 + $0xb8] sm:$0xff] %vm2928, %v4176
        $region48: #{tpu_custom_call.1} parent=39 // pred_fallthru
          _
        %s4201 = smul.u32 %s33, 2
        %s4202 = sld [smem:[#allocation5 + %s4201]]
        %s4203 = sadd.s32 %s4201, 1
        %s4204 = sld [smem:[#allocation5 + %s4203]]
        %p4205 = scmp.ge.s32.totalorder %s34, %s4202
        %p4206 = scmp.le.s32.totalorder %s34, %s4204
        %p4207 = pnand %p4205, %p4206
        %p4208 = pneg %p4207
        // Predicated region
        $region49: #{tpu_custom_call.1} parent=39 // pred_check
          _
        $region50: #{tpu_custom_call.1} parent=39 // pred_check_branch
          %4210 = sbr.rel (%p4207) target = $region52
        $region51: #{tpu_custom_call.1} parent=39 // pred_region
          %v4211 = vlaneseq
          %v4212 = vand.u32 %v4211, 127
          %v4213 = vadd.s32 %v4212, 128
          %v4214 = vadd.s32 %v4212, 256
          %v4215 = vadd.s32 %v4212, 384
          %s4216 = smul.u32 %s34, 512
          %v4217 = vstv %s4216
          %v4218 = vadd.s32 %v4212, %v4217
          %v4219 = vadd.s32 %v4213, %v4217
          %v4220 = vadd.s32 %v4214, %v4217
          %v4221 = vadd.s32 %v4215, %v4217
          %v4222 = vld [vmem:[#allocation2] sm:$0xff]
          %v4223 = vld [vmem:[#allocation2 + $0x8] sm:$0xff]
          %v4224 = vld [vmem:[#allocation2 + $0x10] sm:$0xff]
          %v4225 = vld [vmem:[#allocation2 + $0x18] sm:$0xff]
          %v4226 = vld [vmem:[#allocation2 + $0x20] sm:$0xff]
          %v4227 = vld [vmem:[#allocation2 + $0x28] sm:$0xff]
          %v4228 = vld [vmem:[#allocation2 + $0x30] sm:$0xff]
          %v4229 = vld [vmem:[#allocation2 + $0x38] sm:$0xff]
          %v4230 = vld [vmem:[#allocation2 + $0x40] sm:$0xff]
          %v4231 = vld [vmem:[#allocation2 + $0x48] sm:$0xff]
          %v4232 = vld [vmem:[#allocation2 + $0x50] sm:$0xff]
          %v4233 = vld [vmem:[#allocation2 + $0x58] sm:$0xff]
          %v4234 = vld [vmem:[#allocation2 + $0x60] sm:$0xff]
          %v4235 = vld [vmem:[#allocation2 + $0x68] sm:$0xff]
          %v4236 = vld [vmem:[#allocation2 + $0x70] sm:$0xff]
          %v4237 = vld [vmem:[#allocation2 + $0x78] sm:$0xff]
          %v4238 = vld [vmem:[#allocation2 + $0x80] sm:$0xff]
          %v4239 = vld [vmem:[#allocation2 + $0x88] sm:$0xff]
          %v4240 = vld [vmem:[#allocation2 + $0x90] sm:$0xff]
          %v4241 = vld [vmem:[#allocation2 + $0x98] sm:$0xff]
          %v4242 = vld [vmem:[#allocation2 + $0xa0] sm:$0xff]
          %v4243 = vld [vmem:[#allocation2 + $0xa8] sm:$0xff]
          %v4244 = vld [vmem:[#allocation2 + $0xb0] sm:$0xff]
          %v4245 = vld [vmem:[#allocation2 + $0xb8] sm:$0xff]
          %v4246 = vld [vmem:[#allocation3] sm:$0xff]
          %v4247 = vld [vmem:[#allocation3 + $0x8] sm:$0xff]
          %v4248 = vld [vmem:[#allocation3 + $0x10] sm:$0xff]
          %v4249 = vld [vmem:[#allocation3 + $0x18] sm:$0xff]
          %v4250 = vld [vmem:[#allocation3 + $0x20] sm:$0xff]
          %v4251 = vld [vmem:[#allocation3 + $0x28] sm:$0xff]
          %v4252 = vld [vmem:[#allocation3 + $0x30] sm:$0xff]
          %v4253 = vld [vmem:[#allocation3 + $0x38] sm:$0xff]
          %v4254 = vld [vmem:[#allocation3 + $0x40] sm:$0xff]
          %v4255 = vld [vmem:[#allocation3 + $0x48] sm:$0xff]
          %v4256 = vld [vmem:[#allocation3 + $0x50] sm:$0xff]
          %v4257 = vld [vmem:[#allocation3 + $0x58] sm:$0xff]
          %v4258 = vld [vmem:[#allocation3 + $0x60] sm:$0xff]
          %v4259 = vld [vmem:[#allocation3 + $0x68] sm:$0xff]
          %v4260 = vld [vmem:[#allocation3 + $0x70] sm:$0xff]
          %v4261 = vld [vmem:[#allocation3 + $0x78] sm:$0xff]
          %v4262 = vld [vmem:[#allocation3 + $0x80] sm:$0xff]
          %v4263 = vld [vmem:[#allocation3 + $0x88] sm:$0xff]
          %v4264 = vld [vmem:[#allocation3 + $0x90] sm:$0xff]
          %v4265 = vld [vmem:[#allocation3 + $0x98] sm:$0xff]
          %v4266 = vld [vmem:[#allocation3 + $0xa0] sm:$0xff]
          %v4267 = vld [vmem:[#allocation3 + $0xa8] sm:$0xff]
          %v4268 = vld [vmem:[#allocation3 + $0xb0] sm:$0xff]
          %v4269 = vld [vmem:[#allocation3 + $0xb8] sm:$0xff]
          %4270 = vset.pattern.permute.xlu0 0
          %4271 = vperm.xlu0 %4270, %v4222
          %v4272 = vpop.permute.xlu0 %4271
          %4273 = vset.pattern.permute.xlu0 0
          %4274 = vperm.xlu0 %4273, %v4223
          %v4275 = vpop.permute.xlu0 %4274
          %4276 = vset.pattern.permute.xlu0 0
          %4277 = vperm.xlu0 %4276, %v4224
          %v4278 = vpop.permute.xlu0 %4277
          %4279 = vset.pattern.permute.xlu0 0
          %4280 = vperm.xlu0 %4279, %v4225
          %v4281 = vpop.permute.xlu0 %4280
          %4282 = vset.pattern.permute.xlu0 0
          %4283 = vperm.xlu0 %4282, %v4226
          %v4284 = vpop.permute.xlu0 %4283
          %4285 = vset.pattern.permute.xlu0 0
          %4286 = vperm.xlu0 %4285, %v4227
          %v4287 = vpop.permute.xlu0 %4286
          %4288 = vset.pattern.permute.xlu0 0
          %4289 = vperm.xlu0 %4288, %v4228
          %v4290 = vpop.permute.xlu0 %4289
          %4291 = vset.pattern.permute.xlu0 0
          %4292 = vperm.xlu0 %4291, %v4229
          %v4293 = vpop.permute.xlu0 %4292
          %4294 = vset.pattern.permute.xlu0 0
          %4295 = vperm.xlu0 %4294, %v4230
          %v4296 = vpop.permute.xlu0 %4295
          %4297 = vset.pattern.permute.xlu0 0
          %4298 = vperm.xlu0 %4297, %v4231
          %v4299 = vpop.permute.xlu0 %4298
          %4300 = vset.pattern.permute.xlu0 0
          %4301 = vperm.xlu0 %4300, %v4232
          %v4302 = vpop.permute.xlu0 %4301
          %4303 = vset.pattern.permute.xlu0 0
          %4304 = vperm.xlu0 %4303, %v4233
          %v4305 = vpop.permute.xlu0 %4304
          %4306 = vset.pattern.permute.xlu0 0
          %4307 = vperm.xlu0 %4306, %v4234
          %v4308 = vpop.permute.xlu0 %4307
          %4309 = vset.pattern.permute.xlu0 0
          %4310 = vperm.xlu0 %4309, %v4235
          %v4311 = vpop.permute.xlu0 %4310
          %4312 = vset.pattern.permute.xlu0 0
          %4313 = vperm.xlu0 %4312, %v4236
          %v4314 = vpop.permute.xlu0 %4313
          %4315 = vset.pattern.permute.xlu0 0
          %4316 = vperm.xlu0 %4315, %v4237
          %v4317 = vpop.permute.xlu0 %4316
          %4318 = vset.pattern.permute.xlu0 0
          %4319 = vperm.xlu0 %4318, %v4238
          %v4320 = vpop.permute.xlu0 %4319
          %4321 = vset.pattern.permute.xlu0 0
          %4322 = vperm.xlu0 %4321, %v4239
          %v4323 = vpop.permute.xlu0 %4322
          %4324 = vset.pattern.permute.xlu0 0
          %4325 = vperm.xlu0 %4324, %v4240
          %v4326 = vpop.permute.xlu0 %4325
          %4327 = vset.pattern.permute.xlu0 0
          %4328 = vperm.xlu0 %4327, %v4241
          %v4329 = vpop.permute.xlu0 %4328
          %4330 = vset.pattern.permute.xlu0 0
          %4331 = vperm.xlu0 %4330, %v4242
          %v4332 = vpop.permute.xlu0 %4331
          %4333 = vset.pattern.permute.xlu0 0
          %4334 = vperm.xlu0 %4333, %v4243
          %v4335 = vpop.permute.xlu0 %4334
          %4336 = vset.pattern.permute.xlu0 0
          %4337 = vperm.xlu0 %4336, %v4244
          %v4338 = vpop.permute.xlu0 %4337
          %4339 = vset.pattern.permute.xlu0 0
          %4340 = vperm.xlu0 %4339, %v4245
          %v4341 = vpop.permute.xlu0 %4340
          %vm4342 = vcmp.eq.s32.totalorder %v4218, %v4272
          %vm4343 = vcmp.eq.s32.totalorder %v4219, %v4272
          %vm4344 = vcmp.eq.s32.totalorder %v4220, %v4272
          %vm4345 = vcmp.eq.s32.totalorder %v4221, %v4272
          %vm4346 = vcmp.eq.s32.totalorder %v4218, %v4275
          %vm4347 = vcmp.eq.s32.totalorder %v4219, %v4275
          %vm4348 = vcmp.eq.s32.totalorder %v4220, %v4275
          %vm4349 = vcmp.eq.s32.totalorder %v4221, %v4275
          %vm4350 = vcmp.eq.s32.totalorder %v4218, %v4278
          %vm4351 = vcmp.eq.s32.totalorder %v4219, %v4278
          %vm4352 = vcmp.eq.s32.totalorder %v4220, %v4278
          %vm4353 = vcmp.eq.s32.totalorder %v4221, %v4278
          %vm4354 = vcmp.eq.s32.totalorder %v4218, %v4281
          %vm4355 = vcmp.eq.s32.totalorder %v4219, %v4281
          %vm4356 = vcmp.eq.s32.totalorder %v4220, %v4281
          %vm4357 = vcmp.eq.s32.totalorder %v4221, %v4281
          %vm4358 = vcmp.eq.s32.totalorder %v4218, %v4284
          %vm4359 = vcmp.eq.s32.totalorder %v4219, %v4284
          %vm4360 = vcmp.eq.s32.totalorder %v4220, %v4284
          %vm4361 = vcmp.eq.s32.totalorder %v4221, %v4284
          %vm4362 = vcmp.eq.s32.totalorder %v4218, %v4287
          %vm4363 = vcmp.eq.s32.totalorder %v4219, %v4287
          %vm4364 = vcmp.eq.s32.totalorder %v4220, %v4287
          %vm4365 = vcmp.eq.s32.totalorder %v4221, %v4287
          %vm4366 = vcmp.eq.s32.totalorder %v4218, %v4290
          %vm4367 = vcmp.eq.s32.totalorder %v4219, %v4290
          %vm4368 = vcmp.eq.s32.totalorder %v4220, %v4290
          %vm4369 = vcmp.eq.s32.totalorder %v4221, %v4290
          %vm4370 = vcmp.eq.s32.totalorder %v4218, %v4293
          %vm4371 = vcmp.eq.s32.totalorder %v4219, %v4293
          %vm4372 = vcmp.eq.s32.totalorder %v4220, %v4293
          %vm4373 = vcmp.eq.s32.totalorder %v4221, %v4293
          %vm4374 = vcmp.eq.s32.totalorder %v4218, %v4296
          %vm4375 = vcmp.eq.s32.totalorder %v4219, %v4296
          %vm4376 = vcmp.eq.s32.totalorder %v4220, %v4296
          %vm4377 = vcmp.eq.s32.totalorder %v4221, %v4296
          %vm4378 = vcmp.eq.s32.totalorder %v4218, %v4299
          %vm4379 = vcmp.eq.s32.totalorder %v4219, %v4299
          %vm4380 = vcmp.eq.s32.totalorder %v4220, %v4299
          %vm4381 = vcmp.eq.s32.totalorder %v4221, %v4299
          %vm4382 = vcmp.eq.s32.totalorder %v4218, %v4302
          %vm4383 = vcmp.eq.s32.totalorder %v4219, %v4302
          %vm4384 = vcmp.eq.s32.totalorder %v4220, %v4302
          %vm4385 = vcmp.eq.s32.totalorder %v4221, %v4302
          %vm4386 = vcmp.eq.s32.totalorder %v4218, %v4305
          %vm4387 = vcmp.eq.s32.totalorder %v4219, %v4305
          %vm4388 = vcmp.eq.s32.totalorder %v4220, %v4305
          %vm4389 = vcmp.eq.s32.totalorder %v4221, %v4305
          %vm4390 = vcmp.eq.s32.totalorder %v4218, %v4308
          %vm4391 = vcmp.eq.s32.totalorder %v4219, %v4308
          %vm4392 = vcmp.eq.s32.totalorder %v4220, %v4308
          %vm4393 = vcmp.eq.s32.totalorder %v4221, %v4308
          %vm4394 = vcmp.eq.s32.totalorder %v4218, %v4311
          %vm4395 = vcmp.eq.s32.totalorder %v4219, %v4311
          %vm4396 = vcmp.eq.s32.totalorder %v4220, %v4311
          %vm4397 = vcmp.eq.s32.totalorder %v4221, %v4311
          %vm4398 = vcmp.eq.s32.totalorder %v4218, %v4314
          %vm4399 = vcmp.eq.s32.totalorder %v4219, %v4314
          %vm4400 = vcmp.eq.s32.totalorder %v4220, %v4314
          %vm4401 = vcmp.eq.s32.totalorder %v4221, %v4314
          %vm4402 = vcmp.eq.s32.totalorder %v4218, %v4317
          %vm4403 = vcmp.eq.s32.totalorder %v4219, %v4317
          %vm4404 = vcmp.eq.s32.totalorder %v4220, %v4317
          %vm4405 = vcmp.eq.s32.totalorder %v4221, %v4317
          %vm4406 = vcmp.eq.s32.totalorder %v4218, %v4320
          %vm4407 = vcmp.eq.s32.totalorder %v4219, %v4320
          %vm4408 = vcmp.eq.s32.totalorder %v4220, %v4320
          %vm4409 = vcmp.eq.s32.totalorder %v4221, %v4320
          %vm4410 = vcmp.eq.s32.totalorder %v4218, %v4323
          %vm4411 = vcmp.eq.s32.totalorder %v4219, %v4323
          %vm4412 = vcmp.eq.s32.totalorder %v4220, %v4323
          %vm4413 = vcmp.eq.s32.totalorder %v4221, %v4323
          %vm4414 = vcmp.eq.s32.totalorder %v4218, %v4326
          %vm4415 = vcmp.eq.s32.totalorder %v4219, %v4326
          %vm4416 = vcmp.eq.s32.totalorder %v4220, %v4326
          %vm4417 = vcmp.eq.s32.totalorder %v4221, %v4326
          %vm4418 = vcmp.eq.s32.totalorder %v4218, %v4329
          %vm4419 = vcmp.eq.s32.totalorder %v4219, %v4329
          %vm4420 = vcmp.eq.s32.totalorder %v4220, %v4329
          %vm4421 = vcmp.eq.s32.totalorder %v4221, %v4329
          %vm4422 = vcmp.eq.s32.totalorder %v4218, %v4332
          %vm4423 = vcmp.eq.s32.totalorder %v4219, %v4332
          %vm4424 = vcmp.eq.s32.totalorder %v4220, %v4332
          %vm4425 = vcmp.eq.s32.totalorder %v4221, %v4332
          %vm4426 = vcmp.eq.s32.totalorder %v4218, %v4335
          %vm4427 = vcmp.eq.s32.totalorder %v4219, %v4335
          %vm4428 = vcmp.eq.s32.totalorder %v4220, %v4335
          %vm4429 = vcmp.eq.s32.totalorder %v4221, %v4335
          %vm4430 = vcmp.eq.s32.totalorder %v4218, %v4338
          %vm4431 = vcmp.eq.s32.totalorder %v4219, %v4338
          %vm4432 = vcmp.eq.s32.totalorder %v4220, %v4338
          %vm4433 = vcmp.eq.s32.totalorder %v4221, %v4338
          %vm4434 = vcmp.eq.s32.totalorder %v4218, %v4341
          %vm4435 = vcmp.eq.s32.totalorder %v4219, %v4341
          %vm4436 = vcmp.eq.s32.totalorder %v4220, %v4341
          %vm4437 = vcmp.eq.s32.totalorder %v4221, %v4341
          %v4438 = vadd.s32 %v4222, 1
          %v4439 = vadd.s32 %v4223, 1
          %v4440 = vadd.s32 %v4224, 1
          %v4441 = vadd.s32 %v4225, 1
          %v4442 = vadd.s32 %v4226, 1
          %v4443 = vadd.s32 %v4227, 1
          %v4444 = vadd.s32 %v4228, 1
          %v4445 = vadd.s32 %v4229, 1
          %v4446 = vadd.s32 %v4230, 1
          %v4447 = vadd.s32 %v4231, 1
          %v4448 = vadd.s32 %v4232, 1
          %v4449 = vadd.s32 %v4233, 1
          %v4450 = vadd.s32 %v4234, 1
          %v4451 = vadd.s32 %v4235, 1
          %v4452 = vadd.s32 %v4236, 1
          %v4453 = vadd.s32 %v4237, 1
          %v4454 = vadd.s32 %v4238, 1
          %v4455 = vadd.s32 %v4239, 1
          %v4456 = vadd.s32 %v4240, 1
          %v4457 = vadd.s32 %v4241, 1
          %v4458 = vadd.s32 %v4242, 1
          %v4459 = vadd.s32 %v4243, 1
          %v4460 = vadd.s32 %v4244, 1
          %v4461 = vadd.s32 %v4245, 1
          %4462 = vset.pattern.permute.xlu0 0
          %4463 = vperm.xlu0 %4462, %v4438
          %v4464 = vpop.permute.xlu0 %4463
          %4465 = vset.pattern.permute.xlu0 0
          %4466 = vperm.xlu0 %4465, %v4439
          %v4467 = vpop.permute.xlu0 %4466
          %4468 = vset.pattern.permute.xlu0 0
          %4469 = vperm.xlu0 %4468, %v4440
          %v4470 = vpop.permute.xlu0 %4469
          %4471 = vset.pattern.permute.xlu0 0
          %4472 = vperm.xlu0 %4471, %v4441
          %v4473 = vpop.permute.xlu0 %4472
          %4474 = vset.pattern.permute.xlu0 0
          %4475 = vperm.xlu0 %4474, %v4442
          %v4476 = vpop.permute.xlu0 %4475
          %4477 = vset.pattern.permute.xlu0 0
          %4478 = vperm.xlu0 %4477, %v4443
          %v4479 = vpop.permute.xlu0 %4478
          %4480 = vset.pattern.permute.xlu0 0
          %4481 = vperm.xlu0 %4480, %v4444
          %v4482 = vpop.permute.xlu0 %4481
          %4483 = vset.pattern.permute.xlu0 0
          %4484 = vperm.xlu0 %4483, %v4445
          %v4485 = vpop.permute.xlu0 %4484
          %4486 = vset.pattern.permute.xlu0 0
          %4487 = vperm.xlu0 %4486, %v4446
          %v4488 = vpop.permute.xlu0 %4487
          %4489 = vset.pattern.permute.xlu0 0
          %4490 = vperm.xlu0 %4489, %v4447
          %v4491 = vpop.permute.xlu0 %4490
          %4492 = vset.pattern.permute.xlu0 0
          %4493 = vperm.xlu0 %4492, %v4448
          %v4494 = vpop.permute.xlu0 %4493
          %4495 = vset.pattern.permute.xlu0 0
          %4496 = vperm.xlu0 %4495, %v4449
          %v4497 = vpop.permute.xlu0 %4496
          %4498 = vset.pattern.permute.xlu0 0
          %4499 = vperm.xlu0 %4498, %v4450
          %v4500 = vpop.permute.xlu0 %4499
          %4501 = vset.pattern.permute.xlu0 0
          %4502 = vperm.xlu0 %4501, %v4451
          %v4503 = vpop.permute.xlu0 %4502
          %4504 = vset.pattern.permute.xlu0 0
          %4505 = vperm.xlu0 %4504, %v4452
          %v4506 = vpop.permute.xlu0 %4505
          %4507 = vset.pattern.permute.xlu0 0
          %4508 = vperm.xlu0 %4507, %v4453
          %v4509 = vpop.permute.xlu0 %4508
          %4510 = vset.pattern.permute.xlu0 0
          %4511 = vperm.xlu0 %4510, %v4454
          %v4512 = vpop.permute.xlu0 %4511
          %4513 = vset.pattern.permute.xlu0 0
          %4514 = vperm.xlu0 %4513, %v4455
          %v4515 = vpop.permute.xlu0 %4514
          %4516 = vset.pattern.permute.xlu0 0
          %4517 = vperm.xlu0 %4516, %v4456
          %v4518 = vpop.permute.xlu0 %4517
          %4519 = vset.pattern.permute.xlu0 0
          %4520 = vperm.xlu0 %4519, %v4457
          %v4521 = vpop.permute.xlu0 %4520
          %4522 = vset.pattern.permute.xlu0 0
          %4523 = vperm.xlu0 %4522, %v4458
          %v4524 = vpop.permute.xlu0 %4523
          %4525 = vset.pattern.permute.xlu0 0
          %4526 = vperm.xlu0 %4525, %v4459
          %v4527 = vpop.permute.xlu0 %4526
          %4528 = vset.pattern.permute.xlu0 0
          %4529 = vperm.xlu0 %4528, %v4460
          %v4530 = vpop.permute.xlu0 %4529
          %4531 = vset.pattern.permute.xlu0 0
          %4532 = vperm.xlu0 %4531, %v4461
          %v4533 = vpop.permute.xlu0 %4532
          %vm4534 = vcmp.eq.s32.totalorder %v4218, %v4464
          %vm4535 = vcmp.eq.s32.totalorder %v4219, %v4464
          %vm4536 = vcmp.eq.s32.totalorder %v4220, %v4464
          %vm4537 = vcmp.eq.s32.totalorder %v4221, %v4464
          %vm4538 = vcmp.eq.s32.totalorder %v4218, %v4467
          %vm4539 = vcmp.eq.s32.totalorder %v4219, %v4467
          %vm4540 = vcmp.eq.s32.totalorder %v4220, %v4467
          %vm4541 = vcmp.eq.s32.totalorder %v4221, %v4467
          %vm4542 = vcmp.eq.s32.totalorder %v4218, %v4470
          %vm4543 = vcmp.eq.s32.totalorder %v4219, %v4470
          %vm4544 = vcmp.eq.s32.totalorder %v4220, %v4470
          %vm4545 = vcmp.eq.s32.totalorder %v4221, %v4470
          %vm4546 = vcmp.eq.s32.totalorder %v4218, %v4473
          %vm4547 = vcmp.eq.s32.totalorder %v4219, %v4473
          %vm4548 = vcmp.eq.s32.totalorder %v4220, %v4473
          %vm4549 = vcmp.eq.s32.totalorder %v4221, %v4473
          %vm4550 = vcmp.eq.s32.totalorder %v4218, %v4476
          %vm4551 = vcmp.eq.s32.totalorder %v4219, %v4476
          %vm4552 = vcmp.eq.s32.totalorder %v4220, %v4476
          %vm4553 = vcmp.eq.s32.totalorder %v4221, %v4476
          %vm4554 = vcmp.eq.s32.totalorder %v4218, %v4479
          %vm4555 = vcmp.eq.s32.totalorder %v4219, %v4479
          %vm4556 = vcmp.eq.s32.totalorder %v4220, %v4479
          %vm4557 = vcmp.eq.s32.totalorder %v4221, %v4479
          %vm4558 = vcmp.eq.s32.totalorder %v4218, %v4482
          %vm4559 = vcmp.eq.s32.totalorder %v4219, %v4482
          %vm4560 = vcmp.eq.s32.totalorder %v4220, %v4482
          %vm4561 = vcmp.eq.s32.totalorder %v4221, %v4482
          %vm4562 = vcmp.eq.s32.totalorder %v4218, %v4485
          %vm4563 = vcmp.eq.s32.totalorder %v4219, %v4485
          %vm4564 = vcmp.eq.s32.totalorder %v4220, %v4485
          %vm4565 = vcmp.eq.s32.totalorder %v4221, %v4485
          %vm4566 = vcmp.eq.s32.totalorder %v4218, %v4488
          %vm4567 = vcmp.eq.s32.totalorder %v4219, %v4488
          %vm4568 = vcmp.eq.s32.totalorder %v4220, %v4488
          %vm4569 = vcmp.eq.s32.totalorder %v4221, %v4488
          %vm4570 = vcmp.eq.s32.totalorder %v4218, %v4491
          %vm4571 = vcmp.eq.s32.totalorder %v4219, %v4491
          %vm4572 = vcmp.eq.s32.totalorder %v4220, %v4491
          %vm4573 = vcmp.eq.s32.totalorder %v4221, %v4491
          %vm4574 = vcmp.eq.s32.totalorder %v4218, %v4494
          %vm4575 = vcmp.eq.s32.totalorder %v4219, %v4494
          %vm4576 = vcmp.eq.s32.totalorder %v4220, %v4494
          %vm4577 = vcmp.eq.s32.totalorder %v4221, %v4494
          %vm4578 = vcmp.eq.s32.totalorder %v4218, %v4497
          %vm4579 = vcmp.eq.s32.totalorder %v4219, %v4497
          %vm4580 = vcmp.eq.s32.totalorder %v4220, %v4497
          %vm4581 = vcmp.eq.s32.totalorder %v4221, %v4497
          %vm4582 = vcmp.eq.s32.totalorder %v4218, %v4500
          %vm4583 = vcmp.eq.s32.totalorder %v4219, %v4500
          %vm4584 = vcmp.eq.s32.totalorder %v4220, %v4500
          %vm4585 = vcmp.eq.s32.totalorder %v4221, %v4500
          %vm4586 = vcmp.eq.s32.totalorder %v4218, %v4503
          %vm4587 = vcmp.eq.s32.totalorder %v4219, %v4503
          %vm4588 = vcmp.eq.s32.totalorder %v4220, %v4503
          %vm4589 = vcmp.eq.s32.totalorder %v4221, %v4503
          %vm4590 = vcmp.eq.s32.totalorder %v4218, %v4506
          %vm4591 = vcmp.eq.s32.totalorder %v4219, %v4506
          %vm4592 = vcmp.eq.s32.totalorder %v4220, %v4506
          %vm4593 = vcmp.eq.s32.totalorder %v4221, %v4506
          %vm4594 = vcmp.eq.s32.totalorder %v4218, %v4509
          %vm4595 = vcmp.eq.s32.totalorder %v4219, %v4509
          %vm4596 = vcmp.eq.s32.totalorder %v4220, %v4509
          %vm4597 = vcmp.eq.s32.totalorder %v4221, %v4509
          %vm4598 = vcmp.eq.s32.totalorder %v4218, %v4512
          %vm4599 = vcmp.eq.s32.totalorder %v4219, %v4512
          %vm4600 = vcmp.eq.s32.totalorder %v4220, %v4512
          %vm4601 = vcmp.eq.s32.totalorder %v4221, %v4512
          %vm4602 = vcmp.eq.s32.totalorder %v4218, %v4515
          %vm4603 = vcmp.eq.s32.totalorder %v4219, %v4515
          %vm4604 = vcmp.eq.s32.totalorder %v4220, %v4515
          %vm4605 = vcmp.eq.s32.totalorder %v4221, %v4515
          %vm4606 = vcmp.eq.s32.totalorder %v4218, %v4518
          %vm4607 = vcmp.eq.s32.totalorder %v4219, %v4518
          %vm4608 = vcmp.eq.s32.totalorder %v4220, %v4518
          %vm4609 = vcmp.eq.s32.totalorder %v4221, %v4518
          %vm4610 = vcmp.eq.s32.totalorder %v4218, %v4521
          %vm4611 = vcmp.eq.s32.totalorder %v4219, %v4521
          %vm4612 = vcmp.eq.s32.totalorder %v4220, %v4521
          %vm4613 = vcmp.eq.s32.totalorder %v4221, %v4521
          %vm4614 = vcmp.eq.s32.totalorder %v4218, %v4524
          %vm4615 = vcmp.eq.s32.totalorder %v4219, %v4524
          %vm4616 = vcmp.eq.s32.totalorder %v4220, %v4524
          %vm4617 = vcmp.eq.s32.totalorder %v4221, %v4524
          %vm4618 = vcmp.eq.s32.totalorder %v4218, %v4527
          %vm4619 = vcmp.eq.s32.totalorder %v4219, %v4527
          %vm4620 = vcmp.eq.s32.totalorder %v4220, %v4527
          %vm4621 = vcmp.eq.s32.totalorder %v4221, %v4527
          %vm4622 = vcmp.eq.s32.totalorder %v4218, %v4530
          %vm4623 = vcmp.eq.s32.totalorder %v4219, %v4530
          %vm4624 = vcmp.eq.s32.totalorder %v4220, %v4530
          %vm4625 = vcmp.eq.s32.totalorder %v4221, %v4530
          %vm4626 = vcmp.eq.s32.totalorder %v4218, %v4533
          %vm4627 = vcmp.eq.s32.totalorder %v4219, %v4533
          %vm4628 = vcmp.eq.s32.totalorder %v4220, %v4533
          %vm4629 = vcmp.eq.s32.totalorder %v4221, %v4533
          %4631 = vset.pattern.permute.xlu0 1
          %4632 = vperm.xlu0 %4631, %v4246
          %v4633 = vpop.permute.xlu0 %4632
          %4636 = vset.pattern.permute.xlu0 1
          %4637 = vperm.xlu0 %4636, %v4247
          %v4638 = vpop.permute.xlu0 %4637
          %4641 = vset.pattern.permute.xlu0 1
          %4642 = vperm.xlu0 %4641, %v4248
          %v4643 = vpop.permute.xlu0 %4642
          %4646 = vset.pattern.permute.xlu0 1
          %4647 = vperm.xlu0 %4646, %v4249
          %v4648 = vpop.permute.xlu0 %4647
          %4651 = vset.pattern.permute.xlu0 1
          %4652 = vperm.xlu0 %4651, %v4250
          %v4653 = vpop.permute.xlu0 %4652
          %4656 = vset.pattern.permute.xlu0 1
          %4657 = vperm.xlu0 %4656, %v4251
          %v4658 = vpop.permute.xlu0 %4657
          %4661 = vset.pattern.permute.xlu0 1
          %4662 = vperm.xlu0 %4661, %v4252
          %v4663 = vpop.permute.xlu0 %4662
          %4666 = vset.pattern.permute.xlu0 1
          %4667 = vperm.xlu0 %4666, %v4253
          %v4668 = vpop.permute.xlu0 %4667
          %4671 = vset.pattern.permute.xlu0 1
          %4672 = vperm.xlu0 %4671, %v4254
          %v4673 = vpop.permute.xlu0 %4672
          %4676 = vset.pattern.permute.xlu0 1
          %4677 = vperm.xlu0 %4676, %v4255
          %v4678 = vpop.permute.xlu0 %4677
          %4681 = vset.pattern.permute.xlu0 1
          %4682 = vperm.xlu0 %4681, %v4256
          %v4683 = vpop.permute.xlu0 %4682
          %4686 = vset.pattern.permute.xlu0 1
          %4687 = vperm.xlu0 %4686, %v4257
          %v4688 = vpop.permute.xlu0 %4687
          %4691 = vset.pattern.permute.xlu0 1
          %4692 = vperm.xlu0 %4691, %v4258
          %v4693 = vpop.permute.xlu0 %4692
          %4696 = vset.pattern.permute.xlu0 1
          %4697 = vperm.xlu0 %4696, %v4259
          %v4698 = vpop.permute.xlu0 %4697
          %4701 = vset.pattern.permute.xlu0 1
          %4702 = vperm.xlu0 %4701, %v4260
          %v4703 = vpop.permute.xlu0 %4702
          %4706 = vset.pattern.permute.xlu0 1
          %4707 = vperm.xlu0 %4706, %v4261
          %v4708 = vpop.permute.xlu0 %4707
          %4711 = vset.pattern.permute.xlu0 1
          %4712 = vperm.xlu0 %4711, %v4262
          %v4713 = vpop.permute.xlu0 %4712
          %4716 = vset.pattern.permute.xlu0 1
          %4717 = vperm.xlu0 %4716, %v4263
          %v4718 = vpop.permute.xlu0 %4717
          %4721 = vset.pattern.permute.xlu0 1
          %4722 = vperm.xlu0 %4721, %v4264
          %v4723 = vpop.permute.xlu0 %4722
          %4726 = vset.pattern.permute.xlu0 1
          %4727 = vperm.xlu0 %4726, %v4265
          %v4728 = vpop.permute.xlu0 %4727
          %4731 = vset.pattern.permute.xlu0 1
          %4732 = vperm.xlu0 %4731, %v4266
          %v4733 = vpop.permute.xlu0 %4732
          %4736 = vset.pattern.permute.xlu0 1
          %4737 = vperm.xlu0 %4736, %v4267
          %v4738 = vpop.permute.xlu0 %4737
          %4741 = vset.pattern.permute.xlu0 1
          %4742 = vperm.xlu0 %4741, %v4268
          %v4743 = vpop.permute.xlu0 %4742
          %4746 = vset.pattern.permute.xlu0 1
          %4747 = vperm.xlu0 %4746, %v4269
          %v4748 = vpop.permute.xlu0 %4747
          %v4750 = vsel %vm4534, %v4633, 0.0
          %v4751 = vsel %vm4535, %v4633, 0.0
          %v4752 = vsel %vm4536, %v4633, 0.0
          %v4753 = vsel %vm4537, %v4633, 0.0
          %v4754 = vsel %vm4538, %v4638, 0.0
          %v4755 = vsel %vm4539, %v4638, 0.0
          %v4756 = vsel %vm4540, %v4638, 0.0
          %v4757 = vsel %vm4541, %v4638, 0.0
          %v4758 = vsel %vm4542, %v4643, 0.0
          %v4759 = vsel %vm4543, %v4643, 0.0
          %v4760 = vsel %vm4544, %v4643, 0.0
          %v4761 = vsel %vm4545, %v4643, 0.0
          %v4762 = vsel %vm4546, %v4648, 0.0
          %v4763 = vsel %vm4547, %v4648, 0.0
          %v4764 = vsel %vm4548, %v4648, 0.0
          %v4765 = vsel %vm4549, %v4648, 0.0
          %v4766 = vsel %vm4550, %v4653, 0.0
          %v4767 = vsel %vm4551, %v4653, 0.0
          %v4768 = vsel %vm4552, %v4653, 0.0
          %v4769 = vsel %vm4553, %v4653, 0.0
          %v4770 = vsel %vm4554, %v4658, 0.0
          %v4771 = vsel %vm4555, %v4658, 0.0
          %v4772 = vsel %vm4556, %v4658, 0.0
          %v4773 = vsel %vm4557, %v4658, 0.0
          %v4774 = vsel %vm4558, %v4663, 0.0
          %v4775 = vsel %vm4559, %v4663, 0.0
          %v4776 = vsel %vm4560, %v4663, 0.0
          %v4777 = vsel %vm4561, %v4663, 0.0
          %v4778 = vsel %vm4562, %v4668, 0.0
          %v4779 = vsel %vm4563, %v4668, 0.0
          %v4780 = vsel %vm4564, %v4668, 0.0
          %v4781 = vsel %vm4565, %v4668, 0.0
          %v4782 = vsel %vm4566, %v4673, 0.0
          %v4783 = vsel %vm4567, %v4673, 0.0
          %v4784 = vsel %vm4568, %v4673, 0.0
          %v4785 = vsel %vm4569, %v4673, 0.0
          %v4786 = vsel %vm4570, %v4678, 0.0
          %v4787 = vsel %vm4571, %v4678, 0.0
          %v4788 = vsel %vm4572, %v4678, 0.0
          %v4789 = vsel %vm4573, %v4678, 0.0
          %v4790 = vsel %vm4574, %v4683, 0.0
          %v4791 = vsel %vm4575, %v4683, 0.0
          %v4792 = vsel %vm4576, %v4683, 0.0
          %v4793 = vsel %vm4577, %v4683, 0.0
          %v4794 = vsel %vm4578, %v4688, 0.0
          %v4795 = vsel %vm4579, %v4688, 0.0
          %v4796 = vsel %vm4580, %v4688, 0.0
          %v4797 = vsel %vm4581, %v4688, 0.0
          %v4798 = vsel %vm4582, %v4693, 0.0
          %v4799 = vsel %vm4583, %v4693, 0.0
          %v4800 = vsel %vm4584, %v4693, 0.0
          %v4801 = vsel %vm4585, %v4693, 0.0
          %v4802 = vsel %vm4586, %v4698, 0.0
          %v4803 = vsel %vm4587, %v4698, 0.0
          %v4804 = vsel %vm4588, %v4698, 0.0
          %v4805 = vsel %vm4589, %v4698, 0.0
          %v4806 = vsel %vm4590, %v4703, 0.0
          %v4807 = vsel %vm4591, %v4703, 0.0
          %v4808 = vsel %vm4592, %v4703, 0.0
          %v4809 = vsel %vm4593, %v4703, 0.0
          %v4810 = vsel %vm4594, %v4708, 0.0
          %v4811 = vsel %vm4595, %v4708, 0.0
          %v4812 = vsel %vm4596, %v4708, 0.0
          %v4813 = vsel %vm4597, %v4708, 0.0
          %v4814 = vsel %vm4598, %v4713, 0.0
          %v4815 = vsel %vm4599, %v4713, 0.0
          %v4816 = vsel %vm4600, %v4713, 0.0
          %v4817 = vsel %vm4601, %v4713, 0.0
          %v4818 = vsel %vm4602, %v4718, 0.0
          %v4819 = vsel %vm4603, %v4718, 0.0
          %v4820 = vsel %vm4604, %v4718, 0.0
          %v4821 = vsel %vm4605, %v4718, 0.0
          %v4822 = vsel %vm4606, %v4723, 0.0
          %v4823 = vsel %vm4607, %v4723, 0.0
          %v4824 = vsel %vm4608, %v4723, 0.0
          %v4825 = vsel %vm4609, %v4723, 0.0
          %v4826 = vsel %vm4610, %v4728, 0.0
          %v4827 = vsel %vm4611, %v4728, 0.0
          %v4828 = vsel %vm4612, %v4728, 0.0
          %v4829 = vsel %vm4613, %v4728, 0.0
          %v4830 = vsel %vm4614, %v4733, 0.0
          %v4831 = vsel %vm4615, %v4733, 0.0
          %v4832 = vsel %vm4616, %v4733, 0.0
          %v4833 = vsel %vm4617, %v4733, 0.0
          %v4834 = vsel %vm4618, %v4738, 0.0
          %v4835 = vsel %vm4619, %v4738, 0.0
          %v4836 = vsel %vm4620, %v4738, 0.0
          %v4837 = vsel %vm4621, %v4738, 0.0
          %v4838 = vsel %vm4622, %v4743, 0.0
          %v4839 = vsel %vm4623, %v4743, 0.0
          %v4840 = vsel %vm4624, %v4743, 0.0
          %v4841 = vsel %vm4625, %v4743, 0.0
          %v4842 = vsel %vm4626, %v4748, 0.0
          %v4843 = vsel %vm4627, %v4748, 0.0
          %v4844 = vsel %vm4628, %v4748, 0.0
          %v4845 = vsel %vm4629, %v4748, 0.0
          %4846 = vset.pattern.permute.xlu0 0
          %4847 = vperm.xlu0 %4846, %v4246
          %v4848 = vpop.permute.xlu0 %4847
          %4850 = vset.pattern.permute.xlu0 0
          %4851 = vperm.xlu0 %4850, %v4247
          %v4852 = vpop.permute.xlu0 %4851
          %4854 = vset.pattern.permute.xlu0 0
          %4855 = vperm.xlu0 %4854, %v4248
          %v4856 = vpop.permute.xlu0 %4855
          %4858 = vset.pattern.permute.xlu0 0
          %4859 = vperm.xlu0 %4858, %v4249
          %v4860 = vpop.permute.xlu0 %4859
          %4862 = vset.pattern.permute.xlu0 0
          %4863 = vperm.xlu0 %4862, %v4250
          %v4864 = vpop.permute.xlu0 %4863
          %4866 = vset.pattern.permute.xlu0 0
          %4867 = vperm.xlu0 %4866, %v4251
          %v4868 = vpop.permute.xlu0 %4867
          %4870 = vset.pattern.permute.xlu0 0
          %4871 = vperm.xlu0 %4870, %v4252
          %v4872 = vpop.permute.xlu0 %4871
          %4874 = vset.pattern.permute.xlu0 0
          %4875 = vperm.xlu0 %4874, %v4253
          %v4876 = vpop.permute.xlu0 %4875
          %4878 = vset.pattern.permute.xlu0 0
          %4879 = vperm.xlu0 %4878, %v4254
          %v4880 = vpop.permute.xlu0 %4879
          %4882 = vset.pattern.permute.xlu0 0
          %4883 = vperm.xlu0 %4882, %v4255
          %v4884 = vpop.permute.xlu0 %4883
          %4886 = vset.pattern.permute.xlu0 0
          %4887 = vperm.xlu0 %4886, %v4256
          %v4888 = vpop.permute.xlu0 %4887
          %4890 = vset.pattern.permute.xlu0 0
          %4891 = vperm.xlu0 %4890, %v4257
          %v4892 = vpop.permute.xlu0 %4891
          %4894 = vset.pattern.permute.xlu0 0
          %4895 = vperm.xlu0 %4894, %v4258
          %v4896 = vpop.permute.xlu0 %4895
          %4898 = vset.pattern.permute.xlu0 0
          %4899 = vperm.xlu0 %4898, %v4259
          %v4900 = vpop.permute.xlu0 %4899
          %4902 = vset.pattern.permute.xlu0 0
          %4903 = vperm.xlu0 %4902, %v4260
          %v4904 = vpop.permute.xlu0 %4903
          %4906 = vset.pattern.permute.xlu0 0
          %4907 = vperm.xlu0 %4906, %v4261
          %v4908 = vpop.permute.xlu0 %4907
          %4910 = vset.pattern.permute.xlu0 0
          %4911 = vperm.xlu0 %4910, %v4262
          %v4912 = vpop.permute.xlu0 %4911
          %4914 = vset.pattern.permute.xlu0 0
          %4915 = vperm.xlu0 %4914, %v4263
          %v4916 = vpop.permute.xlu0 %4915
          %4918 = vset.pattern.permute.xlu0 0
          %4919 = vperm.xlu0 %4918, %v4264
          %v4920 = vpop.permute.xlu0 %4919
          %4922 = vset.pattern.permute.xlu0 0
          %4923 = vperm.xlu0 %4922, %v4265
          %v4924 = vpop.permute.xlu0 %4923
          %4926 = vset.pattern.permute.xlu0 0
          %4927 = vperm.xlu0 %4926, %v4266
          %v4928 = vpop.permute.xlu0 %4927
          %4930 = vset.pattern.permute.xlu0 0
          %4931 = vperm.xlu0 %4930, %v4267
          %v4932 = vpop.permute.xlu0 %4931
          %4934 = vset.pattern.permute.xlu0 0
          %4935 = vperm.xlu0 %4934, %v4268
          %v4936 = vpop.permute.xlu0 %4935
          %4938 = vset.pattern.permute.xlu0 0
          %4939 = vperm.xlu0 %4938, %v4269
          %v4940 = vpop.permute.xlu0 %4939
          %v4942 = vsel %vm4342, %v4848, %v4750
          %v4943 = vsel %vm4343, %v4848, %v4751
          %v4944 = vsel %vm4344, %v4848, %v4752
          %v4945 = vsel %vm4345, %v4848, %v4753
          %v4946 = vsel %vm4346, %v4852, %v4754
          %v4947 = vsel %vm4347, %v4852, %v4755
          %v4948 = vsel %vm4348, %v4852, %v4756
          %v4949 = vsel %vm4349, %v4852, %v4757
          %v4950 = vsel %vm4350, %v4856, %v4758
          %v4951 = vsel %vm4351, %v4856, %v4759
          %v4952 = vsel %vm4352, %v4856, %v4760
          %v4953 = vsel %vm4353, %v4856, %v4761
          %v4954 = vsel %vm4354, %v4860, %v4762
          %v4955 = vsel %vm4355, %v4860, %v4763
          %v4956 = vsel %vm4356, %v4860, %v4764
          %v4957 = vsel %vm4357, %v4860, %v4765
          %v4958 = vsel %vm4358, %v4864, %v4766
          %v4959 = vsel %vm4359, %v4864, %v4767
          %v4960 = vsel %vm4360, %v4864, %v4768
          %v4961 = vsel %vm4361, %v4864, %v4769
          %v4962 = vsel %vm4362, %v4868, %v4770
          %v4963 = vsel %vm4363, %v4868, %v4771
          %v4964 = vsel %vm4364, %v4868, %v4772
          %v4965 = vsel %vm4365, %v4868, %v4773
          %v4966 = vsel %vm4366, %v4872, %v4774
          %v4967 = vsel %vm4367, %v4872, %v4775
          %v4968 = vsel %vm4368, %v4872, %v4776
          %v4969 = vsel %vm4369, %v4872, %v4777
          %v4970 = vsel %vm4370, %v4876, %v4778
          %v4971 = vsel %vm4371, %v4876, %v4779
          %v4972 = vsel %vm4372, %v4876, %v4780
          %v4973 = vsel %vm4373, %v4876, %v4781
          %v4974 = vsel %vm4374, %v4880, %v4782
          %v4975 = vsel %vm4375, %v4880, %v4783
          %v4976 = vsel %vm4376, %v4880, %v4784
          %v4977 = vsel %vm4377, %v4880, %v4785
          %v4978 = vsel %vm4378, %v4884, %v4786
          %v4979 = vsel %vm4379, %v4884, %v4787
          %v4980 = vsel %vm4380, %v4884, %v4788
          %v4981 = vsel %vm4381, %v4884, %v4789
          %v4982 = vsel %vm4382, %v4888, %v4790
          %v4983 = vsel %vm4383, %v4888, %v4791
          %v4984 = vsel %vm4384, %v4888, %v4792
          %v4985 = vsel %vm4385, %v4888, %v4793
          %v4986 = vsel %vm4386, %v4892, %v4794
          %v4987 = vsel %vm4387, %v4892, %v4795
          %v4988 = vsel %vm4388, %v4892, %v4796
          %v4989 = vsel %vm4389, %v4892, %v4797
          %v4990 = vsel %vm4390, %v4896, %v4798
          %v4991 = vsel %vm4391, %v4896, %v4799
          %v4992 = vsel %vm4392, %v4896, %v4800
          %v4993 = vsel %vm4393, %v4896, %v4801
          %v4994 = vsel %vm4394, %v4900, %v4802
          %v4995 = vsel %vm4395, %v4900, %v4803
          %v4996 = vsel %vm4396, %v4900, %v4804
          %v4997 = vsel %vm4397, %v4900, %v4805
          %v4998 = vsel %vm4398, %v4904, %v4806
          %v4999 = vsel %vm4399, %v4904, %v4807
          %v5000 = vsel %vm4400, %v4904, %v4808
          %v5001 = vsel %vm4401, %v4904, %v4809
          %v5002 = vsel %vm4402, %v4908, %v4810
          %v5003 = vsel %vm4403, %v4908, %v4811
          %v5004 = vsel %vm4404, %v4908, %v4812
          %v5005 = vsel %vm4405, %v4908, %v4813
          %v5006 = vsel %vm4406, %v4912, %v4814
          %v5007 = vsel %vm4407, %v4912, %v4815
          %v5008 = vsel %vm4408, %v4912, %v4816
          %v5009 = vsel %vm4409, %v4912, %v4817
          %v5010 = vsel %vm4410, %v4916, %v4818
          %v5011 = vsel %vm4411, %v4916, %v4819
          %v5012 = vsel %vm4412, %v4916, %v4820
          %v5013 = vsel %vm4413, %v4916, %v4821
          %v5014 = vsel %vm4414, %v4920, %v4822
          %v5015 = vsel %vm4415, %v4920, %v4823
          %v5016 = vsel %vm4416, %v4920, %v4824
          %v5017 = vsel %vm4417, %v4920, %v4825
          %v5018 = vsel %vm4418, %v4924, %v4826
          %v5019 = vsel %vm4419, %v4924, %v4827
          %v5020 = vsel %vm4420, %v4924, %v4828
          %v5021 = vsel %vm4421, %v4924, %v4829
          %v5022 = vsel %vm4422, %v4928, %v4830
          %v5023 = vsel %vm4423, %v4928, %v4831
          %v5024 = vsel %vm4424, %v4928, %v4832
          %v5025 = vsel %vm4425, %v4928, %v4833
          %v5026 = vsel %vm4426, %v4932, %v4834
          %v5027 = vsel %vm4427, %v4932, %v4835
          %v5028 = vsel %vm4428, %v4932, %v4836
          %v5029 = vsel %vm4429, %v4932, %v4837
          %v5030 = vsel %vm4430, %v4936, %v4838
          %v5031 = vsel %vm4431, %v4936, %v4839
          %v5032 = vsel %vm4432, %v4936, %v4840
          %v5033 = vsel %vm4433, %v4936, %v4841
          %v5034 = vsel %vm4434, %v4940, %v4842
          %v5035 = vsel %vm4435, %v4940, %v4843
          %v5036 = vsel %vm4436, %v4940, %v4844
          %v5037 = vsel %vm4437, %v4940, %v4845
          %v5038 = vadd.f32 %v4942, 0.0
          %v5039 = vadd.f32 %v4943, 0.0
          %v5040 = vadd.f32 %v4944, 0.0
          %v5041 = vadd.f32 %v4945, 0.0
          %v5042 = vadd.f32 %v4946, 0.0
          %v5043 = vadd.f32 %v4947, 0.0
          %v5044 = vadd.f32 %v4948, 0.0
          %v5045 = vadd.f32 %v4949, 0.0
          %v5046 = vadd.f32 %v4950, 0.0
          %v5047 = vadd.f32 %v4951, 0.0
          %v5048 = vadd.f32 %v4952, 0.0
          %v5049 = vadd.f32 %v4953, 0.0
          %v5050 = vadd.f32 %v4954, 0.0
          %v5051 = vadd.f32 %v4955, 0.0
          %v5052 = vadd.f32 %v4956, 0.0
          %v5053 = vadd.f32 %v4957, 0.0
          %v5054 = vadd.f32 %v4958, 0.0
          %v5055 = vadd.f32 %v4959, 0.0
          %v5056 = vadd.f32 %v4960, 0.0
          %v5057 = vadd.f32 %v4961, 0.0
          %v5058 = vadd.f32 %v4962, 0.0
          %v5059 = vadd.f32 %v4963, 0.0
          %v5060 = vadd.f32 %v4964, 0.0
          %v5061 = vadd.f32 %v4965, 0.0
          %v5062 = vadd.f32 %v4966, 0.0
          %v5063 = vadd.f32 %v4967, 0.0
          %v5064 = vadd.f32 %v4968, 0.0
          %v5065 = vadd.f32 %v4969, 0.0
          %v5066 = vadd.f32 %v4970, 0.0
          %v5067 = vadd.f32 %v4971, 0.0
          %v5068 = vadd.f32 %v4972, 0.0
          %v5069 = vadd.f32 %v4973, 0.0
          %v5070 = vadd.f32 %v4974, 0.0
          %v5071 = vadd.f32 %v4975, 0.0
          %v5072 = vadd.f32 %v4976, 0.0
          %v5073 = vadd.f32 %v4977, 0.0
          %v5074 = vadd.f32 %v4978, 0.0
          %v5075 = vadd.f32 %v4979, 0.0
          %v5076 = vadd.f32 %v4980, 0.0
          %v5077 = vadd.f32 %v4981, 0.0
          %v5078 = vadd.f32 %v4982, 0.0
          %v5079 = vadd.f32 %v4983, 0.0
          %v5080 = vadd.f32 %v4984, 0.0
          %v5081 = vadd.f32 %v4985, 0.0
          %v5082 = vadd.f32 %v4986, 0.0
          %v5083 = vadd.f32 %v4987, 0.0
          %v5084 = vadd.f32 %v4988, 0.0
          %v5085 = vadd.f32 %v4989, 0.0
          %v5086 = vadd.f32 %v4990, 0.0
          %v5087 = vadd.f32 %v4991, 0.0
          %v5088 = vadd.f32 %v4992, 0.0
          %v5089 = vadd.f32 %v4993, 0.0
          %v5090 = vadd.f32 %v4994, 0.0
          %v5091 = vadd.f32 %v4995, 0.0
          %v5092 = vadd.f32 %v4996, 0.0
          %v5093 = vadd.f32 %v4997, 0.0
          %v5094 = vadd.f32 %v4998, 0.0
          %v5095 = vadd.f32 %v4999, 0.0
          %v5096 = vadd.f32 %v5000, 0.0
          %v5097 = vadd.f32 %v5001, 0.0
          %v5098 = vadd.f32 %v5002, 0.0
          %v5099 = vadd.f32 %v5003, 0.0
          %v5100 = vadd.f32 %v5004, 0.0
          %v5101 = vadd.f32 %v5005, 0.0
          %v5102 = vadd.f32 %v5006, 0.0
          %v5103 = vadd.f32 %v5007, 0.0
          %v5104 = vadd.f32 %v5008, 0.0
          %v5105 = vadd.f32 %v5009, 0.0
          %v5106 = vadd.f32 %v5010, 0.0
          %v5107 = vadd.f32 %v5011, 0.0
          %v5108 = vadd.f32 %v5012, 0.0
          %v5109 = vadd.f32 %v5013, 0.0
          %v5110 = vadd.f32 %v5014, 0.0
          %v5111 = vadd.f32 %v5015, 0.0
          %v5112 = vadd.f32 %v5016, 0.0
          %v5113 = vadd.f32 %v5017, 0.0
          %v5114 = vadd.f32 %v5018, 0.0
          %v5115 = vadd.f32 %v5019, 0.0
          %v5116 = vadd.f32 %v5020, 0.0
          %v5117 = vadd.f32 %v5021, 0.0
          %v5118 = vadd.f32 %v5022, 0.0
          %v5119 = vadd.f32 %v5023, 0.0
          %v5120 = vadd.f32 %v5024, 0.0
          %v5121 = vadd.f32 %v5025, 0.0
          %v5122 = vadd.f32 %v5026, 0.0
          %v5123 = vadd.f32 %v5027, 0.0
          %v5124 = vadd.f32 %v5028, 0.0
          %v5125 = vadd.f32 %v5029, 0.0
          %v5126 = vadd.f32 %v5030, 0.0
          %v5127 = vadd.f32 %v5031, 0.0
          %v5128 = vadd.f32 %v5032, 0.0
          %v5129 = vadd.f32 %v5033, 0.0
          %v5130 = vadd.f32 %v5034, 0.0
          %v5131 = vadd.f32 %v5035, 0.0
          %v5132 = vadd.f32 %v5036, 0.0
          %v5133 = vadd.f32 %v5037, 0.0
          %5134 = vset.pattern.permute.xlu0 1
          %5135 = vperm.xlu0 %5134, %v4222
          %v5136 = vpop.permute.xlu0 %5135
          %5137 = vset.pattern.permute.xlu0 1
          %5138 = vperm.xlu0 %5137, %v4223
          %v5139 = vpop.permute.xlu0 %5138
          %5140 = vset.pattern.permute.xlu0 1
          %5141 = vperm.xlu0 %5140, %v4224
          %v5142 = vpop.permute.xlu0 %5141
          %5143 = vset.pattern.permute.xlu0 1
          %5144 = vperm.xlu0 %5143, %v4225
          %v5145 = vpop.permute.xlu0 %5144
          %5146 = vset.pattern.permute.xlu0 1
          %5147 = vperm.xlu0 %5146, %v4226
          %v5148 = vpop.permute.xlu0 %5147
          %5149 = vset.pattern.permute.xlu0 1
          %5150 = vperm.xlu0 %5149, %v4227
          %v5151 = vpop.permute.xlu0 %5150
          %5152 = vset.pattern.permute.xlu0 1
          %5153 = vperm.xlu0 %5152, %v4228
          %v5154 = vpop.permute.xlu0 %5153
          %5155 = vset.pattern.permute.xlu0 1
          %5156 = vperm.xlu0 %5155, %v4229
          %v5157 = vpop.permute.xlu0 %5156
          %5158 = vset.pattern.permute.xlu0 1
          %5159 = vperm.xlu0 %5158, %v4230
          %v5160 = vpop.permute.xlu0 %5159
          %5161 = vset.pattern.permute.xlu0 1
          %5162 = vperm.xlu0 %5161, %v4231
          %v5163 = vpop.permute.xlu0 %5162
          %5164 = vset.pattern.permute.xlu0 1
          %5165 = vperm.xlu0 %5164, %v4232
          %v5166 = vpop.permute.xlu0 %5165
          %5167 = vset.pattern.permute.xlu0 1
          %5168 = vperm.xlu0 %5167, %v4233
          %v5169 = vpop.permute.xlu0 %5168
          %5170 = vset.pattern.permute.xlu0 1
          %5171 = vperm.xlu0 %5170, %v4234
          %v5172 = vpop.permute.xlu0 %5171
          %5173 = vset.pattern.permute.xlu0 1
          %5174 = vperm.xlu0 %5173, %v4235
          %v5175 = vpop.permute.xlu0 %5174
          %5176 = vset.pattern.permute.xlu0 1
          %5177 = vperm.xlu0 %5176, %v4236
          %v5178 = vpop.permute.xlu0 %5177
          %5179 = vset.pattern.permute.xlu0 1
          %5180 = vperm.xlu0 %5179, %v4237
          %v5181 = vpop.permute.xlu0 %5180
          %5182 = vset.pattern.permute.xlu0 1
          %5183 = vperm.xlu0 %5182, %v4238
          %v5184 = vpop.permute.xlu0 %5183
          %5185 = vset.pattern.permute.xlu0 1
          %5186 = vperm.xlu0 %5185, %v4239
          %v5187 = vpop.permute.xlu0 %5186
          %5188 = vset.pattern.permute.xlu0 1
          %5189 = vperm.xlu0 %5188, %v4240
          %v5190 = vpop.permute.xlu0 %5189
          %5191 = vset.pattern.permute.xlu0 1
          %5192 = vperm.xlu0 %5191, %v4241
          %v5193 = vpop.permute.xlu0 %5192
          %5194 = vset.pattern.permute.xlu0 1
          %5195 = vperm.xlu0 %5194, %v4242
          %v5196 = vpop.permute.xlu0 %5195
          %5197 = vset.pattern.permute.xlu0 1
          %5198 = vperm.xlu0 %5197, %v4243
          %v5199 = vpop.permute.xlu0 %5198
          %5200 = vset.pattern.permute.xlu0 1
          %5201 = vperm.xlu0 %5200, %v4244
          %v5202 = vpop.permute.xlu0 %5201
          %5203 = vset.pattern.permute.xlu0 1
          %5204 = vperm.xlu0 %5203, %v4245
          %v5205 = vpop.permute.xlu0 %5204
          %vm5206 = vcmp.eq.s32.totalorder %v4218, %v5136
          %vm5207 = vcmp.eq.s32.totalorder %v4219, %v5136
          %vm5208 = vcmp.eq.s32.totalorder %v4220, %v5136
          %vm5209 = vcmp.eq.s32.totalorder %v4221, %v5136
          %vm5210 = vcmp.eq.s32.totalorder %v4218, %v5139
          %vm5211 = vcmp.eq.s32.totalorder %v4219, %v5139
          %vm5212 = vcmp.eq.s32.totalorder %v4220, %v5139
          %vm5213 = vcmp.eq.s32.totalorder %v4221, %v5139
          %vm5214 = vcmp.eq.s32.totalorder %v4218, %v5142
          %vm5215 = vcmp.eq.s32.totalorder %v4219, %v5142
          %vm5216 = vcmp.eq.s32.totalorder %v4220, %v5142
          %vm5217 = vcmp.eq.s32.totalorder %v4221, %v5142
          %vm5218 = vcmp.eq.s32.totalorder %v4218, %v5145
          %vm5219 = vcmp.eq.s32.totalorder %v4219, %v5145
          %vm5220 = vcmp.eq.s32.totalorder %v4220, %v5145
          %vm5221 = vcmp.eq.s32.totalorder %v4221, %v5145
          %vm5222 = vcmp.eq.s32.totalorder %v4218, %v5148
          %vm5223 = vcmp.eq.s32.totalorder %v4219, %v5148
          %vm5224 = vcmp.eq.s32.totalorder %v4220, %v5148
          %vm5225 = vcmp.eq.s32.totalorder %v4221, %v5148
          %vm5226 = vcmp.eq.s32.totalorder %v4218, %v5151
          %vm5227 = vcmp.eq.s32.totalorder %v4219, %v5151
          %vm5228 = vcmp.eq.s32.totalorder %v4220, %v5151
          %vm5229 = vcmp.eq.s32.totalorder %v4221, %v5151
          %vm5230 = vcmp.eq.s32.totalorder %v4218, %v5154
          %vm5231 = vcmp.eq.s32.totalorder %v4219, %v5154
          %vm5232 = vcmp.eq.s32.totalorder %v4220, %v5154
          %vm5233 = vcmp.eq.s32.totalorder %v4221, %v5154
          %vm5234 = vcmp.eq.s32.totalorder %v4218, %v5157
          %vm5235 = vcmp.eq.s32.totalorder %v4219, %v5157
          %vm5236 = vcmp.eq.s32.totalorder %v4220, %v5157
          %vm5237 = vcmp.eq.s32.totalorder %v4221, %v5157
          %vm5238 = vcmp.eq.s32.totalorder %v4218, %v5160
          %vm5239 = vcmp.eq.s32.totalorder %v4219, %v5160
          %vm5240 = vcmp.eq.s32.totalorder %v4220, %v5160
          %vm5241 = vcmp.eq.s32.totalorder %v4221, %v5160
          %vm5242 = vcmp.eq.s32.totalorder %v4218, %v5163
          %vm5243 = vcmp.eq.s32.totalorder %v4219, %v5163
          %vm5244 = vcmp.eq.s32.totalorder %v4220, %v5163
          %vm5245 = vcmp.eq.s32.totalorder %v4221, %v5163
          %vm5246 = vcmp.eq.s32.totalorder %v4218, %v5166
          %vm5247 = vcmp.eq.s32.totalorder %v4219, %v5166
          %vm5248 = vcmp.eq.s32.totalorder %v4220, %v5166
          %vm5249 = vcmp.eq.s32.totalorder %v4221, %v5166
          %vm5250 = vcmp.eq.s32.totalorder %v4218, %v5169
          %vm5251 = vcmp.eq.s32.totalorder %v4219, %v5169
          %vm5252 = vcmp.eq.s32.totalorder %v4220, %v5169
          %vm5253 = vcmp.eq.s32.totalorder %v4221, %v5169
          %vm5254 = vcmp.eq.s32.totalorder %v4218, %v5172
          %vm5255 = vcmp.eq.s32.totalorder %v4219, %v5172
          %vm5256 = vcmp.eq.s32.totalorder %v4220, %v5172
          %vm5257 = vcmp.eq.s32.totalorder %v4221, %v5172
          %vm5258 = vcmp.eq.s32.totalorder %v4218, %v5175
          %vm5259 = vcmp.eq.s32.totalorder %v4219, %v5175
          %vm5260 = vcmp.eq.s32.totalorder %v4220, %v5175
          %vm5261 = vcmp.eq.s32.totalorder %v4221, %v5175
          %vm5262 = vcmp.eq.s32.totalorder %v4218, %v5178
          %vm5263 = vcmp.eq.s32.totalorder %v4219, %v5178
          %vm5264 = vcmp.eq.s32.totalorder %v4220, %v5178
          %vm5265 = vcmp.eq.s32.totalorder %v4221, %v5178
          %vm5266 = vcmp.eq.s32.totalorder %v4218, %v5181
          %vm5267 = vcmp.eq.s32.totalorder %v4219, %v5181
          %vm5268 = vcmp.eq.s32.totalorder %v4220, %v5181
          %vm5269 = vcmp.eq.s32.totalorder %v4221, %v5181
          %vm5270 = vcmp.eq.s32.totalorder %v4218, %v5184
          %vm5271 = vcmp.eq.s32.totalorder %v4219, %v5184
          %vm5272 = vcmp.eq.s32.totalorder %v4220, %v5184
          %vm5273 = vcmp.eq.s32.totalorder %v4221, %v5184
          %vm5274 = vcmp.eq.s32.totalorder %v4218, %v5187
          %vm5275 = vcmp.eq.s32.totalorder %v4219, %v5187
          %vm5276 = vcmp.eq.s32.totalorder %v4220, %v5187
          %vm5277 = vcmp.eq.s32.totalorder %v4221, %v5187
          %vm5278 = vcmp.eq.s32.totalorder %v4218, %v5190
          %vm5279 = vcmp.eq.s32.totalorder %v4219, %v5190
          %vm5280 = vcmp.eq.s32.totalorder %v4220, %v5190
          %vm5281 = vcmp.eq.s32.totalorder %v4221, %v5190
          %vm5282 = vcmp.eq.s32.totalorder %v4218, %v5193
          %vm5283 = vcmp.eq.s32.totalorder %v4219, %v5193
          %vm5284 = vcmp.eq.s32.totalorder %v4220, %v5193
          %vm5285 = vcmp.eq.s32.totalorder %v4221, %v5193
          %vm5286 = vcmp.eq.s32.totalorder %v4218, %v5196
          %vm5287 = vcmp.eq.s32.totalorder %v4219, %v5196
          %vm5288 = vcmp.eq.s32.totalorder %v4220, %v5196
          %vm5289 = vcmp.eq.s32.totalorder %v4221, %v5196
          %vm5290 = vcmp.eq.s32.totalorder %v4218, %v5199
          %vm5291 = vcmp.eq.s32.totalorder %v4219, %v5199
          %vm5292 = vcmp.eq.s32.totalorder %v4220, %v5199
          %vm5293 = vcmp.eq.s32.totalorder %v4221, %v5199
          %vm5294 = vcmp.eq.s32.totalorder %v4218, %v5202
          %vm5295 = vcmp.eq.s32.totalorder %v4219, %v5202
          %vm5296 = vcmp.eq.s32.totalorder %v4220, %v5202
          %vm5297 = vcmp.eq.s32.totalorder %v4221, %v5202
          %vm5298 = vcmp.eq.s32.totalorder %v4218, %v5205
          %vm5299 = vcmp.eq.s32.totalorder %v4219, %v5205
          %vm5300 = vcmp.eq.s32.totalorder %v4220, %v5205
          %vm5301 = vcmp.eq.s32.totalorder %v4221, %v5205
          %5302 = vset.pattern.permute.xlu0 1
          %5303 = vperm.xlu0 %5302, %v4438
          %v5304 = vpop.permute.xlu0 %5303
          %5305 = vset.pattern.permute.xlu0 1
          %5306 = vperm.xlu0 %5305, %v4439
          %v5307 = vpop.permute.xlu0 %5306
          %5308 = vset.pattern.permute.xlu0 1
          %5309 = vperm.xlu0 %5308, %v4440
          %v5310 = vpop.permute.xlu0 %5309
          %5311 = vset.pattern.permute.xlu0 1
          %5312 = vperm.xlu0 %5311, %v4441
          %v5313 = vpop.permute.xlu0 %5312
          %5314 = vset.pattern.permute.xlu0 1
          %5315 = vperm.xlu0 %5314, %v4442
          %v5316 = vpop.permute.xlu0 %5315
          %5317 = vset.pattern.permute.xlu0 1
          %5318 = vperm.xlu0 %5317, %v4443
          %v5319 = vpop.permute.xlu0 %5318
          %5320 = vset.pattern.permute.xlu0 1
          %5321 = vperm.xlu0 %5320, %v4444
          %v5322 = vpop.permute.xlu0 %5321
          %5323 = vset.pattern.permute.xlu0 1
          %5324 = vperm.xlu0 %5323, %v4445
          %v5325 = vpop.permute.xlu0 %5324
          %5326 = vset.pattern.permute.xlu0 1
          %5327 = vperm.xlu0 %5326, %v4446
          %v5328 = vpop.permute.xlu0 %5327
          %5329 = vset.pattern.permute.xlu0 1
          %5330 = vperm.xlu0 %5329, %v4447
          %v5331 = vpop.permute.xlu0 %5330
          %5332 = vset.pattern.permute.xlu0 1
          %5333 = vperm.xlu0 %5332, %v4448
          %v5334 = vpop.permute.xlu0 %5333
          %5335 = vset.pattern.permute.xlu0 1
          %5336 = vperm.xlu0 %5335, %v4449
          %v5337 = vpop.permute.xlu0 %5336
          %5338 = vset.pattern.permute.xlu0 1
          %5339 = vperm.xlu0 %5338, %v4450
          %v5340 = vpop.permute.xlu0 %5339
          %5341 = vset.pattern.permute.xlu0 1
          %5342 = vperm.xlu0 %5341, %v4451
          %v5343 = vpop.permute.xlu0 %5342
          %5344 = vset.pattern.permute.xlu0 1
          %5345 = vperm.xlu0 %5344, %v4452
          %v5346 = vpop.permute.xlu0 %5345
          %5347 = vset.pattern.permute.xlu0 1
          %5348 = vperm.xlu0 %5347, %v4453
          %v5349 = vpop.permute.xlu0 %5348
          %5350 = vset.pattern.permute.xlu0 1
          %5351 = vperm.xlu0 %5350, %v4454
          %v5352 = vpop.permute.xlu0 %5351
          %5353 = vset.pattern.permute.xlu0 1
          %5354 = vperm.xlu0 %5353, %v4455
          %v5355 = vpop.permute.xlu0 %5354
          %5356 = vset.pattern.permute.xlu0 1
          %5357 = vperm.xlu0 %5356, %v4456
          %v5358 = vpop.permute.xlu0 %5357
          %5359 = vset.pattern.permute.xlu0 1
          %5360 = vperm.xlu0 %5359, %v4457
          %v5361 = vpop.permute.xlu0 %5360
          %5362 = vset.pattern.permute.xlu0 1
          %5363 = vperm.xlu0 %5362, %v4458
          %v5364 = vpop.permute.xlu0 %5363
          %5365 = vset.pattern.permute.xlu0 1
          %5366 = vperm.xlu0 %5365, %v4459
          %v5367 = vpop.permute.xlu0 %5366
          %5368 = vset.pattern.permute.xlu0 1
          %5369 = vperm.xlu0 %5368, %v4460
          %v5370 = vpop.permute.xlu0 %5369
          %5371 = vset.pattern.permute.xlu0 1
          %5372 = vperm.xlu0 %5371, %v4461
          %v5373 = vpop.permute.xlu0 %5372
          %vm5374 = vcmp.eq.s32.totalorder %v4218, %v5304
          %vm5375 = vcmp.eq.s32.totalorder %v4219, %v5304
          %vm5376 = vcmp.eq.s32.totalorder %v4220, %v5304
          %vm5377 = vcmp.eq.s32.totalorder %v4221, %v5304
          %vm5378 = vcmp.eq.s32.totalorder %v4218, %v5307
          %vm5379 = vcmp.eq.s32.totalorder %v4219, %v5307
          %vm5380 = vcmp.eq.s32.totalorder %v4220, %v5307
          %vm5381 = vcmp.eq.s32.totalorder %v4221, %v5307
          %vm5382 = vcmp.eq.s32.totalorder %v4218, %v5310
          %vm5383 = vcmp.eq.s32.totalorder %v4219, %v5310
          %vm5384 = vcmp.eq.s32.totalorder %v4220, %v5310
          %vm5385 = vcmp.eq.s32.totalorder %v4221, %v5310
          %vm5386 = vcmp.eq.s32.totalorder %v4218, %v5313
          %vm5387 = vcmp.eq.s32.totalorder %v4219, %v5313
          %vm5388 = vcmp.eq.s32.totalorder %v4220, %v5313
          %vm5389 = vcmp.eq.s32.totalorder %v4221, %v5313
          %vm5390 = vcmp.eq.s32.totalorder %v4218, %v5316
          %vm5391 = vcmp.eq.s32.totalorder %v4219, %v5316
          %vm5392 = vcmp.eq.s32.totalorder %v4220, %v5316
          %vm5393 = vcmp.eq.s32.totalorder %v4221, %v5316
          %vm5394 = vcmp.eq.s32.totalorder %v4218, %v5319
          %vm5395 = vcmp.eq.s32.totalorder %v4219, %v5319
          %vm5396 = vcmp.eq.s32.totalorder %v4220, %v5319
          %vm5397 = vcmp.eq.s32.totalorder %v4221, %v5319
          %vm5398 = vcmp.eq.s32.totalorder %v4218, %v5322
          %vm5399 = vcmp.eq.s32.totalorder %v4219, %v5322
          %vm5400 = vcmp.eq.s32.totalorder %v4220, %v5322
          %vm5401 = vcmp.eq.s32.totalorder %v4221, %v5322
          %vm5402 = vcmp.eq.s32.totalorder %v4218, %v5325
          %vm5403 = vcmp.eq.s32.totalorder %v4219, %v5325
          %vm5404 = vcmp.eq.s32.totalorder %v4220, %v5325
          %vm5405 = vcmp.eq.s32.totalorder %v4221, %v5325
          %vm5406 = vcmp.eq.s32.totalorder %v4218, %v5328
          %vm5407 = vcmp.eq.s32.totalorder %v4219, %v5328
          %vm5408 = vcmp.eq.s32.totalorder %v4220, %v5328
          %vm5409 = vcmp.eq.s32.totalorder %v4221, %v5328
          %vm5410 = vcmp.eq.s32.totalorder %v4218, %v5331
          %vm5411 = vcmp.eq.s32.totalorder %v4219, %v5331
          %vm5412 = vcmp.eq.s32.totalorder %v4220, %v5331
          %vm5413 = vcmp.eq.s32.totalorder %v4221, %v5331
          %vm5414 = vcmp.eq.s32.totalorder %v4218, %v5334
          %vm5415 = vcmp.eq.s32.totalorder %v4219, %v5334
          %vm5416 = vcmp.eq.s32.totalorder %v4220, %v5334
          %vm5417 = vcmp.eq.s32.totalorder %v4221, %v5334
          %vm5418 = vcmp.eq.s32.totalorder %v4218, %v5337
          %vm5419 = vcmp.eq.s32.totalorder %v4219, %v5337
          %vm5420 = vcmp.eq.s32.totalorder %v4220, %v5337
          %vm5421 = vcmp.eq.s32.totalorder %v4221, %v5337
          %vm5422 = vcmp.eq.s32.totalorder %v4218, %v5340
          %vm5423 = vcmp.eq.s32.totalorder %v4219, %v5340
          %vm5424 = vcmp.eq.s32.totalorder %v4220, %v5340
          %vm5425 = vcmp.eq.s32.totalorder %v4221, %v5340
          %vm5426 = vcmp.eq.s32.totalorder %v4218, %v5343
          %vm5427 = vcmp.eq.s32.totalorder %v4219, %v5343
          %vm5428 = vcmp.eq.s32.totalorder %v4220, %v5343
          %vm5429 = vcmp.eq.s32.totalorder %v4221, %v5343
          %vm5430 = vcmp.eq.s32.totalorder %v4218, %v5346
          %vm5431 = vcmp.eq.s32.totalorder %v4219, %v5346
          %vm5432 = vcmp.eq.s32.totalorder %v4220, %v5346
          %vm5433 = vcmp.eq.s32.totalorder %v4221, %v5346
          %vm5434 = vcmp.eq.s32.totalorder %v4218, %v5349
          %vm5435 = vcmp.eq.s32.totalorder %v4219, %v5349
          %vm5436 = vcmp.eq.s32.totalorder %v4220, %v5349
          %vm5437 = vcmp.eq.s32.totalorder %v4221, %v5349
          %vm5438 = vcmp.eq.s32.totalorder %v4218, %v5352
          %vm5439 = vcmp.eq.s32.totalorder %v4219, %v5352
          %vm5440 = vcmp.eq.s32.totalorder %v4220, %v5352
          %vm5441 = vcmp.eq.s32.totalorder %v4221, %v5352
          %vm5442 = vcmp.eq.s32.totalorder %v4218, %v5355
          %vm5443 = vcmp.eq.s32.totalorder %v4219, %v5355
          %vm5444 = vcmp.eq.s32.totalorder %v4220, %v5355
          %vm5445 = vcmp.eq.s32.totalorder %v4221, %v5355
          %vm5446 = vcmp.eq.s32.totalorder %v4218, %v5358
          %vm5447 = vcmp.eq.s32.totalorder %v4219, %v5358
          %vm5448 = vcmp.eq.s32.totalorder %v4220, %v5358
          %vm5449 = vcmp.eq.s32.totalorder %v4221, %v5358
          %vm5450 = vcmp.eq.s32.totalorder %v4218, %v5361
          %vm5451 = vcmp.eq.s32.totalorder %v4219, %v5361
          %vm5452 = vcmp.eq.s32.totalorder %v4220, %v5361
          %vm5453 = vcmp.eq.s32.totalorder %v4221, %v5361
          %vm5454 = vcmp.eq.s32.totalorder %v4218, %v5364
          %vm5455 = vcmp.eq.s32.totalorder %v4219, %v5364
          %vm5456 = vcmp.eq.s32.totalorder %v4220, %v5364
          %vm5457 = vcmp.eq.s32.totalorder %v4221, %v5364
          %vm5458 = vcmp.eq.s32.totalorder %v4218, %v5367
          %vm5459 = vcmp.eq.s32.totalorder %v4219, %v5367
          %vm5460 = vcmp.eq.s32.totalorder %v4220, %v5367
          %vm5461 = vcmp.eq.s32.totalorder %v4221, %v5367
          %vm5462 = vcmp.eq.s32.totalorder %v4218, %v5370
          %vm5463 = vcmp.eq.s32.totalorder %v4219, %v5370
          %vm5464 = vcmp.eq.s32.totalorder %v4220, %v5370
          %vm5465 = vcmp.eq.s32.totalorder %v4221, %v5370
          %vm5466 = vcmp.eq.s32.totalorder %v4218, %v5373
          %vm5467 = vcmp.eq.s32.totalorder %v4219, %v5373
          %vm5468 = vcmp.eq.s32.totalorder %v4220, %v5373
          %vm5469 = vcmp.eq.s32.totalorder %v4221, %v5373
          %5470 = vset.pattern.permute.xlu0 3
          %5471 = vperm.xlu0 %5470, %v4246
          %v5472 = vpop.permute.xlu0 %5471
          %5474 = vset.pattern.permute.xlu0 3
          %5475 = vperm.xlu0 %5474, %v4247
          %v5476 = vpop.permute.xlu0 %5475
          %5478 = vset.pattern.permute.xlu0 3
          %5479 = vperm.xlu0 %5478, %v4248
          %v5480 = vpop.permute.xlu0 %5479
          %5482 = vset.pattern.permute.xlu0 3
          %5483 = vperm.xlu0 %5482, %v4249
          %v5484 = vpop.permute.xlu0 %5483
          %5486 = vset.pattern.permute.xlu0 3
          %5487 = vperm.xlu0 %5486, %v4250
          %v5488 = vpop.permute.xlu0 %5487
          %5490 = vset.pattern.permute.xlu0 3
          %5491 = vperm.xlu0 %5490, %v4251
          %v5492 = vpop.permute.xlu0 %5491
          %5494 = vset.pattern.permute.xlu0 3
          %5495 = vperm.xlu0 %5494, %v4252
          %v5496 = vpop.permute.xlu0 %5495
          %5498 = vset.pattern.permute.xlu0 3
          %5499 = vperm.xlu0 %5498, %v4253
          %v5500 = vpop.permute.xlu0 %5499
          %5502 = vset.pattern.permute.xlu0 3
          %5503 = vperm.xlu0 %5502, %v4254
          %v5504 = vpop.permute.xlu0 %5503
          %5506 = vset.pattern.permute.xlu0 3
          %5507 = vperm.xlu0 %5506, %v4255
          %v5508 = vpop.permute.xlu0 %5507
          %5510 = vset.pattern.permute.xlu0 3
          %5511 = vperm.xlu0 %5510, %v4256
          %v5512 = vpop.permute.xlu0 %5511
          %5514 = vset.pattern.permute.xlu0 3
          %5515 = vperm.xlu0 %5514, %v4257
          %v5516 = vpop.permute.xlu0 %5515
          %5518 = vset.pattern.permute.xlu0 3
          %5519 = vperm.xlu0 %5518, %v4258
          %v5520 = vpop.permute.xlu0 %5519
          %5522 = vset.pattern.permute.xlu0 3
          %5523 = vperm.xlu0 %5522, %v4259
          %v5524 = vpop.permute.xlu0 %5523
          %5526 = vset.pattern.permute.xlu0 3
          %5527 = vperm.xlu0 %5526, %v4260
          %v5528 = vpop.permute.xlu0 %5527
          %5530 = vset.pattern.permute.xlu0 3
          %5531 = vperm.xlu0 %5530, %v4261
          %v5532 = vpop.permute.xlu0 %5531
          %5534 = vset.pattern.permute.xlu0 3
          %5535 = vperm.xlu0 %5534, %v4262
          %v5536 = vpop.permute.xlu0 %5535
          %5538 = vset.pattern.permute.xlu0 3
          %5539 = vperm.xlu0 %5538, %v4263
          %v5540 = vpop.permute.xlu0 %5539
          %5542 = vset.pattern.permute.xlu0 3
          %5543 = vperm.xlu0 %5542, %v4264
          %v5544 = vpop.permute.xlu0 %5543
          %5546 = vset.pattern.permute.xlu0 3
          %5547 = vperm.xlu0 %5546, %v4265
          %v5548 = vpop.permute.xlu0 %5547
          %5550 = vset.pattern.permute.xlu0 3
          %5551 = vperm.xlu0 %5550, %v4266
          %v5552 = vpop.permute.xlu0 %5551
          %5554 = vset.pattern.permute.xlu0 3
          %5555 = vperm.xlu0 %5554, %v4267
          %v5556 = vpop.permute.xlu0 %5555
          %5558 = vset.pattern.permute.xlu0 3
          %5559 = vperm.xlu0 %5558, %v4268
          %v5560 = vpop.permute.xlu0 %5559
          %5562 = vset.pattern.permute.xlu0 3
          %5563 = vperm.xlu0 %5562, %v4269
          %v5564 = vpop.permute.xlu0 %5563
          %v5566 = vsel %vm5374, %v5472, 0.0
          %v5567 = vsel %vm5375, %v5472, 0.0
          %v5568 = vsel %vm5376, %v5472, 0.0
          %v5569 = vsel %vm5377, %v5472, 0.0
          %v5570 = vsel %vm5378, %v5476, 0.0
          %v5571 = vsel %vm5379, %v5476, 0.0
          %v5572 = vsel %vm5380, %v5476, 0.0
          %v5573 = vsel %vm5381, %v5476, 0.0
          %v5574 = vsel %vm5382, %v5480, 0.0
          %v5575 = vsel %vm5383, %v5480, 0.0
          %v5576 = vsel %vm5384, %v5480, 0.0
          %v5577 = vsel %vm5385, %v5480, 0.0
          %v5578 = vsel %vm5386, %v5484, 0.0
          %v5579 = vsel %vm5387, %v5484, 0.0
          %v5580 = vsel %vm5388, %v5484, 0.0
          %v5581 = vsel %vm5389, %v5484, 0.0
          %v5582 = vsel %vm5390, %v5488, 0.0
          %v5583 = vsel %vm5391, %v5488, 0.0
          %v5584 = vsel %vm5392, %v5488, 0.0
          %v5585 = vsel %vm5393, %v5488, 0.0
          %v5586 = vsel %vm5394, %v5492, 0.0
          %v5587 = vsel %vm5395, %v5492, 0.0
          %v5588 = vsel %vm5396, %v5492, 0.0
          %v5589 = vsel %vm5397, %v5492, 0.0
          %v5590 = vsel %vm5398, %v5496, 0.0
          %v5591 = vsel %vm5399, %v5496, 0.0
          %v5592 = vsel %vm5400, %v5496, 0.0
          %v5593 = vsel %vm5401, %v5496, 0.0
          %v5594 = vsel %vm5402, %v5500, 0.0
          %v5595 = vsel %vm5403, %v5500, 0.0
          %v5596 = vsel %vm5404, %v5500, 0.0
          %v5597 = vsel %vm5405, %v5500, 0.0
          %v5598 = vsel %vm5406, %v5504, 0.0
          %v5599 = vsel %vm5407, %v5504, 0.0
          %v5600 = vsel %vm5408, %v5504, 0.0
          %v5601 = vsel %vm5409, %v5504, 0.0
          %v5602 = vsel %vm5410, %v5508, 0.0
          %v5603 = vsel %vm5411, %v5508, 0.0
          %v5604 = vsel %vm5412, %v5508, 0.0
          %v5605 = vsel %vm5413, %v5508, 0.0
          %v5606 = vsel %vm5414, %v5512, 0.0
          %v5607 = vsel %vm5415, %v5512, 0.0
          %v5608 = vsel %vm5416, %v5512, 0.0
          %v5609 = vsel %vm5417, %v5512, 0.0
          %v5610 = vsel %vm5418, %v5516, 0.0
          %v5611 = vsel %vm5419, %v5516, 0.0
          %v5612 = vsel %vm5420, %v5516, 0.0
          %v5613 = vsel %vm5421, %v5516, 0.0
          %v5614 = vsel %vm5422, %v5520, 0.0
          %v5615 = vsel %vm5423, %v5520, 0.0
          %v5616 = vsel %vm5424, %v5520, 0.0
          %v5617 = vsel %vm5425, %v5520, 0.0
          %v5618 = vsel %vm5426, %v5524, 0.0
          %v5619 = vsel %vm5427, %v5524, 0.0
          %v5620 = vsel %vm5428, %v5524, 0.0
          %v5621 = vsel %vm5429, %v5524, 0.0
          %v5622 = vsel %vm5430, %v5528, 0.0
          %v5623 = vsel %vm5431, %v5528, 0.0
          %v5624 = vsel %vm5432, %v5528, 0.0
          %v5625 = vsel %vm5433, %v5528, 0.0
          %v5626 = vsel %vm5434, %v5532, 0.0
          %v5627 = vsel %vm5435, %v5532, 0.0
          %v5628 = vsel %vm5436, %v5532, 0.0
          %v5629 = vsel %vm5437, %v5532, 0.0
          %v5630 = vsel %vm5438, %v5536, 0.0
          %v5631 = vsel %vm5439, %v5536, 0.0
          %v5632 = vsel %vm5440, %v5536, 0.0
          %v5633 = vsel %vm5441, %v5536, 0.0
          %v5634 = vsel %vm5442, %v5540, 0.0
          %v5635 = vsel %vm5443, %v5540, 0.0
          %v5636 = vsel %vm5444, %v5540, 0.0
          %v5637 = vsel %vm5445, %v5540, 0.0
          %v5638 = vsel %vm5446, %v5544, 0.0
          %v5639 = vsel %vm5447, %v5544, 0.0
          %v5640 = vsel %vm5448, %v5544, 0.0
          %v5641 = vsel %vm5449, %v5544, 0.0
          %v5642 = vsel %vm5450, %v5548, 0.0
          %v5643 = vsel %vm5451, %v5548, 0.0
          %v5644 = vsel %vm5452, %v5548, 0.0
          %v5645 = vsel %vm5453, %v5548, 0.0
          %v5646 = vsel %vm5454, %v5552, 0.0
          %v5647 = vsel %vm5455, %v5552, 0.0
          %v5648 = vsel %vm5456, %v5552, 0.0
          %v5649 = vsel %vm5457, %v5552, 0.0
          %v5650 = vsel %vm5458, %v5556, 0.0
          %v5651 = vsel %vm5459, %v5556, 0.0
          %v5652 = vsel %vm5460, %v5556, 0.0
          %v5653 = vsel %vm5461, %v5556, 0.0
          %v5654 = vsel %vm5462, %v5560, 0.0
          %v5655 = vsel %vm5463, %v5560, 0.0
          %v5656 = vsel %vm5464, %v5560, 0.0
          %v5657 = vsel %vm5465, %v5560, 0.0
          %v5658 = vsel %vm5466, %v5564, 0.0
          %v5659 = vsel %vm5467, %v5564, 0.0
          %v5660 = vsel %vm5468, %v5564, 0.0
          %v5661 = vsel %vm5469, %v5564, 0.0
          %5662 = vset.pattern.permute.xlu0 2
          %5663 = vperm.xlu0 %5662, %v4246
          %v5664 = vpop.permute.xlu0 %5663
          %5666 = vset.pattern.permute.xlu0 2
          %5667 = vperm.xlu0 %5666, %v4247
          %v5668 = vpop.permute.xlu0 %5667
          %5670 = vset.pattern.permute.xlu0 2
          %5671 = vperm.xlu0 %5670, %v4248
          %v5672 = vpop.permute.xlu0 %5671
          %5674 = vset.pattern.permute.xlu0 2
          %5675 = vperm.xlu0 %5674, %v4249
          %v5676 = vpop.permute.xlu0 %5675
          %5678 = vset.pattern.permute.xlu0 2
          %5679 = vperm.xlu0 %5678, %v4250
          %v5680 = vpop.permute.xlu0 %5679
          %5682 = vset.pattern.permute.xlu0 2
          %5683 = vperm.xlu0 %5682, %v4251
          %v5684 = vpop.permute.xlu0 %5683
          %5686 = vset.pattern.permute.xlu0 2
          %5687 = vperm.xlu0 %5686, %v4252
          %v5688 = vpop.permute.xlu0 %5687
          %5690 = vset.pattern.permute.xlu0 2
          %5691 = vperm.xlu0 %5690, %v4253
          %v5692 = vpop.permute.xlu0 %5691
          %5694 = vset.pattern.permute.xlu0 2
          %5695 = vperm.xlu0 %5694, %v4254
          %v5696 = vpop.permute.xlu0 %5695
          %5698 = vset.pattern.permute.xlu0 2
          %5699 = vperm.xlu0 %5698, %v4255
          %v5700 = vpop.permute.xlu0 %5699
          %5702 = vset.pattern.permute.xlu0 2
          %5703 = vperm.xlu0 %5702, %v4256
          %v5704 = vpop.permute.xlu0 %5703
          %5706 = vset.pattern.permute.xlu0 2
          %5707 = vperm.xlu0 %5706, %v4257
          %v5708 = vpop.permute.xlu0 %5707
          %5710 = vset.pattern.permute.xlu0 2
          %5711 = vperm.xlu0 %5710, %v4258
          %v5712 = vpop.permute.xlu0 %5711
          %5714 = vset.pattern.permute.xlu0 2
          %5715 = vperm.xlu0 %5714, %v4259
          %v5716 = vpop.permute.xlu0 %5715
          %5718 = vset.pattern.permute.xlu0 2
          %5719 = vperm.xlu0 %5718, %v4260
          %v5720 = vpop.permute.xlu0 %5719
          %5722 = vset.pattern.permute.xlu0 2
          %5723 = vperm.xlu0 %5722, %v4261
          %v5724 = vpop.permute.xlu0 %5723
          %5726 = vset.pattern.permute.xlu0 2
          %5727 = vperm.xlu0 %5726, %v4262
          %v5728 = vpop.permute.xlu0 %5727
          %5730 = vset.pattern.permute.xlu0 2
          %5731 = vperm.xlu0 %5730, %v4263
          %v5732 = vpop.permute.xlu0 %5731
          %5734 = vset.pattern.permute.xlu0 2
          %5735 = vperm.xlu0 %5734, %v4264
          %v5736 = vpop.permute.xlu0 %5735
          %5738 = vset.pattern.permute.xlu0 2
          %5739 = vperm.xlu0 %5738, %v4265
          %v5740 = vpop.permute.xlu0 %5739
          %5742 = vset.pattern.permute.xlu0 2
          %5743 = vperm.xlu0 %5742, %v4266
          %v5744 = vpop.permute.xlu0 %5743
          %5746 = vset.pattern.permute.xlu0 2
          %5747 = vperm.xlu0 %5746, %v4267
          %v5748 = vpop.permute.xlu0 %5747
          %5750 = vset.pattern.permute.xlu0 2
          %5751 = vperm.xlu0 %5750, %v4268
          %v5752 = vpop.permute.xlu0 %5751
          %5754 = vset.pattern.permute.xlu0 2
          %5755 = vperm.xlu0 %5754, %v4269
          %v5756 = vpop.permute.xlu0 %5755
          %v5758 = vsel %vm5206, %v5664, %v5566
          %v5759 = vsel %vm5207, %v5664, %v5567
          %v5760 = vsel %vm5208, %v5664, %v5568
          %v5761 = vsel %vm5209, %v5664, %v5569
          %v5762 = vsel %vm5210, %v5668, %v5570
          %v5763 = vsel %vm5211, %v5668, %v5571
          %v5764 = vsel %vm5212, %v5668, %v5572
          %v5765 = vsel %vm5213, %v5668, %v5573
          %v5766 = vsel %vm5214, %v5672, %v5574
          %v5767 = vsel %vm5215, %v5672, %v5575
          %v5768 = vsel %vm5216, %v5672, %v5576
          %v5769 = vsel %vm5217, %v5672, %v5577
          %v5770 = vsel %vm5218, %v5676, %v5578
          %v5771 = vsel %vm5219, %v5676, %v5579
          %v5772 = vsel %vm5220, %v5676, %v5580
          %v5773 = vsel %vm5221, %v5676, %v5581
          %v5774 = vsel %vm5222, %v5680, %v5582
          %v5775 = vsel %vm5223, %v5680, %v5583
          %v5776 = vsel %vm5224, %v5680, %v5584
          %v5777 = vsel %vm5225, %v5680, %v5585
          %v5778 = vsel %vm5226, %v5684, %v5586
          %v5779 = vsel %vm5227, %v5684, %v5587
          %v5780 = vsel %vm5228, %v5684, %v5588
          %v5781 = vsel %vm5229, %v5684, %v5589
          %v5782 = vsel %vm5230, %v5688, %v5590
          %v5783 = vsel %vm5231, %v5688, %v5591
          %v5784 = vsel %vm5232, %v5688, %v5592
          %v5785 = vsel %vm5233, %v5688, %v5593
          %v5786 = vsel %vm5234, %v5692, %v5594
          %v5787 = vsel %vm5235, %v5692, %v5595
          %v5788 = vsel %vm5236, %v5692, %v5596
          %v5789 = vsel %vm5237, %v5692, %v5597
          %v5790 = vsel %vm5238, %v5696, %v5598
          %v5791 = vsel %vm5239, %v5696, %v5599
          %v5792 = vsel %vm5240, %v5696, %v5600
          %v5793 = vsel %vm5241, %v5696, %v5601
          %v5794 = vsel %vm5242, %v5700, %v5602
          %v5795 = vsel %vm5243, %v5700, %v5603
          %v5796 = vsel %vm5244, %v5700, %v5604
          %v5797 = vsel %vm5245, %v5700, %v5605
          %v5798 = vsel %vm5246, %v5704, %v5606
          %v5799 = vsel %vm5247, %v5704, %v5607
          %v5800 = vsel %vm5248, %v5704, %v5608
          %v5801 = vsel %vm5249, %v5704, %v5609
          %v5802 = vsel %vm5250, %v5708, %v5610
          %v5803 = vsel %vm5251, %v5708, %v5611
          %v5804 = vsel %vm5252, %v5708, %v5612
          %v5805 = vsel %vm5253, %v5708, %v5613
          %v5806 = vsel %vm5254, %v5712, %v5614
          %v5807 = vsel %vm5255, %v5712, %v5615
          %v5808 = vsel %vm5256, %v5712, %v5616
          %v5809 = vsel %vm5257, %v5712, %v5617
          %v5810 = vsel %vm5258, %v5716, %v5618
          %v5811 = vsel %vm5259, %v5716, %v5619
          %v5812 = vsel %vm5260, %v5716, %v5620
          %v5813 = vsel %vm5261, %v5716, %v5621
          %v5814 = vsel %vm5262, %v5720, %v5622
          %v5815 = vsel %vm5263, %v5720, %v5623
          %v5816 = vsel %vm5264, %v5720, %v5624
          %v5817 = vsel %vm5265, %v5720, %v5625
          %v5818 = vsel %vm5266, %v5724, %v5626
          %v5819 = vsel %vm5267, %v5724, %v5627
          %v5820 = vsel %vm5268, %v5724, %v5628
          %v5821 = vsel %vm5269, %v5724, %v5629
          %v5822 = vsel %vm5270, %v5728, %v5630
          %v5823 = vsel %vm5271, %v5728, %v5631
          %v5824 = vsel %vm5272, %v5728, %v5632
          %v5825 = vsel %vm5273, %v5728, %v5633
          %v5826 = vsel %vm5274, %v5732, %v5634
          %v5827 = vsel %vm5275, %v5732, %v5635
          %v5828 = vsel %vm5276, %v5732, %v5636
          %v5829 = vsel %vm5277, %v5732, %v5637
          %v5830 = vsel %vm5278, %v5736, %v5638
          %v5831 = vsel %vm5279, %v5736, %v5639
          %v5832 = vsel %vm5280, %v5736, %v5640
          %v5833 = vsel %vm5281, %v5736, %v5641
          %v5834 = vsel %vm5282, %v5740, %v5642
          %v5835 = vsel %vm5283, %v5740, %v5643
          %v5836 = vsel %vm5284, %v5740, %v5644
          %v5837 = vsel %vm5285, %v5740, %v5645
          %v5838 = vsel %vm5286, %v5744, %v5646
          %v5839 = vsel %vm5287, %v5744, %v5647
          %v5840 = vsel %vm5288, %v5744, %v5648
          %v5841 = vsel %vm5289, %v5744, %v5649
          %v5842 = vsel %vm5290, %v5748, %v5650
          %v5843 = vsel %vm5291, %v5748, %v5651
          %v5844 = vsel %vm5292, %v5748, %v5652
          %v5845 = vsel %vm5293, %v5748, %v5653
          %v5846 = vsel %vm5294, %v5752, %v5654
          %v5847 = vsel %vm5295, %v5752, %v5655
          %v5848 = vsel %vm5296, %v5752, %v5656
          %v5849 = vsel %vm5297, %v5752, %v5657
          %v5850 = vsel %vm5298, %v5756, %v5658
          %v5851 = vsel %vm5299, %v5756, %v5659
          %v5852 = vsel %vm5300, %v5756, %v5660
          %v5853 = vsel %vm5301, %v5756, %v5661
          %v5854 = vadd.f32 %v5038, %v5758
          %v5855 = vadd.f32 %v5039, %v5759
          %v5856 = vadd.f32 %v5040, %v5760
          %v5857 = vadd.f32 %v5041, %v5761
          %v5858 = vadd.f32 %v5042, %v5762
          %v5859 = vadd.f32 %v5043, %v5763
          %v5860 = vadd.f32 %v5044, %v5764
          %v5861 = vadd.f32 %v5045, %v5765
          %v5862 = vadd.f32 %v5046, %v5766
          %v5863 = vadd.f32 %v5047, %v5767
          %v5864 = vadd.f32 %v5048, %v5768
          %v5865 = vadd.f32 %v5049, %v5769
          %v5866 = vadd.f32 %v5050, %v5770
          %v5867 = vadd.f32 %v5051, %v5771
          %v5868 = vadd.f32 %v5052, %v5772
          %v5869 = vadd.f32 %v5053, %v5773
          %v5870 = vadd.f32 %v5054, %v5774
          %v5871 = vadd.f32 %v5055, %v5775
          %v5872 = vadd.f32 %v5056, %v5776
          %v5873 = vadd.f32 %v5057, %v5777
          %v5874 = vadd.f32 %v5058, %v5778
          %v5875 = vadd.f32 %v5059, %v5779
          %v5876 = vadd.f32 %v5060, %v5780
          %v5877 = vadd.f32 %v5061, %v5781
          %v5878 = vadd.f32 %v5062, %v5782
          %v5879 = vadd.f32 %v5063, %v5783
          %v5880 = vadd.f32 %v5064, %v5784
          %v5881 = vadd.f32 %v5065, %v5785
          %v5882 = vadd.f32 %v5066, %v5786
          %v5883 = vadd.f32 %v5067, %v5787
          %v5884 = vadd.f32 %v5068, %v5788
          %v5885 = vadd.f32 %v5069, %v5789
          %v5886 = vadd.f32 %v5070, %v5790
          %v5887 = vadd.f32 %v5071, %v5791
          %v5888 = vadd.f32 %v5072, %v5792
          %v5889 = vadd.f32 %v5073, %v5793
          %v5890 = vadd.f32 %v5074, %v5794
          %v5891 = vadd.f32 %v5075, %v5795
          %v5892 = vadd.f32 %v5076, %v5796
          %v5893 = vadd.f32 %v5077, %v5797
          %v5894 = vadd.f32 %v5078, %v5798
          %v5895 = vadd.f32 %v5079, %v5799
          %v5896 = vadd.f32 %v5080, %v5800
          %v5897 = vadd.f32 %v5081, %v5801
          %v5898 = vadd.f32 %v5082, %v5802
          %v5899 = vadd.f32 %v5083, %v5803
          %v5900 = vadd.f32 %v5084, %v5804
          %v5901 = vadd.f32 %v5085, %v5805
          %v5902 = vadd.f32 %v5086, %v5806
          %v5903 = vadd.f32 %v5087, %v5807
          %v5904 = vadd.f32 %v5088, %v5808
          %v5905 = vadd.f32 %v5089, %v5809
          %v5906 = vadd.f32 %v5090, %v5810
          %v5907 = vadd.f32 %v5091, %v5811
          %v5908 = vadd.f32 %v5092, %v5812
          %v5909 = vadd.f32 %v5093, %v5813
          %v5910 = vadd.f32 %v5094, %v5814
          %v5911 = vadd.f32 %v5095, %v5815
          %v5912 = vadd.f32 %v5096, %v5816
          %v5913 = vadd.f32 %v5097, %v5817
          %v5914 = vadd.f32 %v5098, %v5818
          %v5915 = vadd.f32 %v5099, %v5819
          %v5916 = vadd.f32 %v5100, %v5820
          %v5917 = vadd.f32 %v5101, %v5821
          %v5918 = vadd.f32 %v5102, %v5822
          %v5919 = vadd.f32 %v5103, %v5823
          %v5920 = vadd.f32 %v5104, %v5824
          %v5921 = vadd.f32 %v5105, %v5825
          %v5922 = vadd.f32 %v5106, %v5826
          %v5923 = vadd.f32 %v5107, %v5827
          %v5924 = vadd.f32 %v5108, %v5828
          %v5925 = vadd.f32 %v5109, %v5829
          %v5926 = vadd.f32 %v5110, %v5830
          %v5927 = vadd.f32 %v5111, %v5831
          %v5928 = vadd.f32 %v5112, %v5832
          %v5929 = vadd.f32 %v5113, %v5833
          %v5930 = vadd.f32 %v5114, %v5834
          %v5931 = vadd.f32 %v5115, %v5835
          %v5932 = vadd.f32 %v5116, %v5836
          %v5933 = vadd.f32 %v5117, %v5837
          %v5934 = vadd.f32 %v5118, %v5838
          %v5935 = vadd.f32 %v5119, %v5839
          %v5936 = vadd.f32 %v5120, %v5840
          %v5937 = vadd.f32 %v5121, %v5841
          %v5938 = vadd.f32 %v5122, %v5842
          %v5939 = vadd.f32 %v5123, %v5843
          %v5940 = vadd.f32 %v5124, %v5844
          %v5941 = vadd.f32 %v5125, %v5845
          %v5942 = vadd.f32 %v5126, %v5846
          %v5943 = vadd.f32 %v5127, %v5847
          %v5944 = vadd.f32 %v5128, %v5848
          %v5945 = vadd.f32 %v5129, %v5849
          %v5946 = vadd.f32 %v5130, %v5850
          %v5947 = vadd.f32 %v5131, %v5851
          %v5948 = vadd.f32 %v5132, %v5852
          %v5949 = vadd.f32 %v5133, %v5853
          %5950 = vset.pattern.permute.xlu0 2
          %5951 = vperm.xlu0 %5950, %v4222
          %v5952 = vpop.permute.xlu0 %5951
          %5953 = vset.pattern.permute.xlu0 2
          %5954 = vperm.xlu0 %5953, %v4223
          %v5955 = vpop.permute.xlu0 %5954
          %5956 = vset.pattern.permute.xlu0 2
          %5957 = vperm.xlu0 %5956, %v4224
          %v5958 = vpop.permute.xlu0 %5957
          %5959 = vset.pattern.permute.xlu0 2
          %5960 = vperm.xlu0 %5959, %v4225
          %v5961 = vpop.permute.xlu0 %5960
          %5962 = vset.pattern.permute.xlu0 2
          %5963 = vperm.xlu0 %5962, %v4226
          %v5964 = vpop.permute.xlu0 %5963
          %5965 = vset.pattern.permute.xlu0 2
          %5966 = vperm.xlu0 %5965, %v4227
          %v5967 = vpop.permute.xlu0 %5966
          %5968 = vset.pattern.permute.xlu0 2
          %5969 = vperm.xlu0 %5968, %v4228
          %v5970 = vpop.permute.xlu0 %5969
          %5971 = vset.pattern.permute.xlu0 2
          %5972 = vperm.xlu0 %5971, %v4229
          %v5973 = vpop.permute.xlu0 %5972
          %5974 = vset.pattern.permute.xlu0 2
          %5975 = vperm.xlu0 %5974, %v4230
          %v5976 = vpop.permute.xlu0 %5975
          %5977 = vset.pattern.permute.xlu0 2
          %5978 = vperm.xlu0 %5977, %v4231
          %v5979 = vpop.permute.xlu0 %5978
          %5980 = vset.pattern.permute.xlu0 2
          %5981 = vperm.xlu0 %5980, %v4232
          %v5982 = vpop.permute.xlu0 %5981
          %5983 = vset.pattern.permute.xlu0 2
          %5984 = vperm.xlu0 %5983, %v4233
          %v5985 = vpop.permute.xlu0 %5984
          %5986 = vset.pattern.permute.xlu0 2
          %5987 = vperm.xlu0 %5986, %v4234
          %v5988 = vpop.permute.xlu0 %5987
          %5989 = vset.pattern.permute.xlu0 2
          %5990 = vperm.xlu0 %5989, %v4235
          %v5991 = vpop.permute.xlu0 %5990
          %5992 = vset.pattern.permute.xlu0 2
          %5993 = vperm.xlu0 %5992, %v4236
          %v5994 = vpop.permute.xlu0 %5993
          %5995 = vset.pattern.permute.xlu0 2
          %5996 = vperm.xlu0 %5995, %v4237
          %v5997 = vpop.permute.xlu0 %5996
          %5998 = vset.pattern.permute.xlu0 2
          %5999 = vperm.xlu0 %5998, %v4238
          %v6000 = vpop.permute.xlu0 %5999
          %6001 = vset.pattern.permute.xlu0 2
          %6002 = vperm.xlu0 %6001, %v4239
          %v6003 = vpop.permute.xlu0 %6002
          %6004 = vset.pattern.permute.xlu0 2
          %6005 = vperm.xlu0 %6004, %v4240
          %v6006 = vpop.permute.xlu0 %6005
          %6007 = vset.pattern.permute.xlu0 2
          %6008 = vperm.xlu0 %6007, %v4241
          %v6009 = vpop.permute.xlu0 %6008
          %6010 = vset.pattern.permute.xlu0 2
          %6011 = vperm.xlu0 %6010, %v4242
          %v6012 = vpop.permute.xlu0 %6011
          %6013 = vset.pattern.permute.xlu0 2
          %6014 = vperm.xlu0 %6013, %v4243
          %v6015 = vpop.permute.xlu0 %6014
          %6016 = vset.pattern.permute.xlu0 2
          %6017 = vperm.xlu0 %6016, %v4244
          %v6018 = vpop.permute.xlu0 %6017
          %6019 = vset.pattern.permute.xlu0 2
          %6020 = vperm.xlu0 %6019, %v4245
          %v6021 = vpop.permute.xlu0 %6020
          %vm6022 = vcmp.eq.s32.totalorder %v4218, %v5952
          %vm6023 = vcmp.eq.s32.totalorder %v4219, %v5952
          %vm6024 = vcmp.eq.s32.totalorder %v4220, %v5952
          %vm6025 = vcmp.eq.s32.totalorder %v4221, %v5952
          %vm6026 = vcmp.eq.s32.totalorder %v4218, %v5955
          %vm6027 = vcmp.eq.s32.totalorder %v4219, %v5955
          %vm6028 = vcmp.eq.s32.totalorder %v4220, %v5955
          %vm6029 = vcmp.eq.s32.totalorder %v4221, %v5955
          %vm6030 = vcmp.eq.s32.totalorder %v4218, %v5958
          %vm6031 = vcmp.eq.s32.totalorder %v4219, %v5958
          %vm6032 = vcmp.eq.s32.totalorder %v4220, %v5958
          %vm6033 = vcmp.eq.s32.totalorder %v4221, %v5958
          %vm6034 = vcmp.eq.s32.totalorder %v4218, %v5961
          %vm6035 = vcmp.eq.s32.totalorder %v4219, %v5961
          %vm6036 = vcmp.eq.s32.totalorder %v4220, %v5961
          %vm6037 = vcmp.eq.s32.totalorder %v4221, %v5961
          %vm6038 = vcmp.eq.s32.totalorder %v4218, %v5964
          %vm6039 = vcmp.eq.s32.totalorder %v4219, %v5964
          %vm6040 = vcmp.eq.s32.totalorder %v4220, %v5964
          %vm6041 = vcmp.eq.s32.totalorder %v4221, %v5964
          %vm6042 = vcmp.eq.s32.totalorder %v4218, %v5967
          %vm6043 = vcmp.eq.s32.totalorder %v4219, %v5967
          %vm6044 = vcmp.eq.s32.totalorder %v4220, %v5967
          %vm6045 = vcmp.eq.s32.totalorder %v4221, %v5967
          %vm6046 = vcmp.eq.s32.totalorder %v4218, %v5970
          %vm6047 = vcmp.eq.s32.totalorder %v4219, %v5970
          %vm6048 = vcmp.eq.s32.totalorder %v4220, %v5970
          %vm6049 = vcmp.eq.s32.totalorder %v4221, %v5970
          %vm6050 = vcmp.eq.s32.totalorder %v4218, %v5973
          %vm6051 = vcmp.eq.s32.totalorder %v4219, %v5973
          %vm6052 = vcmp.eq.s32.totalorder %v4220, %v5973
          %vm6053 = vcmp.eq.s32.totalorder %v4221, %v5973
          %vm6054 = vcmp.eq.s32.totalorder %v4218, %v5976
          %vm6055 = vcmp.eq.s32.totalorder %v4219, %v5976
          %vm6056 = vcmp.eq.s32.totalorder %v4220, %v5976
          %vm6057 = vcmp.eq.s32.totalorder %v4221, %v5976
          %vm6058 = vcmp.eq.s32.totalorder %v4218, %v5979
          %vm6059 = vcmp.eq.s32.totalorder %v4219, %v5979
          %vm6060 = vcmp.eq.s32.totalorder %v4220, %v5979
          %vm6061 = vcmp.eq.s32.totalorder %v4221, %v5979
          %vm6062 = vcmp.eq.s32.totalorder %v4218, %v5982
          %vm6063 = vcmp.eq.s32.totalorder %v4219, %v5982
          %vm6064 = vcmp.eq.s32.totalorder %v4220, %v5982
          %vm6065 = vcmp.eq.s32.totalorder %v4221, %v5982
          %vm6066 = vcmp.eq.s32.totalorder %v4218, %v5985
          %vm6067 = vcmp.eq.s32.totalorder %v4219, %v5985
          %vm6068 = vcmp.eq.s32.totalorder %v4220, %v5985
          %vm6069 = vcmp.eq.s32.totalorder %v4221, %v5985
          %vm6070 = vcmp.eq.s32.totalorder %v4218, %v5988
          %vm6071 = vcmp.eq.s32.totalorder %v4219, %v5988
          %vm6072 = vcmp.eq.s32.totalorder %v4220, %v5988
          %vm6073 = vcmp.eq.s32.totalorder %v4221, %v5988
          %vm6074 = vcmp.eq.s32.totalorder %v4218, %v5991
          %vm6075 = vcmp.eq.s32.totalorder %v4219, %v5991
          %vm6076 = vcmp.eq.s32.totalorder %v4220, %v5991
          %vm6077 = vcmp.eq.s32.totalorder %v4221, %v5991
          %vm6078 = vcmp.eq.s32.totalorder %v4218, %v5994
          %vm6079 = vcmp.eq.s32.totalorder %v4219, %v5994
          %vm6080 = vcmp.eq.s32.totalorder %v4220, %v5994
          %vm6081 = vcmp.eq.s32.totalorder %v4221, %v5994
          %vm6082 = vcmp.eq.s32.totalorder %v4218, %v5997
          %vm6083 = vcmp.eq.s32.totalorder %v4219, %v5997
          %vm6084 = vcmp.eq.s32.totalorder %v4220, %v5997
          %vm6085 = vcmp.eq.s32.totalorder %v4221, %v5997
          %vm6086 = vcmp.eq.s32.totalorder %v4218, %v6000
          %vm6087 = vcmp.eq.s32.totalorder %v4219, %v6000
          %vm6088 = vcmp.eq.s32.totalorder %v4220, %v6000
          %vm6089 = vcmp.eq.s32.totalorder %v4221, %v6000
          %vm6090 = vcmp.eq.s32.totalorder %v4218, %v6003
          %vm6091 = vcmp.eq.s32.totalorder %v4219, %v6003
          %vm6092 = vcmp.eq.s32.totalorder %v4220, %v6003
          %vm6093 = vcmp.eq.s32.totalorder %v4221, %v6003
          %vm6094 = vcmp.eq.s32.totalorder %v4218, %v6006
          %vm6095 = vcmp.eq.s32.totalorder %v4219, %v6006
          %vm6096 = vcmp.eq.s32.totalorder %v4220, %v6006
          %vm6097 = vcmp.eq.s32.totalorder %v4221, %v6006
          %vm6098 = vcmp.eq.s32.totalorder %v4218, %v6009
          %vm6099 = vcmp.eq.s32.totalorder %v4219, %v6009
          %vm6100 = vcmp.eq.s32.totalorder %v4220, %v6009
          %vm6101 = vcmp.eq.s32.totalorder %v4221, %v6009
          %vm6102 = vcmp.eq.s32.totalorder %v4218, %v6012
          %vm6103 = vcmp.eq.s32.totalorder %v4219, %v6012
          %vm6104 = vcmp.eq.s32.totalorder %v4220, %v6012
          %vm6105 = vcmp.eq.s32.totalorder %v4221, %v6012
          %vm6106 = vcmp.eq.s32.totalorder %v4218, %v6015
          %vm6107 = vcmp.eq.s32.totalorder %v4219, %v6015
          %vm6108 = vcmp.eq.s32.totalorder %v4220, %v6015
          %vm6109 = vcmp.eq.s32.totalorder %v4221, %v6015
          %vm6110 = vcmp.eq.s32.totalorder %v4218, %v6018
          %vm6111 = vcmp.eq.s32.totalorder %v4219, %v6018
          %vm6112 = vcmp.eq.s32.totalorder %v4220, %v6018
          %vm6113 = vcmp.eq.s32.totalorder %v4221, %v6018
          %vm6114 = vcmp.eq.s32.totalorder %v4218, %v6021
          %vm6115 = vcmp.eq.s32.totalorder %v4219, %v6021
          %vm6116 = vcmp.eq.s32.totalorder %v4220, %v6021
          %vm6117 = vcmp.eq.s32.totalorder %v4221, %v6021
          %6118 = vset.pattern.permute.xlu0 2
          %6119 = vperm.xlu0 %6118, %v4438
          %v6120 = vpop.permute.xlu0 %6119
          %6121 = vset.pattern.permute.xlu0 2
          %6122 = vperm.xlu0 %6121, %v4439
          %v6123 = vpop.permute.xlu0 %6122
          %6124 = vset.pattern.permute.xlu0 2
          %6125 = vperm.xlu0 %6124, %v4440
          %v6126 = vpop.permute.xlu0 %6125
          %6127 = vset.pattern.permute.xlu0 2
          %6128 = vperm.xlu0 %6127, %v4441
          %v6129 = vpop.permute.xlu0 %6128
          %6130 = vset.pattern.permute.xlu0 2
          %6131 = vperm.xlu0 %6130, %v4442
          %v6132 = vpop.permute.xlu0 %6131
          %6133 = vset.pattern.permute.xlu0 2
          %6134 = vperm.xlu0 %6133, %v4443
          %v6135 = vpop.permute.xlu0 %6134
          %6136 = vset.pattern.permute.xlu0 2
          %6137 = vperm.xlu0 %6136, %v4444
          %v6138 = vpop.permute.xlu0 %6137
          %6139 = vset.pattern.permute.xlu0 2
          %6140 = vperm.xlu0 %6139, %v4445
          %v6141 = vpop.permute.xlu0 %6140
          %6142 = vset.pattern.permute.xlu0 2
          %6143 = vperm.xlu0 %6142, %v4446
          %v6144 = vpop.permute.xlu0 %6143
          %6145 = vset.pattern.permute.xlu0 2
          %6146 = vperm.xlu0 %6145, %v4447
          %v6147 = vpop.permute.xlu0 %6146
          %6148 = vset.pattern.permute.xlu0 2
          %6149 = vperm.xlu0 %6148, %v4448
          %v6150 = vpop.permute.xlu0 %6149
          %6151 = vset.pattern.permute.xlu0 2
          %6152 = vperm.xlu0 %6151, %v4449
          %v6153 = vpop.permute.xlu0 %6152
          %6154 = vset.pattern.permute.xlu0 2
          %6155 = vperm.xlu0 %6154, %v4450
          %v6156 = vpop.permute.xlu0 %6155
          %6157 = vset.pattern.permute.xlu0 2
          %6158 = vperm.xlu0 %6157, %v4451
          %v6159 = vpop.permute.xlu0 %6158
          %6160 = vset.pattern.permute.xlu0 2
          %6161 = vperm.xlu0 %6160, %v4452
          %v6162 = vpop.permute.xlu0 %6161
          %6163 = vset.pattern.permute.xlu0 2
          %6164 = vperm.xlu0 %6163, %v4453
          %v6165 = vpop.permute.xlu0 %6164
          %6166 = vset.pattern.permute.xlu0 2
          %6167 = vperm.xlu0 %6166, %v4454
          %v6168 = vpop.permute.xlu0 %6167
          %6169 = vset.pattern.permute.xlu0 2
          %6170 = vperm.xlu0 %6169, %v4455
          %v6171 = vpop.permute.xlu0 %6170
          %6172 = vset.pattern.permute.xlu0 2
          %6173 = vperm.xlu0 %6172, %v4456
          %v6174 = vpop.permute.xlu0 %6173
          %6175 = vset.pattern.permute.xlu0 2
          %6176 = vperm.xlu0 %6175, %v4457
          %v6177 = vpop.permute.xlu0 %6176
          %6178 = vset.pattern.permute.xlu0 2
          %6179 = vperm.xlu0 %6178, %v4458
          %v6180 = vpop.permute.xlu0 %6179
          %6181 = vset.pattern.permute.xlu0 2
          %6182 = vperm.xlu0 %6181, %v4459
          %v6183 = vpop.permute.xlu0 %6182
          %6184 = vset.pattern.permute.xlu0 2
          %6185 = vperm.xlu0 %6184, %v4460
          %v6186 = vpop.permute.xlu0 %6185
          %6187 = vset.pattern.permute.xlu0 2
          %6188 = vperm.xlu0 %6187, %v4461
          %v6189 = vpop.permute.xlu0 %6188
          %vm6190 = vcmp.eq.s32.totalorder %v4218, %v6120
          %vm6191 = vcmp.eq.s32.totalorder %v4219, %v6120
          %vm6192 = vcmp.eq.s32.totalorder %v4220, %v6120
          %vm6193 = vcmp.eq.s32.totalorder %v4221, %v6120
          %vm6194 = vcmp.eq.s32.totalorder %v4218, %v6123
          %vm6195 = vcmp.eq.s32.totalorder %v4219, %v6123
          %vm6196 = vcmp.eq.s32.totalorder %v4220, %v6123
          %vm6197 = vcmp.eq.s32.totalorder %v4221, %v6123
          %vm6198 = vcmp.eq.s32.totalorder %v4218, %v6126
          %vm6199 = vcmp.eq.s32.totalorder %v4219, %v6126
          %vm6200 = vcmp.eq.s32.totalorder %v4220, %v6126
          %vm6201 = vcmp.eq.s32.totalorder %v4221, %v6126
          %vm6202 = vcmp.eq.s32.totalorder %v4218, %v6129
          %vm6203 = vcmp.eq.s32.totalorder %v4219, %v6129
          %vm6204 = vcmp.eq.s32.totalorder %v4220, %v6129
          %vm6205 = vcmp.eq.s32.totalorder %v4221, %v6129
          %vm6206 = vcmp.eq.s32.totalorder %v4218, %v6132
          %vm6207 = vcmp.eq.s32.totalorder %v4219, %v6132
          %vm6208 = vcmp.eq.s32.totalorder %v4220, %v6132
          %vm6209 = vcmp.eq.s32.totalorder %v4221, %v6132
          %vm6210 = vcmp.eq.s32.totalorder %v4218, %v6135
          %vm6211 = vcmp.eq.s32.totalorder %v4219, %v6135
          %vm6212 = vcmp.eq.s32.totalorder %v4220, %v6135
          %vm6213 = vcmp.eq.s32.totalorder %v4221, %v6135
          %vm6214 = vcmp.eq.s32.totalorder %v4218, %v6138
          %vm6215 = vcmp.eq.s32.totalorder %v4219, %v6138
          %vm6216 = vcmp.eq.s32.totalorder %v4220, %v6138
          %vm6217 = vcmp.eq.s32.totalorder %v4221, %v6138
          %vm6218 = vcmp.eq.s32.totalorder %v4218, %v6141
          %vm6219 = vcmp.eq.s32.totalorder %v4219, %v6141
          %vm6220 = vcmp.eq.s32.totalorder %v4220, %v6141
          %vm6221 = vcmp.eq.s32.totalorder %v4221, %v6141
          %vm6222 = vcmp.eq.s32.totalorder %v4218, %v6144
          %vm6223 = vcmp.eq.s32.totalorder %v4219, %v6144
          %vm6224 = vcmp.eq.s32.totalorder %v4220, %v6144
          %vm6225 = vcmp.eq.s32.totalorder %v4221, %v6144
          %vm6226 = vcmp.eq.s32.totalorder %v4218, %v6147
          %vm6227 = vcmp.eq.s32.totalorder %v4219, %v6147
          %vm6228 = vcmp.eq.s32.totalorder %v4220, %v6147
          %vm6229 = vcmp.eq.s32.totalorder %v4221, %v6147
          %vm6230 = vcmp.eq.s32.totalorder %v4218, %v6150
          %vm6231 = vcmp.eq.s32.totalorder %v4219, %v6150
          %vm6232 = vcmp.eq.s32.totalorder %v4220, %v6150
          %vm6233 = vcmp.eq.s32.totalorder %v4221, %v6150
          %vm6234 = vcmp.eq.s32.totalorder %v4218, %v6153
          %vm6235 = vcmp.eq.s32.totalorder %v4219, %v6153
          %vm6236 = vcmp.eq.s32.totalorder %v4220, %v6153
          %vm6237 = vcmp.eq.s32.totalorder %v4221, %v6153
          %vm6238 = vcmp.eq.s32.totalorder %v4218, %v6156
          %vm6239 = vcmp.eq.s32.totalorder %v4219, %v6156
          %vm6240 = vcmp.eq.s32.totalorder %v4220, %v6156
          %vm6241 = vcmp.eq.s32.totalorder %v4221, %v6156
          %vm6242 = vcmp.eq.s32.totalorder %v4218, %v6159
          %vm6243 = vcmp.eq.s32.totalorder %v4219, %v6159
          %vm6244 = vcmp.eq.s32.totalorder %v4220, %v6159
          %vm6245 = vcmp.eq.s32.totalorder %v4221, %v6159
          %vm6246 = vcmp.eq.s32.totalorder %v4218, %v6162
          %vm6247 = vcmp.eq.s32.totalorder %v4219, %v6162
          %vm6248 = vcmp.eq.s32.totalorder %v4220, %v6162
          %vm6249 = vcmp.eq.s32.totalorder %v4221, %v6162
          %vm6250 = vcmp.eq.s32.totalorder %v4218, %v6165
          %vm6251 = vcmp.eq.s32.totalorder %v4219, %v6165
          %vm6252 = vcmp.eq.s32.totalorder %v4220, %v6165
          %vm6253 = vcmp.eq.s32.totalorder %v4221, %v6165
          %vm6254 = vcmp.eq.s32.totalorder %v4218, %v6168
          %vm6255 = vcmp.eq.s32.totalorder %v4219, %v6168
          %vm6256 = vcmp.eq.s32.totalorder %v4220, %v6168
          %vm6257 = vcmp.eq.s32.totalorder %v4221, %v6168
          %vm6258 = vcmp.eq.s32.totalorder %v4218, %v6171
          %vm6259 = vcmp.eq.s32.totalorder %v4219, %v6171
          %vm6260 = vcmp.eq.s32.totalorder %v4220, %v6171
          %vm6261 = vcmp.eq.s32.totalorder %v4221, %v6171
          %vm6262 = vcmp.eq.s32.totalorder %v4218, %v6174
          %vm6263 = vcmp.eq.s32.totalorder %v4219, %v6174
          %vm6264 = vcmp.eq.s32.totalorder %v4220, %v6174
          %vm6265 = vcmp.eq.s32.totalorder %v4221, %v6174
          %vm6266 = vcmp.eq.s32.totalorder %v4218, %v6177
          %vm6267 = vcmp.eq.s32.totalorder %v4219, %v6177
          %vm6268 = vcmp.eq.s32.totalorder %v4220, %v6177
          %vm6269 = vcmp.eq.s32.totalorder %v4221, %v6177
          %vm6270 = vcmp.eq.s32.totalorder %v4218, %v6180
          %vm6271 = vcmp.eq.s32.totalorder %v4219, %v6180
          %vm6272 = vcmp.eq.s32.totalorder %v4220, %v6180
          %vm6273 = vcmp.eq.s32.totalorder %v4221, %v6180
          %vm6274 = vcmp.eq.s32.totalorder %v4218, %v6183
          %vm6275 = vcmp.eq.s32.totalorder %v4219, %v6183
          %vm6276 = vcmp.eq.s32.totalorder %v4220, %v6183
          %vm6277 = vcmp.eq.s32.totalorder %v4221, %v6183
          %vm6278 = vcmp.eq.s32.totalorder %v4218, %v6186
          %vm6279 = vcmp.eq.s32.totalorder %v4219, %v6186
          %vm6280 = vcmp.eq.s32.totalorder %v4220, %v6186
          %vm6281 = vcmp.eq.s32.totalorder %v4221, %v6186
          %vm6282 = vcmp.eq.s32.totalorder %v4218, %v6189
          %vm6283 = vcmp.eq.s32.totalorder %v4219, %v6189
          %vm6284 = vcmp.eq.s32.totalorder %v4220, %v6189
          %vm6285 = vcmp.eq.s32.totalorder %v4221, %v6189
          %6286 = vset.pattern.permute.xlu0 5
          %6287 = vperm.xlu0 %6286, %v4246
          %v6288 = vpop.permute.xlu0 %6287
          %6290 = vset.pattern.permute.xlu0 5
          %6291 = vperm.xlu0 %6290, %v4247
          %v6292 = vpop.permute.xlu0 %6291
          %6294 = vset.pattern.permute.xlu0 5
          %6295 = vperm.xlu0 %6294, %v4248
          %v6296 = vpop.permute.xlu0 %6295
          %6298 = vset.pattern.permute.xlu0 5
          %6299 = vperm.xlu0 %6298, %v4249
          %v6300 = vpop.permute.xlu0 %6299
          %6302 = vset.pattern.permute.xlu0 5
          %6303 = vperm.xlu0 %6302, %v4250
          %v6304 = vpop.permute.xlu0 %6303
          %6306 = vset.pattern.permute.xlu0 5
          %6307 = vperm.xlu0 %6306, %v4251
          %v6308 = vpop.permute.xlu0 %6307
          %6310 = vset.pattern.permute.xlu0 5
          %6311 = vperm.xlu0 %6310, %v4252
          %v6312 = vpop.permute.xlu0 %6311
          %6314 = vset.pattern.permute.xlu0 5
          %6315 = vperm.xlu0 %6314, %v4253
          %v6316 = vpop.permute.xlu0 %6315
          %6318 = vset.pattern.permute.xlu0 5
          %6319 = vperm.xlu0 %6318, %v4254
          %v6320 = vpop.permute.xlu0 %6319
          %6322 = vset.pattern.permute.xlu0 5
          %6323 = vperm.xlu0 %6322, %v4255
          %v6324 = vpop.permute.xlu0 %6323
          %6326 = vset.pattern.permute.xlu0 5
          %6327 = vperm.xlu0 %6326, %v4256
          %v6328 = vpop.permute.xlu0 %6327
          %6330 = vset.pattern.permute.xlu0 5
          %6331 = vperm.xlu0 %6330, %v4257
          %v6332 = vpop.permute.xlu0 %6331
          %6334 = vset.pattern.permute.xlu0 5
          %6335 = vperm.xlu0 %6334, %v4258
          %v6336 = vpop.permute.xlu0 %6335
          %6338 = vset.pattern.permute.xlu0 5
          %6339 = vperm.xlu0 %6338, %v4259
          %v6340 = vpop.permute.xlu0 %6339
          %6342 = vset.pattern.permute.xlu0 5
          %6343 = vperm.xlu0 %6342, %v4260
          %v6344 = vpop.permute.xlu0 %6343
          %6346 = vset.pattern.permute.xlu0 5
          %6347 = vperm.xlu0 %6346, %v4261
          %v6348 = vpop.permute.xlu0 %6347
          %6350 = vset.pattern.permute.xlu0 5
          %6351 = vperm.xlu0 %6350, %v4262
          %v6352 = vpop.permute.xlu0 %6351
          %6354 = vset.pattern.permute.xlu0 5
          %6355 = vperm.xlu0 %6354, %v4263
          %v6356 = vpop.permute.xlu0 %6355
          %6358 = vset.pattern.permute.xlu0 5
          %6359 = vperm.xlu0 %6358, %v4264
          %v6360 = vpop.permute.xlu0 %6359
          %6362 = vset.pattern.permute.xlu0 5
          %6363 = vperm.xlu0 %6362, %v4265
          %v6364 = vpop.permute.xlu0 %6363
          %6366 = vset.pattern.permute.xlu0 5
          %6367 = vperm.xlu0 %6366, %v4266
          %v6368 = vpop.permute.xlu0 %6367
          %6370 = vset.pattern.permute.xlu0 5
          %6371 = vperm.xlu0 %6370, %v4267
          %v6372 = vpop.permute.xlu0 %6371
          %6374 = vset.pattern.permute.xlu0 5
          %6375 = vperm.xlu0 %6374, %v4268
          %v6376 = vpop.permute.xlu0 %6375
          %6378 = vset.pattern.permute.xlu0 5
          %6379 = vperm.xlu0 %6378, %v4269
          %v6380 = vpop.permute.xlu0 %6379
          %v6382 = vsel %vm6190, %v6288, 0.0
          %v6383 = vsel %vm6191, %v6288, 0.0
          %v6384 = vsel %vm6192, %v6288, 0.0
          %v6385 = vsel %vm6193, %v6288, 0.0
          %v6386 = vsel %vm6194, %v6292, 0.0
          %v6387 = vsel %vm6195, %v6292, 0.0
          %v6388 = vsel %vm6196, %v6292, 0.0
          %v6389 = vsel %vm6197, %v6292, 0.0
          %v6390 = vsel %vm6198, %v6296, 0.0
          %v6391 = vsel %vm6199, %v6296, 0.0
          %v6392 = vsel %vm6200, %v6296, 0.0
          %v6393 = vsel %vm6201, %v6296, 0.0
          %v6394 = vsel %vm6202, %v6300, 0.0
          %v6395 = vsel %vm6203, %v6300, 0.0
          %v6396 = vsel %vm6204, %v6300, 0.0
          %v6397 = vsel %vm6205, %v6300, 0.0
          %v6398 = vsel %vm6206, %v6304, 0.0
          %v6399 = vsel %vm6207, %v6304, 0.0
          %v6400 = vsel %vm6208, %v6304, 0.0
          %v6401 = vsel %vm6209, %v6304, 0.0
          %v6402 = vsel %vm6210, %v6308, 0.0
          %v6403 = vsel %vm6211, %v6308, 0.0
          %v6404 = vsel %vm6212, %v6308, 0.0
          %v6405 = vsel %vm6213, %v6308, 0.0
          %v6406 = vsel %vm6214, %v6312, 0.0
          %v6407 = vsel %vm6215, %v6312, 0.0
          %v6408 = vsel %vm6216, %v6312, 0.0
          %v6409 = vsel %vm6217, %v6312, 0.0
          %v6410 = vsel %vm6218, %v6316, 0.0
          %v6411 = vsel %vm6219, %v6316, 0.0
          %v6412 = vsel %vm6220, %v6316, 0.0
          %v6413 = vsel %vm6221, %v6316, 0.0
          %v6414 = vsel %vm6222, %v6320, 0.0
          %v6415 = vsel %vm6223, %v6320, 0.0
          %v6416 = vsel %vm6224, %v6320, 0.0
          %v6417 = vsel %vm6225, %v6320, 0.0
          %v6418 = vsel %vm6226, %v6324, 0.0
          %v6419 = vsel %vm6227, %v6324, 0.0
          %v6420 = vsel %vm6228, %v6324, 0.0
          %v6421 = vsel %vm6229, %v6324, 0.0
          %v6422 = vsel %vm6230, %v6328, 0.0
          %v6423 = vsel %vm6231, %v6328, 0.0
          %v6424 = vsel %vm6232, %v6328, 0.0
          %v6425 = vsel %vm6233, %v6328, 0.0
          %v6426 = vsel %vm6234, %v6332, 0.0
          %v6427 = vsel %vm6235, %v6332, 0.0
          %v6428 = vsel %vm6236, %v6332, 0.0
          %v6429 = vsel %vm6237, %v6332, 0.0
          %v6430 = vsel %vm6238, %v6336, 0.0
          %v6431 = vsel %vm6239, %v6336, 0.0
          %v6432 = vsel %vm6240, %v6336, 0.0
          %v6433 = vsel %vm6241, %v6336, 0.0
          %v6434 = vsel %vm6242, %v6340, 0.0
          %v6435 = vsel %vm6243, %v6340, 0.0
          %v6436 = vsel %vm6244, %v6340, 0.0
          %v6437 = vsel %vm6245, %v6340, 0.0
          %v6438 = vsel %vm6246, %v6344, 0.0
          %v6439 = vsel %vm6247, %v6344, 0.0
          %v6440 = vsel %vm6248, %v6344, 0.0
          %v6441 = vsel %vm6249, %v6344, 0.0
          %v6442 = vsel %vm6250, %v6348, 0.0
          %v6443 = vsel %vm6251, %v6348, 0.0
          %v6444 = vsel %vm6252, %v6348, 0.0
          %v6445 = vsel %vm6253, %v6348, 0.0
          %v6446 = vsel %vm6254, %v6352, 0.0
          %v6447 = vsel %vm6255, %v6352, 0.0
          %v6448 = vsel %vm6256, %v6352, 0.0
          %v6449 = vsel %vm6257, %v6352, 0.0
          %v6450 = vsel %vm6258, %v6356, 0.0
          %v6451 = vsel %vm6259, %v6356, 0.0
          %v6452 = vsel %vm6260, %v6356, 0.0
          %v6453 = vsel %vm6261, %v6356, 0.0
          %v6454 = vsel %vm6262, %v6360, 0.0
          %v6455 = vsel %vm6263, %v6360, 0.0
          %v6456 = vsel %vm6264, %v6360, 0.0
          %v6457 = vsel %vm6265, %v6360, 0.0
          %v6458 = vsel %vm6266, %v6364, 0.0
          %v6459 = vsel %vm6267, %v6364, 0.0
          %v6460 = vsel %vm6268, %v6364, 0.0
          %v6461 = vsel %vm6269, %v6364, 0.0
          %v6462 = vsel %vm6270, %v6368, 0.0
          %v6463 = vsel %vm6271, %v6368, 0.0
          %v6464 = vsel %vm6272, %v6368, 0.0
          %v6465 = vsel %vm6273, %v6368, 0.0
          %v6466 = vsel %vm6274, %v6372, 0.0
          %v6467 = vsel %vm6275, %v6372, 0.0
          %v6468 = vsel %vm6276, %v6372, 0.0
          %v6469 = vsel %vm6277, %v6372, 0.0
          %v6470 = vsel %vm6278, %v6376, 0.0
          %v6471 = vsel %vm6279, %v6376, 0.0
          %v6472 = vsel %vm6280, %v6376, 0.0
          %v6473 = vsel %vm6281, %v6376, 0.0
          %v6474 = vsel %vm6282, %v6380, 0.0
          %v6475 = vsel %vm6283, %v6380, 0.0
          %v6476 = vsel %vm6284, %v6380, 0.0
          %v6477 = vsel %vm6285, %v6380, 0.0
          %6478 = vset.pattern.permute.xlu0 4
          %6479 = vperm.xlu0 %6478, %v4246
          %v6480 = vpop.permute.xlu0 %6479
          %6482 = vset.pattern.permute.xlu0 4
          %6483 = vperm.xlu0 %6482, %v4247
          %v6484 = vpop.permute.xlu0 %6483
          %6486 = vset.pattern.permute.xlu0 4
          %6487 = vperm.xlu0 %6486, %v4248
          %v6488 = vpop.permute.xlu0 %6487
          %6490 = vset.pattern.permute.xlu0 4
          %6491 = vperm.xlu0 %6490, %v4249
          %v6492 = vpop.permute.xlu0 %6491
          %6494 = vset.pattern.permute.xlu0 4
          %6495 = vperm.xlu0 %6494, %v4250
          %v6496 = vpop.permute.xlu0 %6495
          %6498 = vset.pattern.permute.xlu0 4
          %6499 = vperm.xlu0 %6498, %v4251
          %v6500 = vpop.permute.xlu0 %6499
          %6502 = vset.pattern.permute.xlu0 4
          %6503 = vperm.xlu0 %6502, %v4252
          %v6504 = vpop.permute.xlu0 %6503
          %6506 = vset.pattern.permute.xlu0 4
          %6507 = vperm.xlu0 %6506, %v4253
          %v6508 = vpop.permute.xlu0 %6507
          %6510 = vset.pattern.permute.xlu0 4
          %6511 = vperm.xlu0 %6510, %v4254
          %v6512 = vpop.permute.xlu0 %6511
          %6514 = vset.pattern.permute.xlu0 4
          %6515 = vperm.xlu0 %6514, %v4255
          %v6516 = vpop.permute.xlu0 %6515
          %6518 = vset.pattern.permute.xlu0 4
          %6519 = vperm.xlu0 %6518, %v4256
          %v6520 = vpop.permute.xlu0 %6519
          %6522 = vset.pattern.permute.xlu0 4
          %6523 = vperm.xlu0 %6522, %v4257
          %v6524 = vpop.permute.xlu0 %6523
          %6526 = vset.pattern.permute.xlu0 4
          %6527 = vperm.xlu0 %6526, %v4258
          %v6528 = vpop.permute.xlu0 %6527
          %6530 = vset.pattern.permute.xlu0 4
          %6531 = vperm.xlu0 %6530, %v4259
          %v6532 = vpop.permute.xlu0 %6531
          %6534 = vset.pattern.permute.xlu0 4
          %6535 = vperm.xlu0 %6534, %v4260
          %v6536 = vpop.permute.xlu0 %6535
          %6538 = vset.pattern.permute.xlu0 4
          %6539 = vperm.xlu0 %6538, %v4261
          %v6540 = vpop.permute.xlu0 %6539
          %6542 = vset.pattern.permute.xlu0 4
          %6543 = vperm.xlu0 %6542, %v4262
          %v6544 = vpop.permute.xlu0 %6543
          %6546 = vset.pattern.permute.xlu0 4
          %6547 = vperm.xlu0 %6546, %v4263
          %v6548 = vpop.permute.xlu0 %6547
          %6550 = vset.pattern.permute.xlu0 4
          %6551 = vperm.xlu0 %6550, %v4264
          %v6552 = vpop.permute.xlu0 %6551
          %6554 = vset.pattern.permute.xlu0 4
          %6555 = vperm.xlu0 %6554, %v4265
          %v6556 = vpop.permute.xlu0 %6555
          %6558 = vset.pattern.permute.xlu0 4
          %6559 = vperm.xlu0 %6558, %v4266
          %v6560 = vpop.permute.xlu0 %6559
          %6562 = vset.pattern.permute.xlu0 4
          %6563 = vperm.xlu0 %6562, %v4267
          %v6564 = vpop.permute.xlu0 %6563
          %6566 = vset.pattern.permute.xlu0 4
          %6567 = vperm.xlu0 %6566, %v4268
          %v6568 = vpop.permute.xlu0 %6567
          %6570 = vset.pattern.permute.xlu0 4
          %6571 = vperm.xlu0 %6570, %v4269
          %v6572 = vpop.permute.xlu0 %6571
          %v6574 = vsel %vm6022, %v6480, %v6382
          %v6575 = vsel %vm6023, %v6480, %v6383
          %v6576 = vsel %vm6024, %v6480, %v6384
          %v6577 = vsel %vm6025, %v6480, %v6385
          %v6578 = vsel %vm6026, %v6484, %v6386
          %v6579 = vsel %vm6027, %v6484, %v6387
          %v6580 = vsel %vm6028, %v6484, %v6388
          %v6581 = vsel %vm6029, %v6484, %v6389
          %v6582 = vsel %vm6030, %v6488, %v6390
          %v6583 = vsel %vm6031, %v6488, %v6391
          %v6584 = vsel %vm6032, %v6488, %v6392
          %v6585 = vsel %vm6033, %v6488, %v6393
          %v6586 = vsel %vm6034, %v6492, %v6394
          %v6587 = vsel %vm6035, %v6492, %v6395
          %v6588 = vsel %vm6036, %v6492, %v6396
          %v6589 = vsel %vm6037, %v6492, %v6397
          %v6590 = vsel %vm6038, %v6496, %v6398
          %v6591 = vsel %vm6039, %v6496, %v6399
          %v6592 = vsel %vm6040, %v6496, %v6400
          %v6593 = vsel %vm6041, %v6496, %v6401
          %v6594 = vsel %vm6042, %v6500, %v6402
          %v6595 = vsel %vm6043, %v6500, %v6403
          %v6596 = vsel %vm6044, %v6500, %v6404
          %v6597 = vsel %vm6045, %v6500, %v6405
          %v6598 = vsel %vm6046, %v6504, %v6406
          %v6599 = vsel %vm6047, %v6504, %v6407
          %v6600 = vsel %vm6048, %v6504, %v6408
          %v6601 = vsel %vm6049, %v6504, %v6409
          %v6602 = vsel %vm6050, %v6508, %v6410
          %v6603 = vsel %vm6051, %v6508, %v6411
          %v6604 = vsel %vm6052, %v6508, %v6412
          %v6605 = vsel %vm6053, %v6508, %v6413
          %v6606 = vsel %vm6054, %v6512, %v6414
          %v6607 = vsel %vm6055, %v6512, %v6415
          %v6608 = vsel %vm6056, %v6512, %v6416
          %v6609 = vsel %vm6057, %v6512, %v6417
          %v6610 = vsel %vm6058, %v6516, %v6418
          %v6611 = vsel %vm6059, %v6516, %v6419
          %v6612 = vsel %vm6060, %v6516, %v6420
          %v6613 = vsel %vm6061, %v6516, %v6421
          %v6614 = vsel %vm6062, %v6520, %v6422
          %v6615 = vsel %vm6063, %v6520, %v6423
          %v6616 = vsel %vm6064, %v6520, %v6424
          %v6617 = vsel %vm6065, %v6520, %v6425
          %v6618 = vsel %vm6066, %v6524, %v6426
          %v6619 = vsel %vm6067, %v6524, %v6427
          %v6620 = vsel %vm6068, %v6524, %v6428
          %v6621 = vsel %vm6069, %v6524, %v6429
          %v6622 = vsel %vm6070, %v6528, %v6430
          %v6623 = vsel %vm6071, %v6528, %v6431
          %v6624 = vsel %vm6072, %v6528, %v6432
          %v6625 = vsel %vm6073, %v6528, %v6433
          %v6626 = vsel %vm6074, %v6532, %v6434
          %v6627 = vsel %vm6075, %v6532, %v6435
          %v6628 = vsel %vm6076, %v6532, %v6436
          %v6629 = vsel %vm6077, %v6532, %v6437
          %v6630 = vsel %vm6078, %v6536, %v6438
          %v6631 = vsel %vm6079, %v6536, %v6439
          %v6632 = vsel %vm6080, %v6536, %v6440
          %v6633 = vsel %vm6081, %v6536, %v6441
          %v6634 = vsel %vm6082, %v6540, %v6442
          %v6635 = vsel %vm6083, %v6540, %v6443
          %v6636 = vsel %vm6084, %v6540, %v6444
          %v6637 = vsel %vm6085, %v6540, %v6445
          %v6638 = vsel %vm6086, %v6544, %v6446
          %v6639 = vsel %vm6087, %v6544, %v6447
          %v6640 = vsel %vm6088, %v6544, %v6448
          %v6641 = vsel %vm6089, %v6544, %v6449
          %v6642 = vsel %vm6090, %v6548, %v6450
          %v6643 = vsel %vm6091, %v6548, %v6451
          %v6644 = vsel %vm6092, %v6548, %v6452
          %v6645 = vsel %vm6093, %v6548, %v6453
          %v6646 = vsel %vm6094, %v6552, %v6454
          %v6647 = vsel %vm6095, %v6552, %v6455
          %v6648 = vsel %vm6096, %v6552, %v6456
          %v6649 = vsel %vm6097, %v6552, %v6457
          %v6650 = vsel %vm6098, %v6556, %v6458
          %v6651 = vsel %vm6099, %v6556, %v6459
          %v6652 = vsel %vm6100, %v6556, %v6460
          %v6653 = vsel %vm6101, %v6556, %v6461
          %v6654 = vsel %vm6102, %v6560, %v6462
          %v6655 = vsel %vm6103, %v6560, %v6463
          %v6656 = vsel %vm6104, %v6560, %v6464
          %v6657 = vsel %vm6105, %v6560, %v6465
          %v6658 = vsel %vm6106, %v6564, %v6466
          %v6659 = vsel %vm6107, %v6564, %v6467
          %v6660 = vsel %vm6108, %v6564, %v6468
          %v6661 = vsel %vm6109, %v6564, %v6469
          %v6662 = vsel %vm6110, %v6568, %v6470
          %v6663 = vsel %vm6111, %v6568, %v6471
          %v6664 = vsel %vm6112, %v6568, %v6472
          %v6665 = vsel %vm6113, %v6568, %v6473
          %v6666 = vsel %vm6114, %v6572, %v6474
          %v6667 = vsel %vm6115, %v6572, %v6475
          %v6668 = vsel %vm6116, %v6572, %v6476
          %v6669 = vsel %vm6117, %v6572, %v6477
          %v6670 = vadd.f32 %v5854, %v6574
          %v6671 = vadd.f32 %v5855, %v6575
          %v6672 = vadd.f32 %v5856, %v6576
          %v6673 = vadd.f32 %v5857, %v6577
          %v6674 = vadd.f32 %v5858, %v6578
          %v6675 = vadd.f32 %v5859, %v6579
          %v6676 = vadd.f32 %v5860, %v6580
          %v6677 = vadd.f32 %v5861, %v6581
          %v6678 = vadd.f32 %v5862, %v6582
          %v6679 = vadd.f32 %v5863, %v6583
          %v6680 = vadd.f32 %v5864, %v6584
          %v6681 = vadd.f32 %v5865, %v6585
          %v6682 = vadd.f32 %v5866, %v6586
          %v6683 = vadd.f32 %v5867, %v6587
          %v6684 = vadd.f32 %v5868, %v6588
          %v6685 = vadd.f32 %v5869, %v6589
          %v6686 = vadd.f32 %v5870, %v6590
          %v6687 = vadd.f32 %v5871, %v6591
          %v6688 = vadd.f32 %v5872, %v6592
          %v6689 = vadd.f32 %v5873, %v6593
          %v6690 = vadd.f32 %v5874, %v6594
          %v6691 = vadd.f32 %v5875, %v6595
          %v6692 = vadd.f32 %v5876, %v6596
          %v6693 = vadd.f32 %v5877, %v6597
          %v6694 = vadd.f32 %v5878, %v6598
          %v6695 = vadd.f32 %v5879, %v6599
          %v6696 = vadd.f32 %v5880, %v6600
          %v6697 = vadd.f32 %v5881, %v6601
          %v6698 = vadd.f32 %v5882, %v6602
          %v6699 = vadd.f32 %v5883, %v6603
          %v6700 = vadd.f32 %v5884, %v6604
          %v6701 = vadd.f32 %v5885, %v6605
          %v6702 = vadd.f32 %v5886, %v6606
          %v6703 = vadd.f32 %v5887, %v6607
          %v6704 = vadd.f32 %v5888, %v6608
          %v6705 = vadd.f32 %v5889, %v6609
          %v6706 = vadd.f32 %v5890, %v6610
          %v6707 = vadd.f32 %v5891, %v6611
          %v6708 = vadd.f32 %v5892, %v6612
          %v6709 = vadd.f32 %v5893, %v6613
          %v6710 = vadd.f32 %v5894, %v6614
          %v6711 = vadd.f32 %v5895, %v6615
          %v6712 = vadd.f32 %v5896, %v6616
          %v6713 = vadd.f32 %v5897, %v6617
          %v6714 = vadd.f32 %v5898, %v6618
          %v6715 = vadd.f32 %v5899, %v6619
          %v6716 = vadd.f32 %v5900, %v6620
          %v6717 = vadd.f32 %v5901, %v6621
          %v6718 = vadd.f32 %v5902, %v6622
          %v6719 = vadd.f32 %v5903, %v6623
          %v6720 = vadd.f32 %v5904, %v6624
          %v6721 = vadd.f32 %v5905, %v6625
          %v6722 = vadd.f32 %v5906, %v6626
          %v6723 = vadd.f32 %v5907, %v6627
          %v6724 = vadd.f32 %v5908, %v6628
          %v6725 = vadd.f32 %v5909, %v6629
          %v6726 = vadd.f32 %v5910, %v6630
          %v6727 = vadd.f32 %v5911, %v6631
          %v6728 = vadd.f32 %v5912, %v6632
          %v6729 = vadd.f32 %v5913, %v6633
          %v6730 = vadd.f32 %v5914, %v6634
          %v6731 = vadd.f32 %v5915, %v6635
          %v6732 = vadd.f32 %v5916, %v6636
          %v6733 = vadd.f32 %v5917, %v6637
          %v6734 = vadd.f32 %v5918, %v6638
          %v6735 = vadd.f32 %v5919, %v6639
          %v6736 = vadd.f32 %v5920, %v6640
          %v6737 = vadd.f32 %v5921, %v6641
          %v6738 = vadd.f32 %v5922, %v6642
          %v6739 = vadd.f32 %v5923, %v6643
          %v6740 = vadd.f32 %v5924, %v6644
          %v6741 = vadd.f32 %v5925, %v6645
          %v6742 = vadd.f32 %v5926, %v6646
          %v6743 = vadd.f32 %v5927, %v6647
          %v6744 = vadd.f32 %v5928, %v6648
          %v6745 = vadd.f32 %v5929, %v6649
          %v6746 = vadd.f32 %v5930, %v6650
          %v6747 = vadd.f32 %v5931, %v6651
          %v6748 = vadd.f32 %v5932, %v6652
          %v6749 = vadd.f32 %v5933, %v6653
          %v6750 = vadd.f32 %v5934, %v6654
          %v6751 = vadd.f32 %v5935, %v6655
          %v6752 = vadd.f32 %v5936, %v6656
          %v6753 = vadd.f32 %v5937, %v6657
          %v6754 = vadd.f32 %v5938, %v6658
          %v6755 = vadd.f32 %v5939, %v6659
          %v6756 = vadd.f32 %v5940, %v6660
          %v6757 = vadd.f32 %v5941, %v6661
          %v6758 = vadd.f32 %v5942, %v6662
          %v6759 = vadd.f32 %v5943, %v6663
          %v6760 = vadd.f32 %v5944, %v6664
          %v6761 = vadd.f32 %v5945, %v6665
          %v6762 = vadd.f32 %v5946, %v6666
          %v6763 = vadd.f32 %v5947, %v6667
          %v6764 = vadd.f32 %v5948, %v6668
          %v6765 = vadd.f32 %v5949, %v6669
          %6766 = vset.pattern.permute.xlu0 3
          %6767 = vperm.xlu0 %6766, %v4222
          %v6768 = vpop.permute.xlu0 %6767
          %6769 = vset.pattern.permute.xlu0 3
          %6770 = vperm.xlu0 %6769, %v4223
          %v6771 = vpop.permute.xlu0 %6770
          %6772 = vset.pattern.permute.xlu0 3
          %6773 = vperm.xlu0 %6772, %v4224
          %v6774 = vpop.permute.xlu0 %6773
          %6775 = vset.pattern.permute.xlu0 3
          %6776 = vperm.xlu0 %6775, %v4225
          %v6777 = vpop.permute.xlu0 %6776
          %6778 = vset.pattern.permute.xlu0 3
          %6779 = vperm.xlu0 %6778, %v4226
          %v6780 = vpop.permute.xlu0 %6779
          %6781 = vset.pattern.permute.xlu0 3
          %6782 = vperm.xlu0 %6781, %v4227
          %v6783 = vpop.permute.xlu0 %6782
          %6784 = vset.pattern.permute.xlu0 3
          %6785 = vperm.xlu0 %6784, %v4228
          %v6786 = vpop.permute.xlu0 %6785
          %6787 = vset.pattern.permute.xlu0 3
          %6788 = vperm.xlu0 %6787, %v4229
          %v6789 = vpop.permute.xlu0 %6788
          %6790 = vset.pattern.permute.xlu0 3
          %6791 = vperm.xlu0 %6790, %v4230
          %v6792 = vpop.permute.xlu0 %6791
          %6793 = vset.pattern.permute.xlu0 3
          %6794 = vperm.xlu0 %6793, %v4231
          %v6795 = vpop.permute.xlu0 %6794
          %6796 = vset.pattern.permute.xlu0 3
          %6797 = vperm.xlu0 %6796, %v4232
          %v6798 = vpop.permute.xlu0 %6797
          %6799 = vset.pattern.permute.xlu0 3
          %6800 = vperm.xlu0 %6799, %v4233
          %v6801 = vpop.permute.xlu0 %6800
          %6802 = vset.pattern.permute.xlu0 3
          %6803 = vperm.xlu0 %6802, %v4234
          %v6804 = vpop.permute.xlu0 %6803
          %6805 = vset.pattern.permute.xlu0 3
          %6806 = vperm.xlu0 %6805, %v4235
          %v6807 = vpop.permute.xlu0 %6806
          %6808 = vset.pattern.permute.xlu0 3
          %6809 = vperm.xlu0 %6808, %v4236
          %v6810 = vpop.permute.xlu0 %6809
          %6811 = vset.pattern.permute.xlu0 3
          %6812 = vperm.xlu0 %6811, %v4237
          %v6813 = vpop.permute.xlu0 %6812
          %6814 = vset.pattern.permute.xlu0 3
          %6815 = vperm.xlu0 %6814, %v4238
          %v6816 = vpop.permute.xlu0 %6815
          %6817 = vset.pattern.permute.xlu0 3
          %6818 = vperm.xlu0 %6817, %v4239
          %v6819 = vpop.permute.xlu0 %6818
          %6820 = vset.pattern.permute.xlu0 3
          %6821 = vperm.xlu0 %6820, %v4240
          %v6822 = vpop.permute.xlu0 %6821
          %6823 = vset.pattern.permute.xlu0 3
          %6824 = vperm.xlu0 %6823, %v4241
          %v6825 = vpop.permute.xlu0 %6824
          %6826 = vset.pattern.permute.xlu0 3
          %6827 = vperm.xlu0 %6826, %v4242
          %v6828 = vpop.permute.xlu0 %6827
          %6829 = vset.pattern.permute.xlu0 3
          %6830 = vperm.xlu0 %6829, %v4243
          %v6831 = vpop.permute.xlu0 %6830
          %6832 = vset.pattern.permute.xlu0 3
          %6833 = vperm.xlu0 %6832, %v4244
          %v6834 = vpop.permute.xlu0 %6833
          %6835 = vset.pattern.permute.xlu0 3
          %6836 = vperm.xlu0 %6835, %v4245
          %v6837 = vpop.permute.xlu0 %6836
          %vm6838 = vcmp.eq.s32.totalorder %v4218, %v6768
          %vm6839 = vcmp.eq.s32.totalorder %v4219, %v6768
          %vm6840 = vcmp.eq.s32.totalorder %v4220, %v6768
          %vm6841 = vcmp.eq.s32.totalorder %v4221, %v6768
          %vm6842 = vcmp.eq.s32.totalorder %v4218, %v6771
          %vm6843 = vcmp.eq.s32.totalorder %v4219, %v6771
          %vm6844 = vcmp.eq.s32.totalorder %v4220, %v6771
          %vm6845 = vcmp.eq.s32.totalorder %v4221, %v6771
          %vm6846 = vcmp.eq.s32.totalorder %v4218, %v6774
          %vm6847 = vcmp.eq.s32.totalorder %v4219, %v6774
          %vm6848 = vcmp.eq.s32.totalorder %v4220, %v6774
          %vm6849 = vcmp.eq.s32.totalorder %v4221, %v6774
          %vm6850 = vcmp.eq.s32.totalorder %v4218, %v6777
          %vm6851 = vcmp.eq.s32.totalorder %v4219, %v6777
          %vm6852 = vcmp.eq.s32.totalorder %v4220, %v6777
          %vm6853 = vcmp.eq.s32.totalorder %v4221, %v6777
          %vm6854 = vcmp.eq.s32.totalorder %v4218, %v6780
          %vm6855 = vcmp.eq.s32.totalorder %v4219, %v6780
          %vm6856 = vcmp.eq.s32.totalorder %v4220, %v6780
          %vm6857 = vcmp.eq.s32.totalorder %v4221, %v6780
          %vm6858 = vcmp.eq.s32.totalorder %v4218, %v6783
          %vm6859 = vcmp.eq.s32.totalorder %v4219, %v6783
          %vm6860 = vcmp.eq.s32.totalorder %v4220, %v6783
          %vm6861 = vcmp.eq.s32.totalorder %v4221, %v6783
          %vm6862 = vcmp.eq.s32.totalorder %v4218, %v6786
          %vm6863 = vcmp.eq.s32.totalorder %v4219, %v6786
          %vm6864 = vcmp.eq.s32.totalorder %v4220, %v6786
          %vm6865 = vcmp.eq.s32.totalorder %v4221, %v6786
          %vm6866 = vcmp.eq.s32.totalorder %v4218, %v6789
          %vm6867 = vcmp.eq.s32.totalorder %v4219, %v6789
          %vm6868 = vcmp.eq.s32.totalorder %v4220, %v6789
          %vm6869 = vcmp.eq.s32.totalorder %v4221, %v6789
          %vm6870 = vcmp.eq.s32.totalorder %v4218, %v6792
          %vm6871 = vcmp.eq.s32.totalorder %v4219, %v6792
          %vm6872 = vcmp.eq.s32.totalorder %v4220, %v6792
          %vm6873 = vcmp.eq.s32.totalorder %v4221, %v6792
          %vm6874 = vcmp.eq.s32.totalorder %v4218, %v6795
          %vm6875 = vcmp.eq.s32.totalorder %v4219, %v6795
          %vm6876 = vcmp.eq.s32.totalorder %v4220, %v6795
          %vm6877 = vcmp.eq.s32.totalorder %v4221, %v6795
          %vm6878 = vcmp.eq.s32.totalorder %v4218, %v6798
          %vm6879 = vcmp.eq.s32.totalorder %v4219, %v6798
          %vm6880 = vcmp.eq.s32.totalorder %v4220, %v6798
          %vm6881 = vcmp.eq.s32.totalorder %v4221, %v6798
          %vm6882 = vcmp.eq.s32.totalorder %v4218, %v6801
          %vm6883 = vcmp.eq.s32.totalorder %v4219, %v6801
          %vm6884 = vcmp.eq.s32.totalorder %v4220, %v6801
          %vm6885 = vcmp.eq.s32.totalorder %v4221, %v6801
          %vm6886 = vcmp.eq.s32.totalorder %v4218, %v6804
          %vm6887 = vcmp.eq.s32.totalorder %v4219, %v6804
          %vm6888 = vcmp.eq.s32.totalorder %v4220, %v6804
          %vm6889 = vcmp.eq.s32.totalorder %v4221, %v6804
          %vm6890 = vcmp.eq.s32.totalorder %v4218, %v6807
          %vm6891 = vcmp.eq.s32.totalorder %v4219, %v6807
          %vm6892 = vcmp.eq.s32.totalorder %v4220, %v6807
          %vm6893 = vcmp.eq.s32.totalorder %v4221, %v6807
          %vm6894 = vcmp.eq.s32.totalorder %v4218, %v6810
          %vm6895 = vcmp.eq.s32.totalorder %v4219, %v6810
          %vm6896 = vcmp.eq.s32.totalorder %v4220, %v6810
          %vm6897 = vcmp.eq.s32.totalorder %v4221, %v6810
          %vm6898 = vcmp.eq.s32.totalorder %v4218, %v6813
          %vm6899 = vcmp.eq.s32.totalorder %v4219, %v6813
          %vm6900 = vcmp.eq.s32.totalorder %v4220, %v6813
          %vm6901 = vcmp.eq.s32.totalorder %v4221, %v6813
          %vm6902 = vcmp.eq.s32.totalorder %v4218, %v6816
          %vm6903 = vcmp.eq.s32.totalorder %v4219, %v6816
          %vm6904 = vcmp.eq.s32.totalorder %v4220, %v6816
          %vm6905 = vcmp.eq.s32.totalorder %v4221, %v6816
          %vm6906 = vcmp.eq.s32.totalorder %v4218, %v6819
          %vm6907 = vcmp.eq.s32.totalorder %v4219, %v6819
          %vm6908 = vcmp.eq.s32.totalorder %v4220, %v6819
          %vm6909 = vcmp.eq.s32.totalorder %v4221, %v6819
          %vm6910 = vcmp.eq.s32.totalorder %v4218, %v6822
          %vm6911 = vcmp.eq.s32.totalorder %v4219, %v6822
          %vm6912 = vcmp.eq.s32.totalorder %v4220, %v6822
          %vm6913 = vcmp.eq.s32.totalorder %v4221, %v6822
          %vm6914 = vcmp.eq.s32.totalorder %v4218, %v6825
          %vm6915 = vcmp.eq.s32.totalorder %v4219, %v6825
          %vm6916 = vcmp.eq.s32.totalorder %v4220, %v6825
          %vm6917 = vcmp.eq.s32.totalorder %v4221, %v6825
          %vm6918 = vcmp.eq.s32.totalorder %v4218, %v6828
          %vm6919 = vcmp.eq.s32.totalorder %v4219, %v6828
          %vm6920 = vcmp.eq.s32.totalorder %v4220, %v6828
          %vm6921 = vcmp.eq.s32.totalorder %v4221, %v6828
          %vm6922 = vcmp.eq.s32.totalorder %v4218, %v6831
          %vm6923 = vcmp.eq.s32.totalorder %v4219, %v6831
          %vm6924 = vcmp.eq.s32.totalorder %v4220, %v6831
          %vm6925 = vcmp.eq.s32.totalorder %v4221, %v6831
          %vm6926 = vcmp.eq.s32.totalorder %v4218, %v6834
          %vm6927 = vcmp.eq.s32.totalorder %v4219, %v6834
          %vm6928 = vcmp.eq.s32.totalorder %v4220, %v6834
          %vm6929 = vcmp.eq.s32.totalorder %v4221, %v6834
          %vm6930 = vcmp.eq.s32.totalorder %v4218, %v6837
          %vm6931 = vcmp.eq.s32.totalorder %v4219, %v6837
          %vm6932 = vcmp.eq.s32.totalorder %v4220, %v6837
          %vm6933 = vcmp.eq.s32.totalorder %v4221, %v6837
          %6934 = vset.pattern.permute.xlu0 3
          %6935 = vperm.xlu0 %6934, %v4438
          %v6936 = vpop.permute.xlu0 %6935
          %6937 = vset.pattern.permute.xlu0 3
          %6938 = vperm.xlu0 %6937, %v4439
          %v6939 = vpop.permute.xlu0 %6938
          %6940 = vset.pattern.permute.xlu0 3
          %6941 = vperm.xlu0 %6940, %v4440
          %v6942 = vpop.permute.xlu0 %6941
          %6943 = vset.pattern.permute.xlu0 3
          %6944 = vperm.xlu0 %6943, %v4441
          %v6945 = vpop.permute.xlu0 %6944
          %6946 = vset.pattern.permute.xlu0 3
          %6947 = vperm.xlu0 %6946, %v4442
          %v6948 = vpop.permute.xlu0 %6947
          %6949 = vset.pattern.permute.xlu0 3
          %6950 = vperm.xlu0 %6949, %v4443
          %v6951 = vpop.permute.xlu0 %6950
          %6952 = vset.pattern.permute.xlu0 3
          %6953 = vperm.xlu0 %6952, %v4444
          %v6954 = vpop.permute.xlu0 %6953
          %6955 = vset.pattern.permute.xlu0 3
          %6956 = vperm.xlu0 %6955, %v4445
          %v6957 = vpop.permute.xlu0 %6956
          %6958 = vset.pattern.permute.xlu0 3
          %6959 = vperm.xlu0 %6958, %v4446
          %v6960 = vpop.permute.xlu0 %6959
          %6961 = vset.pattern.permute.xlu0 3
          %6962 = vperm.xlu0 %6961, %v4447
          %v6963 = vpop.permute.xlu0 %6962
          %6964 = vset.pattern.permute.xlu0 3
          %6965 = vperm.xlu0 %6964, %v4448
          %v6966 = vpop.permute.xlu0 %6965
          %6967 = vset.pattern.permute.xlu0 3
          %6968 = vperm.xlu0 %6967, %v4449
          %v6969 = vpop.permute.xlu0 %6968
          %6970 = vset.pattern.permute.xlu0 3
          %6971 = vperm.xlu0 %6970, %v4450
          %v6972 = vpop.permute.xlu0 %6971
          %6973 = vset.pattern.permute.xlu0 3
          %6974 = vperm.xlu0 %6973, %v4451
          %v6975 = vpop.permute.xlu0 %6974
          %6976 = vset.pattern.permute.xlu0 3
          %6977 = vperm.xlu0 %6976, %v4452
          %v6978 = vpop.permute.xlu0 %6977
          %6979 = vset.pattern.permute.xlu0 3
          %6980 = vperm.xlu0 %6979, %v4453
          %v6981 = vpop.permute.xlu0 %6980
          %6982 = vset.pattern.permute.xlu0 3
          %6983 = vperm.xlu0 %6982, %v4454
          %v6984 = vpop.permute.xlu0 %6983
          %6985 = vset.pattern.permute.xlu0 3
          %6986 = vperm.xlu0 %6985, %v4455
          %v6987 = vpop.permute.xlu0 %6986
          %6988 = vset.pattern.permute.xlu0 3
          %6989 = vperm.xlu0 %6988, %v4456
          %v6990 = vpop.permute.xlu0 %6989
          %6991 = vset.pattern.permute.xlu0 3
          %6992 = vperm.xlu0 %6991, %v4457
          %v6993 = vpop.permute.xlu0 %6992
          %6994 = vset.pattern.permute.xlu0 3
          %6995 = vperm.xlu0 %6994, %v4458
          %v6996 = vpop.permute.xlu0 %6995
          %6997 = vset.pattern.permute.xlu0 3
          %6998 = vperm.xlu0 %6997, %v4459
          %v6999 = vpop.permute.xlu0 %6998
          %7000 = vset.pattern.permute.xlu0 3
          %7001 = vperm.xlu0 %7000, %v4460
          %v7002 = vpop.permute.xlu0 %7001
          %7003 = vset.pattern.permute.xlu0 3
          %7004 = vperm.xlu0 %7003, %v4461
          %v7005 = vpop.permute.xlu0 %7004
          %vm7006 = vcmp.eq.s32.totalorder %v4218, %v6936
          %vm7007 = vcmp.eq.s32.totalorder %v4219, %v6936
          %vm7008 = vcmp.eq.s32.totalorder %v4220, %v6936
          %vm7009 = vcmp.eq.s32.totalorder %v4221, %v6936
          %vm7010 = vcmp.eq.s32.totalorder %v4218, %v6939
          %vm7011 = vcmp.eq.s32.totalorder %v4219, %v6939
          %vm7012 = vcmp.eq.s32.totalorder %v4220, %v6939
          %vm7013 = vcmp.eq.s32.totalorder %v4221, %v6939
          %vm7014 = vcmp.eq.s32.totalorder %v4218, %v6942
          %vm7015 = vcmp.eq.s32.totalorder %v4219, %v6942
          %vm7016 = vcmp.eq.s32.totalorder %v4220, %v6942
          %vm7017 = vcmp.eq.s32.totalorder %v4221, %v6942
          %vm7018 = vcmp.eq.s32.totalorder %v4218, %v6945
          %vm7019 = vcmp.eq.s32.totalorder %v4219, %v6945
          %vm7020 = vcmp.eq.s32.totalorder %v4220, %v6945
          %vm7021 = vcmp.eq.s32.totalorder %v4221, %v6945
          %vm7022 = vcmp.eq.s32.totalorder %v4218, %v6948
          %vm7023 = vcmp.eq.s32.totalorder %v4219, %v6948
          %vm7024 = vcmp.eq.s32.totalorder %v4220, %v6948
          %vm7025 = vcmp.eq.s32.totalorder %v4221, %v6948
          %vm7026 = vcmp.eq.s32.totalorder %v4218, %v6951
          %vm7027 = vcmp.eq.s32.totalorder %v4219, %v6951
          %vm7028 = vcmp.eq.s32.totalorder %v4220, %v6951
          %vm7029 = vcmp.eq.s32.totalorder %v4221, %v6951
          %vm7030 = vcmp.eq.s32.totalorder %v4218, %v6954
          %vm7031 = vcmp.eq.s32.totalorder %v4219, %v6954
          %vm7032 = vcmp.eq.s32.totalorder %v4220, %v6954
          %vm7033 = vcmp.eq.s32.totalorder %v4221, %v6954
          %vm7034 = vcmp.eq.s32.totalorder %v4218, %v6957
          %vm7035 = vcmp.eq.s32.totalorder %v4219, %v6957
          %vm7036 = vcmp.eq.s32.totalorder %v4220, %v6957
          %vm7037 = vcmp.eq.s32.totalorder %v4221, %v6957
          %vm7038 = vcmp.eq.s32.totalorder %v4218, %v6960
          %vm7039 = vcmp.eq.s32.totalorder %v4219, %v6960
          %vm7040 = vcmp.eq.s32.totalorder %v4220, %v6960
          %vm7041 = vcmp.eq.s32.totalorder %v4221, %v6960
          %vm7042 = vcmp.eq.s32.totalorder %v4218, %v6963
          %vm7043 = vcmp.eq.s32.totalorder %v4219, %v6963
          %vm7044 = vcmp.eq.s32.totalorder %v4220, %v6963
          %vm7045 = vcmp.eq.s32.totalorder %v4221, %v6963
          %vm7046 = vcmp.eq.s32.totalorder %v4218, %v6966
          %vm7047 = vcmp.eq.s32.totalorder %v4219, %v6966
          %vm7048 = vcmp.eq.s32.totalorder %v4220, %v6966
          %vm7049 = vcmp.eq.s32.totalorder %v4221, %v6966
          %vm7050 = vcmp.eq.s32.totalorder %v4218, %v6969
          %vm7051 = vcmp.eq.s32.totalorder %v4219, %v6969
          %vm7052 = vcmp.eq.s32.totalorder %v4220, %v6969
          %vm7053 = vcmp.eq.s32.totalorder %v4221, %v6969
          %vm7054 = vcmp.eq.s32.totalorder %v4218, %v6972
          %vm7055 = vcmp.eq.s32.totalorder %v4219, %v6972
          %vm7056 = vcmp.eq.s32.totalorder %v4220, %v6972
          %vm7057 = vcmp.eq.s32.totalorder %v4221, %v6972
          %vm7058 = vcmp.eq.s32.totalorder %v4218, %v6975
          %vm7059 = vcmp.eq.s32.totalorder %v4219, %v6975
          %vm7060 = vcmp.eq.s32.totalorder %v4220, %v6975
          %vm7061 = vcmp.eq.s32.totalorder %v4221, %v6975
          %vm7062 = vcmp.eq.s32.totalorder %v4218, %v6978
          %vm7063 = vcmp.eq.s32.totalorder %v4219, %v6978
          %vm7064 = vcmp.eq.s32.totalorder %v4220, %v6978
          %vm7065 = vcmp.eq.s32.totalorder %v4221, %v6978
          %vm7066 = vcmp.eq.s32.totalorder %v4218, %v6981
          %vm7067 = vcmp.eq.s32.totalorder %v4219, %v6981
          %vm7068 = vcmp.eq.s32.totalorder %v4220, %v6981
          %vm7069 = vcmp.eq.s32.totalorder %v4221, %v6981
          %vm7070 = vcmp.eq.s32.totalorder %v4218, %v6984
          %vm7071 = vcmp.eq.s32.totalorder %v4219, %v6984
          %vm7072 = vcmp.eq.s32.totalorder %v4220, %v6984
          %vm7073 = vcmp.eq.s32.totalorder %v4221, %v6984
          %vm7074 = vcmp.eq.s32.totalorder %v4218, %v6987
          %vm7075 = vcmp.eq.s32.totalorder %v4219, %v6987
          %vm7076 = vcmp.eq.s32.totalorder %v4220, %v6987
          %vm7077 = vcmp.eq.s32.totalorder %v4221, %v6987
          %vm7078 = vcmp.eq.s32.totalorder %v4218, %v6990
          %vm7079 = vcmp.eq.s32.totalorder %v4219, %v6990
          %vm7080 = vcmp.eq.s32.totalorder %v4220, %v6990
          %vm7081 = vcmp.eq.s32.totalorder %v4221, %v6990
          %vm7082 = vcmp.eq.s32.totalorder %v4218, %v6993
          %vm7083 = vcmp.eq.s32.totalorder %v4219, %v6993
          %vm7084 = vcmp.eq.s32.totalorder %v4220, %v6993
          %vm7085 = vcmp.eq.s32.totalorder %v4221, %v6993
          %vm7086 = vcmp.eq.s32.totalorder %v4218, %v6996
          %vm7087 = vcmp.eq.s32.totalorder %v4219, %v6996
          %vm7088 = vcmp.eq.s32.totalorder %v4220, %v6996
          %vm7089 = vcmp.eq.s32.totalorder %v4221, %v6996
          %vm7090 = vcmp.eq.s32.totalorder %v4218, %v6999
          %vm7091 = vcmp.eq.s32.totalorder %v4219, %v6999
          %vm7092 = vcmp.eq.s32.totalorder %v4220, %v6999
          %vm7093 = vcmp.eq.s32.totalorder %v4221, %v6999
          %vm7094 = vcmp.eq.s32.totalorder %v4218, %v7002
          %vm7095 = vcmp.eq.s32.totalorder %v4219, %v7002
          %vm7096 = vcmp.eq.s32.totalorder %v4220, %v7002
          %vm7097 = vcmp.eq.s32.totalorder %v4221, %v7002
          %vm7098 = vcmp.eq.s32.totalorder %v4218, %v7005
          %vm7099 = vcmp.eq.s32.totalorder %v4219, %v7005
          %vm7100 = vcmp.eq.s32.totalorder %v4220, %v7005
          %vm7101 = vcmp.eq.s32.totalorder %v4221, %v7005
          %7102 = vset.pattern.permute.xlu0 7
          %7103 = vperm.xlu0 %7102, %v4246
          %v7104 = vpop.permute.xlu0 %7103
          %7106 = vset.pattern.permute.xlu0 7
          %7107 = vperm.xlu0 %7106, %v4247
          %v7108 = vpop.permute.xlu0 %7107
          %7110 = vset.pattern.permute.xlu0 7
          %7111 = vperm.xlu0 %7110, %v4248
          %v7112 = vpop.permute.xlu0 %7111
          %7114 = vset.pattern.permute.xlu0 7
          %7115 = vperm.xlu0 %7114, %v4249
          %v7116 = vpop.permute.xlu0 %7115
          %7118 = vset.pattern.permute.xlu0 7
          %7119 = vperm.xlu0 %7118, %v4250
          %v7120 = vpop.permute.xlu0 %7119
          %7122 = vset.pattern.permute.xlu0 7
          %7123 = vperm.xlu0 %7122, %v4251
          %v7124 = vpop.permute.xlu0 %7123
          %7126 = vset.pattern.permute.xlu0 7
          %7127 = vperm.xlu0 %7126, %v4252
          %v7128 = vpop.permute.xlu0 %7127
          %7130 = vset.pattern.permute.xlu0 7
          %7131 = vperm.xlu0 %7130, %v4253
          %v7132 = vpop.permute.xlu0 %7131
          %7134 = vset.pattern.permute.xlu0 7
          %7135 = vperm.xlu0 %7134, %v4254
          %v7136 = vpop.permute.xlu0 %7135
          %7138 = vset.pattern.permute.xlu0 7
          %7139 = vperm.xlu0 %7138, %v4255
          %v7140 = vpop.permute.xlu0 %7139
          %7142 = vset.pattern.permute.xlu0 7
          %7143 = vperm.xlu0 %7142, %v4256
          %v7144 = vpop.permute.xlu0 %7143
          %7146 = vset.pattern.permute.xlu0 7
          %7147 = vperm.xlu0 %7146, %v4257
          %v7148 = vpop.permute.xlu0 %7147
          %7150 = vset.pattern.permute.xlu0 7
          %7151 = vperm.xlu0 %7150, %v4258
          %v7152 = vpop.permute.xlu0 %7151
          %7154 = vset.pattern.permute.xlu0 7
          %7155 = vperm.xlu0 %7154, %v4259
          %v7156 = vpop.permute.xlu0 %7155
          %7158 = vset.pattern.permute.xlu0 7
          %7159 = vperm.xlu0 %7158, %v4260
          %v7160 = vpop.permute.xlu0 %7159
          %7162 = vset.pattern.permute.xlu0 7
          %7163 = vperm.xlu0 %7162, %v4261
          %v7164 = vpop.permute.xlu0 %7163
          %7166 = vset.pattern.permute.xlu0 7
          %7167 = vperm.xlu0 %7166, %v4262
          %v7168 = vpop.permute.xlu0 %7167
          %7170 = vset.pattern.permute.xlu0 7
          %7171 = vperm.xlu0 %7170, %v4263
          %v7172 = vpop.permute.xlu0 %7171
          %7174 = vset.pattern.permute.xlu0 7
          %7175 = vperm.xlu0 %7174, %v4264
          %v7176 = vpop.permute.xlu0 %7175
          %7178 = vset.pattern.permute.xlu0 7
          %7179 = vperm.xlu0 %7178, %v4265
          %v7180 = vpop.permute.xlu0 %7179
          %7182 = vset.pattern.permute.xlu0 7
          %7183 = vperm.xlu0 %7182, %v4266
          %v7184 = vpop.permute.xlu0 %7183
          %7186 = vset.pattern.permute.xlu0 7
          %7187 = vperm.xlu0 %7186, %v4267
          %v7188 = vpop.permute.xlu0 %7187
          %7190 = vset.pattern.permute.xlu0 7
          %7191 = vperm.xlu0 %7190, %v4268
          %v7192 = vpop.permute.xlu0 %7191
          %7194 = vset.pattern.permute.xlu0 7
          %7195 = vperm.xlu0 %7194, %v4269
          %v7196 = vpop.permute.xlu0 %7195
          %v7198 = vsel %vm7006, %v7104, 0.0
          %v7199 = vsel %vm7007, %v7104, 0.0
          %v7200 = vsel %vm7008, %v7104, 0.0
          %v7201 = vsel %vm7009, %v7104, 0.0
          %v7202 = vsel %vm7010, %v7108, 0.0
          %v7203 = vsel %vm7011, %v7108, 0.0
          %v7204 = vsel %vm7012, %v7108, 0.0
          %v7205 = vsel %vm7013, %v7108, 0.0
          %v7206 = vsel %vm7014, %v7112, 0.0
          %v7207 = vsel %vm7015, %v7112, 0.0
          %v7208 = vsel %vm7016, %v7112, 0.0
          %v7209 = vsel %vm7017, %v7112, 0.0
          %v7210 = vsel %vm7018, %v7116, 0.0
          %v7211 = vsel %vm7019, %v7116, 0.0
          %v7212 = vsel %vm7020, %v7116, 0.0
          %v7213 = vsel %vm7021, %v7116, 0.0
          %v7214 = vsel %vm7022, %v7120, 0.0
          %v7215 = vsel %vm7023, %v7120, 0.0
          %v7216 = vsel %vm7024, %v7120, 0.0
          %v7217 = vsel %vm7025, %v7120, 0.0
          %v7218 = vsel %vm7026, %v7124, 0.0
          %v7219 = vsel %vm7027, %v7124, 0.0
          %v7220 = vsel %vm7028, %v7124, 0.0
          %v7221 = vsel %vm7029, %v7124, 0.0
          %v7222 = vsel %vm7030, %v7128, 0.0
          %v7223 = vsel %vm7031, %v7128, 0.0
          %v7224 = vsel %vm7032, %v7128, 0.0
          %v7225 = vsel %vm7033, %v7128, 0.0
          %v7226 = vsel %vm7034, %v7132, 0.0
          %v7227 = vsel %vm7035, %v7132, 0.0
          %v7228 = vsel %vm7036, %v7132, 0.0
          %v7229 = vsel %vm7037, %v7132, 0.0
          %v7230 = vsel %vm7038, %v7136, 0.0
          %v7231 = vsel %vm7039, %v7136, 0.0
          %v7232 = vsel %vm7040, %v7136, 0.0
          %v7233 = vsel %vm7041, %v7136, 0.0
          %v7234 = vsel %vm7042, %v7140, 0.0
          %v7235 = vsel %vm7043, %v7140, 0.0
          %v7236 = vsel %vm7044, %v7140, 0.0
          %v7237 = vsel %vm7045, %v7140, 0.0
          %v7238 = vsel %vm7046, %v7144, 0.0
          %v7239 = vsel %vm7047, %v7144, 0.0
          %v7240 = vsel %vm7048, %v7144, 0.0
          %v7241 = vsel %vm7049, %v7144, 0.0
          %v7242 = vsel %vm7050, %v7148, 0.0
          %v7243 = vsel %vm7051, %v7148, 0.0
          %v7244 = vsel %vm7052, %v7148, 0.0
          %v7245 = vsel %vm7053, %v7148, 0.0
          %v7246 = vsel %vm7054, %v7152, 0.0
          %v7247 = vsel %vm7055, %v7152, 0.0
          %v7248 = vsel %vm7056, %v7152, 0.0
          %v7249 = vsel %vm7057, %v7152, 0.0
          %v7250 = vsel %vm7058, %v7156, 0.0
          %v7251 = vsel %vm7059, %v7156, 0.0
          %v7252 = vsel %vm7060, %v7156, 0.0
          %v7253 = vsel %vm7061, %v7156, 0.0
          %v7254 = vsel %vm7062, %v7160, 0.0
          %v7255 = vsel %vm7063, %v7160, 0.0
          %v7256 = vsel %vm7064, %v7160, 0.0
          %v7257 = vsel %vm7065, %v7160, 0.0
          %v7258 = vsel %vm7066, %v7164, 0.0
          %v7259 = vsel %vm7067, %v7164, 0.0
          %v7260 = vsel %vm7068, %v7164, 0.0
          %v7261 = vsel %vm7069, %v7164, 0.0
          %v7262 = vsel %vm7070, %v7168, 0.0
          %v7263 = vsel %vm7071, %v7168, 0.0
          %v7264 = vsel %vm7072, %v7168, 0.0
          %v7265 = vsel %vm7073, %v7168, 0.0
          %v7266 = vsel %vm7074, %v7172, 0.0
          %v7267 = vsel %vm7075, %v7172, 0.0
          %v7268 = vsel %vm7076, %v7172, 0.0
          %v7269 = vsel %vm7077, %v7172, 0.0
          %v7270 = vsel %vm7078, %v7176, 0.0
          %v7271 = vsel %vm7079, %v7176, 0.0
          %v7272 = vsel %vm7080, %v7176, 0.0
          %v7273 = vsel %vm7081, %v7176, 0.0
          %v7274 = vsel %vm7082, %v7180, 0.0
          %v7275 = vsel %vm7083, %v7180, 0.0
          %v7276 = vsel %vm7084, %v7180, 0.0
          %v7277 = vsel %vm7085, %v7180, 0.0
          %v7278 = vsel %vm7086, %v7184, 0.0
          %v7279 = vsel %vm7087, %v7184, 0.0
          %v7280 = vsel %vm7088, %v7184, 0.0
          %v7281 = vsel %vm7089, %v7184, 0.0
          %v7282 = vsel %vm7090, %v7188, 0.0
          %v7283 = vsel %vm7091, %v7188, 0.0
          %v7284 = vsel %vm7092, %v7188, 0.0
          %v7285 = vsel %vm7093, %v7188, 0.0
          %v7286 = vsel %vm7094, %v7192, 0.0
          %v7287 = vsel %vm7095, %v7192, 0.0
          %v7288 = vsel %vm7096, %v7192, 0.0
          %v7289 = vsel %vm7097, %v7192, 0.0
          %v7290 = vsel %vm7098, %v7196, 0.0
          %v7291 = vsel %vm7099, %v7196, 0.0
          %v7292 = vsel %vm7100, %v7196, 0.0
          %v7293 = vsel %vm7101, %v7196, 0.0
          %7294 = vset.pattern.permute.xlu0 6
          %7295 = vperm.xlu0 %7294, %v4246
          %v7296 = vpop.permute.xlu0 %7295
          %7298 = vset.pattern.permute.xlu0 6
          %7299 = vperm.xlu0 %7298, %v4247
          %v7300 = vpop.permute.xlu0 %7299
          %7302 = vset.pattern.permute.xlu0 6
          %7303 = vperm.xlu0 %7302, %v4248
          %v7304 = vpop.permute.xlu0 %7303
          %7306 = vset.pattern.permute.xlu0 6
          %7307 = vperm.xlu0 %7306, %v4249
          %v7308 = vpop.permute.xlu0 %7307
          %7310 = vset.pattern.permute.xlu0 6
          %7311 = vperm.xlu0 %7310, %v4250
          %v7312 = vpop.permute.xlu0 %7311
          %7314 = vset.pattern.permute.xlu0 6
          %7315 = vperm.xlu0 %7314, %v4251
          %v7316 = vpop.permute.xlu0 %7315
          %7318 = vset.pattern.permute.xlu0 6
          %7319 = vperm.xlu0 %7318, %v4252
          %v7320 = vpop.permute.xlu0 %7319
          %7322 = vset.pattern.permute.xlu0 6
          %7323 = vperm.xlu0 %7322, %v4253
          %v7324 = vpop.permute.xlu0 %7323
          %7326 = vset.pattern.permute.xlu0 6
          %7327 = vperm.xlu0 %7326, %v4254
          %v7328 = vpop.permute.xlu0 %7327
          %7330 = vset.pattern.permute.xlu0 6
          %7331 = vperm.xlu0 %7330, %v4255
          %v7332 = vpop.permute.xlu0 %7331
          %7334 = vset.pattern.permute.xlu0 6
          %7335 = vperm.xlu0 %7334, %v4256
          %v7336 = vpop.permute.xlu0 %7335
          %7338 = vset.pattern.permute.xlu0 6
          %7339 = vperm.xlu0 %7338, %v4257
          %v7340 = vpop.permute.xlu0 %7339
          %7342 = vset.pattern.permute.xlu0 6
          %7343 = vperm.xlu0 %7342, %v4258
          %v7344 = vpop.permute.xlu0 %7343
          %7346 = vset.pattern.permute.xlu0 6
          %7347 = vperm.xlu0 %7346, %v4259
          %v7348 = vpop.permute.xlu0 %7347
          %7350 = vset.pattern.permute.xlu0 6
          %7351 = vperm.xlu0 %7350, %v4260
          %v7352 = vpop.permute.xlu0 %7351
          %7354 = vset.pattern.permute.xlu0 6
          %7355 = vperm.xlu0 %7354, %v4261
          %v7356 = vpop.permute.xlu0 %7355
          %7358 = vset.pattern.permute.xlu0 6
          %7359 = vperm.xlu0 %7358, %v4262
          %v7360 = vpop.permute.xlu0 %7359
          %7362 = vset.pattern.permute.xlu0 6
          %7363 = vperm.xlu0 %7362, %v4263
          %v7364 = vpop.permute.xlu0 %7363
          %7366 = vset.pattern.permute.xlu0 6
          %7367 = vperm.xlu0 %7366, %v4264
          %v7368 = vpop.permute.xlu0 %7367
          %7370 = vset.pattern.permute.xlu0 6
          %7371 = vperm.xlu0 %7370, %v4265
          %v7372 = vpop.permute.xlu0 %7371
          %7374 = vset.pattern.permute.xlu0 6
          %7375 = vperm.xlu0 %7374, %v4266
          %v7376 = vpop.permute.xlu0 %7375
          %7378 = vset.pattern.permute.xlu0 6
          %7379 = vperm.xlu0 %7378, %v4267
          %v7380 = vpop.permute.xlu0 %7379
          %7382 = vset.pattern.permute.xlu0 6
          %7383 = vperm.xlu0 %7382, %v4268
          %v7384 = vpop.permute.xlu0 %7383
          %7386 = vset.pattern.permute.xlu0 6
          %7387 = vperm.xlu0 %7386, %v4269
          %v7388 = vpop.permute.xlu0 %7387
          %v7390 = vsel %vm6838, %v7296, %v7198
          %v7391 = vsel %vm6839, %v7296, %v7199
          %v7392 = vsel %vm6840, %v7296, %v7200
          %v7393 = vsel %vm6841, %v7296, %v7201
          %v7394 = vsel %vm6842, %v7300, %v7202
          %v7395 = vsel %vm6843, %v7300, %v7203
          %v7396 = vsel %vm6844, %v7300, %v7204
          %v7397 = vsel %vm6845, %v7300, %v7205
          %v7398 = vsel %vm6846, %v7304, %v7206
          %v7399 = vsel %vm6847, %v7304, %v7207
          %v7400 = vsel %vm6848, %v7304, %v7208
          %v7401 = vsel %vm6849, %v7304, %v7209
          %v7402 = vsel %vm6850, %v7308, %v7210
          %v7403 = vsel %vm6851, %v7308, %v7211
          %v7404 = vsel %vm6852, %v7308, %v7212
          %v7405 = vsel %vm6853, %v7308, %v7213
          %v7406 = vsel %vm6854, %v7312, %v7214
          %v7407 = vsel %vm6855, %v7312, %v7215
          %v7408 = vsel %vm6856, %v7312, %v7216
          %v7409 = vsel %vm6857, %v7312, %v7217
          %v7410 = vsel %vm6858, %v7316, %v7218
          %v7411 = vsel %vm6859, %v7316, %v7219
          %v7412 = vsel %vm6860, %v7316, %v7220
          %v7413 = vsel %vm6861, %v7316, %v7221
          %v7414 = vsel %vm6862, %v7320, %v7222
          %v7415 = vsel %vm6863, %v7320, %v7223
          %v7416 = vsel %vm6864, %v7320, %v7224
          %v7417 = vsel %vm6865, %v7320, %v7225
          %v7418 = vsel %vm6866, %v7324, %v7226
          %v7419 = vsel %vm6867, %v7324, %v7227
          %v7420 = vsel %vm6868, %v7324, %v7228
          %v7421 = vsel %vm6869, %v7324, %v7229
          %v7422 = vsel %vm6870, %v7328, %v7230
          %v7423 = vsel %vm6871, %v7328, %v7231
          %v7424 = vsel %vm6872, %v7328, %v7232
          %v7425 = vsel %vm6873, %v7328, %v7233
          %v7426 = vsel %vm6874, %v7332, %v7234
          %v7427 = vsel %vm6875, %v7332, %v7235
          %v7428 = vsel %vm6876, %v7332, %v7236
          %v7429 = vsel %vm6877, %v7332, %v7237
          %v7430 = vsel %vm6878, %v7336, %v7238
          %v7431 = vsel %vm6879, %v7336, %v7239
          %v7432 = vsel %vm6880, %v7336, %v7240
          %v7433 = vsel %vm6881, %v7336, %v7241
          %v7434 = vsel %vm6882, %v7340, %v7242
          %v7435 = vsel %vm6883, %v7340, %v7243
          %v7436 = vsel %vm6884, %v7340, %v7244
          %v7437 = vsel %vm6885, %v7340, %v7245
          %v7438 = vsel %vm6886, %v7344, %v7246
          %v7439 = vsel %vm6887, %v7344, %v7247
          %v7440 = vsel %vm6888, %v7344, %v7248
          %v7441 = vsel %vm6889, %v7344, %v7249
          %v7442 = vsel %vm6890, %v7348, %v7250
          %v7443 = vsel %vm6891, %v7348, %v7251
          %v7444 = vsel %vm6892, %v7348, %v7252
          %v7445 = vsel %vm6893, %v7348, %v7253
          %v7446 = vsel %vm6894, %v7352, %v7254
          %v7447 = vsel %vm6895, %v7352, %v7255
          %v7448 = vsel %vm6896, %v7352, %v7256
          %v7449 = vsel %vm6897, %v7352, %v7257
          %v7450 = vsel %vm6898, %v7356, %v7258
          %v7451 = vsel %vm6899, %v7356, %v7259
          %v7452 = vsel %vm6900, %v7356, %v7260
          %v7453 = vsel %vm6901, %v7356, %v7261
          %v7454 = vsel %vm6902, %v7360, %v7262
          %v7455 = vsel %vm6903, %v7360, %v7263
          %v7456 = vsel %vm6904, %v7360, %v7264
          %v7457 = vsel %vm6905, %v7360, %v7265
          %v7458 = vsel %vm6906, %v7364, %v7266
          %v7459 = vsel %vm6907, %v7364, %v7267
          %v7460 = vsel %vm6908, %v7364, %v7268
          %v7461 = vsel %vm6909, %v7364, %v7269
          %v7462 = vsel %vm6910, %v7368, %v7270
          %v7463 = vsel %vm6911, %v7368, %v7271
          %v7464 = vsel %vm6912, %v7368, %v7272
          %v7465 = vsel %vm6913, %v7368, %v7273
          %v7466 = vsel %vm6914, %v7372, %v7274
          %v7467 = vsel %vm6915, %v7372, %v7275
          %v7468 = vsel %vm6916, %v7372, %v7276
          %v7469 = vsel %vm6917, %v7372, %v7277
          %v7470 = vsel %vm6918, %v7376, %v7278
          %v7471 = vsel %vm6919, %v7376, %v7279
          %v7472 = vsel %vm6920, %v7376, %v7280
          %v7473 = vsel %vm6921, %v7376, %v7281
          %v7474 = vsel %vm6922, %v7380, %v7282
          %v7475 = vsel %vm6923, %v7380, %v7283
          %v7476 = vsel %vm6924, %v7380, %v7284
          %v7477 = vsel %vm6925, %v7380, %v7285
          %v7478 = vsel %vm6926, %v7384, %v7286
          %v7479 = vsel %vm6927, %v7384, %v7287
          %v7480 = vsel %vm6928, %v7384, %v7288
          %v7481 = vsel %vm6929, %v7384, %v7289
          %v7482 = vsel %vm6930, %v7388, %v7290
          %v7483 = vsel %vm6931, %v7388, %v7291
          %v7484 = vsel %vm6932, %v7388, %v7292
          %v7485 = vsel %vm6933, %v7388, %v7293
          %v7486 = vadd.f32 %v6670, %v7390
          %v7487 = vadd.f32 %v6671, %v7391
          %v7488 = vadd.f32 %v6672, %v7392
          %v7489 = vadd.f32 %v6673, %v7393
          %v7490 = vadd.f32 %v6674, %v7394
          %v7491 = vadd.f32 %v6675, %v7395
          %v7492 = vadd.f32 %v6676, %v7396
          %v7493 = vadd.f32 %v6677, %v7397
          %v7494 = vadd.f32 %v6678, %v7398
          %v7495 = vadd.f32 %v6679, %v7399
          %v7496 = vadd.f32 %v6680, %v7400
          %v7497 = vadd.f32 %v6681, %v7401
          %v7498 = vadd.f32 %v6682, %v7402
          %v7499 = vadd.f32 %v6683, %v7403
          %v7500 = vadd.f32 %v6684, %v7404
          %v7501 = vadd.f32 %v6685, %v7405
          %v7502 = vadd.f32 %v6686, %v7406
          %v7503 = vadd.f32 %v6687, %v7407
          %v7504 = vadd.f32 %v6688, %v7408
          %v7505 = vadd.f32 %v6689, %v7409
          %v7506 = vadd.f32 %v6690, %v7410
          %v7507 = vadd.f32 %v6691, %v7411
          %v7508 = vadd.f32 %v6692, %v7412
          %v7509 = vadd.f32 %v6693, %v7413
          %v7510 = vadd.f32 %v6694, %v7414
          %v7511 = vadd.f32 %v6695, %v7415
          %v7512 = vadd.f32 %v6696, %v7416
          %v7513 = vadd.f32 %v6697, %v7417
          %v7514 = vadd.f32 %v6698, %v7418
          %v7515 = vadd.f32 %v6699, %v7419
          %v7516 = vadd.f32 %v6700, %v7420
          %v7517 = vadd.f32 %v6701, %v7421
          %v7518 = vadd.f32 %v6702, %v7422
          %v7519 = vadd.f32 %v6703, %v7423
          %v7520 = vadd.f32 %v6704, %v7424
          %v7521 = vadd.f32 %v6705, %v7425
          %v7522 = vadd.f32 %v6706, %v7426
          %v7523 = vadd.f32 %v6707, %v7427
          %v7524 = vadd.f32 %v6708, %v7428
          %v7525 = vadd.f32 %v6709, %v7429
          %v7526 = vadd.f32 %v6710, %v7430
          %v7527 = vadd.f32 %v6711, %v7431
          %v7528 = vadd.f32 %v6712, %v7432
          %v7529 = vadd.f32 %v6713, %v7433
          %v7530 = vadd.f32 %v6714, %v7434
          %v7531 = vadd.f32 %v6715, %v7435
          %v7532 = vadd.f32 %v6716, %v7436
          %v7533 = vadd.f32 %v6717, %v7437
          %v7534 = vadd.f32 %v6718, %v7438
          %v7535 = vadd.f32 %v6719, %v7439
          %v7536 = vadd.f32 %v6720, %v7440
          %v7537 = vadd.f32 %v6721, %v7441
          %v7538 = vadd.f32 %v6722, %v7442
          %v7539 = vadd.f32 %v6723, %v7443
          %v7540 = vadd.f32 %v6724, %v7444
          %v7541 = vadd.f32 %v6725, %v7445
          %v7542 = vadd.f32 %v6726, %v7446
          %v7543 = vadd.f32 %v6727, %v7447
          %v7544 = vadd.f32 %v6728, %v7448
          %v7545 = vadd.f32 %v6729, %v7449
          %v7546 = vadd.f32 %v6730, %v7450
          %v7547 = vadd.f32 %v6731, %v7451
          %v7548 = vadd.f32 %v6732, %v7452
          %v7549 = vadd.f32 %v6733, %v7453
          %v7550 = vadd.f32 %v6734, %v7454
          %v7551 = vadd.f32 %v6735, %v7455
          %v7552 = vadd.f32 %v6736, %v7456
          %v7553 = vadd.f32 %v6737, %v7457
          %v7554 = vadd.f32 %v6738, %v7458
          %v7555 = vadd.f32 %v6739, %v7459
          %v7556 = vadd.f32 %v6740, %v7460
          %v7557 = vadd.f32 %v6741, %v7461
          %v7558 = vadd.f32 %v6742, %v7462
          %v7559 = vadd.f32 %v6743, %v7463
          %v7560 = vadd.f32 %v6744, %v7464
          %v7561 = vadd.f32 %v6745, %v7465
          %v7562 = vadd.f32 %v6746, %v7466
          %v7563 = vadd.f32 %v6747, %v7467
          %v7564 = vadd.f32 %v6748, %v7468
          %v7565 = vadd.f32 %v6749, %v7469
          %v7566 = vadd.f32 %v6750, %v7470
          %v7567 = vadd.f32 %v6751, %v7471
          %v7568 = vadd.f32 %v6752, %v7472
          %v7569 = vadd.f32 %v6753, %v7473
          %v7570 = vadd.f32 %v6754, %v7474
          %v7571 = vadd.f32 %v6755, %v7475
          %v7572 = vadd.f32 %v6756, %v7476
          %v7573 = vadd.f32 %v6757, %v7477
          %v7574 = vadd.f32 %v6758, %v7478
          %v7575 = vadd.f32 %v6759, %v7479
          %v7576 = vadd.f32 %v6760, %v7480
          %v7577 = vadd.f32 %v6761, %v7481
          %v7578 = vadd.f32 %v6762, %v7482
          %v7579 = vadd.f32 %v6763, %v7483
          %v7580 = vadd.f32 %v6764, %v7484
          %v7581 = vadd.f32 %v6765, %v7485
          %v7582 = vld [vmem:[%s333] sm:$0xff]
          %v7583 = vld [vmem:[%s333 + $0x8] sm:$0xff]
          %v7584 = vld [vmem:[%s333 + $0x10] sm:$0xff]
          %v7585 = vld [vmem:[%s333 + $0x18] sm:$0xff]
          %v7586 = vld [vmem:[%s333 + $0x20] sm:$0xff]
          %v7587 = vld [vmem:[%s333 + $0x28] sm:$0xff]
          %v7588 = vld [vmem:[%s333 + $0x30] sm:$0xff]
          %v7589 = vld [vmem:[%s333 + $0x38] sm:$0xff]
          %v7590 = vld [vmem:[%s333 + $0x40] sm:$0xff]
          %v7591 = vld [vmem:[%s333 + $0x48] sm:$0xff]
          %v7592 = vld [vmem:[%s333 + $0x50] sm:$0xff]
          %v7593 = vld [vmem:[%s333 + $0x58] sm:$0xff]
          %v7594 = vld [vmem:[%s333 + $0x60] sm:$0xff]
          %v7595 = vld [vmem:[%s333 + $0x68] sm:$0xff]
          %v7596 = vld [vmem:[%s333 + $0x70] sm:$0xff]
          %v7597 = vld [vmem:[%s333 + $0x78] sm:$0xff]
          %v7598 = vld [vmem:[%s333 + $0x80] sm:$0xff]
          %v7599 = vld [vmem:[%s333 + $0x88] sm:$0xff]
          %v7600 = vld [vmem:[%s333 + $0x90] sm:$0xff]
          %v7601 = vld [vmem:[%s333 + $0x98] sm:$0xff]
          %v7602 = vld [vmem:[%s333 + $0xa0] sm:$0xff]
          %v7603 = vld [vmem:[%s333 + $0xa8] sm:$0xff]
          %v7604 = vld [vmem:[%s333 + $0xb0] sm:$0xff]
          %v7605 = vld [vmem:[%s333 + $0xb8] sm:$0xff]
          %v7606 = vpack.c.bf16 %v7490, %v7486
          %v7607 = vpack.c.bf16 %v7491, %v7487
          %v7608 = vpack.c.bf16 %v7492, %v7488
          %v7609 = vpack.c.bf16 %v7493, %v7489
          %v7610 = vpack.c.bf16 %v7498, %v7494
          %v7611 = vpack.c.bf16 %v7499, %v7495
          %v7612 = vpack.c.bf16 %v7500, %v7496
          %v7613 = vpack.c.bf16 %v7501, %v7497
          %v7614 = vpack.c.bf16 %v7506, %v7502
          %v7615 = vpack.c.bf16 %v7507, %v7503
          %v7616 = vpack.c.bf16 %v7508, %v7504
          %v7617 = vpack.c.bf16 %v7509, %v7505
          %v7618 = vpack.c.bf16 %v7514, %v7510
          %v7619 = vpack.c.bf16 %v7515, %v7511
          %v7620 = vpack.c.bf16 %v7516, %v7512
          %v7621 = vpack.c.bf16 %v7517, %v7513
          %v7622 = vpack.c.bf16 %v7522, %v7518
          %v7623 = vpack.c.bf16 %v7523, %v7519
          %v7624 = vpack.c.bf16 %v7524, %v7520
          %v7625 = vpack.c.bf16 %v7525, %v7521
          %v7626 = vpack.c.bf16 %v7530, %v7526
          %v7627 = vpack.c.bf16 %v7531, %v7527
          %v7628 = vpack.c.bf16 %v7532, %v7528
          %v7629 = vpack.c.bf16 %v7533, %v7529
          %v7630 = vpack.c.bf16 %v7538, %v7534
          %v7631 = vpack.c.bf16 %v7539, %v7535
          %v7632 = vpack.c.bf16 %v7540, %v7536
          %v7633 = vpack.c.bf16 %v7541, %v7537
          %v7634 = vpack.c.bf16 %v7546, %v7542
          %v7635 = vpack.c.bf16 %v7547, %v7543
          %v7636 = vpack.c.bf16 %v7548, %v7544
          %v7637 = vpack.c.bf16 %v7549, %v7545
          %v7638 = vpack.c.bf16 %v7554, %v7550
          %v7639 = vpack.c.bf16 %v7555, %v7551
          %v7640 = vpack.c.bf16 %v7556, %v7552
          %v7641 = vpack.c.bf16 %v7557, %v7553
          %v7642 = vpack.c.bf16 %v7562, %v7558
          %v7643 = vpack.c.bf16 %v7563, %v7559
          %v7644 = vpack.c.bf16 %v7564, %v7560
          %v7645 = vpack.c.bf16 %v7565, %v7561
          %v7646 = vpack.c.bf16 %v7570, %v7566
          %v7647 = vpack.c.bf16 %v7571, %v7567
          %v7648 = vpack.c.bf16 %v7572, %v7568
          %v7649 = vpack.c.bf16 %v7573, %v7569
          %v7650 = vpack.c.bf16 %v7578, %v7574
          %v7651 = vpack.c.bf16 %v7579, %v7575
          %v7652 = vpack.c.bf16 %v7580, %v7576
          %v7653 = vpack.c.bf16 %v7581, %v7577
          %v7654 = vld [vmem:[%s353] sm:$0xf]
          %v7655 = vld [vmem:[%s353 + $0x4] sm:$0xf]
          %v7656 = vld [vmem:[%s353 + $0x8] sm:$0xf]
          %v7657 = vld [vmem:[%s353 + $0xc] sm:$0xf]
          %v7658 = vld [vmem:[%s353 + $0x10] sm:$0xf]
          %v7659 = vld [vmem:[%s353 + $0x14] sm:$0xf]
          %v7660 = vld [vmem:[%s353 + $0x18] sm:$0xf]
          %v7661 = vld [vmem:[%s353 + $0x1c] sm:$0xf]
          %v7662 = vld [vmem:[%s353 + $0x20] sm:$0xf]
          %v7663 = vld [vmem:[%s353 + $0x24] sm:$0xf]
          %v7664 = vld [vmem:[%s353 + $0x28] sm:$0xf]
          %v7665 = vld [vmem:[%s353 + $0x2c] sm:$0xf]
          %v7666 = vld [vmem:[%s353 + $0x30] sm:$0xf]
          %v7667 = vld [vmem:[%s353 + $0x34] sm:$0xf]
          %v7668 = vld [vmem:[%s353 + $0x38] sm:$0xf]
          %v7669 = vld [vmem:[%s353 + $0x3c] sm:$0xf]
          %v7670 = vld [vmem:[%s353 + $0x40] sm:$0xf]
          %v7671 = vld [vmem:[%s353 + $0x44] sm:$0xf]
          %v7672 = vld [vmem:[%s353 + $0x48] sm:$0xf]
          %v7673 = vld [vmem:[%s353 + $0x4c] sm:$0xf]
          %v7674 = vld [vmem:[%s353 + $0x50] sm:$0xf]
          %v7675 = vld [vmem:[%s353 + $0x54] sm:$0xf]
          %v7676 = vld [vmem:[%s353 + $0x58] sm:$0xf]
          %v7677 = vld [vmem:[%s353 + $0x5c] sm:$0xf]
          %v7678 = vld [vmem:[%s353 + $0x60] sm:$0xf]
          %v7679 = vld [vmem:[%s353 + $0x64] sm:$0xf]
          %v7680 = vld [vmem:[%s353 + $0x68] sm:$0xf]
          %v7681 = vld [vmem:[%s353 + $0x6c] sm:$0xf]
          %v7682 = vld [vmem:[%s353 + $0x70] sm:$0xf]
          %v7683 = vld [vmem:[%s353 + $0x74] sm:$0xf]
          %v7684 = vld [vmem:[%s353 + $0x78] sm:$0xf]
          %v7685 = vld [vmem:[%s353 + $0x7c] sm:$0xf]
          %v7686 = vld [vmem:[%s353 + $0x80] sm:$0xf]
          %v7687 = vld [vmem:[%s353 + $0x84] sm:$0xf]
          %v7688 = vld [vmem:[%s353 + $0x88] sm:$0xf]
          %v7689 = vld [vmem:[%s353 + $0x8c] sm:$0xf]
          %v7690 = vld [vmem:[%s353 + $0x90] sm:$0xf]
          %v7691 = vld [vmem:[%s353 + $0x94] sm:$0xf]
          %v7692 = vld [vmem:[%s353 + $0x98] sm:$0xf]
          %v7693 = vld [vmem:[%s353 + $0x9c] sm:$0xf]
          %v7694 = vld [vmem:[%s353 + $0xa0] sm:$0xf]
          %v7695 = vld [vmem:[%s353 + $0xa4] sm:$0xf]
          %v7696 = vld [vmem:[%s353 + $0xa8] sm:$0xf]
          %v7697 = vld [vmem:[%s353 + $0xac] sm:$0xf]
          %v7698 = vld [vmem:[%s353 + $0xb0] sm:$0xf]
          %v7699 = vld [vmem:[%s353 + $0xb4] sm:$0xf]
          %v7700 = vld [vmem:[%s353 + $0xb8] sm:$0xf]
          %v7701 = vld [vmem:[%s353 + $0xbc] sm:$0xf]
          %v7702 = vld [vmem:[%s353 + $0xc0] sm:$0xf]
          %v7703 = vld [vmem:[%s353 + $0xc4] sm:$0xf]
          %v7704 = vld [vmem:[%s353 + $0xc8] sm:$0xf]
          %v7705 = vld [vmem:[%s353 + $0xcc] sm:$0xf]
          %v7706 = vld [vmem:[%s353 + $0xd0] sm:$0xf]
          %v7707 = vld [vmem:[%s353 + $0xd4] sm:$0xf]
          %v7708 = vld [vmem:[%s353 + $0xd8] sm:$0xf]
          %v7709 = vld [vmem:[%s353 + $0xdc] sm:$0xf]
          %v7710 = vld [vmem:[%s353 + $0xe0] sm:$0xf]
          %v7711 = vld [vmem:[%s353 + $0xe4] sm:$0xf]
          %v7712 = vld [vmem:[%s353 + $0xe8] sm:$0xf]
          %v7713 = vld [vmem:[%s353 + $0xec] sm:$0xf]
          %v7714 = vld [vmem:[%s353 + $0xf0] sm:$0xf]
          %v7715 = vld [vmem:[%s353 + $0xf4] sm:$0xf]
          %v7716 = vld [vmem:[%s353 + $0xf8] sm:$0xf]
          %v7717 = vld [vmem:[%s353 + $0xfc] sm:$0xf]
          %v7782 = vunpack.c.l.b16 %v7654
          %v7783 = vunpack.c.l.b16 %v7655
          %v7784 = vunpack.c.l.b16 %v7656
          %v7785 = vunpack.c.l.b16 %v7657
          %v7786 = vunpack.c.l.b16 %v7658
          %v7787 = vunpack.c.l.b16 %v7659
          %v7788 = vunpack.c.l.b16 %v7660
          %v7789 = vunpack.c.l.b16 %v7661
          %v7790 = vunpack.c.l.b16 %v7662
          %v7791 = vunpack.c.l.b16 %v7663
          %v7792 = vunpack.c.l.b16 %v7664
          %v7793 = vunpack.c.l.b16 %v7665
          %v7794 = vunpack.c.l.b16 %v7666
          %v7795 = vunpack.c.l.b16 %v7667
          %v7796 = vunpack.c.l.b16 %v7668
          %v7797 = vunpack.c.l.b16 %v7669
          %v7798 = vunpack.c.l.b16 %v7670
          %v7799 = vunpack.c.l.b16 %v7671
          %v7800 = vunpack.c.l.b16 %v7672
          %v7801 = vunpack.c.l.b16 %v7673
          %v7802 = vunpack.c.l.b16 %v7674
          %v7803 = vunpack.c.l.b16 %v7675
          %v7804 = vunpack.c.l.b16 %v7676
          %v7805 = vunpack.c.l.b16 %v7677
          %v7806 = vunpack.c.l.b16 %v7678
          %v7807 = vunpack.c.l.b16 %v7679
          %v7808 = vunpack.c.l.b16 %v7680
          %v7809 = vunpack.c.l.b16 %v7681
          %v7810 = vunpack.c.l.b16 %v7682
          %v7811 = vunpack.c.l.b16 %v7683
          %v7812 = vunpack.c.l.b16 %v7684
          %v7813 = vunpack.c.l.b16 %v7685
          %v7814 = vunpack.c.l.b16 %v7686
          %v7815 = vunpack.c.l.b16 %v7687
          %v7816 = vunpack.c.l.b16 %v7688
          %v7817 = vunpack.c.l.b16 %v7689
          %v7818 = vunpack.c.l.b16 %v7690
          %v7819 = vunpack.c.l.b16 %v7691
          %v7820 = vunpack.c.l.b16 %v7692
          %v7821 = vunpack.c.l.b16 %v7693
          %v7822 = vunpack.c.l.b16 %v7694
          %v7823 = vunpack.c.l.b16 %v7695
          %v7824 = vunpack.c.l.b16 %v7696
          %v7825 = vunpack.c.l.b16 %v7697
          %v7826 = vunpack.c.l.b16 %v7698
          %v7827 = vunpack.c.l.b16 %v7699
          %v7828 = vunpack.c.l.b16 %v7700
          %v7829 = vunpack.c.l.b16 %v7701
          %v7830 = vunpack.c.l.b16 %v7702
          %v7831 = vunpack.c.l.b16 %v7703
          %v7832 = vunpack.c.l.b16 %v7704
          %v7833 = vunpack.c.l.b16 %v7705
          %v7834 = vunpack.c.l.b16 %v7706
          %v7835 = vunpack.c.l.b16 %v7707
          %v7836 = vunpack.c.l.b16 %v7708
          %v7837 = vunpack.c.l.b16 %v7709
          %v7838 = vunpack.c.l.b16 %v7710
          %v7839 = vunpack.c.l.b16 %v7711
          %v7840 = vunpack.c.l.b16 %v7712
          %v7841 = vunpack.c.l.b16 %v7713
          %v7842 = vunpack.c.l.b16 %v7714
          %v7843 = vunpack.c.l.b16 %v7715
          %v7844 = vunpack.c.l.b16 %v7716
          %v7845 = vunpack.c.l.b16 %v7717
          %v7846 = vpack.c.b16 %v7783, %v7782
          %v7847 = vpack.c.b16 %v7785, %v7784
          %v7848 = vpack.c.b16 %v7787, %v7786
          %v7849 = vpack.c.b16 %v7789, %v7788
          %v7850 = vpack.c.b16 %v7791, %v7790
          %v7851 = vpack.c.b16 %v7793, %v7792
          %v7852 = vpack.c.b16 %v7795, %v7794
          %v7853 = vpack.c.b16 %v7797, %v7796
          %v7854 = vpack.c.b16 %v7799, %v7798
          %v7855 = vpack.c.b16 %v7801, %v7800
          %v7856 = vpack.c.b16 %v7803, %v7802
          %v7857 = vpack.c.b16 %v7805, %v7804
          %v7858 = vpack.c.b16 %v7807, %v7806
          %v7859 = vpack.c.b16 %v7809, %v7808
          %v7860 = vpack.c.b16 %v7811, %v7810
          %v7861 = vpack.c.b16 %v7813, %v7812
          %v7862 = vpack.c.b16 %v7815, %v7814
          %v7863 = vpack.c.b16 %v7817, %v7816
          %v7864 = vpack.c.b16 %v7819, %v7818
          %v7865 = vpack.c.b16 %v7821, %v7820
          %v7866 = vpack.c.b16 %v7823, %v7822
          %v7867 = vpack.c.b16 %v7825, %v7824
          %v7868 = vpack.c.b16 %v7827, %v7826
          %v7869 = vpack.c.b16 %v7829, %v7828
          %v7870 = vpack.c.b16 %v7831, %v7830
          %v7871 = vpack.c.b16 %v7833, %v7832
          %v7872 = vpack.c.b16 %v7835, %v7834
          %v7873 = vpack.c.b16 %v7837, %v7836
          %v7874 = vpack.c.b16 %v7839, %v7838
          %v7875 = vpack.c.b16 %v7841, %v7840
          %v7876 = vpack.c.b16 %v7843, %v7842
          %v7877 = vpack.c.b16 %v7845, %v7844
          %7910 = vmatprep.subr.bf16.mxu0 0
          %7911 = vmatpush1.bf16.msra.mxu0 %v7846
          %7912 = vmatprep.subr.bf16.mxu0 0
          %7913 = vmatpush1.bf16.msra.mxu0 %v7847
          %7914 = vmatprep.subr.bf16.mxu0 0
          %7915 = vmatpush1.bf16.msra.mxu0 %v7848
          %7916 = vmatprep.subr.bf16.mxu0 0
          %7917 = vmatpush1.bf16.msra.mxu0 %v7849
          %7918 = vmatprep.subr.bf16.mxu0 0
          %7919 = vmatpush1.bf16.msra.mxu0 %v7850
          %7920 = vmatprep.subr.bf16.mxu0 0
          %7921 = vmatpush1.bf16.msra.mxu0 %v7851
          %7922 = vmatprep.subr.bf16.mxu0 0
          %7923 = vmatpush1.bf16.msra.mxu0 %v7852
          %7924 = vmatprep.subr.bf16.mxu0 0
          %7925 = vmatpush1.bf16.msra.mxu0 %v7853
          %7926 = vmatprep.subr.bf16.mxu0 0
          %7927 = vmatpush1.bf16.msra.mxu0 %v7854
          %7928 = vmatprep.subr.bf16.mxu0 0
          %7929 = vmatpush1.bf16.msra.mxu0 %v7855
          %7930 = vmatprep.subr.bf16.mxu0 0
          %7931 = vmatpush1.bf16.msra.mxu0 %v7856
          %7932 = vmatprep.subr.bf16.mxu0 0
          %7933 = vmatpush1.bf16.msra.mxu0 %v7857
          %7934 = vmatprep.subr.bf16.mxu0 0
          %7935 = vmatpush1.bf16.msra.mxu0 %v7858
          %7936 = vmatprep.subr.bf16.mxu0 0
          %7937 = vmatpush1.bf16.msra.mxu0 %v7859
          %7938 = vmatprep.subr.bf16.mxu0 0
          %7939 = vmatpush1.bf16.msra.mxu0 %v7860
          %7940 = vmatprep.subr.bf16.mxu0 0
          %7941 = vmatpush1.bf16.msra.mxu0 %v7861
          %7942 = vmatprep.mubr.bf16.mxu0 %v7607
          %7943 = vmatmul.mubr.bf16.gmra.mrb[0].mxu0 %v7606
          %v7944 = vpop.f32.mrb[0].mxu0
          %v7945 = vadd.f32 0.0, %v7944
          %v7946 = vpop.f32.mrb[0].mxu0
          %v7947 = vpop.f32.mrb[0].mxu0
          %v7948 = vadd.f32 0.0, %v7947
          %v7949 = vpop.f32.mrb[0].mxu0
          %7950 = vmatprep.mubr.bf16.mxu0 %v7611
          %7951 = vmatmul.mubr.bf16.gmra.mrb[0].mxu0 %v7610
          %v7952 = vpop.f32.mrb[0].mxu0
          %v7953 = vadd.f32 0.0, %v7952
          %v7954 = vpop.f32.mrb[0].mxu0
          %v7955 = vpop.f32.mrb[0].mxu0
          %v7956 = vadd.f32 0.0, %v7955
          %v7957 = vpop.f32.mrb[0].mxu0
          %7958 = vmatprep.mubr.bf16.mxu0 %v7615
          %7959 = vmatmul.mubr.bf16.gmra.mrb[0].mxu0 %v7614
          %v7960 = vpop.f32.mrb[0].mxu0
          %v7961 = vadd.f32 0.0, %v7960
          %v7962 = vpop.f32.mrb[0].mxu0
          %v7963 = vpop.f32.mrb[0].mxu0
          %v7964 = vadd.f32 0.0, %v7963
          %v7965 = vpop.f32.mrb[0].mxu0
          %7966 = vmatprep.mubr.bf16.mxu0 %v7619
          %7967 = vmatmul.mubr.bf16.gmra.mrb[0].mxu0 %v7618
          %v7968 = vpop.f32.mrb[0].mxu0
          %v7969 = vadd.f32 0.0, %v7968
          %v7970 = vpop.f32.mrb[0].mxu0
          %v7971 = vpop.f32.mrb[0].mxu0
          %v7972 = vadd.f32 0.0, %v7971
          %v7973 = vpop.f32.mrb[0].mxu0
          %7974 = vmatprep.mubr.bf16.mxu0 %v7623
          %7975 = vmatmul.mubr.bf16.gmra.mrb[0].mxu0 %v7622
          %v7976 = vpop.f32.mrb[0].mxu0
          %v7977 = vadd.f32 0.0, %v7976
          %v7978 = vpop.f32.mrb[0].mxu0
          %v7979 = vpop.f32.mrb[0].mxu0
          %v7980 = vadd.f32 0.0, %v7979
          %v7981 = vpop.f32.mrb[0].mxu0
          %7982 = vmatprep.mubr.bf16.mxu0 %v7627
          %7983 = vmatmul.mubr.bf16.gmra.mrb[0].mxu0 %v7626
          %v7984 = vpop.f32.mrb[0].mxu0
          %v7985 = vadd.f32 0.0, %v7984
          %v7986 = vpop.f32.mrb[0].mxu0
          %v7987 = vpop.f32.mrb[0].mxu0
          %v7988 = vadd.f32 0.0, %v7987
          %v7989 = vpop.f32.mrb[0].mxu0
          %7990 = vmatprep.mubr.bf16.mxu0 %v7631
          %7991 = vmatmul.mubr.bf16.gmra.mrb[0].mxu0 %v7630
          %v7992 = vpop.f32.mrb[0].mxu0
          %v7993 = vadd.f32 0.0, %v7992
          %v7994 = vpop.f32.mrb[0].mxu0
          %v7995 = vpop.f32.mrb[0].mxu0
          %v7996 = vadd.f32 0.0, %v7995
          %v7997 = vpop.f32.mrb[0].mxu0
          %7998 = vmatprep.mubr.bf16.mxu0 %v7635
          %7999 = vmatmul.mubr.bf16.gmra.mrb[0].mxu0 %v7634
          %v8000 = vpop.f32.mrb[0].mxu0
          %v8001 = vadd.f32 0.0, %v8000
          %v8002 = vpop.f32.mrb[0].mxu0
          %v8003 = vpop.f32.mrb[0].mxu0
          %v8004 = vadd.f32 0.0, %v8003
          %v8005 = vpop.f32.mrb[0].mxu0
          %8006 = vmatprep.mubr.bf16.mxu0 %v7639
          %8007 = vmatmul.mubr.bf16.gmra.mrb[0].mxu0 %v7638
          %v8008 = vpop.f32.mrb[0].mxu0
          %v8009 = vadd.f32 0.0, %v8008
          %v8010 = vpop.f32.mrb[0].mxu0
          %v8011 = vpop.f32.mrb[0].mxu0
          %v8012 = vadd.f32 0.0, %v8011
          %v8013 = vpop.f32.mrb[0].mxu0
          %8014 = vmatprep.mubr.bf16.mxu0 %v7643
          %8015 = vmatmul.mubr.bf16.gmra.mrb[0].mxu0 %v7642
          %v8016 = vpop.f32.mrb[0].mxu0
          %v8017 = vadd.f32 0.0, %v8016
          %v8018 = vpop.f32.mrb[0].mxu0
          %v8019 = vpop.f32.mrb[0].mxu0
          %v8020 = vadd.f32 0.0, %v8019
          %v8021 = vpop.f32.mrb[0].mxu0
          %8022 = vmatprep.mubr.bf16.mxu0 %v7647
          %8023 = vmatmul.mubr.bf16.gmra.mrb[0].mxu0 %v7646
          %v8024 = vpop.f32.mrb[0].mxu0
          %v8025 = vadd.f32 0.0, %v8024
          %v8026 = vpop.f32.mrb[0].mxu0
          %v8027 = vpop.f32.mrb[0].mxu0
          %v8028 = vadd.f32 0.0, %v8027
          %v8029 = vpop.f32.mrb[0].mxu0
          %8030 = vmatprep.mubr.bf16.mxu0 %v7651
          %8031 = vmatmul.mubr.bf16.gmra.mrb[0].mxu0 %v7650
          %v8032 = vpop.f32.mrb[0].mxu0
          %v8033 = vadd.f32 0.0, %v8032
          %v8034 = vpop.f32.mrb[0].mxu0
          %v8035 = vpop.f32.mrb[0].mxu0
          %v8036 = vadd.f32 0.0, %v8035
          %v8037 = vpop.f32.mrb[0].mxu0
          %8038 = vdwg.mxu0
          %8039 = vmatprep.subr.bf16.mxu0 0
          %8040 = vmatpush1.bf16.msra.mxu0 %v7862
          %8041 = vmatprep.subr.bf16.mxu0 0
          %8042 = vmatpush1.bf16.msra.mxu0 %v7863
          %8043 = vmatprep.subr.bf16.mxu0 0
          %8044 = vmatpush1.bf16.msra.mxu0 %v7864
          %8045 = vmatprep.subr.bf16.mxu0 0
          %8046 = vmatpush1.bf16.msra.mxu0 %v7865
          %8047 = vmatprep.subr.bf16.mxu0 0
          %8048 = vmatpush1.bf16.msra.mxu0 %v7866
          %8049 = vmatprep.subr.bf16.mxu0 0
          %8050 = vmatpush1.bf16.msra.mxu0 %v7867
          %8051 = vmatprep.subr.bf16.mxu0 0
          %8052 = vmatpush1.bf16.msra.mxu0 %v7868
          %8053 = vmatprep.subr.bf16.mxu0 0
          %8054 = vmatpush1.bf16.msra.mxu0 %v7869
          %8055 = vmatprep.subr.bf16.mxu0 0
          %8056 = vmatpush1.bf16.msra.mxu0 %v7870
          %8057 = vmatprep.subr.bf16.mxu0 0
          %8058 = vmatpush1.bf16.msra.mxu0 %v7871
          %8059 = vmatprep.subr.bf16.mxu0 0
          %8060 = vmatpush1.bf16.msra.mxu0 %v7872
          %8061 = vmatprep.subr.bf16.mxu0 0
          %8062 = vmatpush1.bf16.msra.mxu0 %v7873
          %8063 = vmatprep.subr.bf16.mxu0 0
          %8064 = vmatpush1.bf16.msra.mxu0 %v7874
          %8065 = vmatprep.subr.bf16.mxu0 0
          %8066 = vmatpush1.bf16.msra.mxu0 %v7875
          %8067 = vmatprep.subr.bf16.mxu0 0
          %8068 = vmatpush1.bf16.msra.mxu0 %v7876
          %8069 = vmatprep.subr.bf16.mxu0 0
          %8070 = vmatpush1.bf16.msra.mxu0 %v7877
          %8071 = vmatprep.mubr.bf16.mxu0 %v7609
          %8072 = vmatmul.mubr.bf16.gmra.mrb[0].mxu0 %v7608
          %v8073 = vpop.f32.mrb[0].mxu0
          %v8074 = vadd.f32 %v7945, %v8073
          %v8075 = vpop.f32.mrb[0].mxu0
          %v8076 = vpop.f32.mrb[0].mxu0
          %v8077 = vadd.f32 %v7948, %v8076
          %v8078 = vpop.f32.mrb[0].mxu0
          %8079 = vmatprep.mubr.bf16.mxu0 %v7613
          %8080 = vmatmul.mubr.bf16.gmra.mrb[0].mxu0 %v7612
          %v8081 = vpop.f32.mrb[0].mxu0
          %v8082 = vadd.f32 %v7953, %v8081
          %v8083 = vpop.f32.mrb[0].mxu0
          %v8084 = vpop.f32.mrb[0].mxu0
          %v8085 = vadd.f32 %v7956, %v8084
          %v8086 = vpop.f32.mrb[0].mxu0
          %8087 = vmatprep.mubr.bf16.mxu0 %v7617
          %8088 = vmatmul.mubr.bf16.gmra.mrb[0].mxu0 %v7616
          %v8089 = vpop.f32.mrb[0].mxu0
          %v8090 = vadd.f32 %v7961, %v8089
          %v8091 = vpop.f32.mrb[0].mxu0
          %v8092 = vpop.f32.mrb[0].mxu0
          %v8093 = vadd.f32 %v7964, %v8092
          %v8094 = vpop.f32.mrb[0].mxu0
          %8095 = vmatprep.mubr.bf16.mxu0 %v7621
          %8096 = vmatmul.mubr.bf16.gmra.mrb[0].mxu0 %v7620
          %v8097 = vpop.f32.mrb[0].mxu0
          %v8098 = vadd.f32 %v7969, %v8097
          %v8099 = vpop.f32.mrb[0].mxu0
          %v8100 = vpop.f32.mrb[0].mxu0
          %v8101 = vadd.f32 %v7972, %v8100
          %v8102 = vpop.f32.mrb[0].mxu0
          %8103 = vmatprep.mubr.bf16.mxu0 %v7625
          %8104 = vmatmul.mubr.bf16.gmra.mrb[0].mxu0 %v7624
          %v8105 = vpop.f32.mrb[0].mxu0
          %v8106 = vadd.f32 %v7977, %v8105
          %v8107 = vpop.f32.mrb[0].mxu0
          %v8108 = vpop.f32.mrb[0].mxu0
          %v8109 = vadd.f32 %v7980, %v8108
          %v8110 = vpop.f32.mrb[0].mxu0
          %8111 = vmatprep.mubr.bf16.mxu0 %v7629
          %8112 = vmatmul.mubr.bf16.gmra.mrb[0].mxu0 %v7628
          %v8113 = vpop.f32.mrb[0].mxu0
          %v8114 = vadd.f32 %v7985, %v8113
          %v8115 = vpop.f32.mrb[0].mxu0
          %v8116 = vpop.f32.mrb[0].mxu0
          %v8117 = vadd.f32 %v7988, %v8116
          %v8118 = vpop.f32.mrb[0].mxu0
          %8119 = vmatprep.mubr.bf16.mxu0 %v7633
          %8120 = vmatmul.mubr.bf16.gmra.mrb[0].mxu0 %v7632
          %v8121 = vpop.f32.mrb[0].mxu0
          %v8122 = vadd.f32 %v7993, %v8121
          %v8123 = vpop.f32.mrb[0].mxu0
          %v8124 = vpop.f32.mrb[0].mxu0
          %v8125 = vadd.f32 %v7996, %v8124
          %v8126 = vpop.f32.mrb[0].mxu0
          %8127 = vmatprep.mubr.bf16.mxu0 %v7637
          %8128 = vmatmul.mubr.bf16.gmra.mrb[0].mxu0 %v7636
          %v8129 = vpop.f32.mrb[0].mxu0
          %v8130 = vadd.f32 %v8001, %v8129
          %v8131 = vpop.f32.mrb[0].mxu0
          %v8132 = vpop.f32.mrb[0].mxu0
          %v8133 = vadd.f32 %v8004, %v8132
          %v8134 = vpop.f32.mrb[0].mxu0
          %8135 = vmatprep.mubr.bf16.mxu0 %v7641
          %8136 = vmatmul.mubr.bf16.gmra.mrb[0].mxu0 %v7640
          %v8137 = vpop.f32.mrb[0].mxu0
          %v8138 = vadd.f32 %v8009, %v8137
          %v8139 = vpop.f32.mrb[0].mxu0
          %v8140 = vpop.f32.mrb[0].mxu0
          %v8141 = vadd.f32 %v8012, %v8140
          %v8142 = vpop.f32.mrb[0].mxu0
          %8143 = vmatprep.mubr.bf16.mxu0 %v7645
          %8144 = vmatmul.mubr.bf16.gmra.mrb[0].mxu0 %v7644
          %v8145 = vpop.f32.mrb[0].mxu0
          %v8146 = vadd.f32 %v8017, %v8145
          %v8147 = vpop.f32.mrb[0].mxu0
          %v8148 = vpop.f32.mrb[0].mxu0
          %v8149 = vadd.f32 %v8020, %v8148
          %v8150 = vpop.f32.mrb[0].mxu0
          %8151 = vmatprep.mubr.bf16.mxu0 %v7649
          %8152 = vmatmul.mubr.bf16.gmra.mrb[0].mxu0 %v7648
          %v8153 = vpop.f32.mrb[0].mxu0
          %v8154 = vadd.f32 %v8025, %v8153
          %v8155 = vpop.f32.mrb[0].mxu0
          %v8156 = vpop.f32.mrb[0].mxu0
          %v8157 = vadd.f32 %v8028, %v8156
          %v8158 = vpop.f32.mrb[0].mxu0
          %8159 = vmatprep.mubr.bf16.mxu0 %v7653
          %8160 = vmatmul.mubr.bf16.gmra.mrb[0].mxu0 %v7652
          %v8161 = vpop.f32.mrb[0].mxu0
          %v8162 = vadd.f32 %v8033, %v8161
          %v8163 = vpop.f32.mrb[0].mxu0
          %v8164 = vpop.f32.mrb[0].mxu0
          %v8165 = vadd.f32 %v8036, %v8164
          %v8166 = vpop.f32.mrb[0].mxu0
          %8167 = vdwg.mxu0
          %v8168 = vadd.f32 %v7582, %v8074
          %v8169 = vadd.f32 %v7583, %v8077
          %v8170 = vadd.f32 %v7584, %v8082
          %v8171 = vadd.f32 %v7585, %v8085
          %v8172 = vadd.f32 %v7586, %v8090
          %v8173 = vadd.f32 %v7587, %v8093
          %v8174 = vadd.f32 %v7588, %v8098
          %v8175 = vadd.f32 %v7589, %v8101
          %v8176 = vadd.f32 %v7590, %v8106
          %v8177 = vadd.f32 %v7591, %v8109
          %v8178 = vadd.f32 %v7592, %v8114
          %v8179 = vadd.f32 %v7593, %v8117
          %v8180 = vadd.f32 %v7594, %v8122
          %v8181 = vadd.f32 %v7595, %v8125
          %v8182 = vadd.f32 %v7596, %v8130
          %v8183 = vadd.f32 %v7597, %v8133
          %v8184 = vadd.f32 %v7598, %v8138
          %v8185 = vadd.f32 %v7599, %v8141
          %v8186 = vadd.f32 %v7600, %v8146
          %v8187 = vadd.f32 %v7601, %v8149
          %v8188 = vadd.f32 %v7602, %v8154
          %v8189 = vadd.f32 %v7603, %v8157
          %v8190 = vadd.f32 %v7604, %v8162
          %v8191 = vadd.f32 %v7605, %v8165
          %8192 = vst [vmem:[%s333] sm:$0xff] %v8168
          %8193 = vst [vmem:[%s333 + $0x8] sm:$0xff] %v8169
          %8194 = vst [vmem:[%s333 + $0x10] sm:$0xff] %v8170
          %8195 = vst [vmem:[%s333 + $0x18] sm:$0xff] %v8171
          %8196 = vst [vmem:[%s333 + $0x20] sm:$0xff] %v8172
          %8197 = vst [vmem:[%s333 + $0x28] sm:$0xff] %v8173
          %8198 = vst [vmem:[%s333 + $0x30] sm:$0xff] %v8174
          %8199 = vst [vmem:[%s333 + $0x38] sm:$0xff] %v8175
          %8200 = vst [vmem:[%s333 + $0x40] sm:$0xff] %v8176
          %8201 = vst [vmem:[%s333 + $0x48] sm:$0xff] %v8177
          %8202 = vst [vmem:[%s333 + $0x50] sm:$0xff] %v8178
          %8203 = vst [vmem:[%s333 + $0x58] sm:$0xff] %v8179
          %8204 = vst [vmem:[%s333 + $0x60] sm:$0xff] %v8180
          %8205 = vst [vmem:[%s333 + $0x68] sm:$0xff] %v8181
          %8206 = vst [vmem:[%s333 + $0x70] sm:$0xff] %v8182
          %8207 = vst [vmem:[%s333 + $0x78] sm:$0xff] %v8183
          %8208 = vst [vmem:[%s333 + $0x80] sm:$0xff] %v8184
          %8209 = vst [vmem:[%s333 + $0x88] sm:$0xff] %v8185
          %8210 = vst [vmem:[%s333 + $0x90] sm:$0xff] %v8186
          %8211 = vst [vmem:[%s333 + $0x98] sm:$0xff] %v8187
          %8212 = vst [vmem:[%s333 + $0xa0] sm:$0xff] %v8188
          %8213 = vst [vmem:[%s333 + $0xa8] sm:$0xff] %v8189
          %8214 = vst [vmem:[%s333 + $0xb0] sm:$0xff] %v8190
          %8215 = vst [vmem:[%s333 + $0xb8] sm:$0xff] %v8191
        $region52: #{tpu_custom_call.1} parent=39 // pred_fallthru
          _
        // Predicated region
        $region53: #{tpu_custom_call.1} parent=39 // pred_check
          %p8216 = pneg %p365
        $region54: #{tpu_custom_call.1} parent=39 // pred_check_branch
          %8218 = sbr.rel (%p8216) target = $region56
        $region55: #{tpu_custom_call.1} parent=39 // pred_region
          %v8219 = vld [vmem:[%s333] sm:$0xff]
          %v8220 = vld [vmem:[%s333 + $0x8] sm:$0xff]
          %v8221 = vld [vmem:[%s333 + $0x10] sm:$0xff]
          %v8222 = vld [vmem:[%s333 + $0x18] sm:$0xff]
          %v8223 = vld [vmem:[%s333 + $0x20] sm:$0xff]
          %v8224 = vld [vmem:[%s333 + $0x28] sm:$0xff]
          %v8225 = vld [vmem:[%s333 + $0x30] sm:$0xff]
          %v8226 = vld [vmem:[%s333 + $0x38] sm:$0xff]
          %v8227 = vld [vmem:[%s333 + $0x40] sm:$0xff]
          %v8228 = vld [vmem:[%s333 + $0x48] sm:$0xff]
          %v8229 = vld [vmem:[%s333 + $0x50] sm:$0xff]
          %v8230 = vld [vmem:[%s333 + $0x58] sm:$0xff]
          %v8231 = vld [vmem:[%s333 + $0x60] sm:$0xff]
          %v8232 = vld [vmem:[%s333 + $0x68] sm:$0xff]
          %v8233 = vld [vmem:[%s333 + $0x70] sm:$0xff]
          %v8234 = vld [vmem:[%s333 + $0x78] sm:$0xff]
          %v8235 = vld [vmem:[%s333 + $0x80] sm:$0xff]
          %v8236 = vld [vmem:[%s333 + $0x88] sm:$0xff]
          %v8237 = vld [vmem:[%s333 + $0x90] sm:$0xff]
          %v8238 = vld [vmem:[%s333 + $0x98] sm:$0xff]
          %v8239 = vld [vmem:[%s333 + $0xa0] sm:$0xff]
          %v8240 = vld [vmem:[%s333 + $0xa8] sm:$0xff]
          %v8241 = vld [vmem:[%s333 + $0xb0] sm:$0xff]
          %v8242 = vld [vmem:[%s333 + $0xb8] sm:$0xff]
          %v8243 = vmax.f32 %v8219, 0.0
          %v8244 = vmax.f32 %v8220, 0.0
          %v8245 = vmax.f32 %v8221, 0.0
          %v8246 = vmax.f32 %v8222, 0.0
          %v8247 = vmax.f32 %v8223, 0.0
          %v8248 = vmax.f32 %v8224, 0.0
          %v8249 = vmax.f32 %v8225, 0.0
          %v8250 = vmax.f32 %v8226, 0.0
          %v8251 = vmax.f32 %v8227, 0.0
          %v8252 = vmax.f32 %v8228, 0.0
          %v8253 = vmax.f32 %v8229, 0.0
          %v8254 = vmax.f32 %v8230, 0.0
          %v8255 = vmax.f32 %v8231, 0.0
          %v8256 = vmax.f32 %v8232, 0.0
          %v8257 = vmax.f32 %v8233, 0.0
          %v8258 = vmax.f32 %v8234, 0.0
          %v8259 = vmax.f32 %v8235, 0.0
          %v8260 = vmax.f32 %v8236, 0.0
          %v8261 = vmax.f32 %v8237, 0.0
          %v8262 = vmax.f32 %v8238, 0.0
          %v8263 = vmax.f32 %v8239, 0.0
          %v8264 = vmax.f32 %v8240, 0.0
          %v8265 = vmax.f32 %v8241, 0.0
          %v8266 = vmax.f32 %v8242, 0.0
          %8267 = vst [vmem:[%s333] sm:$0xff] %v8243
          %8268 = vst [vmem:[%s333 + $0x8] sm:$0xff] %v8244
          %8269 = vst [vmem:[%s333 + $0x10] sm:$0xff] %v8245
          %8270 = vst [vmem:[%s333 + $0x18] sm:$0xff] %v8246
          %8271 = vst [vmem:[%s333 + $0x20] sm:$0xff] %v8247
          %8272 = vst [vmem:[%s333 + $0x28] sm:$0xff] %v8248
          %8273 = vst [vmem:[%s333 + $0x30] sm:$0xff] %v8249
          %8274 = vst [vmem:[%s333 + $0x38] sm:$0xff] %v8250
          %8275 = vst [vmem:[%s333 + $0x40] sm:$0xff] %v8251
          %8276 = vst [vmem:[%s333 + $0x48] sm:$0xff] %v8252
          %8277 = vst [vmem:[%s333 + $0x50] sm:$0xff] %v8253
          %8278 = vst [vmem:[%s333 + $0x58] sm:$0xff] %v8254
          %8279 = vst [vmem:[%s333 + $0x60] sm:$0xff] %v8255
          %8280 = vst [vmem:[%s333 + $0x68] sm:$0xff] %v8256
          %8281 = vst [vmem:[%s333 + $0x70] sm:$0xff] %v8257
          %8282 = vst [vmem:[%s333 + $0x78] sm:$0xff] %v8258
          %8283 = vst [vmem:[%s333 + $0x80] sm:$0xff] %v8259
          %8284 = vst [vmem:[%s333 + $0x88] sm:$0xff] %v8260
          %8285 = vst [vmem:[%s333 + $0x90] sm:$0xff] %v8261
          %8286 = vst [vmem:[%s333 + $0x98] sm:$0xff] %v8262
          %8287 = vst [vmem:[%s333 + $0xa0] sm:$0xff] %v8263
          %8288 = vst [vmem:[%s333 + $0xa8] sm:$0xff] %v8264
          %8289 = vst [vmem:[%s333 + $0xb0] sm:$0xff] %v8265
          %8290 = vst [vmem:[%s333 + $0xb8] sm:$0xff] %v8266
        $region56: #{tpu_custom_call.1} parent=39 // pred_fallthru
          _
        %s8291 = sand.u32 %s185, 1
        %s8292 = scalar_lea.sflag [#allocation8], %s8291
        %s8293 = sand.u32 %s185, 1
        %s8294 = smul.addr %s8293, 192
        %s8295 = scalar_lea.vmem [#allocation9], %s8294
        // Predicated region
        $region57: #{tpu_custom_call.1} parent=39 // pred_check
          %p8296 = pneg %p195
        $region58: #{tpu_custom_call.1} parent=39 // pred_check_branch
          %8298 = sbr.rel (%p8296) target = $region60
        $region59: #{tpu_custom_call.1} parent=39 // pred_region
          %s8299 = smul.u32 24, %s33
          %s8301 = ssub.s32 3072, 3072
          %8302 = vsyncadd %s8292, %s8301
          %s8303 = smul.addr %s8299, 128
          %s8304 = scalar_lea.hbm %s6, %s8303
          %s8305 = sshll.u32 %s8295, 4
          %s8306 = int_to_ptr.vmem [resolvable:$true] %s8305
          %8311 = dma.vmem_to_hbm [thread:$0]  %s8306, 3072, %s8304, %s8292, 128, 128, 8
        $region60: #{tpu_custom_call.1} parent=39 // pred_fallthru
          _
      $region40: #{tpu_custom_call.1} parent=5 // pred_fallthru
        _
      %p8312 = scmp.le.s32.totalorder 2, %s24
      // Predicated region
      $region61: #{tpu_custom_call.1} parent=5 // pred_check
        %p8313 = pneg %p8312
      $region62: #{tpu_custom_call.1} parent=5 // pred_check_branch
        %8315 = sbr.rel (%p8313) target = $region64
      $region63: #{tpu_custom_call.1} parent=5 // pred_region
        %s8316 = ssub.s32 %s24, 2
        // Predicated region
        $region65: #{tpu_custom_call.1} parent=63 // pred_check
          %p8317 = pneg %p201
        $region66: #{tpu_custom_call.1} parent=63 // pred_check_branch
          %8319 = sbr.rel (%p8317) target = $region68
        $region67: #{tpu_custom_call.1} parent=63 // pred_region
          %s8320 = sand.u32 %s186, 1
          %s8321 = scalar_lea.sflag [#allocation8], %s8320
          %s8322 = sand.u32 %s186, 1
          %s8323 = smul.addr %s8322, 192
          %s8324 = scalar_lea.vmem [#allocation9], %s8323
          %8325 = dma.done %s8321, 3072
        $region68: #{tpu_custom_call.1} parent=63 // pred_fallthru
          _
      $region64: #{tpu_custom_call.1} parent=5 // pred_fallthru
        _
    $region6: #{tpu_custom_call.1} parent=1 // loop_footer
      %s28 = sadd.s32 1, %s24
    $region7: #{tpu_custom_call.1} parent=1 // loop_footer_branch
      %23 = sbr.rel target = $region3
    $region8: #{tpu_custom_call.1} parent=1 // loop_exit
      _
    %8326 = vsyncpa [#allocation7], 1
    %s8327 = scalar_lea.sflag [#allocation7], 1
    %8328 = vsyncpa %s8327, 1
    %8329 = vsyncpa [#allocation8], 1
    %s8330 = scalar_lea.sflag [#allocation8], 1
    %8331 = vsyncpa %s8330, 1

</llo_original>
